<compile_context>
chip_gen: v6e
topology: v6e:2x2x1
jax: 0.10.0
libtpu: 0.0.40
codegen_flags: <defaults>
</compile_context>

<pallas_src>
import functools

import numpy as np
import jax
import jax.numpy as jnp
from jax.experimental import pallas as pl
from jax.experimental.pallas import tpu as pltpu


# ----------------------------------------------------------------------------
# Constant 0/1 shift ("gather") matrices: padding + stride folded in.
# G[t][s, m] == 1  iff tap t of output position m reads input position s.
# Taps that land on zero-padding simply give an all-zero column.
# ----------------------------------------------------------------------------
def _gather_matrices(h, w, k, stride, pad):
    hout = (h + 2 * pad - k) // stride + 1
    wout = (w + 2 * pad - k) // stride + 1
    g = np.zeros((k * k, h * w, hout * wout), np.float32)
    for i in range(k):
        for j in range(k):
            t = i * k + j
            for ho in range(hout):
                hi = ho * stride + i - pad
                if not (0 <= hi < h):
                    continue
                for wo in range(wout):
                    wi = wo * stride + j - pad
                    if 0 <= wi < w:
                        g[t, hi * w + wi, ho * wout + wo] = 1.0
    return g, hout, wout


# ----------------------------------------------------------------------------
# Static layer plan (matches the PyTorch nn.Sequential exactly)
# ----------------------------------------------------------------------------
def _build_plan(params, n_res_block, stride):
    def entry(wkey, bkey, s, p, input_relu, output_relu, save_skip, add_skip):
        w = params[wkey]
        return dict(wkey=wkey, bkey=bkey, k=int(w.shape[2]), s=s, p=p,
                    cin=int(w.shape[1]), cout=int(w.shape[0]),
                    input_relu=input_relu, output_relu=output_relu,
                    save_skip=save_skip, add_skip=add_skip)

    plan = []
    if stride == 4:
        plan.append(entry("c1_w", "c1_b", 2, 1, False, True, False, False))
        plan.append(entry("c2_w", "c2_b", 2, 1, False, True, False, False))
        plan.append(entry("c3_w", "c3_b", 1, 1, False, False, False, False))
    elif stride == 2:
        plan.append(entry("c1_w", "c1_b", 2, 1, False, True, False, False))
        plan.append(entry("c2_w", "c2_b", 1, 1, False, False, False, False))
    else:
        raise ValueError("stride must be 2 or 4")
    for r in range(n_res_block):
        # ResBlock: ReLU -> 3x3 conv -> ReLU -> 1x1 conv, then += block input.
        plan.append(entry(f"res{r}_w1", f"res{r}_b1", 1, 1, True, True, True, False))
        plan.append(entry(f"res{r}_w2", f"res{r}_b2", 1, 0, False, False, False, True))
    return plan


# ----------------------------------------------------------------------------
# The single fused Pallas kernel: one grid step == one batch element.
# Refs: x_ref, then per conv layer [w_taps, bias, (gather)], then o_ref.
# ----------------------------------------------------------------------------
def _fused_encoder_kernel(x_ref, *refs, metas):
    o_ref = refs[-1]
    prefs = refs[:-1]

    A = x_ref[0]                        # (Cin_pad, H*W) f32, channels-first
    skip = None
    idx = 0
    for m in metas:
        wv = prefs[idx][...]            # (kk*Cout, Cin): rows t*Cout+o = W[o,:,i,j]
        b = prefs[idx + 1][...]         # (Cout, 1)
        idx += 2
        gt_ref = None
        if m["kk"] > 1:
            gt_ref = prefs[idx]         # (kk, S_in, M_out) 0/1 shift matrices
            idx += 1

        if m["save_skip"]:
            skip = A                    # ResBlock input, saved before its ReLU
        if m["input_relu"]:
            A = jnp.maximum(A, 0.0)

        cout, kk = m["cout"], m["kk"]
        if kk == 1:
            # 1x1 conv: a plain matmul, no spatial shifts needed.
            A = jnp.dot(wv, A, preferred_element_type=jnp.float32) + b
        else:
            # Weights first: one MXU dot applies every tap's (Cout,Cin) weight.
            R = jnp.dot(wv, A, preferred_element_type=jnp.float32)  # (kk*Cout, S_in)
            acc = None
            for t in range(kk):
                part = jnp.dot(R[t * cout:(t + 1) * cout, :], gt_ref[t],
                               preferred_element_type=jnp.float32)  # (Cout, M_out)
                acc = part if acc is None else acc + part
            A = acc + b

        if m["add_skip"]:
            A = A + skip
        if m["output_relu"]:
            A = jnp.maximum(A, 0.0)

    A = jnp.maximum(A, 0.0)             # encoder's trailing nn.ReLU
    # Final store is ~2 KB per image; lane-density of this single store is
    # noise now that no inter-layer activation ever hits HBM.
    o_ref[0, :, :] = A.astype(o_ref.dtype)


def _resident_spec(arr):
    # Full-array block with a batch-invariant index map: DMA'd once, stays
    # VMEM-resident across every step of the (parallel) batch grid.
    if arr.ndim == 2:
        return pl.BlockSpec(arr.shape, lambda bb: (0, 0))
    return pl.BlockSpec(arr.shape, lambda bb: (0, 0, 0))


# ----------------------------------------------------------------------------
# Wrapper: builds matmul-ready weights + gather constants, one pallas_call.
# ----------------------------------------------------------------------------
def image_encoder_forward(x_nchw, params, *, n_res_block, stride):
    N, Cin, H, W = x_nchw.shape
    plan = _build_plan(params, n_res_block, stride)

    # Pad the first conv's input-channel dim up to a multiple of 8 (sublane
    # tile) with zeros; exact because the matching weight columns are zero too.
    cin0 = plan[0]["cin"]
    cin_pad = -(-cin0 // 8) * 8

    metas = []
    op_args = []
    h, w = H, W
    for li, L in enumerate(plan):
        k, cout, cin = L["k"], L["cout"], L["cin"]
        kk = k * k
        # (Cout, Cin, kh, kw) -> (kh, kw, Cout, Cin) -> (kh*kw*Cout, Cin):
        # rows [t*Cout:(t+1)*Cout] hold W[:, :, i, j]^T with t = i*kw + j.
        wv = jnp.transpose(params[L["wkey"]], (2, 3, 0, 1)).reshape(kk * cout, cin)
        wv = wv.astype(jnp.float32)
        if li == 0 and cin_pad != cin:
            wv = jnp.pad(wv, ((0, 0), (0, cin_pad - cin)))
        b = params[L["bkey"]].reshape(cout, 1).astype(jnp.float32)
        op_args += [wv, b]
        if kk > 1:
            g, hout, wout = _gather_matrices(h, w, k, L["s"], L["p"])
            op_args.append(jnp.asarray(g))
        else:
            hout = (h + 2 * L["p"] - k) // L["s"] + 1
            wout = (w + 2 * L["p"] - k) // L["s"] + 1
        metas.append(dict(kk=kk, cout=cout, input_relu=L["input_relu"],
                          output_relu=L["output_relu"], save_skip=L["save_skip"],
                          add_skip=L["add_skip"]))
        h, w = hout, wout

    c_out = plan[-1]["cout"]
    m_out = h * w

    # NCHW -> (N, C, H*W): pure reshape, channels-first layout matches the kernel.
    x_flat = x_nchw.reshape(N, Cin, H * W).astype(jnp.float32)
    if cin_pad != Cin:
        x_flat = jnp.pad(x_flat, ((0, 0), (0, cin_pad - Cin), (0, 0)))

    in_specs = [pl.BlockSpec((1, cin_pad, H * W), lambda bb: (bb, 0, 0))]
    in_specs += [_resident_spec(a) for a in op_args]
    out_spec = pl.BlockSpec((1, c_out, m_out), lambda bb: (bb, 0, 0))

    kernel = functools.partial(_fused_encoder_kernel, metas=tuple(metas))

    out = pl.pallas_call(
        kernel,
        out_shape=jax.ShapeDtypeStruct((N, c_out, m_out), jnp.float32),
        grid=(N,),
        in_specs=in_specs,
        out_specs=out_spec,
        compiler_params=pltpu.CompilerParams(
            dimension_semantics=("parallel",)),   # batch over v7x's 2 TCs
    )(x_flat, *op_args)

    # (N, Cout, Hout*Wout) -> NCHW, again a pure reshape.
    return out.reshape(N, c_out, h, w)


# ----------------------------------------------------------------------------
# Deterministic synthetic parameters (PyTorch weight layout: OIHW)
# ----------------------------------------------------------------------------
def init_params(key, in_channel, channel, n_res_block, n_res_channel, stride):
    def conv_init(k, cout, cin, ksz):
        kw, kb = jax.random.split(k)
        w = jax.random.normal(kw, (cout, cin, ksz, ksz), jnp.float32) * 0.1
        b = jax.random.normal(kb, (cout,), jnp.float32) * 0.1
        return w, b

    n_convs = (3 if stride == 4 else 2) + 2 * n_res_block
    keys = jax.random.split(key, n_convs)
    params = {}
    i = 0
    if stride == 4:
        params["c1_w"], params["c1_b"] = conv_init(keys[i], channel // 2, in_channel, 4); i += 1
        params["c2_w"], params["c2_b"] = conv_init(keys[i], channel, channel // 2, 4); i += 1
        params["c3_w"], params["c3_b"] = conv_init(keys[i], channel, channel, 3); i += 1
    else:
        params["c1_w"], params["c1_b"] = conv_init(keys[i], channel // 2, in_channel, 4); i += 1
        params["c2_w"], params["c2_b"] = conv_init(keys[i], channel, channel // 2, 3); i += 1
    for r in range(n_res_block):
        params[f"res{r}_w1"], params[f"res{r}_b1"] = conv_init(keys[i], n_res_channel, channel, 3); i += 1
        params[f"res{r}_w2"], params[f"res{r}_b2"] = conv_init(keys[i], channel, n_res_channel, 1); i += 1
    return params


# ----------------------------------------------------------------------------
# Pure-JAX reference (lax.conv) for correctness checking
# ----------------------------------------------------------------------------
def _ref_conv(x, w, b, stride, pad):
    out = jax.lax.conv_general_dilated(
        x, w, (stride, stride), [(pad, pad), (pad, pad)],
        dimension_numbers=("NCHW", "OIHW", "NCHW"))
    return out + b[None, :, None, None]


def ref_forward(x, params, *, n_res_block, stride):
    relu = lambda t: jnp.maximum(t, 0.0)
    if stride == 4:
        x = relu(_ref_conv(x, params["c1_w"], params["c1_b"], 2, 1))
        x = relu(_ref_conv(x, params["c2_w"], params["c2_b"], 2, 1))
        x = _ref_conv(x, params["c3_w"], params["c3_b"], 1, 1)
    else:
        x = relu(_ref_conv(x, params["c1_w"], params["c1_b"], 2, 1))
        x = _ref_conv(x, params["c2_w"], params["c2_b"], 1, 1)
    for r in range(n_res_block):
        h = _ref_conv(relu(x), params[f"res{r}_w1"], params[f"res{r}_b1"], 1, 1)
        h = _ref_conv(relu(h), params[f"res{r}_w2"], params[f"res{r}_b2"], 1, 0)
        x = x + h
    return relu(x)


if __name__ == "__main__":
    # Module hyper-parameters (small, consistent with the PyTorch __init__).
    in_channel, channel = 4, 32
    n_res_block, n_res_channel, stride = 2, 8, 4

    x = jax.random.normal(jax.random.PRNGKey(0), (2, in_channel, 16, 16),
                          jnp.float32)
    params = init_params(jax.random.PRNGKey(42), in_channel, channel,
                         n_res_block, n_res_channel, stride)

    fwd = jax.jit(functools.partial(image_encoder_forward,
                                    n_res_block=n_res_block, stride=stride))
    out = jax.block_until_ready(fwd(x, params))

    ref = ref_forward(x, params, n_res_block=n_res_block, stride=stride)
    assert out.shape == (2, channel, 4, 4), out.shape
    np.testing.assert_allclose(np.asarray(out), np.asarray(ref),
                               rtol=1e-4, atol=1e-4)
    print("KERNEL_OK")
</pallas_src>

<mosaic_0001>
module attributes {stable_mosaic.version = 11 : i64} {
  func.func @_fused_encoder_kernel(%arg0: i32, %arg1: memref<1x8x256xf32, #tpu.memory_space<vmem>>, %arg2: memref<256x8xf32, #tpu.memory_space<vmem>>, %arg3: memref<16x1xf32, #tpu.memory_space<vmem>>, %arg4: memref<16x256x64xf32, #tpu.memory_space<vmem>>, %arg5: memref<512x16xf32, #tpu.memory_space<vmem>>, %arg6: memref<32x1xf32, #tpu.memory_space<vmem>>, %arg7: memref<16x64x16xf32, #tpu.memory_space<vmem>>, %arg8: memref<288x32xf32, #tpu.memory_space<vmem>>, %arg9: memref<32x1xf32, #tpu.memory_space<vmem>>, %arg10: memref<9x16x16xf32, #tpu.memory_space<vmem>>, %arg11: memref<72x32xf32, #tpu.memory_space<vmem>>, %arg12: memref<8x1xf32, #tpu.memory_space<vmem>>, %arg13: memref<9x16x16xf32, #tpu.memory_space<vmem>>, %arg14: memref<32x8xf32, #tpu.memory_space<vmem>>, %arg15: memref<32x1xf32, #tpu.memory_space<vmem>>, %arg16: memref<72x32xf32, #tpu.memory_space<vmem>>, %arg17: memref<8x1xf32, #tpu.memory_space<vmem>>, %arg18: memref<9x16x16xf32, #tpu.memory_space<vmem>>, %arg19: memref<32x8xf32, #tpu.memory_space<vmem>>, %arg20: memref<32x1xf32, #tpu.memory_space<vmem>>, %arg21: memref<1x32x16xf32, #tpu.memory_space<vmem>>) attributes {dimension_semantics = [#tpu.dimension_semantics<parallel>], iteration_bounds = array<i64: 2>, scalar_prefetch = 0 : i64, scratch_operands = 0 : i64, tpu.core_type = #tpu.core_type<tc>, window_params = [{transform_indices = @transform_0, window_bounds = array<i64: 1, 8, 256>}, {pipeline_mode = #tpu.pipeline_mode<synchronous>, transform_indices = @transform_1, window_bounds = array<i64: 256, 8>}, {pipeline_mode = #tpu.pipeline_mode<synchronous>, transform_indices = @transform_2, window_bounds = array<i64: 16, 1>}, {pipeline_mode = #tpu.pipeline_mode<synchronous>, transform_indices = @transform_3, window_bounds = array<i64: 16, 256, 64>}, {pipeline_mode = #tpu.pipeline_mode<synchronous>, transform_indices = @transform_4, window_bounds = array<i64: 512, 16>}, {pipeline_mode = #tpu.pipeline_mode<synchronous>, transform_indices = @transform_5, window_bounds = array<i64: 32, 1>}, {pipeline_mode = #tpu.pipeline_mode<synchronous>, transform_indices = @transform_6, window_bounds = array<i64: 16, 64, 16>}, {pipeline_mode = #tpu.pipeline_mode<synchronous>, transform_indices = @transform_7, window_bounds = array<i64: 288, 32>}, {pipeline_mode = #tpu.pipeline_mode<synchronous>, transform_indices = @transform_8, window_bounds = array<i64: 32, 1>}, {pipeline_mode = #tpu.pipeline_mode<synchronous>, transform_indices = @transform_9, window_bounds = array<i64: 9, 16, 16>}, {pipeline_mode = #tpu.pipeline_mode<synchronous>, transform_indices = @transform_10, window_bounds = array<i64: 72, 32>}, {pipeline_mode = #tpu.pipeline_mode<synchronous>, transform_indices = @transform_11, window_bounds = array<i64: 8, 1>}, {pipeline_mode = #tpu.pipeline_mode<synchronous>, transform_indices = @transform_12, window_bounds = array<i64: 9, 16, 16>}, {pipeline_mode = #tpu.pipeline_mode<synchronous>, transform_indices = @transform_13, window_bounds = array<i64: 32, 8>}, {pipeline_mode = #tpu.pipeline_mode<synchronous>, transform_indices = @transform_14, window_bounds = array<i64: 32, 1>}, {pipeline_mode = #tpu.pipeline_mode<synchronous>, transform_indices = @transform_15, window_bounds = array<i64: 72, 32>}, {pipeline_mode = #tpu.pipeline_mode<synchronous>, transform_indices = @transform_16, window_bounds = array<i64: 8, 1>}, {pipeline_mode = #tpu.pipeline_mode<synchronous>, transform_indices = @transform_17, window_bounds = array<i64: 9, 16, 16>}, {pipeline_mode = #tpu.pipeline_mode<synchronous>, transform_indices = @transform_18, window_bounds = array<i64: 32, 8>}, {pipeline_mode = #tpu.pipeline_mode<synchronous>, transform_indices = @transform_19, window_bounds = array<i64: 32, 1>}, {transform_indices = @transform_20, window_bounds = array<i64: 1, 32, 16>}]} {
    %c0 = arith.constant 0 : index
    %c0_0 = arith.constant 0 : index
    %c0_1 = arith.constant 0 : index
    %0 = vector.load %arg1[%c0, %c0_0, %c0_1] : memref<1x8x256xf32, #tpu.memory_space<vmem>>, vector<1x8x256xf32>
    %1 = vector.shape_cast %0 : vector<1x8x256xf32> to vector<8x256xf32>
    %c0_2 = arith.constant 0 : index
    %c0_3 = arith.constant 0 : index
    %2 = vector.load %arg2[%c0_2, %c0_3] : memref<256x8xf32, #tpu.memory_space<vmem>>, vector<256x8xf32>
    %c0_4 = arith.constant 0 : index
    %c0_5 = arith.constant 0 : index
    %3 = vector.load %arg3[%c0_4, %c0_5] : memref<16x1xf32, #tpu.memory_space<vmem>>, vector<16x1xf32>
    %cst = arith.constant dense<0.000000e+00> : vector<256x256xf32>
    %4 = tpu.matmul %2, %1, %cst {dimension_numbers = #tpu.dot_dimension_numbers<[1], [0], [0], [1], [0, 0, 1, 1], [], []>} : vector<256x8xf32>, vector<8x256xf32>, vector<256x256xf32> -> vector<256x256xf32>
    %5 = vector.extract_strided_slice %4 {offsets = [0, 0], sizes = [16, 256], strides = [1, 1]} : vector<256x256xf32> to vector<16x256xf32>
    %c0_6 = arith.constant 0 : index
    %c0_7 = arith.constant 0 : index
    %c0_8 = arith.constant 0 : index
    %6 = vector.load %arg4[%c0_6, %c0_7, %c0_8] : memref<16x256x64xf32, #tpu.memory_space<vmem>>, vector<1x256x64xf32>
    %7 = vector.shape_cast %6 : vector<1x256x64xf32> to vector<256x64xf32>
    %cst_9 = arith.constant dense<0.000000e+00> : vector<16x64xf32>
    %8 = tpu.matmul %5, %7, %cst_9 {dimension_numbers = #tpu.dot_dimension_numbers<[1], [0], [0], [1], [0, 0, 1, 1], [], []>} : vector<16x256xf32>, vector<256x64xf32>, vector<16x64xf32> -> vector<16x64xf32>
    %9 = vector.extract_strided_slice %4 {offsets = [16, 0], sizes = [16, 256], strides = [1, 1]} : vector<256x256xf32> to vector<16x256xf32>
    %c1 = arith.constant 1 : index
    %c0_10 = arith.constant 0 : index
    %c0_11 = arith.constant 0 : index
    %10 = vector.load %arg4[%c1, %c0_10, %c0_11] : memref<16x256x64xf32, #tpu.memory_space<vmem>>, vector<1x256x64xf32>
    %11 = vector.shape_cast %10 : vector<1x256x64xf32> to vector<256x64xf32>
    %cst_12 = arith.constant dense<0.000000e+00> : vector<16x64xf32>
    %12 = tpu.matmul %9, %11, %cst_12 {dimension_numbers = #tpu.dot_dimension_numbers<[1], [0], [0], [1], [0, 0, 1, 1], [], []>} : vector<16x256xf32>, vector<256x64xf32>, vector<16x64xf32> -> vector<16x64xf32>
    %13 = arith.addf %8, %12 : vector<16x64xf32>
    %14 = vector.extract_strided_slice %4 {offsets = [32, 0], sizes = [16, 256], strides = [1, 1]} : vector<256x256xf32> to vector<16x256xf32>
    %c2 = arith.constant 2 : index
    %c0_13 = arith.constant 0 : index
    %c0_14 = arith.constant 0 : index
    %15 = vector.load %arg4[%c2, %c0_13, %c0_14] : memref<16x256x64xf32, #tpu.memory_space<vmem>>, vector<1x256x64xf32>
    %16 = vector.shape_cast %15 : vector<1x256x64xf32> to vector<256x64xf32>
    %cst_15 = arith.constant dense<0.000000e+00> : vector<16x64xf32>
    %17 = tpu.matmul %14, %16, %cst_15 {dimension_numbers = #tpu.dot_dimension_numbers<[1], [0], [0], [1], [0, 0, 1, 1], [], []>} : vector<16x256xf32>, vector<256x64xf32>, vector<16x64xf32> -> vector<16x64xf32>
    %18 = arith.addf %13, %17 : vector<16x64xf32>
    %19 = vector.extract_strided_slice %4 {offsets = [48, 0], sizes = [16, 256], strides = [1, 1]} : vector<256x256xf32> to vector<16x256xf32>
    %c3 = arith.constant 3 : index
    %c0_16 = arith.constant 0 : index
    %c0_17 = arith.constant 0 : index
    %20 = vector.load %arg4[%c3, %c0_16, %c0_17] : memref<16x256x64xf32, #tpu.memory_space<vmem>>, vector<1x256x64xf32>
    %21 = vector.shape_cast %20 : vector<1x256x64xf32> to vector<256x64xf32>
    %cst_18 = arith.constant dense<0.000000e+00> : vector<16x64xf32>
    %22 = tpu.matmul %19, %21, %cst_18 {dimension_numbers = #tpu.dot_dimension_numbers<[1], [0], [0], [1], [0, 0, 1, 1], [], []>} : vector<16x256xf32>, vector<256x64xf32>, vector<16x64xf32> -> vector<16x64xf32>
    %23 = arith.addf %18, %22 : vector<16x64xf32>
    %24 = vector.extract_strided_slice %4 {offsets = [64, 0], sizes = [16, 256], strides = [1, 1]} : vector<256x256xf32> to vector<16x256xf32>
    %c4 = arith.constant 4 : index
    %c0_19 = arith.constant 0 : index
    %c0_20 = arith.constant 0 : index
    %25 = vector.load %arg4[%c4, %c0_19, %c0_20] : memref<16x256x64xf32, #tpu.memory_space<vmem>>, vector<1x256x64xf32>
    %26 = vector.shape_cast %25 : vector<1x256x64xf32> to vector<256x64xf32>
    %cst_21 = arith.constant dense<0.000000e+00> : vector<16x64xf32>
    %27 = tpu.matmul %24, %26, %cst_21 {dimension_numbers = #tpu.dot_dimension_numbers<[1], [0], [0], [1], [0, 0, 1, 1], [], []>} : vector<16x256xf32>, vector<256x64xf32>, vector<16x64xf32> -> vector<16x64xf32>
    %28 = arith.addf %23, %27 : vector<16x64xf32>
    %29 = vector.extract_strided_slice %4 {offsets = [80, 0], sizes = [16, 256], strides = [1, 1]} : vector<256x256xf32> to vector<16x256xf32>
    %c5 = arith.constant 5 : index
    %c0_22 = arith.constant 0 : index
    %c0_23 = arith.constant 0 : index
    %30 = vector.load %arg4[%c5, %c0_22, %c0_23] : memref<16x256x64xf32, #tpu.memory_space<vmem>>, vector<1x256x64xf32>
    %31 = vector.shape_cast %30 : vector<1x256x64xf32> to vector<256x64xf32>
    %cst_24 = arith.constant dense<0.000000e+00> : vector<16x64xf32>
    %32 = tpu.matmul %29, %31, %cst_24 {dimension_numbers = #tpu.dot_dimension_numbers<[1], [0], [0], [1], [0, 0, 1, 1], [], []>} : vector<16x256xf32>, vector<256x64xf32>, vector<16x64xf32> -> vector<16x64xf32>
    %33 = arith.addf %28, %32 : vector<16x64xf32>
    %34 = vector.extract_strided_slice %4 {offsets = [96, 0], sizes = [16, 256], strides = [1, 1]} : vector<256x256xf32> to vector<16x256xf32>
    %c6 = arith.constant 6 : index
    %c0_25 = arith.constant 0 : index
    %c0_26 = arith.constant 0 : index
    %35 = vector.load %arg4[%c6, %c0_25, %c0_26] : memref<16x256x64xf32, #tpu.memory_space<vmem>>, vector<1x256x64xf32>
    %36 = vector.shape_cast %35 : vector<1x256x64xf32> to vector<256x64xf32>
    %cst_27 = arith.constant dense<0.000000e+00> : vector<16x64xf32>
    %37 = tpu.matmul %34, %36, %cst_27 {dimension_numbers = #tpu.dot_dimension_numbers<[1], [0], [0], [1], [0, 0, 1, 1], [], []>} : vector<16x256xf32>, vector<256x64xf32>, vector<16x64xf32> -> vector<16x64xf32>
    %38 = arith.addf %33, %37 : vector<16x64xf32>
    %39 = vector.extract_strided_slice %4 {offsets = [112, 0], sizes = [16, 256], strides = [1, 1]} : vector<256x256xf32> to vector<16x256xf32>
    %c7 = arith.constant 7 : index
    %c0_28 = arith.constant 0 : index
    %c0_29 = arith.constant 0 : index
    %40 = vector.load %arg4[%c7, %c0_28, %c0_29] : memref<16x256x64xf32, #tpu.memory_space<vmem>>, vector<1x256x64xf32>
    %41 = vector.shape_cast %40 : vector<1x256x64xf32> to vector<256x64xf32>
    %cst_30 = arith.constant dense<0.000000e+00> : vector<16x64xf32>
    %42 = tpu.matmul %39, %41, %cst_30 {dimension_numbers = #tpu.dot_dimension_numbers<[1], [0], [0], [1], [0, 0, 1, 1], [], []>} : vector<16x256xf32>, vector<256x64xf32>, vector<16x64xf32> -> vector<16x64xf32>
    %43 = arith.addf %38, %42 : vector<16x64xf32>
    %44 = vector.extract_strided_slice %4 {offsets = [128, 0], sizes = [16, 256], strides = [1, 1]} : vector<256x256xf32> to vector<16x256xf32>
    %c8 = arith.constant 8 : index
    %c0_31 = arith.constant 0 : index
    %c0_32 = arith.constant 0 : index
    %45 = vector.load %arg4[%c8, %c0_31, %c0_32] : memref<16x256x64xf32, #tpu.memory_space<vmem>>, vector<1x256x64xf32>
    %46 = vector.shape_cast %45 : vector<1x256x64xf32> to vector<256x64xf32>
    %cst_33 = arith.constant dense<0.000000e+00> : vector<16x64xf32>
    %47 = tpu.matmul %44, %46, %cst_33 {dimension_numbers = #tpu.dot_dimension_numbers<[1], [0], [0], [1], [0, 0, 1, 1], [], []>} : vector<16x256xf32>, vector<256x64xf32>, vector<16x64xf32> -> vector<16x64xf32>
    %48 = arith.addf %43, %47 : vector<16x64xf32>
    %49 = vector.extract_strided_slice %4 {offsets = [144, 0], sizes = [16, 256], strides = [1, 1]} : vector<256x256xf32> to vector<16x256xf32>
    %c9 = arith.constant 9 : index
    %c0_34 = arith.constant 0 : index
    %c0_35 = arith.constant 0 : index
    %50 = vector.load %arg4[%c9, %c0_34, %c0_35] : memref<16x256x64xf32, #tpu.memory_space<vmem>>, vector<1x256x64xf32>
    %51 = vector.shape_cast %50 : vector<1x256x64xf32> to vector<256x64xf32>
    %cst_36 = arith.constant dense<0.000000e+00> : vector<16x64xf32>
    %52 = tpu.matmul %49, %51, %cst_36 {dimension_numbers = #tpu.dot_dimension_numbers<[1], [0], [0], [1], [0, 0, 1, 1], [], []>} : vector<16x256xf32>, vector<256x64xf32>, vector<16x64xf32> -> vector<16x64xf32>
    %53 = arith.addf %48, %52 : vector<16x64xf32>
    %54 = vector.extract_strided_slice %4 {offsets = [160, 0], sizes = [16, 256], strides = [1, 1]} : vector<256x256xf32> to vector<16x256xf32>
    %c10 = arith.constant 10 : index
    %c0_37 = arith.constant 0 : index
    %c0_38 = arith.constant 0 : index
    %55 = vector.load %arg4[%c10, %c0_37, %c0_38] : memref<16x256x64xf32, #tpu.memory_space<vmem>>, vector<1x256x64xf32>
    %56 = vector.shape_cast %55 : vector<1x256x64xf32> to vector<256x64xf32>
    %cst_39 = arith.constant dense<0.000000e+00> : vector<16x64xf32>
    %57 = tpu.matmul %54, %56, %cst_39 {dimension_numbers = #tpu.dot_dimension_numbers<[1], [0], [0], [1], [0, 0, 1, 1], [], []>} : vector<16x256xf32>, vector<256x64xf32>, vector<16x64xf32> -> vector<16x64xf32>
    %58 = arith.addf %53, %57 : vector<16x64xf32>
    %59 = vector.extract_strided_slice %4 {offsets = [176, 0], sizes = [16, 256], strides = [1, 1]} : vector<256x256xf32> to vector<16x256xf32>
    %c11 = arith.constant 11 : index
    %c0_40 = arith.constant 0 : index
    %c0_41 = arith.constant 0 : index
    %60 = vector.load %arg4[%c11, %c0_40, %c0_41] : memref<16x256x64xf32, #tpu.memory_space<vmem>>, vector<1x256x64xf32>
    %61 = vector.shape_cast %60 : vector<1x256x64xf32> to vector<256x64xf32>
    %cst_42 = arith.constant dense<0.000000e+00> : vector<16x64xf32>
    %62 = tpu.matmul %59, %61, %cst_42 {dimension_numbers = #tpu.dot_dimension_numbers<[1], [0], [0], [1], [0, 0, 1, 1], [], []>} : vector<16x256xf32>, vector<256x64xf32>, vector<16x64xf32> -> vector<16x64xf32>
    %63 = arith.addf %58, %62 : vector<16x64xf32>
    %64 = vector.extract_strided_slice %4 {offsets = [192, 0], sizes = [16, 256], strides = [1, 1]} : vector<256x256xf32> to vector<16x256xf32>
    %c12 = arith.constant 12 : index
    %c0_43 = arith.constant 0 : index
    %c0_44 = arith.constant 0 : index
    %65 = vector.load %arg4[%c12, %c0_43, %c0_44] : memref<16x256x64xf32, #tpu.memory_space<vmem>>, vector<1x256x64xf32>
    %66 = vector.shape_cast %65 : vector<1x256x64xf32> to vector<256x64xf32>
    %cst_45 = arith.constant dense<0.000000e+00> : vector<16x64xf32>
    %67 = tpu.matmul %64, %66, %cst_45 {dimension_numbers = #tpu.dot_dimension_numbers<[1], [0], [0], [1], [0, 0, 1, 1], [], []>} : vector<16x256xf32>, vector<256x64xf32>, vector<16x64xf32> -> vector<16x64xf32>
    %68 = arith.addf %63, %67 : vector<16x64xf32>
    %69 = vector.extract_strided_slice %4 {offsets = [208, 0], sizes = [16, 256], strides = [1, 1]} : vector<256x256xf32> to vector<16x256xf32>
    %c13 = arith.constant 13 : index
    %c0_46 = arith.constant 0 : index
    %c0_47 = arith.constant 0 : index
    %70 = vector.load %arg4[%c13, %c0_46, %c0_47] : memref<16x256x64xf32, #tpu.memory_space<vmem>>, vector<1x256x64xf32>
    %71 = vector.shape_cast %70 : vector<1x256x64xf32> to vector<256x64xf32>
    %cst_48 = arith.constant dense<0.000000e+00> : vector<16x64xf32>
    %72 = tpu.matmul %69, %71, %cst_48 {dimension_numbers = #tpu.dot_dimension_numbers<[1], [0], [0], [1], [0, 0, 1, 1], [], []>} : vector<16x256xf32>, vector<256x64xf32>, vector<16x64xf32> -> vector<16x64xf32>
    %73 = arith.addf %68, %72 : vector<16x64xf32>
    %74 = vector.extract_strided_slice %4 {offsets = [224, 0], sizes = [16, 256], strides = [1, 1]} : vector<256x256xf32> to vector<16x256xf32>
    %c14 = arith.constant 14 : index
    %c0_49 = arith.constant 0 : index
    %c0_50 = arith.constant 0 : index
    %75 = vector.load %arg4[%c14, %c0_49, %c0_50] : memref<16x256x64xf32, #tpu.memory_space<vmem>>, vector<1x256x64xf32>
    %76 = vector.shape_cast %75 : vector<1x256x64xf32> to vector<256x64xf32>
    %cst_51 = arith.constant dense<0.000000e+00> : vector<16x64xf32>
    %77 = tpu.matmul %74, %76, %cst_51 {dimension_numbers = #tpu.dot_dimension_numbers<[1], [0], [0], [1], [0, 0, 1, 1], [], []>} : vector<16x256xf32>, vector<256x64xf32>, vector<16x64xf32> -> vector<16x64xf32>
    %78 = arith.addf %73, %77 : vector<16x64xf32>
    %79 = vector.extract_strided_slice %4 {offsets = [240, 0], sizes = [16, 256], strides = [1, 1]} : vector<256x256xf32> to vector<16x256xf32>
    %c15 = arith.constant 15 : index
    %c0_52 = arith.constant 0 : index
    %c0_53 = arith.constant 0 : index
    %80 = vector.load %arg4[%c15, %c0_52, %c0_53] : memref<16x256x64xf32, #tpu.memory_space<vmem>>, vector<1x256x64xf32>
    %81 = vector.shape_cast %80 : vector<1x256x64xf32> to vector<256x64xf32>
    %cst_54 = arith.constant dense<0.000000e+00> : vector<16x64xf32>
    %82 = tpu.matmul %79, %81, %cst_54 {dimension_numbers = #tpu.dot_dimension_numbers<[1], [0], [0], [1], [0, 0, 1, 1], [], []>} : vector<16x256xf32>, vector<256x64xf32>, vector<16x64xf32> -> vector<16x64xf32>
    %83 = arith.addf %78, %82 : vector<16x64xf32>
    %84 = vector.broadcast %3 : vector<16x1xf32> to vector<16x64xf32>
    %85 = arith.addf %83, %84 : vector<16x64xf32>
    %cst_55 = arith.constant 0.000000e+00 : f32
    %86 = vector.broadcast %cst_55 : f32 to vector<16x64xf32>
    %87 = arith.maximumf %85, %86 : vector<16x64xf32>
    %c0_56 = arith.constant 0 : index
    %c0_57 = arith.constant 0 : index
    %88 = vector.load %arg5[%c0_56, %c0_57] : memref<512x16xf32, #tpu.memory_space<vmem>>, vector<512x16xf32>
    %c0_58 = arith.constant 0 : index
    %c0_59 = arith.constant 0 : index
    %89 = vector.load %arg6[%c0_58, %c0_59] : memref<32x1xf32, #tpu.memory_space<vmem>>, vector<32x1xf32>
    %cst_60 = arith.constant dense<0.000000e+00> : vector<512x64xf32>
    %90 = tpu.matmul %88, %87, %cst_60 {dimension_numbers = #tpu.dot_dimension_numbers<[1], [0], [0], [1], [0, 0, 1, 1], [], []>} : vector<512x16xf32>, vector<16x64xf32>, vector<512x64xf32> -> vector<512x64xf32>
    %91 = vector.extract_strided_slice %90 {offsets = [0, 0], sizes = [32, 64], strides = [1, 1]} : vector<512x64xf32> to vector<32x64xf32>
    %c0_61 = arith.constant 0 : index
    %c0_62 = arith.constant 0 : index
    %c0_63 = arith.constant 0 : index
    %92 = vector.load %arg7[%c0_61, %c0_62, %c0_63] : memref<16x64x16xf32, #tpu.memory_space<vmem>>, vector<1x64x16xf32>
    %93 = vector.shape_cast %92 : vector<1x64x16xf32> to vector<64x16xf32>
    %cst_64 = arith.constant dense<0.000000e+00> : vector<32x16xf32>
    %94 = tpu.matmul %91, %93, %cst_64 {dimension_numbers = #tpu.dot_dimension_numbers<[1], [0], [0], [1], [0, 0, 1, 1], [], []>} : vector<32x64xf32>, vector<64x16xf32>, vector<32x16xf32> -> vector<32x16xf32>
    %95 = vector.extract_strided_slice %90 {offsets = [32, 0], sizes = [32, 64], strides = [1, 1]} : vector<512x64xf32> to vector<32x64xf32>
    %c1_65 = arith.constant 1 : index
    %c0_66 = arith.constant 0 : index
    %c0_67 = arith.constant 0 : index
    %96 = vector.load %arg7[%c1_65, %c0_66, %c0_67] : memref<16x64x16xf32, #tpu.memory_space<vmem>>, vector<1x64x16xf32>
    %97 = vector.shape_cast %96 : vector<1x64x16xf32> to vector<64x16xf32>
    %cst_68 = arith.constant dense<0.000000e+00> : vector<32x16xf32>
    %98 = tpu.matmul %95, %97, %cst_68 {dimension_numbers = #tpu.dot_dimension_numbers<[1], [0], [0], [1], [0, 0, 1, 1], [], []>} : vector<32x64xf32>, vector<64x16xf32>, vector<32x16xf32> -> vector<32x16xf32>
    %99 = arith.addf %94, %98 : vector<32x16xf32>
    %100 = vector.extract_strided_slice %90 {offsets = [64, 0], sizes = [32, 64], strides = [1, 1]} : vector<512x64xf32> to vector<32x64xf32>
    %c2_69 = arith.constant 2 : index
    %c0_70 = arith.constant 0 : index
    %c0_71 = arith.constant 0 : index
    %101 = vector.load %arg7[%c2_69, %c0_70, %c0_71] : memref<16x64x16xf32, #tpu.memory_space<vmem>>, vector<1x64x16xf32>
    %102 = vector.shape_cast %101 : vector<1x64x16xf32> to vector<64x16xf32>
    %cst_72 = arith.constant dense<0.000000e+00> : vector<32x16xf32>
    %103 = tpu.matmul %100, %102, %cst_72 {dimension_numbers = #tpu.dot_dimension_numbers<[1], [0], [0], [1], [0, 0, 1, 1], [], []>} : vector<32x64xf32>, vector<64x16xf32>, vector<32x16xf32> -> vector<32x16xf32>
    %104 = arith.addf %99, %103 : vector<32x16xf32>
    %105 = vector.extract_strided_slice %90 {offsets = [96, 0], sizes = [32, 64], strides = [1, 1]} : vector<512x64xf32> to vector<32x64xf32>
    %c3_73 = arith.constant 3 : index
    %c0_74 = arith.constant 0 : index
    %c0_75 = arith.constant 0 : index
    %106 = vector.load %arg7[%c3_73, %c0_74, %c0_75] : memref<16x64x16xf32, #tpu.memory_space<vmem>>, vector<1x64x16xf32>
    %107 = vector.shape_cast %106 : vector<1x64x16xf32> to vector<64x16xf32>
    %cst_76 = arith.constant dense<0.000000e+00> : vector<32x16xf32>
    %108 = tpu.matmul %105, %107, %cst_76 {dimension_numbers = #tpu.dot_dimension_numbers<[1], [0], [0], [1], [0, 0, 1, 1], [], []>} : vector<32x64xf32>, vector<64x16xf32>, vector<32x16xf32> -> vector<32x16xf32>
    %109 = arith.addf %104, %108 : vector<32x16xf32>
    %110 = vector.extract_strided_slice %90 {offsets = [128, 0], sizes = [32, 64], strides = [1, 1]} : vector<512x64xf32> to vector<32x64xf32>
    %c4_77 = arith.constant 4 : index
    %c0_78 = arith.constant 0 : index
    %c0_79 = arith.constant 0 : index
    %111 = vector.load %arg7[%c4_77, %c0_78, %c0_79] : memref<16x64x16xf32, #tpu.memory_space<vmem>>, vector<1x64x16xf32>
    %112 = vector.shape_cast %111 : vector<1x64x16xf32> to vector<64x16xf32>
    %cst_80 = arith.constant dense<0.000000e+00> : vector<32x16xf32>
    %113 = tpu.matmul %110, %112, %cst_80 {dimension_numbers = #tpu.dot_dimension_numbers<[1], [0], [0], [1], [0, 0, 1, 1], [], []>} : vector<32x64xf32>, vector<64x16xf32>, vector<32x16xf32> -> vector<32x16xf32>
    %114 = arith.addf %109, %113 : vector<32x16xf32>
    %115 = vector.extract_strided_slice %90 {offsets = [160, 0], sizes = [32, 64], strides = [1, 1]} : vector<512x64xf32> to vector<32x64xf32>
    %c5_81 = arith.constant 5 : index
    %c0_82 = arith.constant 0 : index
    %c0_83 = arith.constant 0 : index
    %116 = vector.load %arg7[%c5_81, %c0_82, %c0_83] : memref<16x64x16xf32, #tpu.memory_space<vmem>>, vector<1x64x16xf32>
    %117 = vector.shape_cast %116 : vector<1x64x16xf32> to vector<64x16xf32>
    %cst_84 = arith.constant dense<0.000000e+00> : vector<32x16xf32>
    %118 = tpu.matmul %115, %117, %cst_84 {dimension_numbers = #tpu.dot_dimension_numbers<[1], [0], [0], [1], [0, 0, 1, 1], [], []>} : vector<32x64xf32>, vector<64x16xf32>, vector<32x16xf32> -> vector<32x16xf32>
    %119 = arith.addf %114, %118 : vector<32x16xf32>
    %120 = vector.extract_strided_slice %90 {offsets = [192, 0], sizes = [32, 64], strides = [1, 1]} : vector<512x64xf32> to vector<32x64xf32>
    %c6_85 = arith.constant 6 : index
    %c0_86 = arith.constant 0 : index
    %c0_87 = arith.constant 0 : index
    %121 = vector.load %arg7[%c6_85, %c0_86, %c0_87] : memref<16x64x16xf32, #tpu.memory_space<vmem>>, vector<1x64x16xf32>
    %122 = vector.shape_cast %121 : vector<1x64x16xf32> to vector<64x16xf32>
    %cst_88 = arith.constant dense<0.000000e+00> : vector<32x16xf32>
    %123 = tpu.matmul %120, %122, %cst_88 {dimension_numbers = #tpu.dot_dimension_numbers<[1], [0], [0], [1], [0, 0, 1, 1], [], []>} : vector<32x64xf32>, vector<64x16xf32>, vector<32x16xf32> -> vector<32x16xf32>
    %124 = arith.addf %119, %123 : vector<32x16xf32>
    %125 = vector.extract_strided_slice %90 {offsets = [224, 0], sizes = [32, 64], strides = [1, 1]} : vector<512x64xf32> to vector<32x64xf32>
    %c7_89 = arith.constant 7 : index
    %c0_90 = arith.constant 0 : index
    %c0_91 = arith.constant 0 : index
    %126 = vector.load %arg7[%c7_89, %c0_90, %c0_91] : memref<16x64x16xf32, #tpu.memory_space<vmem>>, vector<1x64x16xf32>
    %127 = vector.shape_cast %126 : vector<1x64x16xf32> to vector<64x16xf32>
    %cst_92 = arith.constant dense<0.000000e+00> : vector<32x16xf32>
    %128 = tpu.matmul %125, %127, %cst_92 {dimension_numbers = #tpu.dot_dimension_numbers<[1], [0], [0], [1], [0, 0, 1, 1], [], []>} : vector<32x64xf32>, vector<64x16xf32>, vector<32x16xf32> -> vector<32x16xf32>
    %129 = arith.addf %124, %128 : vector<32x16xf32>
    %130 = vector.extract_strided_slice %90 {offsets = [256, 0], sizes = [32, 64], strides = [1, 1]} : vector<512x64xf32> to vector<32x64xf32>
    %c8_93 = arith.constant 8 : index
    %c0_94 = arith.constant 0 : index
    %c0_95 = arith.constant 0 : index
    %131 = vector.load %arg7[%c8_93, %c0_94, %c0_95] : memref<16x64x16xf32, #tpu.memory_space<vmem>>, vector<1x64x16xf32>
    %132 = vector.shape_cast %131 : vector<1x64x16xf32> to vector<64x16xf32>
    %cst_96 = arith.constant dense<0.000000e+00> : vector<32x16xf32>
    %133 = tpu.matmul %130, %132, %cst_96 {dimension_numbers = #tpu.dot_dimension_numbers<[1], [0], [0], [1], [0, 0, 1, 1], [], []>} : vector<32x64xf32>, vector<64x16xf32>, vector<32x16xf32> -> vector<32x16xf32>
    %134 = arith.addf %129, %133 : vector<32x16xf32>
    %135 = vector.extract_strided_slice %90 {offsets = [288, 0], sizes = [32, 64], strides = [1, 1]} : vector<512x64xf32> to vector<32x64xf32>
    %c9_97 = arith.constant 9 : index
    %c0_98 = arith.constant 0 : index
    %c0_99 = arith.constant 0 : index
    %136 = vector.load %arg7[%c9_97, %c0_98, %c0_99] : memref<16x64x16xf32, #tpu.memory_space<vmem>>, vector<1x64x16xf32>
    %137 = vector.shape_cast %136 : vector<1x64x16xf32> to vector<64x16xf32>
    %cst_100 = arith.constant dense<0.000000e+00> : vector<32x16xf32>
    %138 = tpu.matmul %135, %137, %cst_100 {dimension_numbers = #tpu.dot_dimension_numbers<[1], [0], [0], [1], [0, 0, 1, 1], [], []>} : vector<32x64xf32>, vector<64x16xf32>, vector<32x16xf32> -> vector<32x16xf32>
    %139 = arith.addf %134, %138 : vector<32x16xf32>
    %140 = vector.extract_strided_slice %90 {offsets = [320, 0], sizes = [32, 64], strides = [1, 1]} : vector<512x64xf32> to vector<32x64xf32>
    %c10_101 = arith.constant 10 : index
    %c0_102 = arith.constant 0 : index
    %c0_103 = arith.constant 0 : index
    %141 = vector.load %arg7[%c10_101, %c0_102, %c0_103] : memref<16x64x16xf32, #tpu.memory_space<vmem>>, vector<1x64x16xf32>
    %142 = vector.shape_cast %141 : vector<1x64x16xf32> to vector<64x16xf32>
    %cst_104 = arith.constant dense<0.000000e+00> : vector<32x16xf32>
    %143 = tpu.matmul %140, %142, %cst_104 {dimension_numbers = #tpu.dot_dimension_numbers<[1], [0], [0], [1], [0, 0, 1, 1], [], []>} : vector<32x64xf32>, vector<64x16xf32>, vector<32x16xf32> -> vector<32x16xf32>
    %144 = arith.addf %139, %143 : vector<32x16xf32>
    %145 = vector.extract_strided_slice %90 {offsets = [352, 0], sizes = [32, 64], strides = [1, 1]} : vector<512x64xf32> to vector<32x64xf32>
    %c11_105 = arith.constant 11 : index
    %c0_106 = arith.constant 0 : index
    %c0_107 = arith.constant 0 : index
    %146 = vector.load %arg7[%c11_105, %c0_106, %c0_107] : memref<16x64x16xf32, #tpu.memory_space<vmem>>, vector<1x64x16xf32>
    %147 = vector.shape_cast %146 : vector<1x64x16xf32> to vector<64x16xf32>
    %cst_108 = arith.constant dense<0.000000e+00> : vector<32x16xf32>
    %148 = tpu.matmul %145, %147, %cst_108 {dimension_numbers = #tpu.dot_dimension_numbers<[1], [0], [0], [1], [0, 0, 1, 1], [], []>} : vector<32x64xf32>, vector<64x16xf32>, vector<32x16xf32> -> vector<32x16xf32>
    %149 = arith.addf %144, %148 : vector<32x16xf32>
    %150 = vector.extract_strided_slice %90 {offsets = [384, 0], sizes = [32, 64], strides = [1, 1]} : vector<512x64xf32> to vector<32x64xf32>
    %c12_109 = arith.constant 12 : index
    %c0_110 = arith.constant 0 : index
    %c0_111 = arith.constant 0 : index
    %151 = vector.load %arg7[%c12_109, %c0_110, %c0_111] : memref<16x64x16xf32, #tpu.memory_space<vmem>>, vector<1x64x16xf32>
    %152 = vector.shape_cast %151 : vector<1x64x16xf32> to vector<64x16xf32>
    %cst_112 = arith.constant dense<0.000000e+00> : vector<32x16xf32>
    %153 = tpu.matmul %150, %152, %cst_112 {dimension_numbers = #tpu.dot_dimension_numbers<[1], [0], [0], [1], [0, 0, 1, 1], [], []>} : vector<32x64xf32>, vector<64x16xf32>, vector<32x16xf32> -> vector<32x16xf32>
    %154 = arith.addf %149, %153 : vector<32x16xf32>
    %155 = vector.extract_strided_slice %90 {offsets = [416, 0], sizes = [32, 64], strides = [1, 1]} : vector<512x64xf32> to vector<32x64xf32>
    %c13_113 = arith.constant 13 : index
    %c0_114 = arith.constant 0 : index
    %c0_115 = arith.constant 0 : index
    %156 = vector.load %arg7[%c13_113, %c0_114, %c0_115] : memref<16x64x16xf32, #tpu.memory_space<vmem>>, vector<1x64x16xf32>
    %157 = vector.shape_cast %156 : vector<1x64x16xf32> to vector<64x16xf32>
    %cst_116 = arith.constant dense<0.000000e+00> : vector<32x16xf32>
    %158 = tpu.matmul %155, %157, %cst_116 {dimension_numbers = #tpu.dot_dimension_numbers<[1], [0], [0], [1], [0, 0, 1, 1], [], []>} : vector<32x64xf32>, vector<64x16xf32>, vector<32x16xf32> -> vector<32x16xf32>
    %159 = arith.addf %154, %158 : vector<32x16xf32>
    %160 = vector.extract_strided_slice %90 {offsets = [448, 0], sizes = [32, 64], strides = [1, 1]} : vector<512x64xf32> to vector<32x64xf32>
    %c14_117 = arith.constant 14 : index
    %c0_118 = arith.constant 0 : index
    %c0_119 = arith.constant 0 : index
    %161 = vector.load %arg7[%c14_117, %c0_118, %c0_119] : memref<16x64x16xf32, #tpu.memory_space<vmem>>, vector<1x64x16xf32>
    %162 = vector.shape_cast %161 : vector<1x64x16xf32> to vector<64x16xf32>
    %cst_120 = arith.constant dense<0.000000e+00> : vector<32x16xf32>
    %163 = tpu.matmul %160, %162, %cst_120 {dimension_numbers = #tpu.dot_dimension_numbers<[1], [0], [0], [1], [0, 0, 1, 1], [], []>} : vector<32x64xf32>, vector<64x16xf32>, vector<32x16xf32> -> vector<32x16xf32>
    %164 = arith.addf %159, %163 : vector<32x16xf32>
    %165 = vector.extract_strided_slice %90 {offsets = [480, 0], sizes = [32, 64], strides = [1, 1]} : vector<512x64xf32> to vector<32x64xf32>
    %c15_121 = arith.constant 15 : index
    %c0_122 = arith.constant 0 : index
    %c0_123 = arith.constant 0 : index
    %166 = vector.load %arg7[%c15_121, %c0_122, %c0_123] : memref<16x64x16xf32, #tpu.memory_space<vmem>>, vector<1x64x16xf32>
    %167 = vector.shape_cast %166 : vector<1x64x16xf32> to vector<64x16xf32>
    %cst_124 = arith.constant dense<0.000000e+00> : vector<32x16xf32>
    %168 = tpu.matmul %165, %167, %cst_124 {dimension_numbers = #tpu.dot_dimension_numbers<[1], [0], [0], [1], [0, 0, 1, 1], [], []>} : vector<32x64xf32>, vector<64x16xf32>, vector<32x16xf32> -> vector<32x16xf32>
    %169 = arith.addf %164, %168 : vector<32x16xf32>
    %170 = vector.broadcast %89 : vector<32x1xf32> to vector<32x16xf32>
    %171 = arith.addf %169, %170 : vector<32x16xf32>
    %cst_125 = arith.constant 0.000000e+00 : f32
    %172 = vector.broadcast %cst_125 : f32 to vector<32x16xf32>
    %173 = arith.maximumf %171, %172 : vector<32x16xf32>
    %c0_126 = arith.constant 0 : index
    %c0_127 = arith.constant 0 : index
    %174 = vector.load %arg8[%c0_126, %c0_127] : memref<288x32xf32, #tpu.memory_space<vmem>>, vector<288x32xf32>
    %c0_128 = arith.constant 0 : index
    %c0_129 = arith.constant 0 : index
    %175 = vector.load %arg9[%c0_128, %c0_129] : memref<32x1xf32, #tpu.memory_space<vmem>>, vector<32x1xf32>
    %cst_130 = arith.constant dense<0.000000e+00> : vector<288x16xf32>
    %176 = tpu.matmul %174, %173, %cst_130 {dimension_numbers = #tpu.dot_dimension_numbers<[1], [0], [0], [1], [0, 0, 1, 1], [], []>} : vector<288x32xf32>, vector<32x16xf32>, vector<288x16xf32> -> vector<288x16xf32>
    %177 = vector.extract_strided_slice %176 {offsets = [0, 0], sizes = [32, 16], strides = [1, 1]} : vector<288x16xf32> to vector<32x16xf32>
    %c0_131 = arith.constant 0 : index
    %c0_132 = arith.constant 0 : index
    %c0_133 = arith.constant 0 : index
    %178 = vector.load %arg10[%c0_131, %c0_132, %c0_133] : memref<9x16x16xf32, #tpu.memory_space<vmem>>, vector<1x16x16xf32>
    %179 = vector.shape_cast %178 : vector<1x16x16xf32> to vector<16x16xf32>
    %cst_134 = arith.constant dense<0.000000e+00> : vector<32x16xf32>
    %180 = tpu.matmul %177, %179, %cst_134 {dimension_numbers = #tpu.dot_dimension_numbers<[1], [0], [0], [1], [0, 0, 1, 1], [], []>} : vector<32x16xf32>, vector<16x16xf32>, vector<32x16xf32> -> vector<32x16xf32>
    %181 = vector.extract_strided_slice %176 {offsets = [32, 0], sizes = [32, 16], strides = [1, 1]} : vector<288x16xf32> to vector<32x16xf32>
    %c1_135 = arith.constant 1 : index
    %c0_136 = arith.constant 0 : index
    %c0_137 = arith.constant 0 : index
    %182 = vector.load %arg10[%c1_135, %c0_136, %c0_137] : memref<9x16x16xf32, #tpu.memory_space<vmem>>, vector<1x16x16xf32>
    %183 = vector.shape_cast %182 : vector<1x16x16xf32> to vector<16x16xf32>
    %cst_138 = arith.constant dense<0.000000e+00> : vector<32x16xf32>
    %184 = tpu.matmul %181, %183, %cst_138 {dimension_numbers = #tpu.dot_dimension_numbers<[1], [0], [0], [1], [0, 0, 1, 1], [], []>} : vector<32x16xf32>, vector<16x16xf32>, vector<32x16xf32> -> vector<32x16xf32>
    %185 = arith.addf %180, %184 : vector<32x16xf32>
    %186 = vector.extract_strided_slice %176 {offsets = [64, 0], sizes = [32, 16], strides = [1, 1]} : vector<288x16xf32> to vector<32x16xf32>
    %c2_139 = arith.constant 2 : index
    %c0_140 = arith.constant 0 : index
    %c0_141 = arith.constant 0 : index
    %187 = vector.load %arg10[%c2_139, %c0_140, %c0_141] : memref<9x16x16xf32, #tpu.memory_space<vmem>>, vector<1x16x16xf32>
    %188 = vector.shape_cast %187 : vector<1x16x16xf32> to vector<16x16xf32>
    %cst_142 = arith.constant dense<0.000000e+00> : vector<32x16xf32>
    %189 = tpu.matmul %186, %188, %cst_142 {dimension_numbers = #tpu.dot_dimension_numbers<[1], [0], [0], [1], [0, 0, 1, 1], [], []>} : vector<32x16xf32>, vector<16x16xf32>, vector<32x16xf32> -> vector<32x16xf32>
    %190 = arith.addf %185, %189 : vector<32x16xf32>
    %191 = vector.extract_strided_slice %176 {offsets = [96, 0], sizes = [32, 16], strides = [1, 1]} : vector<288x16xf32> to vector<32x16xf32>
    %c3_143 = arith.constant 3 : index
    %c0_144 = arith.constant 0 : index
    %c0_145 = arith.constant 0 : index
    %192 = vector.load %arg10[%c3_143, %c0_144, %c0_145] : memref<9x16x16xf32, #tpu.memory_space<vmem>>, vector<1x16x16xf32>
    %193 = vector.shape_cast %192 : vector<1x16x16xf32> to vector<16x16xf32>
    %cst_146 = arith.constant dense<0.000000e+00> : vector<32x16xf32>
    %194 = tpu.matmul %191, %193, %cst_146 {dimension_numbers = #tpu.dot_dimension_numbers<[1], [0], [0], [1], [0, 0, 1, 1], [], []>} : vector<32x16xf32>, vector<16x16xf32>, vector<32x16xf32> -> vector<32x16xf32>
    %195 = arith.addf %190, %194 : vector<32x16xf32>
    %196 = vector.extract_strided_slice %176 {offsets = [128, 0], sizes = [32, 16], strides = [1, 1]} : vector<288x16xf32> to vector<32x16xf32>
    %c4_147 = arith.constant 4 : index
    %c0_148 = arith.constant 0 : index
    %c0_149 = arith.constant 0 : index
    %197 = vector.load %arg10[%c4_147, %c0_148, %c0_149] : memref<9x16x16xf32, #tpu.memory_space<vmem>>, vector<1x16x16xf32>
    %198 = vector.shape_cast %197 : vector<1x16x16xf32> to vector<16x16xf32>
    %cst_150 = arith.constant dense<0.000000e+00> : vector<32x16xf32>
    %199 = tpu.matmul %196, %198, %cst_150 {dimension_numbers = #tpu.dot_dimension_numbers<[1], [0], [0], [1], [0, 0, 1, 1], [], []>} : vector<32x16xf32>, vector<16x16xf32>, vector<32x16xf32> -> vector<32x16xf32>
    %200 = arith.addf %195, %199 : vector<32x16xf32>
    %201 = vector.extract_strided_slice %176 {offsets = [160, 0], sizes = [32, 16], strides = [1, 1]} : vector<288x16xf32> to vector<32x16xf32>
    %c5_151 = arith.constant 5 : index
    %c0_152 = arith.constant 0 : index
    %c0_153 = arith.constant 0 : index
    %202 = vector.load %arg10[%c5_151, %c0_152, %c0_153] : memref<9x16x16xf32, #tpu.memory_space<vmem>>, vector<1x16x16xf32>
    %203 = vector.shape_cast %202 : vector<1x16x16xf32> to vector<16x16xf32>
    %cst_154 = arith.constant dense<0.000000e+00> : vector<32x16xf32>
    %204 = tpu.matmul %201, %203, %cst_154 {dimension_numbers = #tpu.dot_dimension_numbers<[1], [0], [0], [1], [0, 0, 1, 1], [], []>} : vector<32x16xf32>, vector<16x16xf32>, vector<32x16xf32> -> vector<32x16xf32>
    %205 = arith.addf %200, %204 : vector<32x16xf32>
    %206 = vector.extract_strided_slice %176 {offsets = [192, 0], sizes = [32, 16], strides = [1, 1]} : vector<288x16xf32> to vector<32x16xf32>
    %c6_155 = arith.constant 6 : index
    %c0_156 = arith.constant 0 : index
    %c0_157 = arith.constant 0 : index
    %207 = vector.load %arg10[%c6_155, %c0_156, %c0_157] : memref<9x16x16xf32, #tpu.memory_space<vmem>>, vector<1x16x16xf32>
    %208 = vector.shape_cast %207 : vector<1x16x16xf32> to vector<16x16xf32>
    %cst_158 = arith.constant dense<0.000000e+00> : vector<32x16xf32>
    %209 = tpu.matmul %206, %208, %cst_158 {dimension_numbers = #tpu.dot_dimension_numbers<[1], [0], [0], [1], [0, 0, 1, 1], [], []>} : vector<32x16xf32>, vector<16x16xf32>, vector<32x16xf32> -> vector<32x16xf32>
    %210 = arith.addf %205, %209 : vector<32x16xf32>
    %211 = vector.extract_strided_slice %176 {offsets = [224, 0], sizes = [32, 16], strides = [1, 1]} : vector<288x16xf32> to vector<32x16xf32>
    %c7_159 = arith.constant 7 : index
    %c0_160 = arith.constant 0 : index
    %c0_161 = arith.constant 0 : index
    %212 = vector.load %arg10[%c7_159, %c0_160, %c0_161] : memref<9x16x16xf32, #tpu.memory_space<vmem>>, vector<1x16x16xf32>
    %213 = vector.shape_cast %212 : vector<1x16x16xf32> to vector<16x16xf32>
    %cst_162 = arith.constant dense<0.000000e+00> : vector<32x16xf32>
    %214 = tpu.matmul %211, %213, %cst_162 {dimension_numbers = #tpu.dot_dimension_numbers<[1], [0], [0], [1], [0, 0, 1, 1], [], []>} : vector<32x16xf32>, vector<16x16xf32>, vector<32x16xf32> -> vector<32x16xf32>
    %215 = arith.addf %210, %214 : vector<32x16xf32>
    %216 = vector.extract_strided_slice %176 {offsets = [256, 0], sizes = [32, 16], strides = [1, 1]} : vector<288x16xf32> to vector<32x16xf32>
    %c8_163 = arith.constant 8 : index
    %c0_164 = arith.constant 0 : index
    %c0_165 = arith.constant 0 : index
    %217 = vector.load %arg10[%c8_163, %c0_164, %c0_165] : memref<9x16x16xf32, #tpu.memory_space<vmem>>, vector<1x16x16xf32>
    %218 = vector.shape_cast %217 : vector<1x16x16xf32> to vector<16x16xf32>
    %cst_166 = arith.constant dense<0.000000e+00> : vector<32x16xf32>
    %219 = tpu.matmul %216, %218, %cst_166 {dimension_numbers = #tpu.dot_dimension_numbers<[1], [0], [0], [1], [0, 0, 1, 1], [], []>} : vector<32x16xf32>, vector<16x16xf32>, vector<32x16xf32> -> vector<32x16xf32>
    %220 = arith.addf %215, %219 : vector<32x16xf32>
    %221 = vector.broadcast %175 : vector<32x1xf32> to vector<32x16xf32>
    %222 = arith.addf %220, %221 : vector<32x16xf32>
    %c0_167 = arith.constant 0 : index
    %c0_168 = arith.constant 0 : index
    %223 = vector.load %arg11[%c0_167, %c0_168] : memref<72x32xf32, #tpu.memory_space<vmem>>, vector<72x32xf32>
    %c0_169 = arith.constant 0 : index
    %c0_170 = arith.constant 0 : index
    %224 = vector.load %arg12[%c0_169, %c0_170] : memref<8x1xf32, #tpu.memory_space<vmem>>, vector<8x1xf32>
    %cst_171 = arith.constant 0.000000e+00 : f32
    %225 = vector.broadcast %cst_171 : f32 to vector<32x16xf32>
    %226 = arith.maximumf %222, %225 : vector<32x16xf32>
    %cst_172 = arith.constant dense<0.000000e+00> : vector<72x16xf32>
    %227 = tpu.matmul %223, %226, %cst_172 {dimension_numbers = #tpu.dot_dimension_numbers<[1], [0], [0], [1], [0, 0, 1, 1], [], []>} : vector<72x32xf32>, vector<32x16xf32>, vector<72x16xf32> -> vector<72x16xf32>
    %228 = vector.extract_strided_slice %227 {offsets = [0, 0], sizes = [8, 16], strides = [1, 1]} : vector<72x16xf32> to vector<8x16xf32>
    %c0_173 = arith.constant 0 : index
    %c0_174 = arith.constant 0 : index
    %c0_175 = arith.constant 0 : index
    %229 = vector.load %arg13[%c0_173, %c0_174, %c0_175] : memref<9x16x16xf32, #tpu.memory_space<vmem>>, vector<1x16x16xf32>
    %230 = vector.shape_cast %229 : vector<1x16x16xf32> to vector<16x16xf32>
    %cst_176 = arith.constant dense<0.000000e+00> : vector<8x16xf32>
    %231 = tpu.matmul %228, %230, %cst_176 {dimension_numbers = #tpu.dot_dimension_numbers<[1], [0], [0], [1], [0, 0, 1, 1], [], []>} : vector<8x16xf32>, vector<16x16xf32>, vector<8x16xf32> -> vector<8x16xf32>
    %232 = vector.extract_strided_slice %227 {offsets = [8, 0], sizes = [8, 16], strides = [1, 1]} : vector<72x16xf32> to vector<8x16xf32>
    %c1_177 = arith.constant 1 : index
    %c0_178 = arith.constant 0 : index
    %c0_179 = arith.constant 0 : index
    %233 = vector.load %arg13[%c1_177, %c0_178, %c0_179] : memref<9x16x16xf32, #tpu.memory_space<vmem>>, vector<1x16x16xf32>
    %234 = vector.shape_cast %233 : vector<1x16x16xf32> to vector<16x16xf32>
    %cst_180 = arith.constant dense<0.000000e+00> : vector<8x16xf32>
    %235 = tpu.matmul %232, %234, %cst_180 {dimension_numbers = #tpu.dot_dimension_numbers<[1], [0], [0], [1], [0, 0, 1, 1], [], []>} : vector<8x16xf32>, vector<16x16xf32>, vector<8x16xf32> -> vector<8x16xf32>
    %236 = arith.addf %231, %235 : vector<8x16xf32>
    %237 = vector.extract_strided_slice %227 {offsets = [16, 0], sizes = [8, 16], strides = [1, 1]} : vector<72x16xf32> to vector<8x16xf32>
    %c2_181 = arith.constant 2 : index
    %c0_182 = arith.constant 0 : index
    %c0_183 = arith.constant 0 : index
    %238 = vector.load %arg13[%c2_181, %c0_182, %c0_183] : memref<9x16x16xf32, #tpu.memory_space<vmem>>, vector<1x16x16xf32>
    %239 = vector.shape_cast %238 : vector<1x16x16xf32> to vector<16x16xf32>
    %cst_184 = arith.constant dense<0.000000e+00> : vector<8x16xf32>
    %240 = tpu.matmul %237, %239, %cst_184 {dimension_numbers = #tpu.dot_dimension_numbers<[1], [0], [0], [1], [0, 0, 1, 1], [], []>} : vector<8x16xf32>, vector<16x16xf32>, vector<8x16xf32> -> vector<8x16xf32>
    %241 = arith.addf %236, %240 : vector<8x16xf32>
    %242 = vector.extract_strided_slice %227 {offsets = [24, 0], sizes = [8, 16], strides = [1, 1]} : vector<72x16xf32> to vector<8x16xf32>
    %c3_185 = arith.constant 3 : index
    %c0_186 = arith.constant 0 : index
    %c0_187 = arith.constant 0 : index
    %243 = vector.load %arg13[%c3_185, %c0_186, %c0_187] : memref<9x16x16xf32, #tpu.memory_space<vmem>>, vector<1x16x16xf32>
    %244 = vector.shape_cast %243 : vector<1x16x16xf32> to vector<16x16xf32>
    %cst_188 = arith.constant dense<0.000000e+00> : vector<8x16xf32>
    %245 = tpu.matmul %242, %244, %cst_188 {dimension_numbers = #tpu.dot_dimension_numbers<[1], [0], [0], [1], [0, 0, 1, 1], [], []>} : vector<8x16xf32>, vector<16x16xf32>, vector<8x16xf32> -> vector<8x16xf32>
    %246 = arith.addf %241, %245 : vector<8x16xf32>
    %247 = vector.extract_strided_slice %227 {offsets = [32, 0], sizes = [8, 16], strides = [1, 1]} : vector<72x16xf32> to vector<8x16xf32>
    %c4_189 = arith.constant 4 : index
    %c0_190 = arith.constant 0 : index
    %c0_191 = arith.constant 0 : index
    %248 = vector.load %arg13[%c4_189, %c0_190, %c0_191] : memref<9x16x16xf32, #tpu.memory_space<vmem>>, vector<1x16x16xf32>
    %249 = vector.shape_cast %248 : vector<1x16x16xf32> to vector<16x16xf32>
    %cst_192 = arith.constant dense<0.000000e+00> : vector<8x16xf32>
    %250 = tpu.matmul %247, %249, %cst_192 {dimension_numbers = #tpu.dot_dimension_numbers<[1], [0], [0], [1], [0, 0, 1, 1], [], []>} : vector<8x16xf32>, vector<16x16xf32>, vector<8x16xf32> -> vector<8x16xf32>
    %251 = arith.addf %246, %250 : vector<8x16xf32>
    %252 = vector.extract_strided_slice %227 {offsets = [40, 0], sizes = [8, 16], strides = [1, 1]} : vector<72x16xf32> to vector<8x16xf32>
    %c5_193 = arith.constant 5 : index
    %c0_194 = arith.constant 0 : index
    %c0_195 = arith.constant 0 : index
    %253 = vector.load %arg13[%c5_193, %c0_194, %c0_195] : memref<9x16x16xf32, #tpu.memory_space<vmem>>, vector<1x16x16xf32>
    %254 = vector.shape_cast %253 : vector<1x16x16xf32> to vector<16x16xf32>
    %cst_196 = arith.constant dense<0.000000e+00> : vector<8x16xf32>
    %255 = tpu.matmul %252, %254, %cst_196 {dimension_numbers = #tpu.dot_dimension_numbers<[1], [0], [0], [1], [0, 0, 1, 1], [], []>} : vector<8x16xf32>, vector<16x16xf32>, vector<8x16xf32> -> vector<8x16xf32>
    %256 = arith.addf %251, %255 : vector<8x16xf32>
    %257 = vector.extract_strided_slice %227 {offsets = [48, 0], sizes = [8, 16], strides = [1, 1]} : vector<72x16xf32> to vector<8x16xf32>
    %c6_197 = arith.constant 6 : index
    %c0_198 = arith.constant 0 : index
    %c0_199 = arith.constant 0 : index
    %258 = vector.load %arg13[%c6_197, %c0_198, %c0_199] : memref<9x16x16xf32, #tpu.memory_space<vmem>>, vector<1x16x16xf32>
    %259 = vector.shape_cast %258 : vector<1x16x16xf32> to vector<16x16xf32>
    %cst_200 = arith.constant dense<0.000000e+00> : vector<8x16xf32>
    %260 = tpu.matmul %257, %259, %cst_200 {dimension_numbers = #tpu.dot_dimension_numbers<[1], [0], [0], [1], [0, 0, 1, 1], [], []>} : vector<8x16xf32>, vector<16x16xf32>, vector<8x16xf32> -> vector<8x16xf32>
    %261 = arith.addf %256, %260 : vector<8x16xf32>
    %262 = vector.extract_strided_slice %227 {offsets = [56, 0], sizes = [8, 16], strides = [1, 1]} : vector<72x16xf32> to vector<8x16xf32>
    %c7_201 = arith.constant 7 : index
    %c0_202 = arith.constant 0 : index
    %c0_203 = arith.constant 0 : index
    %263 = vector.load %arg13[%c7_201, %c0_202, %c0_203] : memref<9x16x16xf32, #tpu.memory_space<vmem>>, vector<1x16x16xf32>
    %264 = vector.shape_cast %263 : vector<1x16x16xf32> to vector<16x16xf32>
    %cst_204 = arith.constant dense<0.000000e+00> : vector<8x16xf32>
    %265 = tpu.matmul %262, %264, %cst_204 {dimension_numbers = #tpu.dot_dimension_numbers<[1], [0], [0], [1], [0, 0, 1, 1], [], []>} : vector<8x16xf32>, vector<16x16xf32>, vector<8x16xf32> -> vector<8x16xf32>
    %266 = arith.addf %261, %265 : vector<8x16xf32>
    %267 = vector.extract_strided_slice %227 {offsets = [64, 0], sizes = [8, 16], strides = [1, 1]} : vector<72x16xf32> to vector<8x16xf32>
    %c8_205 = arith.constant 8 : index
    %c0_206 = arith.constant 0 : index
    %c0_207 = arith.constant 0 : index
    %268 = vector.load %arg13[%c8_205, %c0_206, %c0_207] : memref<9x16x16xf32, #tpu.memory_space<vmem>>, vector<1x16x16xf32>
    %269 = vector.shape_cast %268 : vector<1x16x16xf32> to vector<16x16xf32>
    %cst_208 = arith.constant dense<0.000000e+00> : vector<8x16xf32>
    %270 = tpu.matmul %267, %269, %cst_208 {dimension_numbers = #tpu.dot_dimension_numbers<[1], [0], [0], [1], [0, 0, 1, 1], [], []>} : vector<8x16xf32>, vector<16x16xf32>, vector<8x16xf32> -> vector<8x16xf32>
    %271 = arith.addf %266, %270 : vector<8x16xf32>
    %272 = vector.broadcast %224 : vector<8x1xf32> to vector<8x16xf32>
    %273 = arith.addf %271, %272 : vector<8x16xf32>
    %cst_209 = arith.constant 0.000000e+00 : f32
    %274 = vector.broadcast %cst_209 : f32 to vector<8x16xf32>
    %275 = arith.maximumf %273, %274 : vector<8x16xf32>
    %c0_210 = arith.constant 0 : index
    %c0_211 = arith.constant 0 : index
    %276 = vector.load %arg14[%c0_210, %c0_211] : memref<32x8xf32, #tpu.memory_space<vmem>>, vector<32x8xf32>
    %c0_212 = arith.constant 0 : index
    %c0_213 = arith.constant 0 : index
    %277 = vector.load %arg15[%c0_212, %c0_213] : memref<32x1xf32, #tpu.memory_space<vmem>>, vector<32x1xf32>
    %cst_214 = arith.constant dense<0.000000e+00> : vector<32x16xf32>
    %278 = tpu.matmul %276, %275, %cst_214 {dimension_numbers = #tpu.dot_dimension_numbers<[1], [0], [0], [1], [0, 0, 1, 1], [], []>} : vector<32x8xf32>, vector<8x16xf32>, vector<32x16xf32> -> vector<32x16xf32>
    %279 = vector.broadcast %277 : vector<32x1xf32> to vector<32x16xf32>
    %280 = arith.addf %278, %279 : vector<32x16xf32>
    %281 = arith.addf %280, %222 : vector<32x16xf32>
    %c0_215 = arith.constant 0 : index
    %c0_216 = arith.constant 0 : index
    %282 = vector.load %arg16[%c0_215, %c0_216] : memref<72x32xf32, #tpu.memory_space<vmem>>, vector<72x32xf32>
    %c0_217 = arith.constant 0 : index
    %c0_218 = arith.constant 0 : index
    %283 = vector.load %arg17[%c0_217, %c0_218] : memref<8x1xf32, #tpu.memory_space<vmem>>, vector<8x1xf32>
    %cst_219 = arith.constant 0.000000e+00 : f32
    %284 = vector.broadcast %cst_219 : f32 to vector<32x16xf32>
    %285 = arith.maximumf %281, %284 : vector<32x16xf32>
    %cst_220 = arith.constant dense<0.000000e+00> : vector<72x16xf32>
    %286 = tpu.matmul %282, %285, %cst_220 {dimension_numbers = #tpu.dot_dimension_numbers<[1], [0], [0], [1], [0, 0, 1, 1], [], []>} : vector<72x32xf32>, vector<32x16xf32>, vector<72x16xf32> -> vector<72x16xf32>
    %287 = vector.extract_strided_slice %286 {offsets = [0, 0], sizes = [8, 16], strides = [1, 1]} : vector<72x16xf32> to vector<8x16xf32>
    %c0_221 = arith.constant 0 : index
    %c0_222 = arith.constant 0 : index
    %c0_223 = arith.constant 0 : index
    %288 = vector.load %arg18[%c0_221, %c0_222, %c0_223] : memref<9x16x16xf32, #tpu.memory_space<vmem>>, vector<1x16x16xf32>
    %289 = vector.shape_cast %288 : vector<1x16x16xf32> to vector<16x16xf32>
    %cst_224 = arith.constant dense<0.000000e+00> : vector<8x16xf32>
    %290 = tpu.matmul %287, %289, %cst_224 {dimension_numbers = #tpu.dot_dimension_numbers<[1], [0], [0], [1], [0, 0, 1, 1], [], []>} : vector<8x16xf32>, vector<16x16xf32>, vector<8x16xf32> -> vector<8x16xf32>
    %291 = vector.extract_strided_slice %286 {offsets = [8, 0], sizes = [8, 16], strides = [1, 1]} : vector<72x16xf32> to vector<8x16xf32>
    %c1_225 = arith.constant 1 : index
    %c0_226 = arith.constant 0 : index
    %c0_227 = arith.constant 0 : index
    %292 = vector.load %arg18[%c1_225, %c0_226, %c0_227] : memref<9x16x16xf32, #tpu.memory_space<vmem>>, vector<1x16x16xf32>
    %293 = vector.shape_cast %292 : vector<1x16x16xf32> to vector<16x16xf32>
    %cst_228 = arith.constant dense<0.000000e+00> : vector<8x16xf32>
    %294 = tpu.matmul %291, %293, %cst_228 {dimension_numbers = #tpu.dot_dimension_numbers<[1], [0], [0], [1], [0, 0, 1, 1], [], []>} : vector<8x16xf32>, vector<16x16xf32>, vector<8x16xf32> -> vector<8x16xf32>
    %295 = arith.addf %290, %294 : vector<8x16xf32>
    %296 = vector.extract_strided_slice %286 {offsets = [16, 0], sizes = [8, 16], strides = [1, 1]} : vector<72x16xf32> to vector<8x16xf32>
    %c2_229 = arith.constant 2 : index
    %c0_230 = arith.constant 0 : index
    %c0_231 = arith.constant 0 : index
    %297 = vector.load %arg18[%c2_229, %c0_230, %c0_231] : memref<9x16x16xf32, #tpu.memory_space<vmem>>, vector<1x16x16xf32>
    %298 = vector.shape_cast %297 : vector<1x16x16xf32> to vector<16x16xf32>
    %cst_232 = arith.constant dense<0.000000e+00> : vector<8x16xf32>
    %299 = tpu.matmul %296, %298, %cst_232 {dimension_numbers = #tpu.dot_dimension_numbers<[1], [0], [0], [1], [0, 0, 1, 1], [], []>} : vector<8x16xf32>, vector<16x16xf32>, vector<8x16xf32> -> vector<8x16xf32>
    %300 = arith.addf %295, %299 : vector<8x16xf32>
    %301 = vector.extract_strided_slice %286 {offsets = [24, 0], sizes = [8, 16], strides = [1, 1]} : vector<72x16xf32> to vector<8x16xf32>
    %c3_233 = arith.constant 3 : index
    %c0_234 = arith.constant 0 : index
    %c0_235 = arith.constant 0 : index
    %302 = vector.load %arg18[%c3_233, %c0_234, %c0_235] : memref<9x16x16xf32, #tpu.memory_space<vmem>>, vector<1x16x16xf32>
    %303 = vector.shape_cast %302 : vector<1x16x16xf32> to vector<16x16xf32>
    %cst_236 = arith.constant dense<0.000000e+00> : vector<8x16xf32>
    %304 = tpu.matmul %301, %303, %cst_236 {dimension_numbers = #tpu.dot_dimension_numbers<[1], [0], [0], [1], [0, 0, 1, 1], [], []>} : vector<8x16xf32>, vector<16x16xf32>, vector<8x16xf32> -> vector<8x16xf32>
    %305 = arith.addf %300, %304 : vector<8x16xf32>
    %306 = vector.extract_strided_slice %286 {offsets = [32, 0], sizes = [8, 16], strides = [1, 1]} : vector<72x16xf32> to vector<8x16xf32>
    %c4_237 = arith.constant 4 : index
    %c0_238 = arith.constant 0 : index
    %c0_239 = arith.constant 0 : index
    %307 = vector.load %arg18[%c4_237, %c0_238, %c0_239] : memref<9x16x16xf32, #tpu.memory_space<vmem>>, vector<1x16x16xf32>
    %308 = vector.shape_cast %307 : vector<1x16x16xf32> to vector<16x16xf32>
    %cst_240 = arith.constant dense<0.000000e+00> : vector<8x16xf32>
    %309 = tpu.matmul %306, %308, %cst_240 {dimension_numbers = #tpu.dot_dimension_numbers<[1], [0], [0], [1], [0, 0, 1, 1], [], []>} : vector<8x16xf32>, vector<16x16xf32>, vector<8x16xf32> -> vector<8x16xf32>
    %310 = arith.addf %305, %309 : vector<8x16xf32>
    %311 = vector.extract_strided_slice %286 {offsets = [40, 0], sizes = [8, 16], strides = [1, 1]} : vector<72x16xf32> to vector<8x16xf32>
    %c5_241 = arith.constant 5 : index
    %c0_242 = arith.constant 0 : index
    %c0_243 = arith.constant 0 : index
    %312 = vector.load %arg18[%c5_241, %c0_242, %c0_243] : memref<9x16x16xf32, #tpu.memory_space<vmem>>, vector<1x16x16xf32>
    %313 = vector.shape_cast %312 : vector<1x16x16xf32> to vector<16x16xf32>
    %cst_244 = arith.constant dense<0.000000e+00> : vector<8x16xf32>
    %314 = tpu.matmul %311, %313, %cst_244 {dimension_numbers = #tpu.dot_dimension_numbers<[1], [0], [0], [1], [0, 0, 1, 1], [], []>} : vector<8x16xf32>, vector<16x16xf32>, vector<8x16xf32> -> vector<8x16xf32>
    %315 = arith.addf %310, %314 : vector<8x16xf32>
    %316 = vector.extract_strided_slice %286 {offsets = [48, 0], sizes = [8, 16], strides = [1, 1]} : vector<72x16xf32> to vector<8x16xf32>
    %c6_245 = arith.constant 6 : index
    %c0_246 = arith.constant 0 : index
    %c0_247 = arith.constant 0 : index
    %317 = vector.load %arg18[%c6_245, %c0_246, %c0_247] : memref<9x16x16xf32, #tpu.memory_space<vmem>>, vector<1x16x16xf32>
    %318 = vector.shape_cast %317 : vector<1x16x16xf32> to vector<16x16xf32>
    %cst_248 = arith.constant dense<0.000000e+00> : vector<8x16xf32>
    %319 = tpu.matmul %316, %318, %cst_248 {dimension_numbers = #tpu.dot_dimension_numbers<[1], [0], [0], [1], [0, 0, 1, 1], [], []>} : vector<8x16xf32>, vector<16x16xf32>, vector<8x16xf32> -> vector<8x16xf32>
    %320 = arith.addf %315, %319 : vector<8x16xf32>
    %321 = vector.extract_strided_slice %286 {offsets = [56, 0], sizes = [8, 16], strides = [1, 1]} : vector<72x16xf32> to vector<8x16xf32>
    %c7_249 = arith.constant 7 : index
    %c0_250 = arith.constant 0 : index
    %c0_251 = arith.constant 0 : index
    %322 = vector.load %arg18[%c7_249, %c0_250, %c0_251] : memref<9x16x16xf32, #tpu.memory_space<vmem>>, vector<1x16x16xf32>
    %323 = vector.shape_cast %322 : vector<1x16x16xf32> to vector<16x16xf32>
    %cst_252 = arith.constant dense<0.000000e+00> : vector<8x16xf32>
    %324 = tpu.matmul %321, %323, %cst_252 {dimension_numbers = #tpu.dot_dimension_numbers<[1], [0], [0], [1], [0, 0, 1, 1], [], []>} : vector<8x16xf32>, vector<16x16xf32>, vector<8x16xf32> -> vector<8x16xf32>
    %325 = arith.addf %320, %324 : vector<8x16xf32>
    %326 = vector.extract_strided_slice %286 {offsets = [64, 0], sizes = [8, 16], strides = [1, 1]} : vector<72x16xf32> to vector<8x16xf32>
    %c8_253 = arith.constant 8 : index
    %c0_254 = arith.constant 0 : index
    %c0_255 = arith.constant 0 : index
    %327 = vector.load %arg18[%c8_253, %c0_254, %c0_255] : memref<9x16x16xf32, #tpu.memory_space<vmem>>, vector<1x16x16xf32>
    %328 = vector.shape_cast %327 : vector<1x16x16xf32> to vector<16x16xf32>
    %cst_256 = arith.constant dense<0.000000e+00> : vector<8x16xf32>
    %329 = tpu.matmul %326, %328, %cst_256 {dimension_numbers = #tpu.dot_dimension_numbers<[1], [0], [0], [1], [0, 0, 1, 1], [], []>} : vector<8x16xf32>, vector<16x16xf32>, vector<8x16xf32> -> vector<8x16xf32>
    %330 = arith.addf %325, %329 : vector<8x16xf32>
    %331 = vector.broadcast %283 : vector<8x1xf32> to vector<8x16xf32>
    %332 = arith.addf %330, %331 : vector<8x16xf32>
    %cst_257 = arith.constant 0.000000e+00 : f32
    %333 = vector.broadcast %cst_257 : f32 to vector<8x16xf32>
    %334 = arith.maximumf %332, %333 : vector<8x16xf32>
    %c0_258 = arith.constant 0 : index
    %c0_259 = arith.constant 0 : index
    %335 = vector.load %arg19[%c0_258, %c0_259] : memref<32x8xf32, #tpu.memory_space<vmem>>, vector<32x8xf32>
    %c0_260 = arith.constant 0 : index
    %c0_261 = arith.constant 0 : index
    %336 = vector.load %arg20[%c0_260, %c0_261] : memref<32x1xf32, #tpu.memory_space<vmem>>, vector<32x1xf32>
    %cst_262 = arith.constant dense<0.000000e+00> : vector<32x16xf32>
    %337 = tpu.matmul %335, %334, %cst_262 {dimension_numbers = #tpu.dot_dimension_numbers<[1], [0], [0], [1], [0, 0, 1, 1], [], []>} : vector<32x8xf32>, vector<8x16xf32>, vector<32x16xf32> -> vector<32x16xf32>
    %338 = vector.broadcast %336 : vector<32x1xf32> to vector<32x16xf32>
    %339 = arith.addf %337, %338 : vector<32x16xf32>
    %340 = arith.addf %339, %281 : vector<32x16xf32>
    %cst_263 = arith.constant 0.000000e+00 : f32
    %341 = vector.broadcast %cst_263 : f32 to vector<32x16xf32>
    %342 = arith.maximumf %340, %341 : vector<32x16xf32>
    %c0_264 = arith.constant 0 : index
    %c0_265 = arith.constant 0 : index
    %c0_266 = arith.constant 0 : index
    %343 = vector.load %arg21[%c0_264, %c0_265, %c0_266] : memref<1x32x16xf32, #tpu.memory_space<vmem>>, vector<1x32x16xf32>
    %344 = vector.shape_cast %343 : vector<1x32x16xf32> to vector<32x16xf32>
    %345 = vector.shape_cast %342 : vector<32x16xf32> to vector<1x32x16xf32>
    tpu.vector_store %arg21[%c0_264, %c0_265, %c0_266], %345 {strides = array<i32>} : memref<1x32x16xf32, #tpu.memory_space<vmem>>, vector<1x32x16xf32>,
    return
  }
  func.func @transform_0(%arg0: i32) -> (i32, i32, i32) {
    %c0_i32 = arith.constant 0 : i32
    %c0_i32_0 = arith.constant 0 : i32
    %c0_i32_1 = arith.constant 0 : i32
    return %arg0, %c0_i32, %c0_i32_0 : i32, i32, i32
  }
  func.func @transform_1(%arg0: i32) -> (i32, i32) {
    %c0_i32 = arith.constant 0 : i32
    %c0_i32_0 = arith.constant 0 : i32
    %c0_i32_1 = arith.constant 0 : i32
    return %c0_i32, %c0_i32_0 : i32, i32
  }
  func.func @transform_2(%arg0: i32) -> (i32, i32) {
    %c0_i32 = arith.constant 0 : i32
    %c0_i32_0 = arith.constant 0 : i32
    %c0_i32_1 = arith.constant 0 : i32
    return %c0_i32, %c0_i32_0 : i32, i32
  }
  func.func @transform_3(%arg0: i32) -> (i32, i32, i32) {
    %c0_i32 = arith.constant 0 : i32
    %c0_i32_0 = arith.constant 0 : i32
    %c0_i32_1 = arith.constant 0 : i32
    %c0_i32_2 = arith.constant 0 : i32
    return %c0_i32, %c0_i32_0, %c0_i32_1 : i32, i32, i32
  }
  func.func @transform_4(%arg0: i32) -> (i32, i32) {
    %c0_i32 = arith.constant 0 : i32
    %c0_i32_0 = arith.constant 0 : i32
    %c0_i32_1 = arith.constant 0 : i32
    return %c0_i32, %c0_i32_0 : i32, i32
  }
  func.func @transform_5(%arg0: i32) -> (i32, i32) {
    %c0_i32 = arith.constant 0 : i32
    %c0_i32_0 = arith.constant 0 : i32
    %c0_i32_1 = arith.constant 0 : i32
    return %c0_i32, %c0_i32_0 : i32, i32
  }
  func.func @transform_6(%arg0: i32) -> (i32, i32, i32) {
    %c0_i32 = arith.constant 0 : i32
    %c0_i32_0 = arith.constant 0 : i32
    %c0_i32_1 = arith.constant 0 : i32
    %c0_i32_2 = arith.constant 0 : i32
    return %c0_i32, %c0_i32_0, %c0_i32_1 : i32, i32, i32
  }
  func.func @transform_7(%arg0: i32) -> (i32, i32) {
    %c0_i32 = arith.constant 0 : i32
    %c0_i32_0 = arith.constant 0 : i32
    %c0_i32_1 = arith.constant 0 : i32
    return %c0_i32, %c0_i32_0 : i32, i32
  }
  func.func @transform_8(%arg0: i32) -> (i32, i32) {
    %c0_i32 = arith.constant 0 : i32
    %c0_i32_0 = arith.constant 0 : i32
    %c0_i32_1 = arith.constant 0 : i32
    return %c0_i32, %c0_i32_0 : i32, i32
  }
  func.func @transform_9(%arg0: i32) -> (i32, i32, i32) {
    %c0_i32 = arith.constant 0 : i32
    %c0_i32_0 = arith.constant 0 : i32
    %c0_i32_1 = arith.constant 0 : i32
    %c0_i32_2 = arith.constant 0 : i32
    return %c0_i32, %c0_i32_0, %c0_i32_1 : i32, i32, i32
  }
  func.func @transform_10(%arg0: i32) -> (i32, i32) {
    %c0_i32 = arith.constant 0 : i32
    %c0_i32_0 = arith.constant 0 : i32
    %c0_i32_1 = arith.constant 0 : i32
    return %c0_i32, %c0_i32_0 : i32, i32
  }
  func.func @transform_11(%arg0: i32) -> (i32, i32) {
    %c0_i32 = arith.constant 0 : i32
    %c0_i32_0 = arith.constant 0 : i32
    %c0_i32_1 = arith.constant 0 : i32
    return %c0_i32, %c0_i32_0 : i32, i32
  }
  func.func @transform_12(%arg0: i32) -> (i32, i32, i32) {
    %c0_i32 = arith.constant 0 : i32
    %c0_i32_0 = arith.constant 0 : i32
    %c0_i32_1 = arith.constant 0 : i32
    %c0_i32_2 = arith.constant 0 : i32
    return %c0_i32, %c0_i32_0, %c0_i32_1 : i32, i32, i32
  }
  func.func @transform_13(%arg0: i32) -> (i32, i32) {
    %c0_i32 = arith.constant 0 : i32
    %c0_i32_0 = arith.constant 0 : i32
    %c0_i32_1 = arith.constant 0 : i32
    return %c0_i32, %c0_i32_0 : i32, i32
  }
  func.func @transform_14(%arg0: i32) -> (i32, i32) {
    %c0_i32 = arith.constant 0 : i32
    %c0_i32_0 = arith.constant 0 : i32
    %c0_i32_1 = arith.constant 0 : i32
    return %c0_i32, %c0_i32_0 : i32, i32
  }
  func.func @transform_15(%arg0: i32) -> (i32, i32) {
    %c0_i32 = arith.constant 0 : i32
    %c0_i32_0 = arith.constant 0 : i32
    %c0_i32_1 = arith.constant 0 : i32
    return %c0_i32, %c0_i32_0 : i32, i32
  }
  func.func @transform_16(%arg0: i32) -> (i32, i32) {
    %c0_i32 = arith.constant 0 : i32
    %c0_i32_0 = arith.constant 0 : i32
    %c0_i32_1 = arith.constant 0 : i32
    return %c0_i32, %c0_i32_0 : i32, i32
  }
  func.func @transform_17(%arg0: i32) -> (i32, i32, i32) {
    %c0_i32 = arith.constant 0 : i32
    %c0_i32_0 = arith.constant 0 : i32
    %c0_i32_1 = arith.constant 0 : i32
    %c0_i32_2 = arith.constant 0 : i32
    return %c0_i32, %c0_i32_0, %c0_i32_1 : i32, i32, i32
  }
  func.func @transform_18(%arg0: i32) -> (i32, i32) {
    %c0_i32 = arith.constant 0 : i32
    %c0_i32_0 = arith.constant 0 : i32
    %c0_i32_1 = arith.constant 0 : i32
    return %c0_i32, %c0_i32_0 : i32, i32
  }
  func.func @transform_19(%arg0: i32) -> (i32, i32) {
    %c0_i32 = arith.constant 0 : i32
    %c0_i32_0 = arith.constant 0 : i32
    %c0_i32_1 = arith.constant 0 : i32
    return %c0_i32, %c0_i32_0 : i32, i32
  }
  func.func @transform_20(%arg0: i32) -> (i32, i32, i32) {
    %c0_i32 = arith.constant 0 : i32
    %c0_i32_0 = arith.constant 0 : i32
    %c0_i32_1 = arith.constant 0 : i32
    return %arg0, %c0_i32, %c0_i32_0 : i32, i32, i32
  }
}

</mosaic_0001>

<llo_original>
// kernel: image_encoder_forward.1
$region0: #{image_encoder_forward.1}
  #allocation0 [shape = 'u32[]', space=smem, size = 0x4, offset = 0x4, fixed_abs, tag = 'smem constant byte address 0x4 - core index']
  #allocation1 [shape = 'u32[144,128]{1,0:T(1,128)}', space=vmem, size = 0x12000, scoped, tag = 'internal scratch']
  %s0 = inlined_call_operand.vmem [shape: f32[2,8,256], index: 0, kind: input, shape index: {}]
  %s1 = inlined_call_operand.vmem [shape: f32[256,8], index: 1, kind: input, shape index: {}]
  %s2 = inlined_call_operand.vmem [shape: f32[16,1], index: 2, kind: input, shape index: {}]
  %s3 = inlined_call_operand.hbm [shape: f32[16,256,64], index: 3, kind: input, shape index: {}]
  %s4 = inlined_call_operand.vmem [shape: f32[512,16], index: 4, kind: input, shape index: {}]
  %s5 = inlined_call_operand.vmem [shape: f32[32,1], index: 5, kind: input, shape index: {}]
  %s6 = inlined_call_operand.hbm [shape: f32[16,64,16], index: 6, kind: input, shape index: {}]
  %s7 = inlined_call_operand.hbm [shape: f32[288,32], index: 7, kind: input, shape index: {}]
  %s8 = inlined_call_operand.vmem [shape: f32[32,1], index: 8, kind: input, shape index: {}]
  %s9 = inlined_call_operand.hbm [shape: f32[9,16,16], index: 9, kind: input, shape index: {}, may-alias: {9,12,17}]
  %s10 = inlined_call_operand.hbm [shape: f32[72,32], index: 10, kind: input, shape index: {}]
  %s11 = inlined_call_operand.vmem [shape: f32[8,1], index: 11, kind: input, shape index: {}]
  %s12 = inlined_call_operand.hbm [shape: f32[9,16,16], index: 12, kind: input, shape index: {}, may-alias: {9,12,17}]
  %s13 = inlined_call_operand.vmem [shape: f32[32,8], index: 13, kind: input, shape index: {}]
  %s14 = inlined_call_operand.vmem [shape: f32[32,1], index: 14, kind: input, shape index: {}]
  %s15 = inlined_call_operand.hbm [shape: f32[72,32], index: 15, kind: input, shape index: {}]
  %s16 = inlined_call_operand.vmem [shape: f32[8,1], index: 16, kind: input, shape index: {}]
  %s17 = inlined_call_operand.hbm [shape: f32[9,16,16], index: 17, kind: input, shape index: {}, may-alias: {9,12,17}]
  %s18 = inlined_call_operand.vmem [shape: f32[32,8], index: 18, kind: input, shape index: {}]
  %s19 = inlined_call_operand.vmem [shape: f32[32,1], index: 19, kind: input, shape index: {}]
  %s20 = inlined_call_operand.vmem [shape: f32[2,32,16], index: 20, kind: output, shape index: {}]
  %s21 = sld [smem:[#allocation0]]
  $region145: #{image_encoder_forward.1} parent=0
    _
  %s23 = ssub.s32 1, %s21
  %s24 = scalar_select 0, %s23, %s21
  $region1: #{image_encoder_forward.1} parent=0
    #allocation2 [shape = 'u8[2097152]{0}', space=vmem, size = 0x200000, scoped, tag = 'input window, operand 3, single buffered']
    #allocation3 [shape = 's32[2]{0}', space=sflag, size = 0x8, scoped, tag = 'scoped memory for image_encoder_forward.1']
    #allocation4 [shape = 'u8[524288]{0}', space=vmem, size = 0x80000, scoped, tag = 'input window, operand 6, single buffered']
    #allocation5 [shape = 's32[1]{0}', space=sflag, size = 0x4, scoped, tag = 'scoped memory for image_encoder_forward.1']
    #allocation6 [shape = 'u8[147456]{0}', space=vmem, size = 0x24000, scoped, tag = 'input window, operand 7, single buffered']
    #allocation7 [shape = 'u8[73728]{0}', space=vmem, size = 0x12000, scoped, tag = 'input window, operand 9, single buffered']
    #allocation8 [shape = 's32[1]{0}', space=sflag, size = 0x4, scoped, tag = 'scoped memory for image_encoder_forward.1']
    #allocation9 [shape = 'u8[36864]{0}', space=vmem, size = 0x9000, scoped, tag = 'input window, operand 10, single buffered']
    #allocation10 [shape = 'u8[73728]{0}', space=vmem, size = 0x12000, scoped, tag = 'input window, operand 12, single buffered']
    #allocation11 [shape = 's32[1]{0}', space=sflag, size = 0x4, scoped, tag = 'scoped memory for image_encoder_forward.1']
    #allocation12 [shape = 'u8[36864]{0}', space=vmem, size = 0x9000, scoped, tag = 'input window, operand 15, single buffered']
    #allocation13 [shape = 'u8[73728]{0}', space=vmem, size = 0x12000, scoped, tag = 'input window, operand 17, single buffered']
    #allocation14 [shape = 's32[1]{0}', space=sflag, size = 0x4, scoped, tag = 'scoped memory for image_encoder_forward.1']
    %25 = vsyncpa [#allocation3], 0
    %26 = vsyncpa [#allocation5], 0
    %27 = vsyncpa [#allocation8], 0
    %28 = vsyncpa [#allocation11], 0
    %29 = vsyncpa [#allocation14], 0
    loop: start=0, step=1, limit=4
    $region2: #{image_encoder_forward.1} parent=1 // loop_pre_header
      _
    $region3: #{image_encoder_forward.1} parent=1 // loop_header
      %s31 = sphi 0, %s35
      %p32 = scmp.ge.s32.totalorder %s31, 4
      %s41 = sphi 0, %s43
      %s44 = sphi 0, %s41
      %s45 = sphi 0, %s44
      %s61 = sphi 0, %s45
      %s65 = sphi 0, %s65
      %s67 = sphi 0, %s65
      %s68 = sphi 0, %s67
      %s82 = sphi 0, %s68
      %s86 = sphi 0, %s86
      %s88 = sphi 0, %s86
      %s89 = sphi 0, %s88
      %s103 = sphi 0, %s89
      %s107 = sphi 0, %s107
      %s109 = sphi 0, %s107
      %s110 = sphi 0, %s109
      %s124 = sphi 0, %s110
      %s128 = sphi 0, %s128
      %s130 = sphi 0, %s128
      %s131 = sphi 0, %s130
      %s145 = sphi 0, %s131
      %s149 = sphi 0, %s149
      %s151 = sphi 0, %s149
      %s152 = sphi 0, %s151
      %s166 = sphi 0, %s152
      %s170 = sphi 0, %s170
      %s172 = sphi 0, %s170
      %s173 = sphi 0, %s172
      %s187 = sphi 0, %s173
      %s191 = sphi 0, %s191
      %s193 = sphi 0, %s191
      %s194 = sphi 0, %s193
      %s208 = sphi 0, %s194
      %s212 = sphi 0, %s212
      %s214 = sphi 0, %s212
      %s215 = sphi 0, %s214
      %s229 = sphi 0, %s215
      %s233 = sphi 0, %s233
      %s235 = sphi 0, %s233
      %s236 = sphi 0, %s235
      %s250 = sphi 0, %s236
      %s254 = sphi 0, %s254
      %s256 = sphi 0, %s254
      %s257 = sphi 0, %s256
      %s271 = sphi 0, %s257
      %s275 = sphi 0, %s275
      %s277 = sphi 0, %s275
      %s278 = sphi 0, %s277
      %s292 = sphi 0, %s278
      %s296 = sphi 0, %s296
      %s298 = sphi 0, %s296
      %s299 = sphi 0, %s298
      %s313 = sphi 0, %s299
      %s317 = sphi 0, %s317
      %s319 = sphi 0, %s317
      %s320 = sphi 0, %s319
      %s334 = sphi 0, %s320
      %s338 = sphi 0, %s338
      %s340 = sphi 0, %s338
      %s341 = sphi 0, %s340
      %s355 = sphi 0, %s341
      %s359 = sphi 0, %s359
      %s361 = sphi 0, %s359
      %s362 = sphi 0, %s361
      %s376 = sphi 0, %s362
      %s380 = sphi 0, %s380
      %s382 = sphi 0, %s380
      %s383 = sphi 0, %s382
      %s397 = sphi 0, %s383
      %s401 = sphi 0, %s401
      %s403 = sphi 0, %s401
      %s404 = sphi 0, %s403
      %s418 = sphi 0, %s404
      %s422 = sphi 0, %s422
      %s424 = sphi 0, %s422
      %s425 = sphi 0, %s424
      %s439 = sphi 0, %s425
      %s443 = sphi 0, %s443
      %s445 = sphi 0, %s443
      %s446 = sphi 0, %s445
      %s460 = sphi 0, %s446
      %s466 = sphi 0, %s468
      %s469 = sphi 0, %s466
      %s470 = sphi 0, %s469
      %s486 = sphi 0, %s470
    $region4: #{image_encoder_forward.1} parent=1 // loop_header_branch
      %34 = sbr.rel (%p32) target = $region8
    $region5: #{image_encoder_forward.1} parent=1 // loop_body
      %s36 = ssub.s32 %s31, 1
      %s37 = ssub.s32 %s31, 2
      %s38 = sadd.s32 %s31, 1
      %s39 = ssub.s32 %s31, %s38
      %p40 = scmp.eq.s32.totalorder %s39, 0
      %s42 = sadd.s32 %s41, 1
      %s43 = scalar_select %p40, %s41, %s42
      %p46 = pneg %p40
      %p47 = scmp.eq.s32.totalorder %s31, 1
      %p48 = por %p46, %p47
      %p49 = scmp.ne.s32.totalorder %s41, %s44
      %p50 = scmp.eq.s32.totalorder %s31, 0
      %p51 = por %p49, %p50
      %p52 = scmp.ne.s32.totalorder %s41, %s44
      %p53 = scmp.eq.s32.totalorder %s36, 1
      %p54 = por %p52, %p53
      %p55 = scmp.ne.s32.totalorder %s44, %s45
      %p56 = scmp.eq.s32.totalorder %s36, 0
      %p57 = por %p55, %p56
      %p58 = scmp.ne.s32.totalorder %s44, %s45
      %p59 = scmp.eq.s32.totalorder %s37, 1
      %p60 = por %p58, %p59
      %p62 = scmp.ne.s32.totalorder %s45, %s61
      %p63 = scmp.eq.s32.totalorder %s37, 0
      %p64 = por %p62, %p63
      %s66 = sadd.s32 %s65, 1
      %p69 = scmp.eq.s32.totalorder %s31, 1
      %p70 = scmp.ne.s32.totalorder %s65, %s67
      %p71 = scmp.eq.s32.totalorder %s31, 0
      %p72 = por %p70, %p71
      %p73 = scmp.ne.s32.totalorder %s65, %s67
      %p74 = scmp.eq.s32.totalorder %s36, 1
      %p75 = por %p73, %p74
      %p76 = scmp.ne.s32.totalorder %s67, %s68
      %p77 = scmp.eq.s32.totalorder %s36, 0
      %p78 = por %p76, %p77
      %p79 = scmp.ne.s32.totalorder %s67, %s68
      %p80 = scmp.eq.s32.totalorder %s37, 1
      %p81 = por %p79, %p80
      %p83 = scmp.ne.s32.totalorder %s68, %s82
      %p84 = scmp.eq.s32.totalorder %s37, 0
      %p85 = por %p83, %p84
      %s87 = sadd.s32 %s86, 1
      %p90 = scmp.eq.s32.totalorder %s31, 1
      %p91 = scmp.ne.s32.totalorder %s86, %s88
      %p92 = scmp.eq.s32.totalorder %s31, 0
      %p93 = por %p91, %p92
      %p94 = scmp.ne.s32.totalorder %s86, %s88
      %p95 = scmp.eq.s32.totalorder %s36, 1
      %p96 = por %p94, %p95
      %p97 = scmp.ne.s32.totalorder %s88, %s89
      %p98 = scmp.eq.s32.totalorder %s36, 0
      %p99 = por %p97, %p98
      %p100 = scmp.ne.s32.totalorder %s88, %s89
      %p101 = scmp.eq.s32.totalorder %s37, 1
      %p102 = por %p100, %p101
      %p104 = scmp.ne.s32.totalorder %s89, %s103
      %p105 = scmp.eq.s32.totalorder %s37, 0
      %p106 = por %p104, %p105
      %s108 = sadd.s32 %s107, 1
      %p111 = scmp.eq.s32.totalorder %s31, 1
      %p112 = scmp.ne.s32.totalorder %s107, %s109
      %p113 = scmp.eq.s32.totalorder %s31, 0
      %p114 = por %p112, %p113
      %p115 = scmp.ne.s32.totalorder %s107, %s109
      %p116 = scmp.eq.s32.totalorder %s36, 1
      %p117 = por %p115, %p116
      %p118 = scmp.ne.s32.totalorder %s109, %s110
      %p119 = scmp.eq.s32.totalorder %s36, 0
      %p120 = por %p118, %p119
      %p121 = scmp.ne.s32.totalorder %s109, %s110
      %p122 = scmp.eq.s32.totalorder %s37, 1
      %p123 = por %p121, %p122
      %p125 = scmp.ne.s32.totalorder %s110, %s124
      %p126 = scmp.eq.s32.totalorder %s37, 0
      %p127 = por %p125, %p126
      %s129 = sadd.s32 %s128, 1
      %p132 = scmp.eq.s32.totalorder %s31, 1
      %p133 = scmp.ne.s32.totalorder %s128, %s130
      %p134 = scmp.eq.s32.totalorder %s31, 0
      %p135 = por %p133, %p134
      %p136 = scmp.ne.s32.totalorder %s128, %s130
      %p137 = scmp.eq.s32.totalorder %s36, 1
      %p138 = por %p136, %p137
      %p139 = scmp.ne.s32.totalorder %s130, %s131
      %p140 = scmp.eq.s32.totalorder %s36, 0
      %p141 = por %p139, %p140
      %p142 = scmp.ne.s32.totalorder %s130, %s131
      %p143 = scmp.eq.s32.totalorder %s37, 1
      %p144 = por %p142, %p143
      %p146 = scmp.ne.s32.totalorder %s131, %s145
      %p147 = scmp.eq.s32.totalorder %s37, 0
      %p148 = por %p146, %p147
      %s150 = sadd.s32 %s149, 1
      %p153 = scmp.eq.s32.totalorder %s31, 1
      %p154 = scmp.ne.s32.totalorder %s149, %s151
      %p155 = scmp.eq.s32.totalorder %s31, 0
      %p156 = por %p154, %p155
      %p157 = scmp.ne.s32.totalorder %s149, %s151
      %p158 = scmp.eq.s32.totalorder %s36, 1
      %p159 = por %p157, %p158
      %p160 = scmp.ne.s32.totalorder %s151, %s152
      %p161 = scmp.eq.s32.totalorder %s36, 0
      %p162 = por %p160, %p161
      %p163 = scmp.ne.s32.totalorder %s151, %s152
      %p164 = scmp.eq.s32.totalorder %s37, 1
      %p165 = por %p163, %p164
      %p167 = scmp.ne.s32.totalorder %s152, %s166
      %p168 = scmp.eq.s32.totalorder %s37, 0
      %p169 = por %p167, %p168
      %s171 = sadd.s32 %s170, 1
      %p174 = scmp.eq.s32.totalorder %s31, 1
      %p175 = scmp.ne.s32.totalorder %s170, %s172
      %p176 = scmp.eq.s32.totalorder %s31, 0
      %p177 = por %p175, %p176
      %p178 = scmp.ne.s32.totalorder %s170, %s172
      %p179 = scmp.eq.s32.totalorder %s36, 1
      %p180 = por %p178, %p179
      %p181 = scmp.ne.s32.totalorder %s172, %s173
      %p182 = scmp.eq.s32.totalorder %s36, 0
      %p183 = por %p181, %p182
      %p184 = scmp.ne.s32.totalorder %s172, %s173
      %p185 = scmp.eq.s32.totalorder %s37, 1
      %p186 = por %p184, %p185
      %p188 = scmp.ne.s32.totalorder %s173, %s187
      %p189 = scmp.eq.s32.totalorder %s37, 0
      %p190 = por %p188, %p189
      %s192 = sadd.s32 %s191, 1
      %p195 = scmp.eq.s32.totalorder %s31, 1
      %p196 = scmp.ne.s32.totalorder %s191, %s193
      %p197 = scmp.eq.s32.totalorder %s31, 0
      %p198 = por %p196, %p197
      %p199 = scmp.ne.s32.totalorder %s191, %s193
      %p200 = scmp.eq.s32.totalorder %s36, 1
      %p201 = por %p199, %p200
      %p202 = scmp.ne.s32.totalorder %s193, %s194
      %p203 = scmp.eq.s32.totalorder %s36, 0
      %p204 = por %p202, %p203
      %p205 = scmp.ne.s32.totalorder %s193, %s194
      %p206 = scmp.eq.s32.totalorder %s37, 1
      %p207 = por %p205, %p206
      %p209 = scmp.ne.s32.totalorder %s194, %s208
      %p210 = scmp.eq.s32.totalorder %s37, 0
      %p211 = por %p209, %p210
      %s213 = sadd.s32 %s212, 1
      %p216 = scmp.eq.s32.totalorder %s31, 1
      %p217 = scmp.ne.s32.totalorder %s212, %s214
      %p218 = scmp.eq.s32.totalorder %s31, 0
      %p219 = por %p217, %p218
      %p220 = scmp.ne.s32.totalorder %s212, %s214
      %p221 = scmp.eq.s32.totalorder %s36, 1
      %p222 = por %p220, %p221
      %p223 = scmp.ne.s32.totalorder %s214, %s215
      %p224 = scmp.eq.s32.totalorder %s36, 0
      %p225 = por %p223, %p224
      %p226 = scmp.ne.s32.totalorder %s214, %s215
      %p227 = scmp.eq.s32.totalorder %s37, 1
      %p228 = por %p226, %p227
      %p230 = scmp.ne.s32.totalorder %s215, %s229
      %p231 = scmp.eq.s32.totalorder %s37, 0
      %p232 = por %p230, %p231
      %s234 = sadd.s32 %s233, 1
      %p237 = scmp.eq.s32.totalorder %s31, 1
      %p238 = scmp.ne.s32.totalorder %s233, %s235
      %p239 = scmp.eq.s32.totalorder %s31, 0
      %p240 = por %p238, %p239
      %p241 = scmp.ne.s32.totalorder %s233, %s235
      %p242 = scmp.eq.s32.totalorder %s36, 1
      %p243 = por %p241, %p242
      %p244 = scmp.ne.s32.totalorder %s235, %s236
      %p245 = scmp.eq.s32.totalorder %s36, 0
      %p246 = por %p244, %p245
      %p247 = scmp.ne.s32.totalorder %s235, %s236
      %p248 = scmp.eq.s32.totalorder %s37, 1
      %p249 = por %p247, %p248
      %p251 = scmp.ne.s32.totalorder %s236, %s250
      %p252 = scmp.eq.s32.totalorder %s37, 0
      %p253 = por %p251, %p252
      %s255 = sadd.s32 %s254, 1
      %p258 = scmp.eq.s32.totalorder %s31, 1
      %p259 = scmp.ne.s32.totalorder %s254, %s256
      %p260 = scmp.eq.s32.totalorder %s31, 0
      %p261 = por %p259, %p260
      %p262 = scmp.ne.s32.totalorder %s254, %s256
      %p263 = scmp.eq.s32.totalorder %s36, 1
      %p264 = por %p262, %p263
      %p265 = scmp.ne.s32.totalorder %s256, %s257
      %p266 = scmp.eq.s32.totalorder %s36, 0
      %p267 = por %p265, %p266
      %p268 = scmp.ne.s32.totalorder %s256, %s257
      %p269 = scmp.eq.s32.totalorder %s37, 1
      %p270 = por %p268, %p269
      %p272 = scmp.ne.s32.totalorder %s257, %s271
      %p273 = scmp.eq.s32.totalorder %s37, 0
      %p274 = por %p272, %p273
      %s276 = sadd.s32 %s275, 1
      %p279 = scmp.eq.s32.totalorder %s31, 1
      %p280 = scmp.ne.s32.totalorder %s275, %s277
      %p281 = scmp.eq.s32.totalorder %s31, 0
      %p282 = por %p280, %p281
      %p283 = scmp.ne.s32.totalorder %s275, %s277
      %p284 = scmp.eq.s32.totalorder %s36, 1
      %p285 = por %p283, %p284
      %p286 = scmp.ne.s32.totalorder %s277, %s278
      %p287 = scmp.eq.s32.totalorder %s36, 0
      %p288 = por %p286, %p287
      %p289 = scmp.ne.s32.totalorder %s277, %s278
      %p290 = scmp.eq.s32.totalorder %s37, 1
      %p291 = por %p289, %p290
      %p293 = scmp.ne.s32.totalorder %s278, %s292
      %p294 = scmp.eq.s32.totalorder %s37, 0
      %p295 = por %p293, %p294
      %s297 = sadd.s32 %s296, 1
      %p300 = scmp.eq.s32.totalorder %s31, 1
      %p301 = scmp.ne.s32.totalorder %s296, %s298
      %p302 = scmp.eq.s32.totalorder %s31, 0
      %p303 = por %p301, %p302
      %p304 = scmp.ne.s32.totalorder %s296, %s298
      %p305 = scmp.eq.s32.totalorder %s36, 1
      %p306 = por %p304, %p305
      %p307 = scmp.ne.s32.totalorder %s298, %s299
      %p308 = scmp.eq.s32.totalorder %s36, 0
      %p309 = por %p307, %p308
      %p310 = scmp.ne.s32.totalorder %s298, %s299
      %p311 = scmp.eq.s32.totalorder %s37, 1
      %p312 = por %p310, %p311
      %p314 = scmp.ne.s32.totalorder %s299, %s313
      %p315 = scmp.eq.s32.totalorder %s37, 0
      %p316 = por %p314, %p315
      %s318 = sadd.s32 %s317, 1
      %p321 = scmp.eq.s32.totalorder %s31, 1
      %p322 = scmp.ne.s32.totalorder %s317, %s319
      %p323 = scmp.eq.s32.totalorder %s31, 0
      %p324 = por %p322, %p323
      %p325 = scmp.ne.s32.totalorder %s317, %s319
      %p326 = scmp.eq.s32.totalorder %s36, 1
      %p327 = por %p325, %p326
      %p328 = scmp.ne.s32.totalorder %s319, %s320
      %p329 = scmp.eq.s32.totalorder %s36, 0
      %p330 = por %p328, %p329
      %p331 = scmp.ne.s32.totalorder %s319, %s320
      %p332 = scmp.eq.s32.totalorder %s37, 1
      %p333 = por %p331, %p332
      %p335 = scmp.ne.s32.totalorder %s320, %s334
      %p336 = scmp.eq.s32.totalorder %s37, 0
      %p337 = por %p335, %p336
      %s339 = sadd.s32 %s338, 1
      %p342 = scmp.eq.s32.totalorder %s31, 1
      %p343 = scmp.ne.s32.totalorder %s338, %s340
      %p344 = scmp.eq.s32.totalorder %s31, 0
      %p345 = por %p343, %p344
      %p346 = scmp.ne.s32.totalorder %s338, %s340
      %p347 = scmp.eq.s32.totalorder %s36, 1
      %p348 = por %p346, %p347
      %p349 = scmp.ne.s32.totalorder %s340, %s341
      %p350 = scmp.eq.s32.totalorder %s36, 0
      %p351 = por %p349, %p350
      %p352 = scmp.ne.s32.totalorder %s340, %s341
      %p353 = scmp.eq.s32.totalorder %s37, 1
      %p354 = por %p352, %p353
      %p356 = scmp.ne.s32.totalorder %s341, %s355
      %p357 = scmp.eq.s32.totalorder %s37, 0
      %p358 = por %p356, %p357
      %s360 = sadd.s32 %s359, 1
      %p363 = scmp.eq.s32.totalorder %s31, 1
      %p364 = scmp.ne.s32.totalorder %s359, %s361
      %p365 = scmp.eq.s32.totalorder %s31, 0
      %p366 = por %p364, %p365
      %p367 = scmp.ne.s32.totalorder %s359, %s361
      %p368 = scmp.eq.s32.totalorder %s36, 1
      %p369 = por %p367, %p368
      %p370 = scmp.ne.s32.totalorder %s361, %s362
      %p371 = scmp.eq.s32.totalorder %s36, 0
      %p372 = por %p370, %p371
      %p373 = scmp.ne.s32.totalorder %s361, %s362
      %p374 = scmp.eq.s32.totalorder %s37, 1
      %p375 = por %p373, %p374
      %p377 = scmp.ne.s32.totalorder %s362, %s376
      %p378 = scmp.eq.s32.totalorder %s37, 0
      %p379 = por %p377, %p378
      %s381 = sadd.s32 %s380, 1
      %p384 = scmp.eq.s32.totalorder %s31, 1
      %p385 = scmp.ne.s32.totalorder %s380, %s382
      %p386 = scmp.eq.s32.totalorder %s31, 0
      %p387 = por %p385, %p386
      %p388 = scmp.ne.s32.totalorder %s380, %s382
      %p389 = scmp.eq.s32.totalorder %s36, 1
      %p390 = por %p388, %p389
      %p391 = scmp.ne.s32.totalorder %s382, %s383
      %p392 = scmp.eq.s32.totalorder %s36, 0
      %p393 = por %p391, %p392
      %p394 = scmp.ne.s32.totalorder %s382, %s383
      %p395 = scmp.eq.s32.totalorder %s37, 1
      %p396 = por %p394, %p395
      %p398 = scmp.ne.s32.totalorder %s383, %s397
      %p399 = scmp.eq.s32.totalorder %s37, 0
      %p400 = por %p398, %p399
      %s402 = sadd.s32 %s401, 1
      %p405 = scmp.eq.s32.totalorder %s31, 1
      %p406 = scmp.ne.s32.totalorder %s401, %s403
      %p407 = scmp.eq.s32.totalorder %s31, 0
      %p408 = por %p406, %p407
      %p409 = scmp.ne.s32.totalorder %s401, %s403
      %p410 = scmp.eq.s32.totalorder %s36, 1
      %p411 = por %p409, %p410
      %p412 = scmp.ne.s32.totalorder %s403, %s404
      %p413 = scmp.eq.s32.totalorder %s36, 0
      %p414 = por %p412, %p413
      %p415 = scmp.ne.s32.totalorder %s403, %s404
      %p416 = scmp.eq.s32.totalorder %s37, 1
      %p417 = por %p415, %p416
      %p419 = scmp.ne.s32.totalorder %s404, %s418
      %p420 = scmp.eq.s32.totalorder %s37, 0
      %p421 = por %p419, %p420
      %s423 = sadd.s32 %s422, 1
      %p426 = scmp.eq.s32.totalorder %s31, 1
      %p427 = scmp.ne.s32.totalorder %s422, %s424
      %p428 = scmp.eq.s32.totalorder %s31, 0
      %p429 = por %p427, %p428
      %p430 = scmp.ne.s32.totalorder %s422, %s424
      %p431 = scmp.eq.s32.totalorder %s36, 1
      %p432 = por %p430, %p431
      %p433 = scmp.ne.s32.totalorder %s424, %s425
      %p434 = scmp.eq.s32.totalorder %s36, 0
      %p435 = por %p433, %p434
      %p436 = scmp.ne.s32.totalorder %s424, %s425
      %p437 = scmp.eq.s32.totalorder %s37, 1
      %p438 = por %p436, %p437
      %p440 = scmp.ne.s32.totalorder %s425, %s439
      %p441 = scmp.eq.s32.totalorder %s37, 0
      %p442 = por %p440, %p441
      %s444 = sadd.s32 %s443, 1
      %p447 = scmp.eq.s32.totalorder %s31, 1
      %p448 = scmp.ne.s32.totalorder %s443, %s445
      %p449 = scmp.eq.s32.totalorder %s31, 0
      %p450 = por %p448, %p449
      %p451 = scmp.ne.s32.totalorder %s443, %s445
      %p452 = scmp.eq.s32.totalorder %s36, 1
      %p453 = por %p451, %p452
      %p454 = scmp.ne.s32.totalorder %s445, %s446
      %p455 = scmp.eq.s32.totalorder %s36, 0
      %p456 = por %p454, %p455
      %p457 = scmp.ne.s32.totalorder %s445, %s446
      %p458 = scmp.eq.s32.totalorder %s37, 1
      %p459 = por %p457, %p458
      %p461 = scmp.ne.s32.totalorder %s446, %s460
      %p462 = scmp.eq.s32.totalorder %s37, 0
      %p463 = por %p461, %p462
      %s464 = ssub.s32 %s31, %s38
      %p465 = scmp.eq.s32.totalorder %s464, 0
      %s467 = sadd.s32 %s466, 1
      %s468 = scalar_select %p465, %s466, %s467
      %p471 = pneg %p465
      %p472 = scmp.eq.s32.totalorder %s31, 1
      %p473 = por %p471, %p472
      %p474 = scmp.ne.s32.totalorder %s466, %s469
      %p475 = scmp.eq.s32.totalorder %s31, 0
      %p476 = por %p474, %p475
      %p477 = scmp.ne.s32.totalorder %s466, %s469
      %p478 = scmp.eq.s32.totalorder %s36, 1
      %p479 = por %p477, %p478
      %p480 = scmp.ne.s32.totalorder %s469, %s470
      %p481 = scmp.eq.s32.totalorder %s36, 0
      %p482 = por %p480, %p481
      %p483 = scmp.ne.s32.totalorder %s469, %s470
      %p484 = scmp.eq.s32.totalorder %s37, 1
      %p485 = por %p483, %p484
      %p487 = scmp.ne.s32.totalorder %s470, %s486
      %p488 = scmp.eq.s32.totalorder %s37, 0
      %p489 = por %p487, %p488
      %p490 = scmp.le.s32.totalorder 1, %s31
      %p491 = scmp.lt.s32.totalorder %s31, 3
      %p492 = pnand %p490, %p491
      %p493 = pneg %p492
      // Predicated region
      $region9: #{image_encoder_forward.1} parent=5 // pred_check
        _
      $region10: #{image_encoder_forward.1} parent=5 // pred_check_branch
        %495 = sbr.rel (%p492) target = $region12
      $region11: #{image_encoder_forward.1} parent=5 // pred_region
        %s496 = ssub.s32 %s31, 1
        // Predicated region
        $region13: #{image_encoder_forward.1} parent=11 // pred_check
          %p497 = pneg %p78
        $region14: #{image_encoder_forward.1} parent=11 // pred_check_branch
          %499 = sbr.rel (%p497) target = $region16
        $region15: #{image_encoder_forward.1} parent=11 // pred_region
          _
        $region16: #{image_encoder_forward.1} parent=11 // pred_fallthru
          _
        // Predicated region
        $region17: #{image_encoder_forward.1} parent=11 // pred_check
          %p500 = pneg %p99
        $region18: #{image_encoder_forward.1} parent=11 // pred_check_branch
          %502 = sbr.rel (%p500) target = $region20
        $region19: #{image_encoder_forward.1} parent=11 // pred_region
          _
        $region20: #{image_encoder_forward.1} parent=11 // pred_fallthru
          _
        // Predicated region
        $region21: #{image_encoder_forward.1} parent=11 // pred_check
          %p503 = pneg %p120
        $region22: #{image_encoder_forward.1} parent=11 // pred_check_branch
          %505 = sbr.rel (%p503) target = $region24
        $region23: #{image_encoder_forward.1} parent=11 // pred_region
          %s507 = ssub.s32 65536, 65536
          %508 = vsyncadd [#allocation3], %s507
          %s509 = sshll.u32 [#allocation2], 4
          %s510 = int_to_ptr.vmem [resolvable:$true] %s509
          %515 = dma.hbm_to_vmem [thread:$0]  %s3, 65536, %s510, [#allocation3], 128, 128, 8
        $region24: #{image_encoder_forward.1} parent=11 // pred_fallthru
          _
        // Predicated region
        $region25: #{image_encoder_forward.1} parent=11 // pred_check
          %p516 = pneg %p141
        $region26: #{image_encoder_forward.1} parent=11 // pred_check_branch
          %518 = sbr.rel (%p516) target = $region28
        $region27: #{image_encoder_forward.1} parent=11 // pred_region
          _
        $region28: #{image_encoder_forward.1} parent=11 // pred_fallthru
          _
        // Predicated region
        $region29: #{image_encoder_forward.1} parent=11 // pred_check
          %p519 = pneg %p162
        $region30: #{image_encoder_forward.1} parent=11 // pred_check_branch
          %521 = sbr.rel (%p519) target = $region32
        $region31: #{image_encoder_forward.1} parent=11 // pred_region
          _
        $region32: #{image_encoder_forward.1} parent=11 // pred_fallthru
          _
        // Predicated region
        $region33: #{image_encoder_forward.1} parent=11 // pred_check
          %p522 = pneg %p183
        $region34: #{image_encoder_forward.1} parent=11 // pred_check_branch
          %524 = sbr.rel (%p522) target = $region36
        $region35: #{image_encoder_forward.1} parent=11 // pred_region
          %s526 = ssub.s32 16384, 16384
          %527 = vsyncadd [#allocation5], %s526
          %s528 = sshll.u32 [#allocation4], 4
          %s529 = int_to_ptr.vmem [resolvable:$true] %s528
          %534 = dma.hbm_to_vmem [thread:$0]  %s6, 16384, %s529, [#allocation5], 128, 128, 8
        $region36: #{image_encoder_forward.1} parent=11 // pred_fallthru
          _
        // Predicated region
        $region37: #{image_encoder_forward.1} parent=11 // pred_check
          %p535 = pneg %p204
        $region38: #{image_encoder_forward.1} parent=11 // pred_check_branch
          %537 = sbr.rel (%p535) target = $region40
        $region39: #{image_encoder_forward.1} parent=11 // pred_region
          %s539 = ssub.s32 4608, 4608
          %540 = vsyncadd [#allocation5], %s539
          %s541 = sshll.u32 [#allocation6], 4
          %s542 = int_to_ptr.vmem [resolvable:$true] %s541
          %547 = dma.hbm_to_vmem [thread:$0]  %s7, 4608, %s542, [#allocation5], 128, 128, 8
        $region40: #{image_encoder_forward.1} parent=11 // pred_fallthru
          _
        // Predicated region
        $region41: #{image_encoder_forward.1} parent=11 // pred_check
          %p548 = pneg %p225
        $region42: #{image_encoder_forward.1} parent=11 // pred_check_branch
          %550 = sbr.rel (%p548) target = $region44
        $region43: #{image_encoder_forward.1} parent=11 // pred_region
          _
        $region44: #{image_encoder_forward.1} parent=11 // pred_fallthru
          _
        // Predicated region
        $region45: #{image_encoder_forward.1} parent=11 // pred_check
          %p551 = pneg %p246
        $region46: #{image_encoder_forward.1} parent=11 // pred_check_branch
          %553 = sbr.rel (%p551) target = $region48
        $region47: #{image_encoder_forward.1} parent=11 // pred_region
          %s555 = ssub.s32 2304, 2304
          %556 = vsyncadd [#allocation8], %s555
          %s557 = sshll.u32 [#allocation7], 4
          %s558 = int_to_ptr.vmem [resolvable:$true] %s557
          %563 = dma.hbm_to_vmem [thread:$0]  %s9, 2304, %s558, [#allocation8], 128, 128, 8
        $region48: #{image_encoder_forward.1} parent=11 // pred_fallthru
          _
        // Predicated region
        $region49: #{image_encoder_forward.1} parent=11 // pred_check
          %p564 = pneg %p267
        $region50: #{image_encoder_forward.1} parent=11 // pred_check_branch
          %566 = sbr.rel (%p564) target = $region52
        $region51: #{image_encoder_forward.1} parent=11 // pred_region
          %s568 = ssub.s32 1152, 1152
          %569 = vsyncadd [#allocation8], %s568
          %s570 = sshll.u32 [#allocation9], 4
          %s571 = int_to_ptr.vmem [resolvable:$true] %s570
          %576 = dma.hbm_to_vmem [thread:$0]  %s10, 1152, %s571, [#allocation8], 128, 128, 8
        $region52: #{image_encoder_forward.1} parent=11 // pred_fallthru
          _
        // Predicated region
        $region53: #{image_encoder_forward.1} parent=11 // pred_check
          %p577 = pneg %p288
        $region54: #{image_encoder_forward.1} parent=11 // pred_check_branch
          %579 = sbr.rel (%p577) target = $region56
        $region55: #{image_encoder_forward.1} parent=11 // pred_region
          _
        $region56: #{image_encoder_forward.1} parent=11 // pred_fallthru
          _
        // Predicated region
        $region57: #{image_encoder_forward.1} parent=11 // pred_check
          %p580 = pneg %p309
        $region58: #{image_encoder_forward.1} parent=11 // pred_check_branch
          %582 = sbr.rel (%p580) target = $region60
        $region59: #{image_encoder_forward.1} parent=11 // pred_region
          %s584 = ssub.s32 2304, 2304
          %585 = vsyncadd [#allocation11], %s584
          %s586 = sshll.u32 [#allocation10], 4
          %s587 = int_to_ptr.vmem [resolvable:$true] %s586
          %592 = dma.hbm_to_vmem [thread:$0]  %s12, 2304, %s587, [#allocation11], 128, 128, 8
        $region60: #{image_encoder_forward.1} parent=11 // pred_fallthru
          _
        // Predicated region
        $region61: #{image_encoder_forward.1} parent=11 // pred_check
          %p593 = pneg %p330
        $region62: #{image_encoder_forward.1} parent=11 // pred_check_branch
          %595 = sbr.rel (%p593) target = $region64
        $region63: #{image_encoder_forward.1} parent=11 // pred_region
          _
        $region64: #{image_encoder_forward.1} parent=11 // pred_fallthru
          _
        // Predicated region
        $region65: #{image_encoder_forward.1} parent=11 // pred_check
          %p596 = pneg %p351
        $region66: #{image_encoder_forward.1} parent=11 // pred_check_branch
          %598 = sbr.rel (%p596) target = $region68
        $region67: #{image_encoder_forward.1} parent=11 // pred_region
          _
        $region68: #{image_encoder_forward.1} parent=11 // pred_fallthru
          _
        // Predicated region
        $region69: #{image_encoder_forward.1} parent=11 // pred_check
          %p599 = pneg %p372
        $region70: #{image_encoder_forward.1} parent=11 // pred_check_branch
          %601 = sbr.rel (%p599) target = $region72
        $region71: #{image_encoder_forward.1} parent=11 // pred_region
          %s603 = ssub.s32 1152, 1152
          %604 = vsyncadd [#allocation11], %s603
          %s605 = sshll.u32 [#allocation12], 4
          %s606 = int_to_ptr.vmem [resolvable:$true] %s605
          %611 = dma.hbm_to_vmem [thread:$0]  %s15, 1152, %s606, [#allocation11], 128, 128, 8
        $region72: #{image_encoder_forward.1} parent=11 // pred_fallthru
          _
        // Predicated region
        $region73: #{image_encoder_forward.1} parent=11 // pred_check
          %p612 = pneg %p393
        $region74: #{image_encoder_forward.1} parent=11 // pred_check_branch
          %614 = sbr.rel (%p612) target = $region76
        $region75: #{image_encoder_forward.1} parent=11 // pred_region
          _
        $region76: #{image_encoder_forward.1} parent=11 // pred_fallthru
          _
        // Predicated region
        $region77: #{image_encoder_forward.1} parent=11 // pred_check
          %p615 = pneg %p414
        $region78: #{image_encoder_forward.1} parent=11 // pred_check_branch
          %617 = sbr.rel (%p615) target = $region80
        $region79: #{image_encoder_forward.1} parent=11 // pred_region
          %s619 = ssub.s32 2304, 2304
          %620 = vsyncadd [#allocation14], %s619
          %s621 = sshll.u32 [#allocation13], 4
          %s622 = int_to_ptr.vmem [resolvable:$true] %s621
          %627 = dma.hbm_to_vmem [thread:$0]  %s17, 2304, %s622, [#allocation14], 128, 128, 8
        $region80: #{image_encoder_forward.1} parent=11 // pred_fallthru
          _
        // Predicated region
        $region81: #{image_encoder_forward.1} parent=11 // pred_check
          %p628 = pneg %p435
        $region82: #{image_encoder_forward.1} parent=11 // pred_check_branch
          %630 = sbr.rel (%p628) target = $region84
        $region83: #{image_encoder_forward.1} parent=11 // pred_region
          _
        $region84: #{image_encoder_forward.1} parent=11 // pred_fallthru
          _
        // Predicated region
        $region85: #{image_encoder_forward.1} parent=11 // pred_check
          %p631 = pneg %p456
        $region86: #{image_encoder_forward.1} parent=11 // pred_check_branch
          %633 = sbr.rel (%p631) target = $region88
        $region87: #{image_encoder_forward.1} parent=11 // pred_region
          _
        $region88: #{image_encoder_forward.1} parent=11 // pred_fallthru
          _
      $region12: #{image_encoder_forward.1} parent=5 // pred_fallthru
        _
      %p634 = scmp.lt.s32.totalorder %s31, 2
      // Predicated region
      $region89: #{image_encoder_forward.1} parent=5 // pred_check
        %p635 = pneg %p634
      $region90: #{image_encoder_forward.1} parent=5 // pred_check_branch
        %637 = sbr.rel (%p635) target = $region92
      $region91: #{image_encoder_forward.1} parent=5 // pred_region
        // Predicated region
        $region93: #{image_encoder_forward.1} parent=91 // pred_check
          %p638 = pneg %p51
        $region94: #{image_encoder_forward.1} parent=91 // pred_check_branch
          %640 = sbr.rel (%p638) target = $region96
        $region95: #{image_encoder_forward.1} parent=91 // pred_region
          %p641 = scmp.lt.s32.totalorder %s31, 1
          %s642 = scalar_select %p641, %s31, 1
          %s643 = smul.addr %s642, 2
          %s644 = smul.addr %s643, 8
          %s645 = scalar_lea.vmem %s0, %s644
        $region96: #{image_encoder_forward.1} parent=91 // pred_fallthru
          _
      $region92: #{image_encoder_forward.1} parent=5 // pred_fallthru
        _
      %p646 = scmp.le.s32.totalorder 1, %s31
      %p647 = scmp.lt.s32.totalorder %s31, 3
      %p648 = pnand %p646, %p647
      %p649 = pneg %p648
      // Predicated region
      $region97: #{image_encoder_forward.1} parent=5 // pred_check
        _
      $region98: #{image_encoder_forward.1} parent=5 // pred_check_branch
        %651 = sbr.rel (%p648) target = $region100
      $region99: #{image_encoder_forward.1} parent=5 // pred_region
        %s652 = ssub.s32 %s31, 1
        // Predicated region
        $region101: #{image_encoder_forward.1} parent=99 // pred_check
          %p653 = pneg %p120
        $region102: #{image_encoder_forward.1} parent=99 // pred_check_branch
          %655 = sbr.rel (%p653) target = $region104
        $region103: #{image_encoder_forward.1} parent=99 // pred_region
          %656 = dma.done [#allocation3], 65536
        $region104: #{image_encoder_forward.1} parent=99 // pred_fallthru
          _
        // Predicated region
        $region105: #{image_encoder_forward.1} parent=99 // pred_check
          %p657 = pneg %p183
        $region106: #{image_encoder_forward.1} parent=99 // pred_check_branch
          %659 = sbr.rel (%p657) target = $region108
        $region107: #{image_encoder_forward.1} parent=99 // pred_region
          %660 = dma.done [#allocation5], 16384
        $region108: #{image_encoder_forward.1} parent=99 // pred_fallthru
          _
        // Predicated region
        $region109: #{image_encoder_forward.1} parent=99 // pred_check
          %p661 = pneg %p204
        $region110: #{image_encoder_forward.1} parent=99 // pred_check_branch
          %663 = sbr.rel (%p661) target = $region112
        $region111: #{image_encoder_forward.1} parent=99 // pred_region
          %664 = dma.done [#allocation5], 4608
        $region112: #{image_encoder_forward.1} parent=99 // pred_fallthru
          _
        // Predicated region
        $region113: #{image_encoder_forward.1} parent=99 // pred_check
          %p665 = pneg %p246
        $region114: #{image_encoder_forward.1} parent=99 // pred_check_branch
          %667 = sbr.rel (%p665) target = $region116
        $region115: #{image_encoder_forward.1} parent=99 // pred_region
          %668 = dma.done [#allocation8], 2304
        $region116: #{image_encoder_forward.1} parent=99 // pred_fallthru
          _
        // Predicated region
        $region117: #{image_encoder_forward.1} parent=99 // pred_check
          %p669 = pneg %p267
        $region118: #{image_encoder_forward.1} parent=99 // pred_check_branch
          %671 = sbr.rel (%p669) target = $region120
        $region119: #{image_encoder_forward.1} parent=99 // pred_region
          %672 = dma.done [#allocation8], 1152
        $region120: #{image_encoder_forward.1} parent=99 // pred_fallthru
          _
        // Predicated region
        $region121: #{image_encoder_forward.1} parent=99 // pred_check
          %p673 = pneg %p309
        $region122: #{image_encoder_forward.1} parent=99 // pred_check_branch
          %675 = sbr.rel (%p673) target = $region124
        $region123: #{image_encoder_forward.1} parent=99 // pred_region
          %676 = dma.done [#allocation11], 2304
        $region124: #{image_encoder_forward.1} parent=99 // pred_fallthru
          _
        // Predicated region
        $region125: #{image_encoder_forward.1} parent=99 // pred_check
          %p677 = pneg %p372
        $region126: #{image_encoder_forward.1} parent=99 // pred_check_branch
          %679 = sbr.rel (%p677) target = $region128
        $region127: #{image_encoder_forward.1} parent=99 // pred_region
          %680 = dma.done [#allocation11], 1152
        $region128: #{image_encoder_forward.1} parent=99 // pred_fallthru
          _
        // Predicated region
        $region129: #{image_encoder_forward.1} parent=99 // pred_check
          %p681 = pneg %p414
        $region130: #{image_encoder_forward.1} parent=99 // pred_check_branch
          %683 = sbr.rel (%p681) target = $region132
        $region131: #{image_encoder_forward.1} parent=99 // pred_region
          %684 = dma.done [#allocation14], 2304
        $region132: #{image_encoder_forward.1} parent=99 // pred_fallthru
          _
        %p685 = scmp.lt.s32.totalorder %s36, 1
        %s686 = scalar_select %p685, %s36, 1
        %s687 = smul.addr %s686, 2
        %s688 = smul.addr %s687, 8
        %s689 = scalar_lea.vmem %s0, %s688
        %p690 = pneg %p57
        %p691 = pneg %p54
        %p692 = pneg %p78
        %p693 = pneg %p75
        %p694 = pneg %p99
        %p695 = pneg %p96
        %p696 = pneg %p120
        %p697 = pneg %p117
        %p698 = pneg %p141
        %p699 = pneg %p138
        %p700 = pneg %p162
        %p701 = pneg %p159
        %p702 = pneg %p183
        %p703 = pneg %p180
        %p704 = pneg %p204
        %p705 = pneg %p201
        %p706 = pneg %p225
        %p707 = pneg %p222
        %p708 = pneg %p246
        %p709 = pneg %p243
        %p710 = pneg %p267
        %p711 = pneg %p264
        %p712 = pneg %p288
        %p713 = pneg %p285
        %p714 = pneg %p309
        %p715 = pneg %p306
        %p716 = pneg %p330
        %p717 = pneg %p327
        %p718 = pneg %p351
        %p719 = pneg %p348
        %p720 = pneg %p372
        %p721 = pneg %p369
        %p722 = pneg %p393
        %p723 = pneg %p390
        %p724 = pneg %p414
        %p725 = pneg %p411
        %p726 = pneg %p435
        %p727 = pneg %p432
        %p728 = pneg %p456
        %p729 = pneg %p453
        %p730 = pneg %p482
        %p731 = pneg %p479
        %p732 = scmp.lt.s32.totalorder %s36, 1
        %s733 = scalar_select %p732, %s36, 1
        %s734 = smul.addr %s733, 4
        %s735 = smul.addr %s734, 8
        %s736 = scalar_lea.vmem %s20, %s735
        %p737 = scmp.lt.s32.totalorder %s36, 1
        %s738 = scalar_select %p737, %s36, 1
        %s739 = smul.addr %s738, 2
        %s740 = smul.addr %s739, 8
        %s741 = scalar_lea.vmem %s0, %s740
        %p742 = scmp.lt.s32.totalorder %s36, 1
        %s743 = scalar_select %p742, %s36, 1
        %s744 = smul.addr %s743, 4
        %s745 = smul.addr %s744, 8
        %s746 = scalar_lea.vmem %s20, %s745
        %v747 = vld [vmem:[%s741] sm:$0xff]
        %v748 = vld [vmem:[%s741 + $0x8] sm:$0xff]
        %v749 = vld [vmem:[%s1] sm:$0xff]
        %v750 = vld [vmem:[%s1 + $0x8] sm:$0xff]
        %v751 = vld [vmem:[%s1 + $0x10] sm:$0xff]
        %v752 = vld [vmem:[%s1 + $0x18] sm:$0xff]
        %v753 = vld [vmem:[%s1 + $0x20] sm:$0xff]
        %v754 = vld [vmem:[%s1 + $0x28] sm:$0xff]
        %v755 = vld [vmem:[%s1 + $0x30] sm:$0xff]
        %v756 = vld [vmem:[%s1 + $0x38] sm:$0xff]
        %v757 = vld [vmem:[%s1 + $0x40] sm:$0xff]
        %v758 = vld [vmem:[%s1 + $0x48] sm:$0xff]
        %v759 = vld [vmem:[%s1 + $0x50] sm:$0xff]
        %v760 = vld [vmem:[%s1 + $0x58] sm:$0xff]
        %v761 = vld [vmem:[%s1 + $0x60] sm:$0xff]
        %v762 = vld [vmem:[%s1 + $0x68] sm:$0xff]
        %v763 = vld [vmem:[%s1 + $0x70] sm:$0xff]
        %v764 = vld [vmem:[%s1 + $0x78] sm:$0xff]
        %v765 = vld [vmem:[%s1 + $0x80] sm:$0xff]
        %v766 = vld [vmem:[%s1 + $0x88] sm:$0xff]
        %v767 = vld [vmem:[%s1 + $0x90] sm:$0xff]
        %v768 = vld [vmem:[%s1 + $0x98] sm:$0xff]
        %v769 = vld [vmem:[%s1 + $0xa0] sm:$0xff]
        %v770 = vld [vmem:[%s1 + $0xa8] sm:$0xff]
        %v771 = vld [vmem:[%s1 + $0xb0] sm:$0xff]
        %v772 = vld [vmem:[%s1 + $0xb8] sm:$0xff]
        %v773 = vld [vmem:[%s1 + $0xc0] sm:$0xff]
        %v774 = vld [vmem:[%s1 + $0xc8] sm:$0xff]
        %v775 = vld [vmem:[%s1 + $0xd0] sm:$0xff]
        %v776 = vld [vmem:[%s1 + $0xd8] sm:$0xff]
        %v777 = vld [vmem:[%s1 + $0xe0] sm:$0xff]
        %v778 = vld [vmem:[%s1 + $0xe8] sm:$0xff]
        %v779 = vld [vmem:[%s1 + $0xf0] sm:$0xff]
        %v780 = vld [vmem:[%s1 + $0xf8] sm:$0xff]
        %v781 = vld [vmem:[%s2] sm:$0xff]
        %v782 = vld [vmem:[%s2 + $0x8] sm:$0xff]
        %vm783 = vcmask 64512
        %v785 = vsel %vm783, %v749, 0
        %v788 = vsel %vm783, %v750, 0
        %v791 = vsel %vm783, %v751, 0
        %v794 = vsel %vm783, %v752, 0
        %v797 = vsel %vm783, %v753, 0
        %v800 = vsel %vm783, %v754, 0
        %v803 = vsel %vm783, %v755, 0
        %v806 = vsel %vm783, %v756, 0
        %v809 = vsel %vm783, %v757, 0
        %v812 = vsel %vm783, %v758, 0
        %v815 = vsel %vm783, %v759, 0
        %v818 = vsel %vm783, %v760, 0
        %v821 = vsel %vm783, %v761, 0
        %v824 = vsel %vm783, %v762, 0
        %v827 = vsel %vm783, %v763, 0
        %v830 = vsel %vm783, %v764, 0
        %v833 = vsel %vm783, %v765, 0
        %v836 = vsel %vm783, %v766, 0
        %v839 = vsel %vm783, %v767, 0
        %v842 = vsel %vm783, %v768, 0
        %v845 = vsel %vm783, %v769, 0
        %v848 = vsel %vm783, %v770, 0
        %v851 = vsel %vm783, %v771, 0
        %v854 = vsel %vm783, %v772, 0
        %v857 = vsel %vm783, %v773, 0
        %v860 = vsel %vm783, %v774, 0
        %v863 = vsel %vm783, %v775, 0
        %v866 = vsel %vm783, %v776, 0
        %v869 = vsel %vm783, %v777, 0
        %v872 = vsel %vm783, %v778, 0
        %v875 = vsel %vm783, %v779, 0
        %v878 = vsel %vm783, %v780, 0
        %880 = vmatprep.subr.mxu0 0.0
        %881 = vmatpush1.msra.mxu0 0.0
        %882 = vmatprep.subr.mxu0 0.0
        %883 = vmatpush1.msra.mxu0 0.0
        %884 = vmatprep.subr.mxu0 0.0
        %885 = vmatpush1.msra.mxu0 0.0
        %886 = vmatprep.subr.mxu0 0.0
        %887 = vmatpush1.msra.mxu0 0.0
        %888 = vmatprep.subr.mxu0 0.0
        %889 = vmatpush1.msra.mxu0 0.0
        %890 = vmatprep.subr.mxu0 0.0
        %891 = vmatpush1.msra.mxu0 0.0
        %892 = vmatprep.subr.mxu0 0.0
        %893 = vmatpush1.msra.mxu0 0.0
        %894 = vmatprep.subr.mxu0 0.0
        %895 = vmatpush1.msra.mxu0 0.0
        %896 = vmatprep.subr.mxu0 0.0
        %897 = vmatpush1.msra.mxu0 0.0
        %898 = vmatprep.subr.mxu0 0.0
        %899 = vmatpush1.msra.mxu0 0.0
        %900 = vmatprep.subr.mxu0 0.0
        %901 = vmatpush1.msra.mxu0 0.0
        %902 = vmatprep.subr.mxu0 0.0
        %903 = vmatpush1.msra.mxu0 0.0
        %904 = vmatprep.subr.mxu0 0.0
        %905 = vmatpush1.msra.mxu0 0.0
        %906 = vmatprep.subr.mxu0 0.0
        %907 = vmatpush1.msra.mxu0 0.0
        %908 = vmatprep.subr.mxu0 0.0
        %909 = vmatpush1.msra.mxu0 0.0
        %910 = vmatprep.subr.mxu0 %v748
        %911 = vmatpush1.msra.mxu0 %v747
        %912 = vmatprep.subr.mxu0 0.0
        %913 = vmatpush2.msra.mxu0 0.0
        %914 = vmatprep.subr.mxu0 0.0
        %915 = vmatpush2.msra.mxu0 0.0
        %916 = vmatprep.subr.mxu0 0.0
        %917 = vmatpush2.msra.mxu0 0.0
        %918 = vmatprep.subr.mxu0 0.0
        %919 = vmatpush2.msra.mxu0 0.0
        %920 = vmatprep.subr.mxu0 0.0
        %921 = vmatpush2.msra.mxu0 0.0
        %922 = vmatprep.subr.mxu0 0.0
        %923 = vmatpush2.msra.mxu0 0.0
        %924 = vmatprep.subr.mxu0 0.0
        %925 = vmatpush2.msra.mxu0 0.0
        %926 = vmatprep.subr.mxu0 0.0
        %927 = vmatpush2.msra.mxu0 0.0
        %928 = vmatprep.subr.mxu0 0.0
        %929 = vmatpush2.msra.mxu0 0.0
        %930 = vmatprep.subr.mxu0 0.0
        %931 = vmatpush2.msra.mxu0 0.0
        %932 = vmatprep.subr.mxu0 0.0
        %933 = vmatpush2.msra.mxu0 0.0
        %934 = vmatprep.subr.mxu0 0.0
        %935 = vmatpush2.msra.mxu0 0.0
        %936 = vmatprep.subr.mxu0 0.0
        %937 = vmatpush2.msra.mxu0 0.0
        %938 = vmatprep.subr.mxu0 0.0
        %939 = vmatpush2.msra.mxu0 0.0
        %940 = vmatprep.subr.mxu0 0.0
        %941 = vmatpush2.msra.mxu0 0.0
        %942 = vmatprep.subr.mxu0 0.0
        %943 = vmatpush2.msra.mxu0 0.0
        %944 = vmatprep.mubr.f32.mxu0 0.0
        %945 = vmatmul.mubr.f32.gmra.mxu0 %v785
        %v946 = vpop.f32.mrf.mxu0
        %v947 = vadd.f32 0.0, %v946
        %v948 = vpop.f32.mrf.mxu0
        %v949 = vadd.f32 0.0, %v948
        %950 = vmatprep.mubr.f32.mxu0 0.0
        %951 = vmatmul.mubr.f32.gmra.mxu0 %v788
        %v952 = vpop.f32.mrf.mxu0
        %v953 = vadd.f32 0.0, %v952
        %v954 = vpop.f32.mrf.mxu0
        %v955 = vadd.f32 0.0, %v954
        %956 = vmatprep.mubr.f32.mxu0 0.0
        %957 = vmatmul.mubr.f32.gmra.mxu0 %v791
        %v958 = vpop.f32.mrf.mxu0
        %v959 = vadd.f32 0.0, %v958
        %v960 = vpop.f32.mrf.mxu0
        %v961 = vadd.f32 0.0, %v960
        %962 = vmatprep.mubr.f32.mxu0 0.0
        %963 = vmatmul.mubr.f32.gmra.mxu0 %v794
        %v964 = vpop.f32.mrf.mxu0
        %v965 = vadd.f32 0.0, %v964
        %v966 = vpop.f32.mrf.mxu0
        %v967 = vadd.f32 0.0, %v966
        %968 = vmatprep.mubr.f32.mxu0 0.0
        %969 = vmatmul.mubr.f32.gmra.mxu0 %v797
        %v970 = vpop.f32.mrf.mxu0
        %v971 = vadd.f32 0.0, %v970
        %v972 = vpop.f32.mrf.mxu0
        %v973 = vadd.f32 0.0, %v972
        %974 = vmatprep.mubr.f32.mxu0 0.0
        %975 = vmatmul.mubr.f32.gmra.mxu0 %v800
        %v976 = vpop.f32.mrf.mxu0
        %v977 = vadd.f32 0.0, %v976
        %v978 = vpop.f32.mrf.mxu0
        %v979 = vadd.f32 0.0, %v978
        %980 = vmatprep.mubr.f32.mxu0 0.0
        %981 = vmatmul.mubr.f32.gmra.mxu0 %v803
        %v982 = vpop.f32.mrf.mxu0
        %v983 = vadd.f32 0.0, %v982
        %v984 = vpop.f32.mrf.mxu0
        %v985 = vadd.f32 0.0, %v984
        %986 = vmatprep.mubr.f32.mxu0 0.0
        %987 = vmatmul.mubr.f32.gmra.mxu0 %v806
        %v988 = vpop.f32.mrf.mxu0
        %v989 = vadd.f32 0.0, %v988
        %v990 = vpop.f32.mrf.mxu0
        %v991 = vadd.f32 0.0, %v990
        %992 = vmatprep.mubr.f32.mxu0 0.0
        %993 = vmatmul.mubr.f32.gmra.mxu0 %v809
        %v994 = vpop.f32.mrf.mxu0
        %v995 = vadd.f32 0.0, %v994
        %v996 = vpop.f32.mrf.mxu0
        %v997 = vadd.f32 0.0, %v996
        %998 = vmatprep.mubr.f32.mxu0 0.0
        %999 = vmatmul.mubr.f32.gmra.mxu0 %v812
        %v1000 = vpop.f32.mrf.mxu0
        %v1001 = vadd.f32 0.0, %v1000
        %v1002 = vpop.f32.mrf.mxu0
        %v1003 = vadd.f32 0.0, %v1002
        %1004 = vmatprep.mubr.f32.mxu0 0.0
        %1005 = vmatmul.mubr.f32.gmra.mxu0 %v815
        %v1006 = vpop.f32.mrf.mxu0
        %v1007 = vadd.f32 0.0, %v1006
        %v1008 = vpop.f32.mrf.mxu0
        %v1009 = vadd.f32 0.0, %v1008
        %1010 = vmatprep.mubr.f32.mxu0 0.0
        %1011 = vmatmul.mubr.f32.gmra.mxu0 %v818
        %v1012 = vpop.f32.mrf.mxu0
        %v1013 = vadd.f32 0.0, %v1012
        %v1014 = vpop.f32.mrf.mxu0
        %v1015 = vadd.f32 0.0, %v1014
        %1016 = vmatprep.mubr.f32.mxu0 0.0
        %1017 = vmatmul.mubr.f32.gmra.mxu0 %v821
        %v1018 = vpop.f32.mrf.mxu0
        %v1019 = vadd.f32 0.0, %v1018
        %v1020 = vpop.f32.mrf.mxu0
        %v1021 = vadd.f32 0.0, %v1020
        %1022 = vmatprep.mubr.f32.mxu0 0.0
        %1023 = vmatmul.mubr.f32.gmra.mxu0 %v824
        %v1024 = vpop.f32.mrf.mxu0
        %v1025 = vadd.f32 0.0, %v1024
        %v1026 = vpop.f32.mrf.mxu0
        %v1027 = vadd.f32 0.0, %v1026
        %1028 = vmatprep.mubr.f32.mxu0 0.0
        %1029 = vmatmul.mubr.f32.gmra.mxu0 %v827
        %v1030 = vpop.f32.mrf.mxu0
        %v1031 = vadd.f32 0.0, %v1030
        %v1032 = vpop.f32.mrf.mxu0
        %v1033 = vadd.f32 0.0, %v1032
        %1034 = vmatprep.mubr.f32.mxu0 0.0
        %1035 = vmatmul.mubr.f32.gmra.mxu0 %v830
        %v1036 = vpop.f32.mrf.mxu0
        %v1037 = vadd.f32 0.0, %v1036
        %v1038 = vpop.f32.mrf.mxu0
        %v1039 = vadd.f32 0.0, %v1038
        %1040 = vmatprep.mubr.f32.mxu0 0.0
        %1041 = vmatmul.mubr.f32.gmra.mxu0 %v833
        %v1042 = vpop.f32.mrf.mxu0
        %v1043 = vadd.f32 0.0, %v1042
        %v1044 = vpop.f32.mrf.mxu0
        %v1045 = vadd.f32 0.0, %v1044
        %1046 = vmatprep.mubr.f32.mxu0 0.0
        %1047 = vmatmul.mubr.f32.gmra.mxu0 %v836
        %v1048 = vpop.f32.mrf.mxu0
        %v1049 = vadd.f32 0.0, %v1048
        %v1050 = vpop.f32.mrf.mxu0
        %v1051 = vadd.f32 0.0, %v1050
        %1052 = vmatprep.mubr.f32.mxu0 0.0
        %1053 = vmatmul.mubr.f32.gmra.mxu0 %v839
        %v1054 = vpop.f32.mrf.mxu0
        %v1055 = vadd.f32 0.0, %v1054
        %v1056 = vpop.f32.mrf.mxu0
        %v1057 = vadd.f32 0.0, %v1056
        %1058 = vmatprep.mubr.f32.mxu0 0.0
        %1059 = vmatmul.mubr.f32.gmra.mxu0 %v842
        %v1060 = vpop.f32.mrf.mxu0
        %v1061 = vadd.f32 0.0, %v1060
        %v1062 = vpop.f32.mrf.mxu0
        %v1063 = vadd.f32 0.0, %v1062
        %1064 = vmatprep.mubr.f32.mxu0 0.0
        %1065 = vmatmul.mubr.f32.gmra.mxu0 %v845
        %v1066 = vpop.f32.mrf.mxu0
        %v1067 = vadd.f32 0.0, %v1066
        %v1068 = vpop.f32.mrf.mxu0
        %v1069 = vadd.f32 0.0, %v1068
        %1070 = vmatprep.mubr.f32.mxu0 0.0
        %1071 = vmatmul.mubr.f32.gmra.mxu0 %v848
        %v1072 = vpop.f32.mrf.mxu0
        %v1073 = vadd.f32 0.0, %v1072
        %v1074 = vpop.f32.mrf.mxu0
        %v1075 = vadd.f32 0.0, %v1074
        %1076 = vmatprep.mubr.f32.mxu0 0.0
        %1077 = vmatmul.mubr.f32.gmra.mxu0 %v851
        %v1078 = vpop.f32.mrf.mxu0
        %v1079 = vadd.f32 0.0, %v1078
        %v1080 = vpop.f32.mrf.mxu0
        %v1081 = vadd.f32 0.0, %v1080
        %1082 = vmatprep.mubr.f32.mxu0 0.0
        %1083 = vmatmul.mubr.f32.gmra.mxu0 %v854
        %v1084 = vpop.f32.mrf.mxu0
        %v1085 = vadd.f32 0.0, %v1084
        %v1086 = vpop.f32.mrf.mxu0
        %v1087 = vadd.f32 0.0, %v1086
        %1088 = vmatprep.mubr.f32.mxu0 0.0
        %1089 = vmatmul.mubr.f32.gmra.mxu0 %v857
        %v1090 = vpop.f32.mrf.mxu0
        %v1091 = vadd.f32 0.0, %v1090
        %v1092 = vpop.f32.mrf.mxu0
        %v1093 = vadd.f32 0.0, %v1092
        %1094 = vmatprep.mubr.f32.mxu0 0.0
        %1095 = vmatmul.mubr.f32.gmra.mxu0 %v860
        %v1096 = vpop.f32.mrf.mxu0
        %v1097 = vadd.f32 0.0, %v1096
        %v1098 = vpop.f32.mrf.mxu0
        %v1099 = vadd.f32 0.0, %v1098
        %1100 = vmatprep.mubr.f32.mxu0 0.0
        %1101 = vmatmul.mubr.f32.gmra.mxu0 %v863
        %v1102 = vpop.f32.mrf.mxu0
        %v1103 = vadd.f32 0.0, %v1102
        %v1104 = vpop.f32.mrf.mxu0
        %v1105 = vadd.f32 0.0, %v1104
        %1106 = vmatprep.mubr.f32.mxu0 0.0
        %1107 = vmatmul.mubr.f32.gmra.mxu0 %v866
        %v1108 = vpop.f32.mrf.mxu0
        %v1109 = vadd.f32 0.0, %v1108
        %v1110 = vpop.f32.mrf.mxu0
        %v1111 = vadd.f32 0.0, %v1110
        %1112 = vmatprep.mubr.f32.mxu0 0.0
        %1113 = vmatmul.mubr.f32.gmra.mxu0 %v869
        %v1114 = vpop.f32.mrf.mxu0
        %v1115 = vadd.f32 0.0, %v1114
        %v1116 = vpop.f32.mrf.mxu0
        %v1117 = vadd.f32 0.0, %v1116
        %1118 = vmatprep.mubr.f32.mxu0 0.0
        %1119 = vmatmul.mubr.f32.gmra.mxu0 %v872
        %v1120 = vpop.f32.mrf.mxu0
        %v1121 = vadd.f32 0.0, %v1120
        %v1122 = vpop.f32.mrf.mxu0
        %v1123 = vadd.f32 0.0, %v1122
        %1124 = vmatprep.mubr.f32.mxu0 0.0
        %1125 = vmatmul.mubr.f32.gmra.mxu0 %v875
        %v1126 = vpop.f32.mrf.mxu0
        %v1127 = vadd.f32 0.0, %v1126
        %v1128 = vpop.f32.mrf.mxu0
        %v1129 = vadd.f32 0.0, %v1128
        %1130 = vmatprep.mubr.f32.mxu0 0.0
        %1131 = vmatmul.mubr.f32.gmra.mxu0 %v878
        %v1132 = vpop.f32.mrf.mxu0
        %v1133 = vadd.f32 0.0, %v1132
        %v1134 = vpop.f32.mrf.mxu0
        %v1135 = vadd.f32 0.0, %v1134
        %1136 = vdwg.mxu0
        %v1137 = vld [vmem:[#allocation2] sm:$0xff]
        %v1138 = vld [vmem:[#allocation2 + $0x8] sm:$0xff]
        %v1139 = vld [vmem:[#allocation2 + $0x10] sm:$0xff]
        %v1140 = vld [vmem:[#allocation2 + $0x18] sm:$0xff]
        %v1141 = vld [vmem:[#allocation2 + $0x20] sm:$0xff]
        %v1142 = vld [vmem:[#allocation2 + $0x28] sm:$0xff]
        %v1143 = vld [vmem:[#allocation2 + $0x30] sm:$0xff]
        %v1144 = vld [vmem:[#allocation2 + $0x38] sm:$0xff]
        %v1145 = vld [vmem:[#allocation2 + $0x40] sm:$0xff]
        %v1146 = vld [vmem:[#allocation2 + $0x48] sm:$0xff]
        %v1147 = vld [vmem:[#allocation2 + $0x50] sm:$0xff]
        %v1148 = vld [vmem:[#allocation2 + $0x58] sm:$0xff]
        %v1149 = vld [vmem:[#allocation2 + $0x60] sm:$0xff]
        %v1150 = vld [vmem:[#allocation2 + $0x68] sm:$0xff]
        %v1151 = vld [vmem:[#allocation2 + $0x70] sm:$0xff]
        %v1152 = vld [vmem:[#allocation2 + $0x78] sm:$0xff]
        %v1153 = vld [vmem:[#allocation2 + $0x80] sm:$0xff]
        %v1154 = vld [vmem:[#allocation2 + $0x88] sm:$0xff]
        %v1155 = vld [vmem:[#allocation2 + $0x90] sm:$0xff]
        %v1156 = vld [vmem:[#allocation2 + $0x98] sm:$0xff]
        %v1157 = vld [vmem:[#allocation2 + $0xa0] sm:$0xff]
        %v1158 = vld [vmem:[#allocation2 + $0xa8] sm:$0xff]
        %v1159 = vld [vmem:[#allocation2 + $0xb0] sm:$0xff]
        %v1160 = vld [vmem:[#allocation2 + $0xb8] sm:$0xff]
        %v1161 = vld [vmem:[#allocation2 + $0xc0] sm:$0xff]
        %v1162 = vld [vmem:[#allocation2 + $0xc8] sm:$0xff]
        %v1163 = vld [vmem:[#allocation2 + $0xd0] sm:$0xff]
        %v1164 = vld [vmem:[#allocation2 + $0xd8] sm:$0xff]
        %v1165 = vld [vmem:[#allocation2 + $0xe0] sm:$0xff]
        %v1166 = vld [vmem:[#allocation2 + $0xe8] sm:$0xff]
        %v1167 = vld [vmem:[#allocation2 + $0xf0] sm:$0xff]
        %v1168 = vld [vmem:[#allocation2 + $0xf8] sm:$0xff]
        %s1169 = scalar_lea.vmem [#allocation2], 256
        %v1170 = vld [vmem:[%s1169] sm:$0xff]
        %v1171 = vld [vmem:[%s1169 + $0x8] sm:$0xff]
        %v1172 = vld [vmem:[%s1169 + $0x10] sm:$0xff]
        %v1173 = vld [vmem:[%s1169 + $0x18] sm:$0xff]
        %v1174 = vld [vmem:[%s1169 + $0x20] sm:$0xff]
        %v1175 = vld [vmem:[%s1169 + $0x28] sm:$0xff]
        %v1176 = vld [vmem:[%s1169 + $0x30] sm:$0xff]
        %v1177 = vld [vmem:[%s1169 + $0x38] sm:$0xff]
        %v1178 = vld [vmem:[%s1169 + $0x40] sm:$0xff]
        %v1179 = vld [vmem:[%s1169 + $0x48] sm:$0xff]
        %v1180 = vld [vmem:[%s1169 + $0x50] sm:$0xff]
        %v1181 = vld [vmem:[%s1169 + $0x58] sm:$0xff]
        %v1182 = vld [vmem:[%s1169 + $0x60] sm:$0xff]
        %v1183 = vld [vmem:[%s1169 + $0x68] sm:$0xff]
        %v1184 = vld [vmem:[%s1169 + $0x70] sm:$0xff]
        %v1185 = vld [vmem:[%s1169 + $0x78] sm:$0xff]
        %v1186 = vld [vmem:[%s1169 + $0x80] sm:$0xff]
        %v1187 = vld [vmem:[%s1169 + $0x88] sm:$0xff]
        %v1188 = vld [vmem:[%s1169 + $0x90] sm:$0xff]
        %v1189 = vld [vmem:[%s1169 + $0x98] sm:$0xff]
        %v1190 = vld [vmem:[%s1169 + $0xa0] sm:$0xff]
        %v1191 = vld [vmem:[%s1169 + $0xa8] sm:$0xff]
        %v1192 = vld [vmem:[%s1169 + $0xb0] sm:$0xff]
        %v1193 = vld [vmem:[%s1169 + $0xb8] sm:$0xff]
        %v1194 = vld [vmem:[%s1169 + $0xc0] sm:$0xff]
        %v1195 = vld [vmem:[%s1169 + $0xc8] sm:$0xff]
        %v1196 = vld [vmem:[%s1169 + $0xd0] sm:$0xff]
        %v1197 = vld [vmem:[%s1169 + $0xd8] sm:$0xff]
        %v1198 = vld [vmem:[%s1169 + $0xe0] sm:$0xff]
        %v1199 = vld [vmem:[%s1169 + $0xe8] sm:$0xff]
        %v1200 = vld [vmem:[%s1169 + $0xf0] sm:$0xff]
        %v1201 = vld [vmem:[%s1169 + $0xf8] sm:$0xff]
        %1202 = vmatprep.subr.mxu0 0.0
        %1203 = vmatpush1.msra.mxu0 %v1185
        %1204 = vmatprep.subr.mxu0 0.0
        %1205 = vmatpush1.msra.mxu0 %v1184
        %1206 = vmatprep.subr.mxu0 0.0
        %1207 = vmatpush1.msra.mxu0 %v1183
        %1208 = vmatprep.subr.mxu0 0.0
        %1209 = vmatpush1.msra.mxu0 %v1182
        %1210 = vmatprep.subr.mxu0 0.0
        %1211 = vmatpush1.msra.mxu0 %v1181
        %1212 = vmatprep.subr.mxu0 0.0
        %1213 = vmatpush1.msra.mxu0 %v1180
        %1214 = vmatprep.subr.mxu0 0.0
        %1215 = vmatpush1.msra.mxu0 %v1179
        %1216 = vmatprep.subr.mxu0 0.0
        %1217 = vmatpush1.msra.mxu0 %v1178
        %1218 = vmatprep.subr.mxu0 0.0
        %1219 = vmatpush1.msra.mxu0 %v1177
        %1220 = vmatprep.subr.mxu0 0.0
        %1221 = vmatpush1.msra.mxu0 %v1176
        %1222 = vmatprep.subr.mxu0 0.0
        %1223 = vmatpush1.msra.mxu0 %v1175
        %1224 = vmatprep.subr.mxu0 0.0
        %1225 = vmatpush1.msra.mxu0 %v1174
        %1226 = vmatprep.subr.mxu0 0.0
        %1227 = vmatpush1.msra.mxu0 %v1173
        %1228 = vmatprep.subr.mxu0 0.0
        %1229 = vmatpush1.msra.mxu0 %v1172
        %1230 = vmatprep.subr.mxu0 0.0
        %1231 = vmatpush1.msra.mxu0 %v1171
        %1232 = vmatprep.subr.mxu0 0.0
        %1233 = vmatpush1.msra.mxu0 %v1170
        %1234 = vmatprep.subr.mxu0 0.0
        %1235 = vmatpush2.msra.mxu0 %v1201
        %1236 = vmatprep.subr.mxu0 0.0
        %1237 = vmatpush2.msra.mxu0 %v1200
        %1238 = vmatprep.subr.mxu0 0.0
        %1239 = vmatpush2.msra.mxu0 %v1199
        %1240 = vmatprep.subr.mxu0 0.0
        %1241 = vmatpush2.msra.mxu0 %v1198
        %1242 = vmatprep.subr.mxu0 0.0
        %1243 = vmatpush2.msra.mxu0 %v1197
        %1244 = vmatprep.subr.mxu0 0.0
        %1245 = vmatpush2.msra.mxu0 %v1196
        %1246 = vmatprep.subr.mxu0 0.0
        %1247 = vmatpush2.msra.mxu0 %v1195
        %1248 = vmatprep.subr.mxu0 0.0
        %1249 = vmatpush2.msra.mxu0 %v1194
        %1250 = vmatprep.subr.mxu0 0.0
        %1251 = vmatpush2.msra.mxu0 %v1193
        %1252 = vmatprep.subr.mxu0 0.0
        %1253 = vmatpush2.msra.mxu0 %v1192
        %1254 = vmatprep.subr.mxu0 0.0
        %1255 = vmatpush2.msra.mxu0 %v1191
        %1256 = vmatprep.subr.mxu0 0.0
        %1257 = vmatpush2.msra.mxu0 %v1190
        %1258 = vmatprep.subr.mxu0 0.0
        %1259 = vmatpush2.msra.mxu0 %v1189
        %1260 = vmatprep.subr.mxu0 0.0
        %1261 = vmatpush2.msra.mxu0 %v1188
        %1262 = vmatprep.subr.mxu0 0.0
        %1263 = vmatpush2.msra.mxu0 %v1187
        %1264 = vmatprep.subr.mxu0 0.0
        %1265 = vmatpush2.msra.mxu0 %v1186
        %1266 = vmatprep.mubr.f32.mxu0 %v961
        %1267 = vmatmul.mubr.f32.gmra.mxu0 %v959
        %v1268 = vpop.f32.mrf.mxu0
        %v1269 = vadd.f32 0.0, %v1268
        %v1270 = vpop.f32.mrf.mxu0
        %1271 = vmatprep.mubr.f32.mxu0 %v967
        %1272 = vmatmul.mubr.f32.gmra.mxu0 %v965
        %v1273 = vpop.f32.mrf.mxu0
        %v1274 = vadd.f32 0.0, %v1273
        %v1275 = vpop.f32.mrf.mxu0
        %1276 = vdwg.mxu0
        %1277 = vmatprep.subr.mxu0 0.0
        %1278 = vmatpush1.msra.mxu0 %v1152
        %1279 = vmatprep.subr.mxu0 0.0
        %1280 = vmatpush1.msra.mxu0 %v1151
        %1281 = vmatprep.subr.mxu0 0.0
        %1282 = vmatpush1.msra.mxu0 %v1150
        %1283 = vmatprep.subr.mxu0 0.0
        %1284 = vmatpush1.msra.mxu0 %v1149
        %1285 = vmatprep.subr.mxu0 0.0
        %1286 = vmatpush1.msra.mxu0 %v1148
        %1287 = vmatprep.subr.mxu0 0.0
        %1288 = vmatpush1.msra.mxu0 %v1147
        %1289 = vmatprep.subr.mxu0 0.0
        %1290 = vmatpush1.msra.mxu0 %v1146
        %1291 = vmatprep.subr.mxu0 0.0
        %1292 = vmatpush1.msra.mxu0 %v1145
        %1293 = vmatprep.subr.mxu0 0.0
        %1294 = vmatpush1.msra.mxu0 %v1144
        %1295 = vmatprep.subr.mxu0 0.0
        %1296 = vmatpush1.msra.mxu0 %v1143
        %1297 = vmatprep.subr.mxu0 0.0
        %1298 = vmatpush1.msra.mxu0 %v1142
        %1299 = vmatprep.subr.mxu0 0.0
        %1300 = vmatpush1.msra.mxu0 %v1141
        %1301 = vmatprep.subr.mxu0 0.0
        %1302 = vmatpush1.msra.mxu0 %v1140
        %1303 = vmatprep.subr.mxu0 0.0
        %1304 = vmatpush1.msra.mxu0 %v1139
        %1305 = vmatprep.subr.mxu0 0.0
        %1306 = vmatpush1.msra.mxu0 %v1138
        %1307 = vmatprep.subr.mxu0 0.0
        %1308 = vmatpush1.msra.mxu0 %v1137
        %1309 = vmatprep.subr.mxu0 0.0
        %1310 = vmatpush2.msra.mxu0 %v1168
        %1311 = vmatprep.subr.mxu0 0.0
        %1312 = vmatpush2.msra.mxu0 %v1167
        %1313 = vmatprep.subr.mxu0 0.0
        %1314 = vmatpush2.msra.mxu0 %v1166
        %1315 = vmatprep.subr.mxu0 0.0
        %1316 = vmatpush2.msra.mxu0 %v1165
        %1317 = vmatprep.subr.mxu0 0.0
        %1318 = vmatpush2.msra.mxu0 %v1164
        %1319 = vmatprep.subr.mxu0 0.0
        %1320 = vmatpush2.msra.mxu0 %v1163
        %1321 = vmatprep.subr.mxu0 0.0
        %1322 = vmatpush2.msra.mxu0 %v1162
        %1323 = vmatprep.subr.mxu0 0.0
        %1324 = vmatpush2.msra.mxu0 %v1161
        %1325 = vmatprep.subr.mxu0 0.0
        %1326 = vmatpush2.msra.mxu0 %v1160
        %1327 = vmatprep.subr.mxu0 0.0
        %1328 = vmatpush2.msra.mxu0 %v1159
        %1329 = vmatprep.subr.mxu0 0.0
        %1330 = vmatpush2.msra.mxu0 %v1158
        %1331 = vmatprep.subr.mxu0 0.0
        %1332 = vmatpush2.msra.mxu0 %v1157
        %1333 = vmatprep.subr.mxu0 0.0
        %1334 = vmatpush2.msra.mxu0 %v1156
        %1335 = vmatprep.subr.mxu0 0.0
        %1336 = vmatpush2.msra.mxu0 %v1155
        %1337 = vmatprep.subr.mxu0 0.0
        %1338 = vmatpush2.msra.mxu0 %v1154
        %1339 = vmatprep.subr.mxu0 0.0
        %1340 = vmatpush2.msra.mxu0 %v1153
        %1341 = vmatprep.mubr.f32.mxu0 %v949
        %1342 = vmatmul.mubr.f32.gmra.mxu0 %v947
        %v1343 = vpop.f32.mrf.mxu0
        %v1344 = vadd.f32 %v1269, %v1343
        %v1345 = vpop.f32.mrf.mxu0
        %1346 = vmatprep.mubr.f32.mxu0 %v955
        %1347 = vmatmul.mubr.f32.gmra.mxu0 %v953
        %v1348 = vpop.f32.mrf.mxu0
        %v1349 = vadd.f32 %v1274, %v1348
        %v1350 = vpop.f32.mrf.mxu0
        %1351 = vdwg.mxu0
        %s1352 = scalar_lea.vmem [#allocation2], 512
        %v1353 = vld [vmem:[%s1352] sm:$0xff]
        %v1354 = vld [vmem:[%s1352 + $0x8] sm:$0xff]
        %v1355 = vld [vmem:[%s1352 + $0x10] sm:$0xff]
        %v1356 = vld [vmem:[%s1352 + $0x18] sm:$0xff]
        %v1357 = vld [vmem:[%s1352 + $0x20] sm:$0xff]
        %v1358 = vld [vmem:[%s1352 + $0x28] sm:$0xff]
        %v1359 = vld [vmem:[%s1352 + $0x30] sm:$0xff]
        %v1360 = vld [vmem:[%s1352 + $0x38] sm:$0xff]
        %v1361 = vld [vmem:[%s1352 + $0x40] sm:$0xff]
        %v1362 = vld [vmem:[%s1352 + $0x48] sm:$0xff]
        %v1363 = vld [vmem:[%s1352 + $0x50] sm:$0xff]
        %v1364 = vld [vmem:[%s1352 + $0x58] sm:$0xff]
        %v1365 = vld [vmem:[%s1352 + $0x60] sm:$0xff]
        %v1366 = vld [vmem:[%s1352 + $0x68] sm:$0xff]
        %v1367 = vld [vmem:[%s1352 + $0x70] sm:$0xff]
        %v1368 = vld [vmem:[%s1352 + $0x78] sm:$0xff]
        %v1369 = vld [vmem:[%s1352 + $0x80] sm:$0xff]
        %v1370 = vld [vmem:[%s1352 + $0x88] sm:$0xff]
        %v1371 = vld [vmem:[%s1352 + $0x90] sm:$0xff]
        %v1372 = vld [vmem:[%s1352 + $0x98] sm:$0xff]
        %v1373 = vld [vmem:[%s1352 + $0xa0] sm:$0xff]
        %v1374 = vld [vmem:[%s1352 + $0xa8] sm:$0xff]
        %v1375 = vld [vmem:[%s1352 + $0xb0] sm:$0xff]
        %v1376 = vld [vmem:[%s1352 + $0xb8] sm:$0xff]
        %v1377 = vld [vmem:[%s1352 + $0xc0] sm:$0xff]
        %v1378 = vld [vmem:[%s1352 + $0xc8] sm:$0xff]
        %v1379 = vld [vmem:[%s1352 + $0xd0] sm:$0xff]
        %v1380 = vld [vmem:[%s1352 + $0xd8] sm:$0xff]
        %v1381 = vld [vmem:[%s1352 + $0xe0] sm:$0xff]
        %v1382 = vld [vmem:[%s1352 + $0xe8] sm:$0xff]
        %v1383 = vld [vmem:[%s1352 + $0xf0] sm:$0xff]
        %v1384 = vld [vmem:[%s1352 + $0xf8] sm:$0xff]
        %1385 = vmatprep.subr.mxu0 0.0
        %1386 = vmatpush1.msra.mxu0 %v1368
        %1387 = vmatprep.subr.mxu0 0.0
        %1388 = vmatpush1.msra.mxu0 %v1367
        %1389 = vmatprep.subr.mxu0 0.0
        %1390 = vmatpush1.msra.mxu0 %v1366
        %1391 = vmatprep.subr.mxu0 0.0
        %1392 = vmatpush1.msra.mxu0 %v1365
        %1393 = vmatprep.subr.mxu0 0.0
        %1394 = vmatpush1.msra.mxu0 %v1364
        %1395 = vmatprep.subr.mxu0 0.0
        %1396 = vmatpush1.msra.mxu0 %v1363
        %1397 = vmatprep.subr.mxu0 0.0
        %1398 = vmatpush1.msra.mxu0 %v1362
        %1399 = vmatprep.subr.mxu0 0.0
        %1400 = vmatpush1.msra.mxu0 %v1361
        %1401 = vmatprep.subr.mxu0 0.0
        %1402 = vmatpush1.msra.mxu0 %v1360
        %1403 = vmatprep.subr.mxu0 0.0
        %1404 = vmatpush1.msra.mxu0 %v1359
        %1405 = vmatprep.subr.mxu0 0.0
        %1406 = vmatpush1.msra.mxu0 %v1358
        %1407 = vmatprep.subr.mxu0 0.0
        %1408 = vmatpush1.msra.mxu0 %v1357
        %1409 = vmatprep.subr.mxu0 0.0
        %1410 = vmatpush1.msra.mxu0 %v1356
        %1411 = vmatprep.subr.mxu0 0.0
        %1412 = vmatpush1.msra.mxu0 %v1355
        %1413 = vmatprep.subr.mxu0 0.0
        %1414 = vmatpush1.msra.mxu0 %v1354
        %1415 = vmatprep.subr.mxu0 0.0
        %1416 = vmatpush1.msra.mxu0 %v1353
        %1417 = vmatprep.subr.mxu0 0.0
        %1418 = vmatpush2.msra.mxu0 %v1384
        %1419 = vmatprep.subr.mxu0 0.0
        %1420 = vmatpush2.msra.mxu0 %v1383
        %1421 = vmatprep.subr.mxu0 0.0
        %1422 = vmatpush2.msra.mxu0 %v1382
        %1423 = vmatprep.subr.mxu0 0.0
        %1424 = vmatpush2.msra.mxu0 %v1381
        %1425 = vmatprep.subr.mxu0 0.0
        %1426 = vmatpush2.msra.mxu0 %v1380
        %1427 = vmatprep.subr.mxu0 0.0
        %1428 = vmatpush2.msra.mxu0 %v1379
        %1429 = vmatprep.subr.mxu0 0.0
        %1430 = vmatpush2.msra.mxu0 %v1378
        %1431 = vmatprep.subr.mxu0 0.0
        %1432 = vmatpush2.msra.mxu0 %v1377
        %1433 = vmatprep.subr.mxu0 0.0
        %1434 = vmatpush2.msra.mxu0 %v1376
        %1435 = vmatprep.subr.mxu0 0.0
        %1436 = vmatpush2.msra.mxu0 %v1375
        %1437 = vmatprep.subr.mxu0 0.0
        %1438 = vmatpush2.msra.mxu0 %v1374
        %1439 = vmatprep.subr.mxu0 0.0
        %1440 = vmatpush2.msra.mxu0 %v1373
        %1441 = vmatprep.subr.mxu0 0.0
        %1442 = vmatpush2.msra.mxu0 %v1372
        %1443 = vmatprep.subr.mxu0 0.0
        %1444 = vmatpush2.msra.mxu0 %v1371
        %1445 = vmatprep.subr.mxu0 0.0
        %1446 = vmatpush2.msra.mxu0 %v1370
        %1447 = vmatprep.subr.mxu0 0.0
        %1448 = vmatpush2.msra.mxu0 %v1369
        %1449 = vmatprep.mubr.f32.mxu0 %v973
        %1450 = vmatmul.mubr.f32.gmra.mxu0 %v971
        %v1451 = vpop.f32.mrf.mxu0
        %v1452 = vadd.f32 0.0, %v1451
        %v1453 = vpop.f32.mrf.mxu0
        %1454 = vmatprep.mubr.f32.mxu0 %v979
        %1455 = vmatmul.mubr.f32.gmra.mxu0 %v977
        %v1456 = vpop.f32.mrf.mxu0
        %v1457 = vadd.f32 0.0, %v1456
        %v1458 = vpop.f32.mrf.mxu0
        %1459 = vdwg.mxu0
        %v1460 = vadd.f32 %v1344, %v1452
        %v1461 = vadd.f32 %v1349, %v1457
        %s1462 = scalar_lea.vmem [#allocation2], 768
        %v1463 = vld [vmem:[%s1462] sm:$0xff]
        %v1464 = vld [vmem:[%s1462 + $0x8] sm:$0xff]
        %v1465 = vld [vmem:[%s1462 + $0x10] sm:$0xff]
        %v1466 = vld [vmem:[%s1462 + $0x18] sm:$0xff]
        %v1467 = vld [vmem:[%s1462 + $0x20] sm:$0xff]
        %v1468 = vld [vmem:[%s1462 + $0x28] sm:$0xff]
        %v1469 = vld [vmem:[%s1462 + $0x30] sm:$0xff]
        %v1470 = vld [vmem:[%s1462 + $0x38] sm:$0xff]
        %v1471 = vld [vmem:[%s1462 + $0x40] sm:$0xff]
        %v1472 = vld [vmem:[%s1462 + $0x48] sm:$0xff]
        %v1473 = vld [vmem:[%s1462 + $0x50] sm:$0xff]
        %v1474 = vld [vmem:[%s1462 + $0x58] sm:$0xff]
        %v1475 = vld [vmem:[%s1462 + $0x60] sm:$0xff]
        %v1476 = vld [vmem:[%s1462 + $0x68] sm:$0xff]
        %v1477 = vld [vmem:[%s1462 + $0x70] sm:$0xff]
        %v1478 = vld [vmem:[%s1462 + $0x78] sm:$0xff]
        %v1479 = vld [vmem:[%s1462 + $0x80] sm:$0xff]
        %v1480 = vld [vmem:[%s1462 + $0x88] sm:$0xff]
        %v1481 = vld [vmem:[%s1462 + $0x90] sm:$0xff]
        %v1482 = vld [vmem:[%s1462 + $0x98] sm:$0xff]
        %v1483 = vld [vmem:[%s1462 + $0xa0] sm:$0xff]
        %v1484 = vld [vmem:[%s1462 + $0xa8] sm:$0xff]
        %v1485 = vld [vmem:[%s1462 + $0xb0] sm:$0xff]
        %v1486 = vld [vmem:[%s1462 + $0xb8] sm:$0xff]
        %v1487 = vld [vmem:[%s1462 + $0xc0] sm:$0xff]
        %v1488 = vld [vmem:[%s1462 + $0xc8] sm:$0xff]
        %v1489 = vld [vmem:[%s1462 + $0xd0] sm:$0xff]
        %v1490 = vld [vmem:[%s1462 + $0xd8] sm:$0xff]
        %v1491 = vld [vmem:[%s1462 + $0xe0] sm:$0xff]
        %v1492 = vld [vmem:[%s1462 + $0xe8] sm:$0xff]
        %v1493 = vld [vmem:[%s1462 + $0xf0] sm:$0xff]
        %v1494 = vld [vmem:[%s1462 + $0xf8] sm:$0xff]
        %1495 = vmatprep.subr.mxu0 0.0
        %1496 = vmatpush1.msra.mxu0 %v1478
        %1497 = vmatprep.subr.mxu0 0.0
        %1498 = vmatpush1.msra.mxu0 %v1477
        %1499 = vmatprep.subr.mxu0 0.0
        %1500 = vmatpush1.msra.mxu0 %v1476
        %1501 = vmatprep.subr.mxu0 0.0
        %1502 = vmatpush1.msra.mxu0 %v1475
        %1503 = vmatprep.subr.mxu0 0.0
        %1504 = vmatpush1.msra.mxu0 %v1474
        %1505 = vmatprep.subr.mxu0 0.0
        %1506 = vmatpush1.msra.mxu0 %v1473
        %1507 = vmatprep.subr.mxu0 0.0
        %1508 = vmatpush1.msra.mxu0 %v1472
        %1509 = vmatprep.subr.mxu0 0.0
        %1510 = vmatpush1.msra.mxu0 %v1471
        %1511 = vmatprep.subr.mxu0 0.0
        %1512 = vmatpush1.msra.mxu0 %v1470
        %1513 = vmatprep.subr.mxu0 0.0
        %1514 = vmatpush1.msra.mxu0 %v1469
        %1515 = vmatprep.subr.mxu0 0.0
        %1516 = vmatpush1.msra.mxu0 %v1468
        %1517 = vmatprep.subr.mxu0 0.0
        %1518 = vmatpush1.msra.mxu0 %v1467
        %1519 = vmatprep.subr.mxu0 0.0
        %1520 = vmatpush1.msra.mxu0 %v1466
        %1521 = vmatprep.subr.mxu0 0.0
        %1522 = vmatpush1.msra.mxu0 %v1465
        %1523 = vmatprep.subr.mxu0 0.0
        %1524 = vmatpush1.msra.mxu0 %v1464
        %1525 = vmatprep.subr.mxu0 0.0
        %1526 = vmatpush1.msra.mxu0 %v1463
        %1527 = vmatprep.subr.mxu0 0.0
        %1528 = vmatpush2.msra.mxu0 %v1494
        %1529 = vmatprep.subr.mxu0 0.0
        %1530 = vmatpush2.msra.mxu0 %v1493
        %1531 = vmatprep.subr.mxu0 0.0
        %1532 = vmatpush2.msra.mxu0 %v1492
        %1533 = vmatprep.subr.mxu0 0.0
        %1534 = vmatpush2.msra.mxu0 %v1491
        %1535 = vmatprep.subr.mxu0 0.0
        %1536 = vmatpush2.msra.mxu0 %v1490
        %1537 = vmatprep.subr.mxu0 0.0
        %1538 = vmatpush2.msra.mxu0 %v1489
        %1539 = vmatprep.subr.mxu0 0.0
        %1540 = vmatpush2.msra.mxu0 %v1488
        %1541 = vmatprep.subr.mxu0 0.0
        %1542 = vmatpush2.msra.mxu0 %v1487
        %1543 = vmatprep.subr.mxu0 0.0
        %1544 = vmatpush2.msra.mxu0 %v1486
        %1545 = vmatprep.subr.mxu0 0.0
        %1546 = vmatpush2.msra.mxu0 %v1485
        %1547 = vmatprep.subr.mxu0 0.0
        %1548 = vmatpush2.msra.mxu0 %v1484
        %1549 = vmatprep.subr.mxu0 0.0
        %1550 = vmatpush2.msra.mxu0 %v1483
        %1551 = vmatprep.subr.mxu0 0.0
        %1552 = vmatpush2.msra.mxu0 %v1482
        %1553 = vmatprep.subr.mxu0 0.0
        %1554 = vmatpush2.msra.mxu0 %v1481
        %1555 = vmatprep.subr.mxu0 0.0
        %1556 = vmatpush2.msra.mxu0 %v1480
        %1557 = vmatprep.subr.mxu0 0.0
        %1558 = vmatpush2.msra.mxu0 %v1479
        %1559 = vmatprep.mubr.f32.mxu0 %v985
        %1560 = vmatmul.mubr.f32.gmra.mxu0 %v983
        %v1561 = vpop.f32.mrf.mxu0
        %v1562 = vadd.f32 0.0, %v1561
        %v1563 = vpop.f32.mrf.mxu0
        %1564 = vmatprep.mubr.f32.mxu0 %v991
        %1565 = vmatmul.mubr.f32.gmra.mxu0 %v989
        %v1566 = vpop.f32.mrf.mxu0
        %v1567 = vadd.f32 0.0, %v1566
        %v1568 = vpop.f32.mrf.mxu0
        %1569 = vdwg.mxu0
        %v1570 = vadd.f32 %v1460, %v1562
        %v1571 = vadd.f32 %v1461, %v1567
        %s1572 = scalar_lea.vmem [#allocation2], 1024
        %v1573 = vld [vmem:[%s1572] sm:$0xff]
        %v1574 = vld [vmem:[%s1572 + $0x8] sm:$0xff]
        %v1575 = vld [vmem:[%s1572 + $0x10] sm:$0xff]
        %v1576 = vld [vmem:[%s1572 + $0x18] sm:$0xff]
        %v1577 = vld [vmem:[%s1572 + $0x20] sm:$0xff]
        %v1578 = vld [vmem:[%s1572 + $0x28] sm:$0xff]
        %v1579 = vld [vmem:[%s1572 + $0x30] sm:$0xff]
        %v1580 = vld [vmem:[%s1572 + $0x38] sm:$0xff]
        %v1581 = vld [vmem:[%s1572 + $0x40] sm:$0xff]
        %v1582 = vld [vmem:[%s1572 + $0x48] sm:$0xff]
        %v1583 = vld [vmem:[%s1572 + $0x50] sm:$0xff]
        %v1584 = vld [vmem:[%s1572 + $0x58] sm:$0xff]
        %v1585 = vld [vmem:[%s1572 + $0x60] sm:$0xff]
        %v1586 = vld [vmem:[%s1572 + $0x68] sm:$0xff]
        %v1587 = vld [vmem:[%s1572 + $0x70] sm:$0xff]
        %v1588 = vld [vmem:[%s1572 + $0x78] sm:$0xff]
        %v1589 = vld [vmem:[%s1572 + $0x80] sm:$0xff]
        %v1590 = vld [vmem:[%s1572 + $0x88] sm:$0xff]
        %v1591 = vld [vmem:[%s1572 + $0x90] sm:$0xff]
        %v1592 = vld [vmem:[%s1572 + $0x98] sm:$0xff]
        %v1593 = vld [vmem:[%s1572 + $0xa0] sm:$0xff]
        %v1594 = vld [vmem:[%s1572 + $0xa8] sm:$0xff]
        %v1595 = vld [vmem:[%s1572 + $0xb0] sm:$0xff]
        %v1596 = vld [vmem:[%s1572 + $0xb8] sm:$0xff]
        %v1597 = vld [vmem:[%s1572 + $0xc0] sm:$0xff]
        %v1598 = vld [vmem:[%s1572 + $0xc8] sm:$0xff]
        %v1599 = vld [vmem:[%s1572 + $0xd0] sm:$0xff]
        %v1600 = vld [vmem:[%s1572 + $0xd8] sm:$0xff]
        %v1601 = vld [vmem:[%s1572 + $0xe0] sm:$0xff]
        %v1602 = vld [vmem:[%s1572 + $0xe8] sm:$0xff]
        %v1603 = vld [vmem:[%s1572 + $0xf0] sm:$0xff]
        %v1604 = vld [vmem:[%s1572 + $0xf8] sm:$0xff]
        %1605 = vmatprep.subr.mxu0 0.0
        %1606 = vmatpush1.msra.mxu0 %v1588
        %1607 = vmatprep.subr.mxu0 0.0
        %1608 = vmatpush1.msra.mxu0 %v1587
        %1609 = vmatprep.subr.mxu0 0.0
        %1610 = vmatpush1.msra.mxu0 %v1586
        %1611 = vmatprep.subr.mxu0 0.0
        %1612 = vmatpush1.msra.mxu0 %v1585
        %1613 = vmatprep.subr.mxu0 0.0
        %1614 = vmatpush1.msra.mxu0 %v1584
        %1615 = vmatprep.subr.mxu0 0.0
        %1616 = vmatpush1.msra.mxu0 %v1583
        %1617 = vmatprep.subr.mxu0 0.0
        %1618 = vmatpush1.msra.mxu0 %v1582
        %1619 = vmatprep.subr.mxu0 0.0
        %1620 = vmatpush1.msra.mxu0 %v1581
        %1621 = vmatprep.subr.mxu0 0.0
        %1622 = vmatpush1.msra.mxu0 %v1580
        %1623 = vmatprep.subr.mxu0 0.0
        %1624 = vmatpush1.msra.mxu0 %v1579
        %1625 = vmatprep.subr.mxu0 0.0
        %1626 = vmatpush1.msra.mxu0 %v1578
        %1627 = vmatprep.subr.mxu0 0.0
        %1628 = vmatpush1.msra.mxu0 %v1577
        %1629 = vmatprep.subr.mxu0 0.0
        %1630 = vmatpush1.msra.mxu0 %v1576
        %1631 = vmatprep.subr.mxu0 0.0
        %1632 = vmatpush1.msra.mxu0 %v1575
        %1633 = vmatprep.subr.mxu0 0.0
        %1634 = vmatpush1.msra.mxu0 %v1574
        %1635 = vmatprep.subr.mxu0 0.0
        %1636 = vmatpush1.msra.mxu0 %v1573
        %1637 = vmatprep.subr.mxu0 0.0
        %1638 = vmatpush2.msra.mxu0 %v1604
        %1639 = vmatprep.subr.mxu0 0.0
        %1640 = vmatpush2.msra.mxu0 %v1603
        %1641 = vmatprep.subr.mxu0 0.0
        %1642 = vmatpush2.msra.mxu0 %v1602
        %1643 = vmatprep.subr.mxu0 0.0
        %1644 = vmatpush2.msra.mxu0 %v1601
        %1645 = vmatprep.subr.mxu0 0.0
        %1646 = vmatpush2.msra.mxu0 %v1600
        %1647 = vmatprep.subr.mxu0 0.0
        %1648 = vmatpush2.msra.mxu0 %v1599
        %1649 = vmatprep.subr.mxu0 0.0
        %1650 = vmatpush2.msra.mxu0 %v1598
        %1651 = vmatprep.subr.mxu0 0.0
        %1652 = vmatpush2.msra.mxu0 %v1597
        %1653 = vmatprep.subr.mxu0 0.0
        %1654 = vmatpush2.msra.mxu0 %v1596
        %1655 = vmatprep.subr.mxu0 0.0
        %1656 = vmatpush2.msra.mxu0 %v1595
        %1657 = vmatprep.subr.mxu0 0.0
        %1658 = vmatpush2.msra.mxu0 %v1594
        %1659 = vmatprep.subr.mxu0 0.0
        %1660 = vmatpush2.msra.mxu0 %v1593
        %1661 = vmatprep.subr.mxu0 0.0
        %1662 = vmatpush2.msra.mxu0 %v1592
        %1663 = vmatprep.subr.mxu0 0.0
        %1664 = vmatpush2.msra.mxu0 %v1591
        %1665 = vmatprep.subr.mxu0 0.0
        %1666 = vmatpush2.msra.mxu0 %v1590
        %1667 = vmatprep.subr.mxu0 0.0
        %1668 = vmatpush2.msra.mxu0 %v1589
        %1669 = vmatprep.mubr.f32.mxu0 %v997
        %1670 = vmatmul.mubr.f32.gmra.mxu0 %v995
        %v1671 = vpop.f32.mrf.mxu0
        %v1672 = vadd.f32 0.0, %v1671
        %v1673 = vpop.f32.mrf.mxu0
        %1674 = vmatprep.mubr.f32.mxu0 %v1003
        %1675 = vmatmul.mubr.f32.gmra.mxu0 %v1001
        %v1676 = vpop.f32.mrf.mxu0
        %v1677 = vadd.f32 0.0, %v1676
        %v1678 = vpop.f32.mrf.mxu0
        %1679 = vdwg.mxu0
        %v1680 = vadd.f32 %v1570, %v1672
        %v1681 = vadd.f32 %v1571, %v1677
        %s1682 = scalar_lea.vmem [#allocation2], 1280
        %v1683 = vld [vmem:[%s1682] sm:$0xff]
        %v1684 = vld [vmem:[%s1682 + $0x8] sm:$0xff]
        %v1685 = vld [vmem:[%s1682 + $0x10] sm:$0xff]
        %v1686 = vld [vmem:[%s1682 + $0x18] sm:$0xff]
        %v1687 = vld [vmem:[%s1682 + $0x20] sm:$0xff]
        %v1688 = vld [vmem:[%s1682 + $0x28] sm:$0xff]
        %v1689 = vld [vmem:[%s1682 + $0x30] sm:$0xff]
        %v1690 = vld [vmem:[%s1682 + $0x38] sm:$0xff]
        %v1691 = vld [vmem:[%s1682 + $0x40] sm:$0xff]
        %v1692 = vld [vmem:[%s1682 + $0x48] sm:$0xff]
        %v1693 = vld [vmem:[%s1682 + $0x50] sm:$0xff]
        %v1694 = vld [vmem:[%s1682 + $0x58] sm:$0xff]
        %v1695 = vld [vmem:[%s1682 + $0x60] sm:$0xff]
        %v1696 = vld [vmem:[%s1682 + $0x68] sm:$0xff]
        %v1697 = vld [vmem:[%s1682 + $0x70] sm:$0xff]
        %v1698 = vld [vmem:[%s1682 + $0x78] sm:$0xff]
        %v1699 = vld [vmem:[%s1682 + $0x80] sm:$0xff]
        %v1700 = vld [vmem:[%s1682 + $0x88] sm:$0xff]
        %v1701 = vld [vmem:[%s1682 + $0x90] sm:$0xff]
        %v1702 = vld [vmem:[%s1682 + $0x98] sm:$0xff]
        %v1703 = vld [vmem:[%s1682 + $0xa0] sm:$0xff]
        %v1704 = vld [vmem:[%s1682 + $0xa8] sm:$0xff]
        %v1705 = vld [vmem:[%s1682 + $0xb0] sm:$0xff]
        %v1706 = vld [vmem:[%s1682 + $0xb8] sm:$0xff]
        %v1707 = vld [vmem:[%s1682 + $0xc0] sm:$0xff]
        %v1708 = vld [vmem:[%s1682 + $0xc8] sm:$0xff]
        %v1709 = vld [vmem:[%s1682 + $0xd0] sm:$0xff]
        %v1710 = vld [vmem:[%s1682 + $0xd8] sm:$0xff]
        %v1711 = vld [vmem:[%s1682 + $0xe0] sm:$0xff]
        %v1712 = vld [vmem:[%s1682 + $0xe8] sm:$0xff]
        %v1713 = vld [vmem:[%s1682 + $0xf0] sm:$0xff]
        %v1714 = vld [vmem:[%s1682 + $0xf8] sm:$0xff]
        %1715 = vmatprep.subr.mxu0 0.0
        %1716 = vmatpush1.msra.mxu0 %v1698
        %1717 = vmatprep.subr.mxu0 0.0
        %1718 = vmatpush1.msra.mxu0 %v1697
        %1719 = vmatprep.subr.mxu0 0.0
        %1720 = vmatpush1.msra.mxu0 %v1696
        %1721 = vmatprep.subr.mxu0 0.0
        %1722 = vmatpush1.msra.mxu0 %v1695
        %1723 = vmatprep.subr.mxu0 0.0
        %1724 = vmatpush1.msra.mxu0 %v1694
        %1725 = vmatprep.subr.mxu0 0.0
        %1726 = vmatpush1.msra.mxu0 %v1693
        %1727 = vmatprep.subr.mxu0 0.0
        %1728 = vmatpush1.msra.mxu0 %v1692
        %1729 = vmatprep.subr.mxu0 0.0
        %1730 = vmatpush1.msra.mxu0 %v1691
        %1731 = vmatprep.subr.mxu0 0.0
        %1732 = vmatpush1.msra.mxu0 %v1690
        %1733 = vmatprep.subr.mxu0 0.0
        %1734 = vmatpush1.msra.mxu0 %v1689
        %1735 = vmatprep.subr.mxu0 0.0
        %1736 = vmatpush1.msra.mxu0 %v1688
        %1737 = vmatprep.subr.mxu0 0.0
        %1738 = vmatpush1.msra.mxu0 %v1687
        %1739 = vmatprep.subr.mxu0 0.0
        %1740 = vmatpush1.msra.mxu0 %v1686
        %1741 = vmatprep.subr.mxu0 0.0
        %1742 = vmatpush1.msra.mxu0 %v1685
        %1743 = vmatprep.subr.mxu0 0.0
        %1744 = vmatpush1.msra.mxu0 %v1684
        %1745 = vmatprep.subr.mxu0 0.0
        %1746 = vmatpush1.msra.mxu0 %v1683
        %1747 = vmatprep.subr.mxu0 0.0
        %1748 = vmatpush2.msra.mxu0 %v1714
        %1749 = vmatprep.subr.mxu0 0.0
        %1750 = vmatpush2.msra.mxu0 %v1713
        %1751 = vmatprep.subr.mxu0 0.0
        %1752 = vmatpush2.msra.mxu0 %v1712
        %1753 = vmatprep.subr.mxu0 0.0
        %1754 = vmatpush2.msra.mxu0 %v1711
        %1755 = vmatprep.subr.mxu0 0.0
        %1756 = vmatpush2.msra.mxu0 %v1710
        %1757 = vmatprep.subr.mxu0 0.0
        %1758 = vmatpush2.msra.mxu0 %v1709
        %1759 = vmatprep.subr.mxu0 0.0
        %1760 = vmatpush2.msra.mxu0 %v1708
        %1761 = vmatprep.subr.mxu0 0.0
        %1762 = vmatpush2.msra.mxu0 %v1707
        %1763 = vmatprep.subr.mxu0 0.0
        %1764 = vmatpush2.msra.mxu0 %v1706
        %1765 = vmatprep.subr.mxu0 0.0
        %1766 = vmatpush2.msra.mxu0 %v1705
        %1767 = vmatprep.subr.mxu0 0.0
        %1768 = vmatpush2.msra.mxu0 %v1704
        %1769 = vmatprep.subr.mxu0 0.0
        %1770 = vmatpush2.msra.mxu0 %v1703
        %1771 = vmatprep.subr.mxu0 0.0
        %1772 = vmatpush2.msra.mxu0 %v1702
        %1773 = vmatprep.subr.mxu0 0.0
        %1774 = vmatpush2.msra.mxu0 %v1701
        %1775 = vmatprep.subr.mxu0 0.0
        %1776 = vmatpush2.msra.mxu0 %v1700
        %1777 = vmatprep.subr.mxu0 0.0
        %1778 = vmatpush2.msra.mxu0 %v1699
        %1779 = vmatprep.mubr.f32.mxu0 %v1009
        %1780 = vmatmul.mubr.f32.gmra.mxu0 %v1007
        %v1781 = vpop.f32.mrf.mxu0
        %v1782 = vadd.f32 0.0, %v1781
        %v1783 = vpop.f32.mrf.mxu0
        %1784 = vmatprep.mubr.f32.mxu0 %v1015
        %1785 = vmatmul.mubr.f32.gmra.mxu0 %v1013
        %v1786 = vpop.f32.mrf.mxu0
        %v1787 = vadd.f32 0.0, %v1786
        %v1788 = vpop.f32.mrf.mxu0
        %1789 = vdwg.mxu0
        %v1790 = vadd.f32 %v1680, %v1782
        %v1791 = vadd.f32 %v1681, %v1787
        %s1792 = scalar_lea.vmem [#allocation2], 1536
        %v1793 = vld [vmem:[%s1792] sm:$0xff]
        %v1794 = vld [vmem:[%s1792 + $0x8] sm:$0xff]
        %v1795 = vld [vmem:[%s1792 + $0x10] sm:$0xff]
        %v1796 = vld [vmem:[%s1792 + $0x18] sm:$0xff]
        %v1797 = vld [vmem:[%s1792 + $0x20] sm:$0xff]
        %v1798 = vld [vmem:[%s1792 + $0x28] sm:$0xff]
        %v1799 = vld [vmem:[%s1792 + $0x30] sm:$0xff]
        %v1800 = vld [vmem:[%s1792 + $0x38] sm:$0xff]
        %v1801 = vld [vmem:[%s1792 + $0x40] sm:$0xff]
        %v1802 = vld [vmem:[%s1792 + $0x48] sm:$0xff]
        %v1803 = vld [vmem:[%s1792 + $0x50] sm:$0xff]
        %v1804 = vld [vmem:[%s1792 + $0x58] sm:$0xff]
        %v1805 = vld [vmem:[%s1792 + $0x60] sm:$0xff]
        %v1806 = vld [vmem:[%s1792 + $0x68] sm:$0xff]
        %v1807 = vld [vmem:[%s1792 + $0x70] sm:$0xff]
        %v1808 = vld [vmem:[%s1792 + $0x78] sm:$0xff]
        %v1809 = vld [vmem:[%s1792 + $0x80] sm:$0xff]
        %v1810 = vld [vmem:[%s1792 + $0x88] sm:$0xff]
        %v1811 = vld [vmem:[%s1792 + $0x90] sm:$0xff]
        %v1812 = vld [vmem:[%s1792 + $0x98] sm:$0xff]
        %v1813 = vld [vmem:[%s1792 + $0xa0] sm:$0xff]
        %v1814 = vld [vmem:[%s1792 + $0xa8] sm:$0xff]
        %v1815 = vld [vmem:[%s1792 + $0xb0] sm:$0xff]
        %v1816 = vld [vmem:[%s1792 + $0xb8] sm:$0xff]
        %v1817 = vld [vmem:[%s1792 + $0xc0] sm:$0xff]
        %v1818 = vld [vmem:[%s1792 + $0xc8] sm:$0xff]
        %v1819 = vld [vmem:[%s1792 + $0xd0] sm:$0xff]
        %v1820 = vld [vmem:[%s1792 + $0xd8] sm:$0xff]
        %v1821 = vld [vmem:[%s1792 + $0xe0] sm:$0xff]
        %v1822 = vld [vmem:[%s1792 + $0xe8] sm:$0xff]
        %v1823 = vld [vmem:[%s1792 + $0xf0] sm:$0xff]
        %v1824 = vld [vmem:[%s1792 + $0xf8] sm:$0xff]
        %1825 = vmatprep.subr.mxu0 0.0
        %1826 = vmatpush1.msra.mxu0 %v1808
        %1827 = vmatprep.subr.mxu0 0.0
        %1828 = vmatpush1.msra.mxu0 %v1807
        %1829 = vmatprep.subr.mxu0 0.0
        %1830 = vmatpush1.msra.mxu0 %v1806
        %1831 = vmatprep.subr.mxu0 0.0
        %1832 = vmatpush1.msra.mxu0 %v1805
        %1833 = vmatprep.subr.mxu0 0.0
        %1834 = vmatpush1.msra.mxu0 %v1804
        %1835 = vmatprep.subr.mxu0 0.0
        %1836 = vmatpush1.msra.mxu0 %v1803
        %1837 = vmatprep.subr.mxu0 0.0
        %1838 = vmatpush1.msra.mxu0 %v1802
        %1839 = vmatprep.subr.mxu0 0.0
        %1840 = vmatpush1.msra.mxu0 %v1801
        %1841 = vmatprep.subr.mxu0 0.0
        %1842 = vmatpush1.msra.mxu0 %v1800
        %1843 = vmatprep.subr.mxu0 0.0
        %1844 = vmatpush1.msra.mxu0 %v1799
        %1845 = vmatprep.subr.mxu0 0.0
        %1846 = vmatpush1.msra.mxu0 %v1798
        %1847 = vmatprep.subr.mxu0 0.0
        %1848 = vmatpush1.msra.mxu0 %v1797
        %1849 = vmatprep.subr.mxu0 0.0
        %1850 = vmatpush1.msra.mxu0 %v1796
        %1851 = vmatprep.subr.mxu0 0.0
        %1852 = vmatpush1.msra.mxu0 %v1795
        %1853 = vmatprep.subr.mxu0 0.0
        %1854 = vmatpush1.msra.mxu0 %v1794
        %1855 = vmatprep.subr.mxu0 0.0
        %1856 = vmatpush1.msra.mxu0 %v1793
        %1857 = vmatprep.subr.mxu0 0.0
        %1858 = vmatpush2.msra.mxu0 %v1824
        %1859 = vmatprep.subr.mxu0 0.0
        %1860 = vmatpush2.msra.mxu0 %v1823
        %1861 = vmatprep.subr.mxu0 0.0
        %1862 = vmatpush2.msra.mxu0 %v1822
        %1863 = vmatprep.subr.mxu0 0.0
        %1864 = vmatpush2.msra.mxu0 %v1821
        %1865 = vmatprep.subr.mxu0 0.0
        %1866 = vmatpush2.msra.mxu0 %v1820
        %1867 = vmatprep.subr.mxu0 0.0
        %1868 = vmatpush2.msra.mxu0 %v1819
        %1869 = vmatprep.subr.mxu0 0.0
        %1870 = vmatpush2.msra.mxu0 %v1818
        %1871 = vmatprep.subr.mxu0 0.0
        %1872 = vmatpush2.msra.mxu0 %v1817
        %1873 = vmatprep.subr.mxu0 0.0
        %1874 = vmatpush2.msra.mxu0 %v1816
        %1875 = vmatprep.subr.mxu0 0.0
        %1876 = vmatpush2.msra.mxu0 %v1815
        %1877 = vmatprep.subr.mxu0 0.0
        %1878 = vmatpush2.msra.mxu0 %v1814
        %1879 = vmatprep.subr.mxu0 0.0
        %1880 = vmatpush2.msra.mxu0 %v1813
        %1881 = vmatprep.subr.mxu0 0.0
        %1882 = vmatpush2.msra.mxu0 %v1812
        %1883 = vmatprep.subr.mxu0 0.0
        %1884 = vmatpush2.msra.mxu0 %v1811
        %1885 = vmatprep.subr.mxu0 0.0
        %1886 = vmatpush2.msra.mxu0 %v1810
        %1887 = vmatprep.subr.mxu0 0.0
        %1888 = vmatpush2.msra.mxu0 %v1809
        %1889 = vmatprep.mubr.f32.mxu0 %v1021
        %1890 = vmatmul.mubr.f32.gmra.mxu0 %v1019
        %v1891 = vpop.f32.mrf.mxu0
        %v1892 = vadd.f32 0.0, %v1891
        %v1893 = vpop.f32.mrf.mxu0
        %1894 = vmatprep.mubr.f32.mxu0 %v1027
        %1895 = vmatmul.mubr.f32.gmra.mxu0 %v1025
        %v1896 = vpop.f32.mrf.mxu0
        %v1897 = vadd.f32 0.0, %v1896
        %v1898 = vpop.f32.mrf.mxu0
        %1899 = vdwg.mxu0
        %v1900 = vadd.f32 %v1790, %v1892
        %v1901 = vadd.f32 %v1791, %v1897
        %s1902 = scalar_lea.vmem [#allocation2], 1792
        %v1903 = vld [vmem:[%s1902] sm:$0xff]
        %v1904 = vld [vmem:[%s1902 + $0x8] sm:$0xff]
        %v1905 = vld [vmem:[%s1902 + $0x10] sm:$0xff]
        %v1906 = vld [vmem:[%s1902 + $0x18] sm:$0xff]
        %v1907 = vld [vmem:[%s1902 + $0x20] sm:$0xff]
        %v1908 = vld [vmem:[%s1902 + $0x28] sm:$0xff]
        %v1909 = vld [vmem:[%s1902 + $0x30] sm:$0xff]
        %v1910 = vld [vmem:[%s1902 + $0x38] sm:$0xff]
        %v1911 = vld [vmem:[%s1902 + $0x40] sm:$0xff]
        %v1912 = vld [vmem:[%s1902 + $0x48] sm:$0xff]
        %v1913 = vld [vmem:[%s1902 + $0x50] sm:$0xff]
        %v1914 = vld [vmem:[%s1902 + $0x58] sm:$0xff]
        %v1915 = vld [vmem:[%s1902 + $0x60] sm:$0xff]
        %v1916 = vld [vmem:[%s1902 + $0x68] sm:$0xff]
        %v1917 = vld [vmem:[%s1902 + $0x70] sm:$0xff]
        %v1918 = vld [vmem:[%s1902 + $0x78] sm:$0xff]
        %v1919 = vld [vmem:[%s1902 + $0x80] sm:$0xff]
        %v1920 = vld [vmem:[%s1902 + $0x88] sm:$0xff]
        %v1921 = vld [vmem:[%s1902 + $0x90] sm:$0xff]
        %v1922 = vld [vmem:[%s1902 + $0x98] sm:$0xff]
        %v1923 = vld [vmem:[%s1902 + $0xa0] sm:$0xff]
        %v1924 = vld [vmem:[%s1902 + $0xa8] sm:$0xff]
        %v1925 = vld [vmem:[%s1902 + $0xb0] sm:$0xff]
        %v1926 = vld [vmem:[%s1902 + $0xb8] sm:$0xff]
        %v1927 = vld [vmem:[%s1902 + $0xc0] sm:$0xff]
        %v1928 = vld [vmem:[%s1902 + $0xc8] sm:$0xff]
        %v1929 = vld [vmem:[%s1902 + $0xd0] sm:$0xff]
        %v1930 = vld [vmem:[%s1902 + $0xd8] sm:$0xff]
        %v1931 = vld [vmem:[%s1902 + $0xe0] sm:$0xff]
        %v1932 = vld [vmem:[%s1902 + $0xe8] sm:$0xff]
        %v1933 = vld [vmem:[%s1902 + $0xf0] sm:$0xff]
        %v1934 = vld [vmem:[%s1902 + $0xf8] sm:$0xff]
        %1935 = vmatprep.subr.mxu0 0.0
        %1936 = vmatpush1.msra.mxu0 %v1918
        %1937 = vmatprep.subr.mxu0 0.0
        %1938 = vmatpush1.msra.mxu0 %v1917
        %1939 = vmatprep.subr.mxu0 0.0
        %1940 = vmatpush1.msra.mxu0 %v1916
        %1941 = vmatprep.subr.mxu0 0.0
        %1942 = vmatpush1.msra.mxu0 %v1915
        %1943 = vmatprep.subr.mxu0 0.0
        %1944 = vmatpush1.msra.mxu0 %v1914
        %1945 = vmatprep.subr.mxu0 0.0
        %1946 = vmatpush1.msra.mxu0 %v1913
        %1947 = vmatprep.subr.mxu0 0.0
        %1948 = vmatpush1.msra.mxu0 %v1912
        %1949 = vmatprep.subr.mxu0 0.0
        %1950 = vmatpush1.msra.mxu0 %v1911
        %1951 = vmatprep.subr.mxu0 0.0
        %1952 = vmatpush1.msra.mxu0 %v1910
        %1953 = vmatprep.subr.mxu0 0.0
        %1954 = vmatpush1.msra.mxu0 %v1909
        %1955 = vmatprep.subr.mxu0 0.0
        %1956 = vmatpush1.msra.mxu0 %v1908
        %1957 = vmatprep.subr.mxu0 0.0
        %1958 = vmatpush1.msra.mxu0 %v1907
        %1959 = vmatprep.subr.mxu0 0.0
        %1960 = vmatpush1.msra.mxu0 %v1906
        %1961 = vmatprep.subr.mxu0 0.0
        %1962 = vmatpush1.msra.mxu0 %v1905
        %1963 = vmatprep.subr.mxu0 0.0
        %1964 = vmatpush1.msra.mxu0 %v1904
        %1965 = vmatprep.subr.mxu0 0.0
        %1966 = vmatpush1.msra.mxu0 %v1903
        %1967 = vmatprep.subr.mxu0 0.0
        %1968 = vmatpush2.msra.mxu0 %v1934
        %1969 = vmatprep.subr.mxu0 0.0
        %1970 = vmatpush2.msra.mxu0 %v1933
        %1971 = vmatprep.subr.mxu0 0.0
        %1972 = vmatpush2.msra.mxu0 %v1932
        %1973 = vmatprep.subr.mxu0 0.0
        %1974 = vmatpush2.msra.mxu0 %v1931
        %1975 = vmatprep.subr.mxu0 0.0
        %1976 = vmatpush2.msra.mxu0 %v1930
        %1977 = vmatprep.subr.mxu0 0.0
        %1978 = vmatpush2.msra.mxu0 %v1929
        %1979 = vmatprep.subr.mxu0 0.0
        %1980 = vmatpush2.msra.mxu0 %v1928
        %1981 = vmatprep.subr.mxu0 0.0
        %1982 = vmatpush2.msra.mxu0 %v1927
        %1983 = vmatprep.subr.mxu0 0.0
        %1984 = vmatpush2.msra.mxu0 %v1926
        %1985 = vmatprep.subr.mxu0 0.0
        %1986 = vmatpush2.msra.mxu0 %v1925
        %1987 = vmatprep.subr.mxu0 0.0
        %1988 = vmatpush2.msra.mxu0 %v1924
        %1989 = vmatprep.subr.mxu0 0.0
        %1990 = vmatpush2.msra.mxu0 %v1923
        %1991 = vmatprep.subr.mxu0 0.0
        %1992 = vmatpush2.msra.mxu0 %v1922
        %1993 = vmatprep.subr.mxu0 0.0
        %1994 = vmatpush2.msra.mxu0 %v1921
        %1995 = vmatprep.subr.mxu0 0.0
        %1996 = vmatpush2.msra.mxu0 %v1920
        %1997 = vmatprep.subr.mxu0 0.0
        %1998 = vmatpush2.msra.mxu0 %v1919
        %1999 = vmatprep.mubr.f32.mxu0 %v1033
        %2000 = vmatmul.mubr.f32.gmra.mxu0 %v1031
        %v2001 = vpop.f32.mrf.mxu0
        %v2002 = vadd.f32 0.0, %v2001
        %v2003 = vpop.f32.mrf.mxu0
        %2004 = vmatprep.mubr.f32.mxu0 %v1039
        %2005 = vmatmul.mubr.f32.gmra.mxu0 %v1037
        %v2006 = vpop.f32.mrf.mxu0
        %v2007 = vadd.f32 0.0, %v2006
        %v2008 = vpop.f32.mrf.mxu0
        %2009 = vdwg.mxu0
        %v2010 = vadd.f32 %v1900, %v2002
        %v2011 = vadd.f32 %v1901, %v2007
        %s2012 = scalar_lea.vmem [#allocation2], 2048
        %v2013 = vld [vmem:[%s2012] sm:$0xff]
        %v2014 = vld [vmem:[%s2012 + $0x8] sm:$0xff]
        %v2015 = vld [vmem:[%s2012 + $0x10] sm:$0xff]
        %v2016 = vld [vmem:[%s2012 + $0x18] sm:$0xff]
        %v2017 = vld [vmem:[%s2012 + $0x20] sm:$0xff]
        %v2018 = vld [vmem:[%s2012 + $0x28] sm:$0xff]
        %v2019 = vld [vmem:[%s2012 + $0x30] sm:$0xff]
        %v2020 = vld [vmem:[%s2012 + $0x38] sm:$0xff]
        %v2021 = vld [vmem:[%s2012 + $0x40] sm:$0xff]
        %v2022 = vld [vmem:[%s2012 + $0x48] sm:$0xff]
        %v2023 = vld [vmem:[%s2012 + $0x50] sm:$0xff]
        %v2024 = vld [vmem:[%s2012 + $0x58] sm:$0xff]
        %v2025 = vld [vmem:[%s2012 + $0x60] sm:$0xff]
        %v2026 = vld [vmem:[%s2012 + $0x68] sm:$0xff]
        %v2027 = vld [vmem:[%s2012 + $0x70] sm:$0xff]
        %v2028 = vld [vmem:[%s2012 + $0x78] sm:$0xff]
        %v2029 = vld [vmem:[%s2012 + $0x80] sm:$0xff]
        %v2030 = vld [vmem:[%s2012 + $0x88] sm:$0xff]
        %v2031 = vld [vmem:[%s2012 + $0x90] sm:$0xff]
        %v2032 = vld [vmem:[%s2012 + $0x98] sm:$0xff]
        %v2033 = vld [vmem:[%s2012 + $0xa0] sm:$0xff]
        %v2034 = vld [vmem:[%s2012 + $0xa8] sm:$0xff]
        %v2035 = vld [vmem:[%s2012 + $0xb0] sm:$0xff]
        %v2036 = vld [vmem:[%s2012 + $0xb8] sm:$0xff]
        %v2037 = vld [vmem:[%s2012 + $0xc0] sm:$0xff]
        %v2038 = vld [vmem:[%s2012 + $0xc8] sm:$0xff]
        %v2039 = vld [vmem:[%s2012 + $0xd0] sm:$0xff]
        %v2040 = vld [vmem:[%s2012 + $0xd8] sm:$0xff]
        %v2041 = vld [vmem:[%s2012 + $0xe0] sm:$0xff]
        %v2042 = vld [vmem:[%s2012 + $0xe8] sm:$0xff]
        %v2043 = vld [vmem:[%s2012 + $0xf0] sm:$0xff]
        %v2044 = vld [vmem:[%s2012 + $0xf8] sm:$0xff]
        %2045 = vmatprep.subr.mxu0 0.0
        %2046 = vmatpush1.msra.mxu0 %v2028
        %2047 = vmatprep.subr.mxu0 0.0
        %2048 = vmatpush1.msra.mxu0 %v2027
        %2049 = vmatprep.subr.mxu0 0.0
        %2050 = vmatpush1.msra.mxu0 %v2026
        %2051 = vmatprep.subr.mxu0 0.0
        %2052 = vmatpush1.msra.mxu0 %v2025
        %2053 = vmatprep.subr.mxu0 0.0
        %2054 = vmatpush1.msra.mxu0 %v2024
        %2055 = vmatprep.subr.mxu0 0.0
        %2056 = vmatpush1.msra.mxu0 %v2023
        %2057 = vmatprep.subr.mxu0 0.0
        %2058 = vmatpush1.msra.mxu0 %v2022
        %2059 = vmatprep.subr.mxu0 0.0
        %2060 = vmatpush1.msra.mxu0 %v2021
        %2061 = vmatprep.subr.mxu0 0.0
        %2062 = vmatpush1.msra.mxu0 %v2020
        %2063 = vmatprep.subr.mxu0 0.0
        %2064 = vmatpush1.msra.mxu0 %v2019
        %2065 = vmatprep.subr.mxu0 0.0
        %2066 = vmatpush1.msra.mxu0 %v2018
        %2067 = vmatprep.subr.mxu0 0.0
        %2068 = vmatpush1.msra.mxu0 %v2017
        %2069 = vmatprep.subr.mxu0 0.0
        %2070 = vmatpush1.msra.mxu0 %v2016
        %2071 = vmatprep.subr.mxu0 0.0
        %2072 = vmatpush1.msra.mxu0 %v2015
        %2073 = vmatprep.subr.mxu0 0.0
        %2074 = vmatpush1.msra.mxu0 %v2014
        %2075 = vmatprep.subr.mxu0 0.0
        %2076 = vmatpush1.msra.mxu0 %v2013
        %2077 = vmatprep.subr.mxu0 0.0
        %2078 = vmatpush2.msra.mxu0 %v2044
        %2079 = vmatprep.subr.mxu0 0.0
        %2080 = vmatpush2.msra.mxu0 %v2043
        %2081 = vmatprep.subr.mxu0 0.0
        %2082 = vmatpush2.msra.mxu0 %v2042
        %2083 = vmatprep.subr.mxu0 0.0
        %2084 = vmatpush2.msra.mxu0 %v2041
        %2085 = vmatprep.subr.mxu0 0.0
        %2086 = vmatpush2.msra.mxu0 %v2040
        %2087 = vmatprep.subr.mxu0 0.0
        %2088 = vmatpush2.msra.mxu0 %v2039
        %2089 = vmatprep.subr.mxu0 0.0
        %2090 = vmatpush2.msra.mxu0 %v2038
        %2091 = vmatprep.subr.mxu0 0.0
        %2092 = vmatpush2.msra.mxu0 %v2037
        %2093 = vmatprep.subr.mxu0 0.0
        %2094 = vmatpush2.msra.mxu0 %v2036
        %2095 = vmatprep.subr.mxu0 0.0
        %2096 = vmatpush2.msra.mxu0 %v2035
        %2097 = vmatprep.subr.mxu0 0.0
        %2098 = vmatpush2.msra.mxu0 %v2034
        %2099 = vmatprep.subr.mxu0 0.0
        %2100 = vmatpush2.msra.mxu0 %v2033
        %2101 = vmatprep.subr.mxu0 0.0
        %2102 = vmatpush2.msra.mxu0 %v2032
        %2103 = vmatprep.subr.mxu0 0.0
        %2104 = vmatpush2.msra.mxu0 %v2031
        %2105 = vmatprep.subr.mxu0 0.0
        %2106 = vmatpush2.msra.mxu0 %v2030
        %2107 = vmatprep.subr.mxu0 0.0
        %2108 = vmatpush2.msra.mxu0 %v2029
        %2109 = vmatprep.mubr.f32.mxu0 %v1045
        %2110 = vmatmul.mubr.f32.gmra.mxu0 %v1043
        %v2111 = vpop.f32.mrf.mxu0
        %v2112 = vadd.f32 0.0, %v2111
        %v2113 = vpop.f32.mrf.mxu0
        %2114 = vmatprep.mubr.f32.mxu0 %v1051
        %2115 = vmatmul.mubr.f32.gmra.mxu0 %v1049
        %v2116 = vpop.f32.mrf.mxu0
        %v2117 = vadd.f32 0.0, %v2116
        %v2118 = vpop.f32.mrf.mxu0
        %2119 = vdwg.mxu0
        %v2120 = vadd.f32 %v2010, %v2112
        %v2121 = vadd.f32 %v2011, %v2117
        %s2122 = scalar_lea.vmem [#allocation2], 2304
        %v2123 = vld [vmem:[%s2122] sm:$0xff]
        %v2124 = vld [vmem:[%s2122 + $0x8] sm:$0xff]
        %v2125 = vld [vmem:[%s2122 + $0x10] sm:$0xff]
        %v2126 = vld [vmem:[%s2122 + $0x18] sm:$0xff]
        %v2127 = vld [vmem:[%s2122 + $0x20] sm:$0xff]
        %v2128 = vld [vmem:[%s2122 + $0x28] sm:$0xff]
        %v2129 = vld [vmem:[%s2122 + $0x30] sm:$0xff]
        %v2130 = vld [vmem:[%s2122 + $0x38] sm:$0xff]
        %v2131 = vld [vmem:[%s2122 + $0x40] sm:$0xff]
        %v2132 = vld [vmem:[%s2122 + $0x48] sm:$0xff]
        %v2133 = vld [vmem:[%s2122 + $0x50] sm:$0xff]
        %v2134 = vld [vmem:[%s2122 + $0x58] sm:$0xff]
        %v2135 = vld [vmem:[%s2122 + $0x60] sm:$0xff]
        %v2136 = vld [vmem:[%s2122 + $0x68] sm:$0xff]
        %v2137 = vld [vmem:[%s2122 + $0x70] sm:$0xff]
        %v2138 = vld [vmem:[%s2122 + $0x78] sm:$0xff]
        %v2139 = vld [vmem:[%s2122 + $0x80] sm:$0xff]
        %v2140 = vld [vmem:[%s2122 + $0x88] sm:$0xff]
        %v2141 = vld [vmem:[%s2122 + $0x90] sm:$0xff]
        %v2142 = vld [vmem:[%s2122 + $0x98] sm:$0xff]
        %v2143 = vld [vmem:[%s2122 + $0xa0] sm:$0xff]
        %v2144 = vld [vmem:[%s2122 + $0xa8] sm:$0xff]
        %v2145 = vld [vmem:[%s2122 + $0xb0] sm:$0xff]
        %v2146 = vld [vmem:[%s2122 + $0xb8] sm:$0xff]
        %v2147 = vld [vmem:[%s2122 + $0xc0] sm:$0xff]
        %v2148 = vld [vmem:[%s2122 + $0xc8] sm:$0xff]
        %v2149 = vld [vmem:[%s2122 + $0xd0] sm:$0xff]
        %v2150 = vld [vmem:[%s2122 + $0xd8] sm:$0xff]
        %v2151 = vld [vmem:[%s2122 + $0xe0] sm:$0xff]
        %v2152 = vld [vmem:[%s2122 + $0xe8] sm:$0xff]
        %v2153 = vld [vmem:[%s2122 + $0xf0] sm:$0xff]
        %v2154 = vld [vmem:[%s2122 + $0xf8] sm:$0xff]
        %2155 = vmatprep.subr.mxu0 0.0
        %2156 = vmatpush1.msra.mxu0 %v2138
        %2157 = vmatprep.subr.mxu0 0.0
        %2158 = vmatpush1.msra.mxu0 %v2137
        %2159 = vmatprep.subr.mxu0 0.0
        %2160 = vmatpush1.msra.mxu0 %v2136
        %2161 = vmatprep.subr.mxu0 0.0
        %2162 = vmatpush1.msra.mxu0 %v2135
        %2163 = vmatprep.subr.mxu0 0.0
        %2164 = vmatpush1.msra.mxu0 %v2134
        %2165 = vmatprep.subr.mxu0 0.0
        %2166 = vmatpush1.msra.mxu0 %v2133
        %2167 = vmatprep.subr.mxu0 0.0
        %2168 = vmatpush1.msra.mxu0 %v2132
        %2169 = vmatprep.subr.mxu0 0.0
        %2170 = vmatpush1.msra.mxu0 %v2131
        %2171 = vmatprep.subr.mxu0 0.0
        %2172 = vmatpush1.msra.mxu0 %v2130
        %2173 = vmatprep.subr.mxu0 0.0
        %2174 = vmatpush1.msra.mxu0 %v2129
        %2175 = vmatprep.subr.mxu0 0.0
        %2176 = vmatpush1.msra.mxu0 %v2128
        %2177 = vmatprep.subr.mxu0 0.0
        %2178 = vmatpush1.msra.mxu0 %v2127
        %2179 = vmatprep.subr.mxu0 0.0
        %2180 = vmatpush1.msra.mxu0 %v2126
        %2181 = vmatprep.subr.mxu0 0.0
        %2182 = vmatpush1.msra.mxu0 %v2125
        %2183 = vmatprep.subr.mxu0 0.0
        %2184 = vmatpush1.msra.mxu0 %v2124
        %2185 = vmatprep.subr.mxu0 0.0
        %2186 = vmatpush1.msra.mxu0 %v2123
        %2187 = vmatprep.subr.mxu0 0.0
        %2188 = vmatpush2.msra.mxu0 %v2154
        %2189 = vmatprep.subr.mxu0 0.0
        %2190 = vmatpush2.msra.mxu0 %v2153
        %2191 = vmatprep.subr.mxu0 0.0
        %2192 = vmatpush2.msra.mxu0 %v2152
        %2193 = vmatprep.subr.mxu0 0.0
        %2194 = vmatpush2.msra.mxu0 %v2151
        %2195 = vmatprep.subr.mxu0 0.0
        %2196 = vmatpush2.msra.mxu0 %v2150
        %2197 = vmatprep.subr.mxu0 0.0
        %2198 = vmatpush2.msra.mxu0 %v2149
        %2199 = vmatprep.subr.mxu0 0.0
        %2200 = vmatpush2.msra.mxu0 %v2148
        %2201 = vmatprep.subr.mxu0 0.0
        %2202 = vmatpush2.msra.mxu0 %v2147
        %2203 = vmatprep.subr.mxu0 0.0
        %2204 = vmatpush2.msra.mxu0 %v2146
        %2205 = vmatprep.subr.mxu0 0.0
        %2206 = vmatpush2.msra.mxu0 %v2145
        %2207 = vmatprep.subr.mxu0 0.0
        %2208 = vmatpush2.msra.mxu0 %v2144
        %2209 = vmatprep.subr.mxu0 0.0
        %2210 = vmatpush2.msra.mxu0 %v2143
        %2211 = vmatprep.subr.mxu0 0.0
        %2212 = vmatpush2.msra.mxu0 %v2142
        %2213 = vmatprep.subr.mxu0 0.0
        %2214 = vmatpush2.msra.mxu0 %v2141
        %2215 = vmatprep.subr.mxu0 0.0
        %2216 = vmatpush2.msra.mxu0 %v2140
        %2217 = vmatprep.subr.mxu0 0.0
        %2218 = vmatpush2.msra.mxu0 %v2139
        %2219 = vmatprep.mubr.f32.mxu0 %v1057
        %2220 = vmatmul.mubr.f32.gmra.mxu0 %v1055
        %v2221 = vpop.f32.mrf.mxu0
        %v2222 = vadd.f32 0.0, %v2221
        %v2223 = vpop.f32.mrf.mxu0
        %2224 = vmatprep.mubr.f32.mxu0 %v1063
        %2225 = vmatmul.mubr.f32.gmra.mxu0 %v1061
        %v2226 = vpop.f32.mrf.mxu0
        %v2227 = vadd.f32 0.0, %v2226
        %v2228 = vpop.f32.mrf.mxu0
        %2229 = vdwg.mxu0
        %v2230 = vadd.f32 %v2120, %v2222
        %v2231 = vadd.f32 %v2121, %v2227
        %s2232 = scalar_lea.vmem [#allocation2], 2560
        %v2233 = vld [vmem:[%s2232] sm:$0xff]
        %v2234 = vld [vmem:[%s2232 + $0x8] sm:$0xff]
        %v2235 = vld [vmem:[%s2232 + $0x10] sm:$0xff]
        %v2236 = vld [vmem:[%s2232 + $0x18] sm:$0xff]
        %v2237 = vld [vmem:[%s2232 + $0x20] sm:$0xff]
        %v2238 = vld [vmem:[%s2232 + $0x28] sm:$0xff]
        %v2239 = vld [vmem:[%s2232 + $0x30] sm:$0xff]
        %v2240 = vld [vmem:[%s2232 + $0x38] sm:$0xff]
        %v2241 = vld [vmem:[%s2232 + $0x40] sm:$0xff]
        %v2242 = vld [vmem:[%s2232 + $0x48] sm:$0xff]
        %v2243 = vld [vmem:[%s2232 + $0x50] sm:$0xff]
        %v2244 = vld [vmem:[%s2232 + $0x58] sm:$0xff]
        %v2245 = vld [vmem:[%s2232 + $0x60] sm:$0xff]
        %v2246 = vld [vmem:[%s2232 + $0x68] sm:$0xff]
        %v2247 = vld [vmem:[%s2232 + $0x70] sm:$0xff]
        %v2248 = vld [vmem:[%s2232 + $0x78] sm:$0xff]
        %v2249 = vld [vmem:[%s2232 + $0x80] sm:$0xff]
        %v2250 = vld [vmem:[%s2232 + $0x88] sm:$0xff]
        %v2251 = vld [vmem:[%s2232 + $0x90] sm:$0xff]
        %v2252 = vld [vmem:[%s2232 + $0x98] sm:$0xff]
        %v2253 = vld [vmem:[%s2232 + $0xa0] sm:$0xff]
        %v2254 = vld [vmem:[%s2232 + $0xa8] sm:$0xff]
        %v2255 = vld [vmem:[%s2232 + $0xb0] sm:$0xff]
        %v2256 = vld [vmem:[%s2232 + $0xb8] sm:$0xff]
        %v2257 = vld [vmem:[%s2232 + $0xc0] sm:$0xff]
        %v2258 = vld [vmem:[%s2232 + $0xc8] sm:$0xff]
        %v2259 = vld [vmem:[%s2232 + $0xd0] sm:$0xff]
        %v2260 = vld [vmem:[%s2232 + $0xd8] sm:$0xff]
        %v2261 = vld [vmem:[%s2232 + $0xe0] sm:$0xff]
        %v2262 = vld [vmem:[%s2232 + $0xe8] sm:$0xff]
        %v2263 = vld [vmem:[%s2232 + $0xf0] sm:$0xff]
        %v2264 = vld [vmem:[%s2232 + $0xf8] sm:$0xff]
        %2265 = vmatprep.subr.mxu0 0.0
        %2266 = vmatpush1.msra.mxu0 %v2248
        %2267 = vmatprep.subr.mxu0 0.0
        %2268 = vmatpush1.msra.mxu0 %v2247
        %2269 = vmatprep.subr.mxu0 0.0
        %2270 = vmatpush1.msra.mxu0 %v2246
        %2271 = vmatprep.subr.mxu0 0.0
        %2272 = vmatpush1.msra.mxu0 %v2245
        %2273 = vmatprep.subr.mxu0 0.0
        %2274 = vmatpush1.msra.mxu0 %v2244
        %2275 = vmatprep.subr.mxu0 0.0
        %2276 = vmatpush1.msra.mxu0 %v2243
        %2277 = vmatprep.subr.mxu0 0.0
        %2278 = vmatpush1.msra.mxu0 %v2242
        %2279 = vmatprep.subr.mxu0 0.0
        %2280 = vmatpush1.msra.mxu0 %v2241
        %2281 = vmatprep.subr.mxu0 0.0
        %2282 = vmatpush1.msra.mxu0 %v2240
        %2283 = vmatprep.subr.mxu0 0.0
        %2284 = vmatpush1.msra.mxu0 %v2239
        %2285 = vmatprep.subr.mxu0 0.0
        %2286 = vmatpush1.msra.mxu0 %v2238
        %2287 = vmatprep.subr.mxu0 0.0
        %2288 = vmatpush1.msra.mxu0 %v2237
        %2289 = vmatprep.subr.mxu0 0.0
        %2290 = vmatpush1.msra.mxu0 %v2236
        %2291 = vmatprep.subr.mxu0 0.0
        %2292 = vmatpush1.msra.mxu0 %v2235
        %2293 = vmatprep.subr.mxu0 0.0
        %2294 = vmatpush1.msra.mxu0 %v2234
        %2295 = vmatprep.subr.mxu0 0.0
        %2296 = vmatpush1.msra.mxu0 %v2233
        %2297 = vmatprep.subr.mxu0 0.0
        %2298 = vmatpush2.msra.mxu0 %v2264
        %2299 = vmatprep.subr.mxu0 0.0
        %2300 = vmatpush2.msra.mxu0 %v2263
        %2301 = vmatprep.subr.mxu0 0.0
        %2302 = vmatpush2.msra.mxu0 %v2262
        %2303 = vmatprep.subr.mxu0 0.0
        %2304 = vmatpush2.msra.mxu0 %v2261
        %2305 = vmatprep.subr.mxu0 0.0
        %2306 = vmatpush2.msra.mxu0 %v2260
        %2307 = vmatprep.subr.mxu0 0.0
        %2308 = vmatpush2.msra.mxu0 %v2259
        %2309 = vmatprep.subr.mxu0 0.0
        %2310 = vmatpush2.msra.mxu0 %v2258
        %2311 = vmatprep.subr.mxu0 0.0
        %2312 = vmatpush2.msra.mxu0 %v2257
        %2313 = vmatprep.subr.mxu0 0.0
        %2314 = vmatpush2.msra.mxu0 %v2256
        %2315 = vmatprep.subr.mxu0 0.0
        %2316 = vmatpush2.msra.mxu0 %v2255
        %2317 = vmatprep.subr.mxu0 0.0
        %2318 = vmatpush2.msra.mxu0 %v2254
        %2319 = vmatprep.subr.mxu0 0.0
        %2320 = vmatpush2.msra.mxu0 %v2253
        %2321 = vmatprep.subr.mxu0 0.0
        %2322 = vmatpush2.msra.mxu0 %v2252
        %2323 = vmatprep.subr.mxu0 0.0
        %2324 = vmatpush2.msra.mxu0 %v2251
        %2325 = vmatprep.subr.mxu0 0.0
        %2326 = vmatpush2.msra.mxu0 %v2250
        %2327 = vmatprep.subr.mxu0 0.0
        %2328 = vmatpush2.msra.mxu0 %v2249
        %2329 = vmatprep.mubr.f32.mxu0 %v1069
        %2330 = vmatmul.mubr.f32.gmra.mxu0 %v1067
        %v2331 = vpop.f32.mrf.mxu0
        %v2332 = vadd.f32 0.0, %v2331
        %v2333 = vpop.f32.mrf.mxu0
        %2334 = vmatprep.mubr.f32.mxu0 %v1075
        %2335 = vmatmul.mubr.f32.gmra.mxu0 %v1073
        %v2336 = vpop.f32.mrf.mxu0
        %v2337 = vadd.f32 0.0, %v2336
        %v2338 = vpop.f32.mrf.mxu0
        %2339 = vdwg.mxu0
        %v2340 = vadd.f32 %v2230, %v2332
        %v2341 = vadd.f32 %v2231, %v2337
        %s2342 = scalar_lea.vmem [#allocation2], 2816
        %v2343 = vld [vmem:[%s2342] sm:$0xff]
        %v2344 = vld [vmem:[%s2342 + $0x8] sm:$0xff]
        %v2345 = vld [vmem:[%s2342 + $0x10] sm:$0xff]
        %v2346 = vld [vmem:[%s2342 + $0x18] sm:$0xff]
        %v2347 = vld [vmem:[%s2342 + $0x20] sm:$0xff]
        %v2348 = vld [vmem:[%s2342 + $0x28] sm:$0xff]
        %v2349 = vld [vmem:[%s2342 + $0x30] sm:$0xff]
        %v2350 = vld [vmem:[%s2342 + $0x38] sm:$0xff]
        %v2351 = vld [vmem:[%s2342 + $0x40] sm:$0xff]
        %v2352 = vld [vmem:[%s2342 + $0x48] sm:$0xff]
        %v2353 = vld [vmem:[%s2342 + $0x50] sm:$0xff]
        %v2354 = vld [vmem:[%s2342 + $0x58] sm:$0xff]
        %v2355 = vld [vmem:[%s2342 + $0x60] sm:$0xff]
        %v2356 = vld [vmem:[%s2342 + $0x68] sm:$0xff]
        %v2357 = vld [vmem:[%s2342 + $0x70] sm:$0xff]
        %v2358 = vld [vmem:[%s2342 + $0x78] sm:$0xff]
        %v2359 = vld [vmem:[%s2342 + $0x80] sm:$0xff]
        %v2360 = vld [vmem:[%s2342 + $0x88] sm:$0xff]
        %v2361 = vld [vmem:[%s2342 + $0x90] sm:$0xff]
        %v2362 = vld [vmem:[%s2342 + $0x98] sm:$0xff]
        %v2363 = vld [vmem:[%s2342 + $0xa0] sm:$0xff]
        %v2364 = vld [vmem:[%s2342 + $0xa8] sm:$0xff]
        %v2365 = vld [vmem:[%s2342 + $0xb0] sm:$0xff]
        %v2366 = vld [vmem:[%s2342 + $0xb8] sm:$0xff]
        %v2367 = vld [vmem:[%s2342 + $0xc0] sm:$0xff]
        %v2368 = vld [vmem:[%s2342 + $0xc8] sm:$0xff]
        %v2369 = vld [vmem:[%s2342 + $0xd0] sm:$0xff]
        %v2370 = vld [vmem:[%s2342 + $0xd8] sm:$0xff]
        %v2371 = vld [vmem:[%s2342 + $0xe0] sm:$0xff]
        %v2372 = vld [vmem:[%s2342 + $0xe8] sm:$0xff]
        %v2373 = vld [vmem:[%s2342 + $0xf0] sm:$0xff]
        %v2374 = vld [vmem:[%s2342 + $0xf8] sm:$0xff]
        %2375 = vmatprep.subr.mxu0 0.0
        %2376 = vmatpush1.msra.mxu0 %v2358
        %2377 = vmatprep.subr.mxu0 0.0
        %2378 = vmatpush1.msra.mxu0 %v2357
        %2379 = vmatprep.subr.mxu0 0.0
        %2380 = vmatpush1.msra.mxu0 %v2356
        %2381 = vmatprep.subr.mxu0 0.0
        %2382 = vmatpush1.msra.mxu0 %v2355
        %2383 = vmatprep.subr.mxu0 0.0
        %2384 = vmatpush1.msra.mxu0 %v2354
        %2385 = vmatprep.subr.mxu0 0.0
        %2386 = vmatpush1.msra.mxu0 %v2353
        %2387 = vmatprep.subr.mxu0 0.0
        %2388 = vmatpush1.msra.mxu0 %v2352
        %2389 = vmatprep.subr.mxu0 0.0
        %2390 = vmatpush1.msra.mxu0 %v2351
        %2391 = vmatprep.subr.mxu0 0.0
        %2392 = vmatpush1.msra.mxu0 %v2350
        %2393 = vmatprep.subr.mxu0 0.0
        %2394 = vmatpush1.msra.mxu0 %v2349
        %2395 = vmatprep.subr.mxu0 0.0
        %2396 = vmatpush1.msra.mxu0 %v2348
        %2397 = vmatprep.subr.mxu0 0.0
        %2398 = vmatpush1.msra.mxu0 %v2347
        %2399 = vmatprep.subr.mxu0 0.0
        %2400 = vmatpush1.msra.mxu0 %v2346
        %2401 = vmatprep.subr.mxu0 0.0
        %2402 = vmatpush1.msra.mxu0 %v2345
        %2403 = vmatprep.subr.mxu0 0.0
        %2404 = vmatpush1.msra.mxu0 %v2344
        %2405 = vmatprep.subr.mxu0 0.0
        %2406 = vmatpush1.msra.mxu0 %v2343
        %2407 = vmatprep.subr.mxu0 0.0
        %2408 = vmatpush2.msra.mxu0 %v2374
        %2409 = vmatprep.subr.mxu0 0.0
        %2410 = vmatpush2.msra.mxu0 %v2373
        %2411 = vmatprep.subr.mxu0 0.0
        %2412 = vmatpush2.msra.mxu0 %v2372
        %2413 = vmatprep.subr.mxu0 0.0
        %2414 = vmatpush2.msra.mxu0 %v2371
        %2415 = vmatprep.subr.mxu0 0.0
        %2416 = vmatpush2.msra.mxu0 %v2370
        %2417 = vmatprep.subr.mxu0 0.0
        %2418 = vmatpush2.msra.mxu0 %v2369
        %2419 = vmatprep.subr.mxu0 0.0
        %2420 = vmatpush2.msra.mxu0 %v2368
        %2421 = vmatprep.subr.mxu0 0.0
        %2422 = vmatpush2.msra.mxu0 %v2367
        %2423 = vmatprep.subr.mxu0 0.0
        %2424 = vmatpush2.msra.mxu0 %v2366
        %2425 = vmatprep.subr.mxu0 0.0
        %2426 = vmatpush2.msra.mxu0 %v2365
        %2427 = vmatprep.subr.mxu0 0.0
        %2428 = vmatpush2.msra.mxu0 %v2364
        %2429 = vmatprep.subr.mxu0 0.0
        %2430 = vmatpush2.msra.mxu0 %v2363
        %2431 = vmatprep.subr.mxu0 0.0
        %2432 = vmatpush2.msra.mxu0 %v2362
        %2433 = vmatprep.subr.mxu0 0.0
        %2434 = vmatpush2.msra.mxu0 %v2361
        %2435 = vmatprep.subr.mxu0 0.0
        %2436 = vmatpush2.msra.mxu0 %v2360
        %2437 = vmatprep.subr.mxu0 0.0
        %2438 = vmatpush2.msra.mxu0 %v2359
        %2439 = vmatprep.mubr.f32.mxu0 %v1081
        %2440 = vmatmul.mubr.f32.gmra.mxu0 %v1079
        %v2441 = vpop.f32.mrf.mxu0
        %v2442 = vadd.f32 0.0, %v2441
        %v2443 = vpop.f32.mrf.mxu0
        %2444 = vmatprep.mubr.f32.mxu0 %v1087
        %2445 = vmatmul.mubr.f32.gmra.mxu0 %v1085
        %v2446 = vpop.f32.mrf.mxu0
        %v2447 = vadd.f32 0.0, %v2446
        %v2448 = vpop.f32.mrf.mxu0
        %2449 = vdwg.mxu0
        %v2450 = vadd.f32 %v2340, %v2442
        %v2451 = vadd.f32 %v2341, %v2447
        %s2452 = scalar_lea.vmem [#allocation2], 3072
        %v2453 = vld [vmem:[%s2452] sm:$0xff]
        %v2454 = vld [vmem:[%s2452 + $0x8] sm:$0xff]
        %v2455 = vld [vmem:[%s2452 + $0x10] sm:$0xff]
        %v2456 = vld [vmem:[%s2452 + $0x18] sm:$0xff]
        %v2457 = vld [vmem:[%s2452 + $0x20] sm:$0xff]
        %v2458 = vld [vmem:[%s2452 + $0x28] sm:$0xff]
        %v2459 = vld [vmem:[%s2452 + $0x30] sm:$0xff]
        %v2460 = vld [vmem:[%s2452 + $0x38] sm:$0xff]
        %v2461 = vld [vmem:[%s2452 + $0x40] sm:$0xff]
        %v2462 = vld [vmem:[%s2452 + $0x48] sm:$0xff]
        %v2463 = vld [vmem:[%s2452 + $0x50] sm:$0xff]
        %v2464 = vld [vmem:[%s2452 + $0x58] sm:$0xff]
        %v2465 = vld [vmem:[%s2452 + $0x60] sm:$0xff]
        %v2466 = vld [vmem:[%s2452 + $0x68] sm:$0xff]
        %v2467 = vld [vmem:[%s2452 + $0x70] sm:$0xff]
        %v2468 = vld [vmem:[%s2452 + $0x78] sm:$0xff]
        %v2469 = vld [vmem:[%s2452 + $0x80] sm:$0xff]
        %v2470 = vld [vmem:[%s2452 + $0x88] sm:$0xff]
        %v2471 = vld [vmem:[%s2452 + $0x90] sm:$0xff]
        %v2472 = vld [vmem:[%s2452 + $0x98] sm:$0xff]
        %v2473 = vld [vmem:[%s2452 + $0xa0] sm:$0xff]
        %v2474 = vld [vmem:[%s2452 + $0xa8] sm:$0xff]
        %v2475 = vld [vmem:[%s2452 + $0xb0] sm:$0xff]
        %v2476 = vld [vmem:[%s2452 + $0xb8] sm:$0xff]
        %v2477 = vld [vmem:[%s2452 + $0xc0] sm:$0xff]
        %v2478 = vld [vmem:[%s2452 + $0xc8] sm:$0xff]
        %v2479 = vld [vmem:[%s2452 + $0xd0] sm:$0xff]
        %v2480 = vld [vmem:[%s2452 + $0xd8] sm:$0xff]
        %v2481 = vld [vmem:[%s2452 + $0xe0] sm:$0xff]
        %v2482 = vld [vmem:[%s2452 + $0xe8] sm:$0xff]
        %v2483 = vld [vmem:[%s2452 + $0xf0] sm:$0xff]
        %v2484 = vld [vmem:[%s2452 + $0xf8] sm:$0xff]
        %2485 = vmatprep.subr.mxu0 0.0
        %2486 = vmatpush1.msra.mxu0 %v2468
        %2487 = vmatprep.subr.mxu0 0.0
        %2488 = vmatpush1.msra.mxu0 %v2467
        %2489 = vmatprep.subr.mxu0 0.0
        %2490 = vmatpush1.msra.mxu0 %v2466
        %2491 = vmatprep.subr.mxu0 0.0
        %2492 = vmatpush1.msra.mxu0 %v2465
        %2493 = vmatprep.subr.mxu0 0.0
        %2494 = vmatpush1.msra.mxu0 %v2464
        %2495 = vmatprep.subr.mxu0 0.0
        %2496 = vmatpush1.msra.mxu0 %v2463
        %2497 = vmatprep.subr.mxu0 0.0
        %2498 = vmatpush1.msra.mxu0 %v2462
        %2499 = vmatprep.subr.mxu0 0.0
        %2500 = vmatpush1.msra.mxu0 %v2461
        %2501 = vmatprep.subr.mxu0 0.0
        %2502 = vmatpush1.msra.mxu0 %v2460
        %2503 = vmatprep.subr.mxu0 0.0
        %2504 = vmatpush1.msra.mxu0 %v2459
        %2505 = vmatprep.subr.mxu0 0.0
        %2506 = vmatpush1.msra.mxu0 %v2458
        %2507 = vmatprep.subr.mxu0 0.0
        %2508 = vmatpush1.msra.mxu0 %v2457
        %2509 = vmatprep.subr.mxu0 0.0
        %2510 = vmatpush1.msra.mxu0 %v2456
        %2511 = vmatprep.subr.mxu0 0.0
        %2512 = vmatpush1.msra.mxu0 %v2455
        %2513 = vmatprep.subr.mxu0 0.0
        %2514 = vmatpush1.msra.mxu0 %v2454
        %2515 = vmatprep.subr.mxu0 0.0
        %2516 = vmatpush1.msra.mxu0 %v2453
        %2517 = vmatprep.subr.mxu0 0.0
        %2518 = vmatpush2.msra.mxu0 %v2484
        %2519 = vmatprep.subr.mxu0 0.0
        %2520 = vmatpush2.msra.mxu0 %v2483
        %2521 = vmatprep.subr.mxu0 0.0
        %2522 = vmatpush2.msra.mxu0 %v2482
        %2523 = vmatprep.subr.mxu0 0.0
        %2524 = vmatpush2.msra.mxu0 %v2481
        %2525 = vmatprep.subr.mxu0 0.0
        %2526 = vmatpush2.msra.mxu0 %v2480
        %2527 = vmatprep.subr.mxu0 0.0
        %2528 = vmatpush2.msra.mxu0 %v2479
        %2529 = vmatprep.subr.mxu0 0.0
        %2530 = vmatpush2.msra.mxu0 %v2478
        %2531 = vmatprep.subr.mxu0 0.0
        %2532 = vmatpush2.msra.mxu0 %v2477
        %2533 = vmatprep.subr.mxu0 0.0
        %2534 = vmatpush2.msra.mxu0 %v2476
        %2535 = vmatprep.subr.mxu0 0.0
        %2536 = vmatpush2.msra.mxu0 %v2475
        %2537 = vmatprep.subr.mxu0 0.0
        %2538 = vmatpush2.msra.mxu0 %v2474
        %2539 = vmatprep.subr.mxu0 0.0
        %2540 = vmatpush2.msra.mxu0 %v2473
        %2541 = vmatprep.subr.mxu0 0.0
        %2542 = vmatpush2.msra.mxu0 %v2472
        %2543 = vmatprep.subr.mxu0 0.0
        %2544 = vmatpush2.msra.mxu0 %v2471
        %2545 = vmatprep.subr.mxu0 0.0
        %2546 = vmatpush2.msra.mxu0 %v2470
        %2547 = vmatprep.subr.mxu0 0.0
        %2548 = vmatpush2.msra.mxu0 %v2469
        %2549 = vmatprep.mubr.f32.mxu0 %v1093
        %2550 = vmatmul.mubr.f32.gmra.mxu0 %v1091
        %v2551 = vpop.f32.mrf.mxu0
        %v2552 = vadd.f32 0.0, %v2551
        %v2553 = vpop.f32.mrf.mxu0
        %2554 = vmatprep.mubr.f32.mxu0 %v1099
        %2555 = vmatmul.mubr.f32.gmra.mxu0 %v1097
        %v2556 = vpop.f32.mrf.mxu0
        %v2557 = vadd.f32 0.0, %v2556
        %v2558 = vpop.f32.mrf.mxu0
        %2559 = vdwg.mxu0
        %v2560 = vadd.f32 %v2450, %v2552
        %v2561 = vadd.f32 %v2451, %v2557
        %s2562 = scalar_lea.vmem [#allocation2], 3328
        %v2563 = vld [vmem:[%s2562] sm:$0xff]
        %v2564 = vld [vmem:[%s2562 + $0x8] sm:$0xff]
        %v2565 = vld [vmem:[%s2562 + $0x10] sm:$0xff]
        %v2566 = vld [vmem:[%s2562 + $0x18] sm:$0xff]
        %v2567 = vld [vmem:[%s2562 + $0x20] sm:$0xff]
        %v2568 = vld [vmem:[%s2562 + $0x28] sm:$0xff]
        %v2569 = vld [vmem:[%s2562 + $0x30] sm:$0xff]
        %v2570 = vld [vmem:[%s2562 + $0x38] sm:$0xff]
        %v2571 = vld [vmem:[%s2562 + $0x40] sm:$0xff]
        %v2572 = vld [vmem:[%s2562 + $0x48] sm:$0xff]
        %v2573 = vld [vmem:[%s2562 + $0x50] sm:$0xff]
        %v2574 = vld [vmem:[%s2562 + $0x58] sm:$0xff]
        %v2575 = vld [vmem:[%s2562 + $0x60] sm:$0xff]
        %v2576 = vld [vmem:[%s2562 + $0x68] sm:$0xff]
        %v2577 = vld [vmem:[%s2562 + $0x70] sm:$0xff]
        %v2578 = vld [vmem:[%s2562 + $0x78] sm:$0xff]
        %v2579 = vld [vmem:[%s2562 + $0x80] sm:$0xff]
        %v2580 = vld [vmem:[%s2562 + $0x88] sm:$0xff]
        %v2581 = vld [vmem:[%s2562 + $0x90] sm:$0xff]
        %v2582 = vld [vmem:[%s2562 + $0x98] sm:$0xff]
        %v2583 = vld [vmem:[%s2562 + $0xa0] sm:$0xff]
        %v2584 = vld [vmem:[%s2562 + $0xa8] sm:$0xff]
        %v2585 = vld [vmem:[%s2562 + $0xb0] sm:$0xff]
        %v2586 = vld [vmem:[%s2562 + $0xb8] sm:$0xff]
        %v2587 = vld [vmem:[%s2562 + $0xc0] sm:$0xff]
        %v2588 = vld [vmem:[%s2562 + $0xc8] sm:$0xff]
        %v2589 = vld [vmem:[%s2562 + $0xd0] sm:$0xff]
        %v2590 = vld [vmem:[%s2562 + $0xd8] sm:$0xff]
        %v2591 = vld [vmem:[%s2562 + $0xe0] sm:$0xff]
        %v2592 = vld [vmem:[%s2562 + $0xe8] sm:$0xff]
        %v2593 = vld [vmem:[%s2562 + $0xf0] sm:$0xff]
        %v2594 = vld [vmem:[%s2562 + $0xf8] sm:$0xff]
        %2595 = vmatprep.subr.mxu0 0.0
        %2596 = vmatpush1.msra.mxu0 %v2578
        %2597 = vmatprep.subr.mxu0 0.0
        %2598 = vmatpush1.msra.mxu0 %v2577
        %2599 = vmatprep.subr.mxu0 0.0
        %2600 = vmatpush1.msra.mxu0 %v2576
        %2601 = vmatprep.subr.mxu0 0.0
        %2602 = vmatpush1.msra.mxu0 %v2575
        %2603 = vmatprep.subr.mxu0 0.0
        %2604 = vmatpush1.msra.mxu0 %v2574
        %2605 = vmatprep.subr.mxu0 0.0
        %2606 = vmatpush1.msra.mxu0 %v2573
        %2607 = vmatprep.subr.mxu0 0.0
        %2608 = vmatpush1.msra.mxu0 %v2572
        %2609 = vmatprep.subr.mxu0 0.0
        %2610 = vmatpush1.msra.mxu0 %v2571
        %2611 = vmatprep.subr.mxu0 0.0
        %2612 = vmatpush1.msra.mxu0 %v2570
        %2613 = vmatprep.subr.mxu0 0.0
        %2614 = vmatpush1.msra.mxu0 %v2569
        %2615 = vmatprep.subr.mxu0 0.0
        %2616 = vmatpush1.msra.mxu0 %v2568
        %2617 = vmatprep.subr.mxu0 0.0
        %2618 = vmatpush1.msra.mxu0 %v2567
        %2619 = vmatprep.subr.mxu0 0.0
        %2620 = vmatpush1.msra.mxu0 %v2566
        %2621 = vmatprep.subr.mxu0 0.0
        %2622 = vmatpush1.msra.mxu0 %v2565
        %2623 = vmatprep.subr.mxu0 0.0
        %2624 = vmatpush1.msra.mxu0 %v2564
        %2625 = vmatprep.subr.mxu0 0.0
        %2626 = vmatpush1.msra.mxu0 %v2563
        %2627 = vmatprep.subr.mxu0 0.0
        %2628 = vmatpush2.msra.mxu0 %v2594
        %2629 = vmatprep.subr.mxu0 0.0
        %2630 = vmatpush2.msra.mxu0 %v2593
        %2631 = vmatprep.subr.mxu0 0.0
        %2632 = vmatpush2.msra.mxu0 %v2592
        %2633 = vmatprep.subr.mxu0 0.0
        %2634 = vmatpush2.msra.mxu0 %v2591
        %2635 = vmatprep.subr.mxu0 0.0
        %2636 = vmatpush2.msra.mxu0 %v2590
        %2637 = vmatprep.subr.mxu0 0.0
        %2638 = vmatpush2.msra.mxu0 %v2589
        %2639 = vmatprep.subr.mxu0 0.0
        %2640 = vmatpush2.msra.mxu0 %v2588
        %2641 = vmatprep.subr.mxu0 0.0
        %2642 = vmatpush2.msra.mxu0 %v2587
        %2643 = vmatprep.subr.mxu0 0.0
        %2644 = vmatpush2.msra.mxu0 %v2586
        %2645 = vmatprep.subr.mxu0 0.0
        %2646 = vmatpush2.msra.mxu0 %v2585
        %2647 = vmatprep.subr.mxu0 0.0
        %2648 = vmatpush2.msra.mxu0 %v2584
        %2649 = vmatprep.subr.mxu0 0.0
        %2650 = vmatpush2.msra.mxu0 %v2583
        %2651 = vmatprep.subr.mxu0 0.0
        %2652 = vmatpush2.msra.mxu0 %v2582
        %2653 = vmatprep.subr.mxu0 0.0
        %2654 = vmatpush2.msra.mxu0 %v2581
        %2655 = vmatprep.subr.mxu0 0.0
        %2656 = vmatpush2.msra.mxu0 %v2580
        %2657 = vmatprep.subr.mxu0 0.0
        %2658 = vmatpush2.msra.mxu0 %v2579
        %2659 = vmatprep.mubr.f32.mxu0 %v1105
        %2660 = vmatmul.mubr.f32.gmra.mxu0 %v1103
        %v2661 = vpop.f32.mrf.mxu0
        %v2662 = vadd.f32 0.0, %v2661
        %v2663 = vpop.f32.mrf.mxu0
        %2664 = vmatprep.mubr.f32.mxu0 %v1111
        %2665 = vmatmul.mubr.f32.gmra.mxu0 %v1109
        %v2666 = vpop.f32.mrf.mxu0
        %v2667 = vadd.f32 0.0, %v2666
        %v2668 = vpop.f32.mrf.mxu0
        %2669 = vdwg.mxu0
        %v2670 = vadd.f32 %v2560, %v2662
        %v2671 = vadd.f32 %v2561, %v2667
        %s2672 = scalar_lea.vmem [#allocation2], 3584
        %v2673 = vld [vmem:[%s2672] sm:$0xff]
        %v2674 = vld [vmem:[%s2672 + $0x8] sm:$0xff]
        %v2675 = vld [vmem:[%s2672 + $0x10] sm:$0xff]
        %v2676 = vld [vmem:[%s2672 + $0x18] sm:$0xff]
        %v2677 = vld [vmem:[%s2672 + $0x20] sm:$0xff]
        %v2678 = vld [vmem:[%s2672 + $0x28] sm:$0xff]
        %v2679 = vld [vmem:[%s2672 + $0x30] sm:$0xff]
        %v2680 = vld [vmem:[%s2672 + $0x38] sm:$0xff]
        %v2681 = vld [vmem:[%s2672 + $0x40] sm:$0xff]
        %v2682 = vld [vmem:[%s2672 + $0x48] sm:$0xff]
        %v2683 = vld [vmem:[%s2672 + $0x50] sm:$0xff]
        %v2684 = vld [vmem:[%s2672 + $0x58] sm:$0xff]
        %v2685 = vld [vmem:[%s2672 + $0x60] sm:$0xff]
        %v2686 = vld [vmem:[%s2672 + $0x68] sm:$0xff]
        %v2687 = vld [vmem:[%s2672 + $0x70] sm:$0xff]
        %v2688 = vld [vmem:[%s2672 + $0x78] sm:$0xff]
        %v2689 = vld [vmem:[%s2672 + $0x80] sm:$0xff]
        %v2690 = vld [vmem:[%s2672 + $0x88] sm:$0xff]
        %v2691 = vld [vmem:[%s2672 + $0x90] sm:$0xff]
        %v2692 = vld [vmem:[%s2672 + $0x98] sm:$0xff]
        %v2693 = vld [vmem:[%s2672 + $0xa0] sm:$0xff]
        %v2694 = vld [vmem:[%s2672 + $0xa8] sm:$0xff]
        %v2695 = vld [vmem:[%s2672 + $0xb0] sm:$0xff]
        %v2696 = vld [vmem:[%s2672 + $0xb8] sm:$0xff]
        %v2697 = vld [vmem:[%s2672 + $0xc0] sm:$0xff]
        %v2698 = vld [vmem:[%s2672 + $0xc8] sm:$0xff]
        %v2699 = vld [vmem:[%s2672 + $0xd0] sm:$0xff]
        %v2700 = vld [vmem:[%s2672 + $0xd8] sm:$0xff]
        %v2701 = vld [vmem:[%s2672 + $0xe0] sm:$0xff]
        %v2702 = vld [vmem:[%s2672 + $0xe8] sm:$0xff]
        %v2703 = vld [vmem:[%s2672 + $0xf0] sm:$0xff]
        %v2704 = vld [vmem:[%s2672 + $0xf8] sm:$0xff]
        %2705 = vmatprep.subr.mxu0 0.0
        %2706 = vmatpush1.msra.mxu0 %v2688
        %2707 = vmatprep.subr.mxu0 0.0
        %2708 = vmatpush1.msra.mxu0 %v2687
        %2709 = vmatprep.subr.mxu0 0.0
        %2710 = vmatpush1.msra.mxu0 %v2686
        %2711 = vmatprep.subr.mxu0 0.0
        %2712 = vmatpush1.msra.mxu0 %v2685
        %2713 = vmatprep.subr.mxu0 0.0
        %2714 = vmatpush1.msra.mxu0 %v2684
        %2715 = vmatprep.subr.mxu0 0.0
        %2716 = vmatpush1.msra.mxu0 %v2683
        %2717 = vmatprep.subr.mxu0 0.0
        %2718 = vmatpush1.msra.mxu0 %v2682
        %2719 = vmatprep.subr.mxu0 0.0
        %2720 = vmatpush1.msra.mxu0 %v2681
        %2721 = vmatprep.subr.mxu0 0.0
        %2722 = vmatpush1.msra.mxu0 %v2680
        %2723 = vmatprep.subr.mxu0 0.0
        %2724 = vmatpush1.msra.mxu0 %v2679
        %2725 = vmatprep.subr.mxu0 0.0
        %2726 = vmatpush1.msra.mxu0 %v2678
        %2727 = vmatprep.subr.mxu0 0.0
        %2728 = vmatpush1.msra.mxu0 %v2677
        %2729 = vmatprep.subr.mxu0 0.0
        %2730 = vmatpush1.msra.mxu0 %v2676
        %2731 = vmatprep.subr.mxu0 0.0
        %2732 = vmatpush1.msra.mxu0 %v2675
        %2733 = vmatprep.subr.mxu0 0.0
        %2734 = vmatpush1.msra.mxu0 %v2674
        %2735 = vmatprep.subr.mxu0 0.0
        %2736 = vmatpush1.msra.mxu0 %v2673
        %2737 = vmatprep.subr.mxu0 0.0
        %2738 = vmatpush2.msra.mxu0 %v2704
        %2739 = vmatprep.subr.mxu0 0.0
        %2740 = vmatpush2.msra.mxu0 %v2703
        %2741 = vmatprep.subr.mxu0 0.0
        %2742 = vmatpush2.msra.mxu0 %v2702
        %2743 = vmatprep.subr.mxu0 0.0
        %2744 = vmatpush2.msra.mxu0 %v2701
        %2745 = vmatprep.subr.mxu0 0.0
        %2746 = vmatpush2.msra.mxu0 %v2700
        %2747 = vmatprep.subr.mxu0 0.0
        %2748 = vmatpush2.msra.mxu0 %v2699
        %2749 = vmatprep.subr.mxu0 0.0
        %2750 = vmatpush2.msra.mxu0 %v2698
        %2751 = vmatprep.subr.mxu0 0.0
        %2752 = vmatpush2.msra.mxu0 %v2697
        %2753 = vmatprep.subr.mxu0 0.0
        %2754 = vmatpush2.msra.mxu0 %v2696
        %2755 = vmatprep.subr.mxu0 0.0
        %2756 = vmatpush2.msra.mxu0 %v2695
        %2757 = vmatprep.subr.mxu0 0.0
        %2758 = vmatpush2.msra.mxu0 %v2694
        %2759 = vmatprep.subr.mxu0 0.0
        %2760 = vmatpush2.msra.mxu0 %v2693
        %2761 = vmatprep.subr.mxu0 0.0
        %2762 = vmatpush2.msra.mxu0 %v2692
        %2763 = vmatprep.subr.mxu0 0.0
        %2764 = vmatpush2.msra.mxu0 %v2691
        %2765 = vmatprep.subr.mxu0 0.0
        %2766 = vmatpush2.msra.mxu0 %v2690
        %2767 = vmatprep.subr.mxu0 0.0
        %2768 = vmatpush2.msra.mxu0 %v2689
        %2769 = vmatprep.mubr.f32.mxu0 %v1117
        %2770 = vmatmul.mubr.f32.gmra.mxu0 %v1115
        %v2771 = vpop.f32.mrf.mxu0
        %v2772 = vadd.f32 0.0, %v2771
        %v2773 = vpop.f32.mrf.mxu0
        %2774 = vmatprep.mubr.f32.mxu0 %v1123
        %2775 = vmatmul.mubr.f32.gmra.mxu0 %v1121
        %v2776 = vpop.f32.mrf.mxu0
        %v2777 = vadd.f32 0.0, %v2776
        %v2778 = vpop.f32.mrf.mxu0
        %2779 = vdwg.mxu0
        %v2780 = vadd.f32 %v2670, %v2772
        %v2781 = vadd.f32 %v2671, %v2777
        %s2782 = scalar_lea.vmem [#allocation2], 3840
        %v2783 = vld [vmem:[%s2782] sm:$0xff]
        %v2784 = vld [vmem:[%s2782 + $0x8] sm:$0xff]
        %v2785 = vld [vmem:[%s2782 + $0x10] sm:$0xff]
        %v2786 = vld [vmem:[%s2782 + $0x18] sm:$0xff]
        %v2787 = vld [vmem:[%s2782 + $0x20] sm:$0xff]
        %v2788 = vld [vmem:[%s2782 + $0x28] sm:$0xff]
        %v2789 = vld [vmem:[%s2782 + $0x30] sm:$0xff]
        %v2790 = vld [vmem:[%s2782 + $0x38] sm:$0xff]
        %v2791 = vld [vmem:[%s2782 + $0x40] sm:$0xff]
        %v2792 = vld [vmem:[%s2782 + $0x48] sm:$0xff]
        %v2793 = vld [vmem:[%s2782 + $0x50] sm:$0xff]
        %v2794 = vld [vmem:[%s2782 + $0x58] sm:$0xff]
        %v2795 = vld [vmem:[%s2782 + $0x60] sm:$0xff]
        %v2796 = vld [vmem:[%s2782 + $0x68] sm:$0xff]
        %v2797 = vld [vmem:[%s2782 + $0x70] sm:$0xff]
        %v2798 = vld [vmem:[%s2782 + $0x78] sm:$0xff]
        %v2799 = vld [vmem:[%s2782 + $0x80] sm:$0xff]
        %v2800 = vld [vmem:[%s2782 + $0x88] sm:$0xff]
        %v2801 = vld [vmem:[%s2782 + $0x90] sm:$0xff]
        %v2802 = vld [vmem:[%s2782 + $0x98] sm:$0xff]
        %v2803 = vld [vmem:[%s2782 + $0xa0] sm:$0xff]
        %v2804 = vld [vmem:[%s2782 + $0xa8] sm:$0xff]
        %v2805 = vld [vmem:[%s2782 + $0xb0] sm:$0xff]
        %v2806 = vld [vmem:[%s2782 + $0xb8] sm:$0xff]
        %v2807 = vld [vmem:[%s2782 + $0xc0] sm:$0xff]
        %v2808 = vld [vmem:[%s2782 + $0xc8] sm:$0xff]
        %v2809 = vld [vmem:[%s2782 + $0xd0] sm:$0xff]
        %v2810 = vld [vmem:[%s2782 + $0xd8] sm:$0xff]
        %v2811 = vld [vmem:[%s2782 + $0xe0] sm:$0xff]
        %v2812 = vld [vmem:[%s2782 + $0xe8] sm:$0xff]
        %v2813 = vld [vmem:[%s2782 + $0xf0] sm:$0xff]
        %v2814 = vld [vmem:[%s2782 + $0xf8] sm:$0xff]
        %2815 = vmatprep.subr.mxu0 0.0
        %2816 = vmatpush1.msra.mxu0 %v2798
        %2817 = vmatprep.subr.mxu0 0.0
        %2818 = vmatpush1.msra.mxu0 %v2797
        %2819 = vmatprep.subr.mxu0 0.0
        %2820 = vmatpush1.msra.mxu0 %v2796
        %2821 = vmatprep.subr.mxu0 0.0
        %2822 = vmatpush1.msra.mxu0 %v2795
        %2823 = vmatprep.subr.mxu0 0.0
        %2824 = vmatpush1.msra.mxu0 %v2794
        %2825 = vmatprep.subr.mxu0 0.0
        %2826 = vmatpush1.msra.mxu0 %v2793
        %2827 = vmatprep.subr.mxu0 0.0
        %2828 = vmatpush1.msra.mxu0 %v2792
        %2829 = vmatprep.subr.mxu0 0.0
        %2830 = vmatpush1.msra.mxu0 %v2791
        %2831 = vmatprep.subr.mxu0 0.0
        %2832 = vmatpush1.msra.mxu0 %v2790
        %2833 = vmatprep.subr.mxu0 0.0
        %2834 = vmatpush1.msra.mxu0 %v2789
        %2835 = vmatprep.subr.mxu0 0.0
        %2836 = vmatpush1.msra.mxu0 %v2788
        %2837 = vmatprep.subr.mxu0 0.0
        %2838 = vmatpush1.msra.mxu0 %v2787
        %2839 = vmatprep.subr.mxu0 0.0
        %2840 = vmatpush1.msra.mxu0 %v2786
        %2841 = vmatprep.subr.mxu0 0.0
        %2842 = vmatpush1.msra.mxu0 %v2785
        %2843 = vmatprep.subr.mxu0 0.0
        %2844 = vmatpush1.msra.mxu0 %v2784
        %2845 = vmatprep.subr.mxu0 0.0
        %2846 = vmatpush1.msra.mxu0 %v2783
        %2847 = vmatprep.subr.mxu0 0.0
        %2848 = vmatpush2.msra.mxu0 %v2814
        %2849 = vmatprep.subr.mxu0 0.0
        %2850 = vmatpush2.msra.mxu0 %v2813
        %2851 = vmatprep.subr.mxu0 0.0
        %2852 = vmatpush2.msra.mxu0 %v2812
        %2853 = vmatprep.subr.mxu0 0.0
        %2854 = vmatpush2.msra.mxu0 %v2811
        %2855 = vmatprep.subr.mxu0 0.0
        %2856 = vmatpush2.msra.mxu0 %v2810
        %2857 = vmatprep.subr.mxu0 0.0
        %2858 = vmatpush2.msra.mxu0 %v2809
        %2859 = vmatprep.subr.mxu0 0.0
        %2860 = vmatpush2.msra.mxu0 %v2808
        %2861 = vmatprep.subr.mxu0 0.0
        %2862 = vmatpush2.msra.mxu0 %v2807
        %2863 = vmatprep.subr.mxu0 0.0
        %2864 = vmatpush2.msra.mxu0 %v2806
        %2865 = vmatprep.subr.mxu0 0.0
        %2866 = vmatpush2.msra.mxu0 %v2805
        %2867 = vmatprep.subr.mxu0 0.0
        %2868 = vmatpush2.msra.mxu0 %v2804
        %2869 = vmatprep.subr.mxu0 0.0
        %2870 = vmatpush2.msra.mxu0 %v2803
        %2871 = vmatprep.subr.mxu0 0.0
        %2872 = vmatpush2.msra.mxu0 %v2802
        %2873 = vmatprep.subr.mxu0 0.0
        %2874 = vmatpush2.msra.mxu0 %v2801
        %2875 = vmatprep.subr.mxu0 0.0
        %2876 = vmatpush2.msra.mxu0 %v2800
        %2877 = vmatprep.subr.mxu0 0.0
        %2878 = vmatpush2.msra.mxu0 %v2799
        %2879 = vmatprep.mubr.f32.mxu0 %v1129
        %2880 = vmatmul.mubr.f32.gmra.mxu0 %v1127
        %v2881 = vpop.f32.mrf.mxu0
        %v2882 = vadd.f32 0.0, %v2881
        %v2883 = vpop.f32.mrf.mxu0
        %2884 = vmatprep.mubr.f32.mxu0 %v1135
        %2885 = vmatmul.mubr.f32.gmra.mxu0 %v1133
        %v2886 = vpop.f32.mrf.mxu0
        %v2887 = vadd.f32 0.0, %v2886
        %v2888 = vpop.f32.mrf.mxu0
        %2889 = vdwg.mxu0
        %v2890 = vadd.f32 %v2780, %v2882
        %v2891 = vadd.f32 %v2781, %v2887
        %2893 = vset.pattern.permute.xlu0 0
        %2894 = vperm.xlu0 %2893, %v781
        %v2895 = vpop.permute.xlu0 %2894
        %2898 = vset.pattern.permute.xlu0 0
        %2899 = vperm.xlu0 %2898, %v782
        %v2900 = vpop.permute.xlu0 %2899
        %v2902 = vadd.f32 %v2890, %v2895
        %v2903 = vadd.f32 %v2891, %v2900
        %v2904 = vmax.f32 %v2902, 0.0
        %v2905 = vmax.f32 %v2903, 0.0
        %v2906 = vld [vmem:[%s4] sm:$0xff]
        %v2907 = vld [vmem:[%s4 + $0x8] sm:$0xff]
        %v2908 = vld [vmem:[%s4 + $0x10] sm:$0xff]
        %v2909 = vld [vmem:[%s4 + $0x18] sm:$0xff]
        %v2910 = vld [vmem:[%s4 + $0x20] sm:$0xff]
        %v2911 = vld [vmem:[%s4 + $0x28] sm:$0xff]
        %v2912 = vld [vmem:[%s4 + $0x30] sm:$0xff]
        %v2913 = vld [vmem:[%s4 + $0x38] sm:$0xff]
        %v2914 = vld [vmem:[%s4 + $0x40] sm:$0xff]
        %v2915 = vld [vmem:[%s4 + $0x48] sm:$0xff]
        %v2916 = vld [vmem:[%s4 + $0x50] sm:$0xff]
        %v2917 = vld [vmem:[%s4 + $0x58] sm:$0xff]
        %v2918 = vld [vmem:[%s4 + $0x60] sm:$0xff]
        %v2919 = vld [vmem:[%s4 + $0x68] sm:$0xff]
        %v2920 = vld [vmem:[%s4 + $0x70] sm:$0xff]
        %v2921 = vld [vmem:[%s4 + $0x78] sm:$0xff]
        %v2922 = vld [vmem:[%s4 + $0x80] sm:$0xff]
        %v2923 = vld [vmem:[%s4 + $0x88] sm:$0xff]
        %v2924 = vld [vmem:[%s4 + $0x90] sm:$0xff]
        %v2925 = vld [vmem:[%s4 + $0x98] sm:$0xff]
        %v2926 = vld [vmem:[%s4 + $0xa0] sm:$0xff]
        %v2927 = vld [vmem:[%s4 + $0xa8] sm:$0xff]
        %v2928 = vld [vmem:[%s4 + $0xb0] sm:$0xff]
        %v2929 = vld [vmem:[%s4 + $0xb8] sm:$0xff]
        %v2930 = vld [vmem:[%s4 + $0xc0] sm:$0xff]
        %v2931 = vld [vmem:[%s4 + $0xc8] sm:$0xff]
        %v2932 = vld [vmem:[%s4 + $0xd0] sm:$0xff]
        %v2933 = vld [vmem:[%s4 + $0xd8] sm:$0xff]
        %v2934 = vld [vmem:[%s4 + $0xe0] sm:$0xff]
        %v2935 = vld [vmem:[%s4 + $0xe8] sm:$0xff]
        %v2936 = vld [vmem:[%s4 + $0xf0] sm:$0xff]
        %v2937 = vld [vmem:[%s4 + $0xf8] sm:$0xff]
        %v2938 = vld [vmem:[%s4 + $0x100] sm:$0xff]
        %v2939 = vld [vmem:[%s4 + $0x108] sm:$0xff]
        %v2940 = vld [vmem:[%s4 + $0x110] sm:$0xff]
        %v2941 = vld [vmem:[%s4 + $0x118] sm:$0xff]
        %v2942 = vld [vmem:[%s4 + $0x120] sm:$0xff]
        %v2943 = vld [vmem:[%s4 + $0x128] sm:$0xff]
        %v2944 = vld [vmem:[%s4 + $0x130] sm:$0xff]
        %v2945 = vld [vmem:[%s4 + $0x138] sm:$0xff]
        %v2946 = vld [vmem:[%s4 + $0x140] sm:$0xff]
        %v2947 = vld [vmem:[%s4 + $0x148] sm:$0xff]
        %v2948 = vld [vmem:[%s4 + $0x150] sm:$0xff]
        %v2949 = vld [vmem:[%s4 + $0x158] sm:$0xff]
        %v2950 = vld [vmem:[%s4 + $0x160] sm:$0xff]
        %v2951 = vld [vmem:[%s4 + $0x168] sm:$0xff]
        %v2952 = vld [vmem:[%s4 + $0x170] sm:$0xff]
        %v2953 = vld [vmem:[%s4 + $0x178] sm:$0xff]
        %v2954 = vld [vmem:[%s4 + $0x180] sm:$0xff]
        %v2955 = vld [vmem:[%s4 + $0x188] sm:$0xff]
        %v2956 = vld [vmem:[%s4 + $0x190] sm:$0xff]
        %v2957 = vld [vmem:[%s4 + $0x198] sm:$0xff]
        %v2958 = vld [vmem:[%s4 + $0x1a0] sm:$0xff]
        %v2959 = vld [vmem:[%s4 + $0x1a8] sm:$0xff]
        %v2960 = vld [vmem:[%s4 + $0x1b0] sm:$0xff]
        %v2961 = vld [vmem:[%s4 + $0x1b8] sm:$0xff]
        %v2962 = vld [vmem:[%s4 + $0x1c0] sm:$0xff]
        %v2963 = vld [vmem:[%s4 + $0x1c8] sm:$0xff]
        %v2964 = vld [vmem:[%s4 + $0x1d0] sm:$0xff]
        %v2965 = vld [vmem:[%s4 + $0x1d8] sm:$0xff]
        %v2966 = vld [vmem:[%s4 + $0x1e0] sm:$0xff]
        %v2967 = vld [vmem:[%s4 + $0x1e8] sm:$0xff]
        %v2968 = vld [vmem:[%s4 + $0x1f0] sm:$0xff]
        %v2969 = vld [vmem:[%s4 + $0x1f8] sm:$0xff]
        %v2970 = vld [vmem:[%s5] sm:$0xff]
        %v2971 = vld [vmem:[%s5 + $0x8] sm:$0xff]
        %v2972 = vld [vmem:[%s5 + $0x10] sm:$0xff]
        %v2973 = vld [vmem:[%s5 + $0x18] sm:$0xff]
        %vm2974 = vcmask 130048
        %v2976 = vsel %vm2974, %v2906, 0
        %v2979 = vsel %vm2974, %v2907, 0
        %v2982 = vsel %vm2974, %v2908, 0
        %v2985 = vsel %vm2974, %v2909, 0
        %v2988 = vsel %vm2974, %v2910, 0
        %v2991 = vsel %vm2974, %v2911, 0
        %v2994 = vsel %vm2974, %v2912, 0
        %v2997 = vsel %vm2974, %v2913, 0
        %v3000 = vsel %vm2974, %v2914, 0
        %v3003 = vsel %vm2974, %v2915, 0
        %v3006 = vsel %vm2974, %v2916, 0
        %v3009 = vsel %vm2974, %v2917, 0
        %v3012 = vsel %vm2974, %v2918, 0
        %v3015 = vsel %vm2974, %v2919, 0
        %v3018 = vsel %vm2974, %v2920, 0
        %v3021 = vsel %vm2974, %v2921, 0
        %v3024 = vsel %vm2974, %v2922, 0
        %v3027 = vsel %vm2974, %v2923, 0
        %v3030 = vsel %vm2974, %v2924, 0
        %v3033 = vsel %vm2974, %v2925, 0
        %v3036 = vsel %vm2974, %v2926, 0
        %v3039 = vsel %vm2974, %v2927, 0
        %v3042 = vsel %vm2974, %v2928, 0
        %v3045 = vsel %vm2974, %v2929, 0
        %v3048 = vsel %vm2974, %v2930, 0
        %v3051 = vsel %vm2974, %v2931, 0
        %v3054 = vsel %vm2974, %v2932, 0
        %v3057 = vsel %vm2974, %v2933, 0
        %v3060 = vsel %vm2974, %v2934, 0
        %v3063 = vsel %vm2974, %v2935, 0
        %v3066 = vsel %vm2974, %v2936, 0
        %v3069 = vsel %vm2974, %v2937, 0
        %v3072 = vsel %vm2974, %v2938, 0
        %v3075 = vsel %vm2974, %v2939, 0
        %v3078 = vsel %vm2974, %v2940, 0
        %v3081 = vsel %vm2974, %v2941, 0
        %v3084 = vsel %vm2974, %v2942, 0
        %v3087 = vsel %vm2974, %v2943, 0
        %v3090 = vsel %vm2974, %v2944, 0
        %v3093 = vsel %vm2974, %v2945, 0
        %v3096 = vsel %vm2974, %v2946, 0
        %v3099 = vsel %vm2974, %v2947, 0
        %v3102 = vsel %vm2974, %v2948, 0
        %v3105 = vsel %vm2974, %v2949, 0
        %v3108 = vsel %vm2974, %v2950, 0
        %v3111 = vsel %vm2974, %v2951, 0
        %v3114 = vsel %vm2974, %v2952, 0
        %v3117 = vsel %vm2974, %v2953, 0
        %v3120 = vsel %vm2974, %v2954, 0
        %v3123 = vsel %vm2974, %v2955, 0
        %v3126 = vsel %vm2974, %v2956, 0
        %v3129 = vsel %vm2974, %v2957, 0
        %v3132 = vsel %vm2974, %v2958, 0
        %v3135 = vsel %vm2974, %v2959, 0
        %v3138 = vsel %vm2974, %v2960, 0
        %v3141 = vsel %vm2974, %v2961, 0
        %v3144 = vsel %vm2974, %v2962, 0
        %v3147 = vsel %vm2974, %v2963, 0
        %v3150 = vsel %vm2974, %v2964, 0
        %v3153 = vsel %vm2974, %v2965, 0
        %v3156 = vsel %vm2974, %v2966, 0
        %v3159 = vsel %vm2974, %v2967, 0
        %v3162 = vsel %vm2974, %v2968, 0
        %v3165 = vsel %vm2974, %v2969, 0
        %3167 = vmatprep.subr.mxu0 0.0
        %3168 = vmatpush1.msra.mxu0 0.0
        %3169 = vmatprep.subr.mxu0 0.0
        %3170 = vmatpush1.msra.mxu0 0.0
        %3171 = vmatprep.subr.mxu0 0.0
        %3172 = vmatpush1.msra.mxu0 0.0
        %3173 = vmatprep.subr.mxu0 0.0
        %3174 = vmatpush1.msra.mxu0 0.0
        %3175 = vmatprep.subr.mxu0 0.0
        %3176 = vmatpush1.msra.mxu0 0.0
        %3177 = vmatprep.subr.mxu0 0.0
        %3178 = vmatpush1.msra.mxu0 0.0
        %3179 = vmatprep.subr.mxu0 0.0
        %3180 = vmatpush1.msra.mxu0 0.0
        %3181 = vmatprep.subr.mxu0 0.0
        %3182 = vmatpush1.msra.mxu0 0.0
        %3183 = vmatprep.subr.mxu0 0.0
        %3184 = vmatpush1.msra.mxu0 0.0
        %3185 = vmatprep.subr.mxu0 0.0
        %3186 = vmatpush1.msra.mxu0 0.0
        %3187 = vmatprep.subr.mxu0 0.0
        %3188 = vmatpush1.msra.mxu0 0.0
        %3189 = vmatprep.subr.mxu0 0.0
        %3190 = vmatpush1.msra.mxu0 0.0
        %3191 = vmatprep.subr.mxu0 0.0
        %3192 = vmatpush1.msra.mxu0 0.0
        %3193 = vmatprep.subr.mxu0 0.0
        %3194 = vmatpush1.msra.mxu0 0.0
        %3195 = vmatprep.subr.mxu0 0.0
        %3196 = vmatpush1.msra.mxu0 %v2905
        %3197 = vmatprep.subr.mxu0 0.0
        %3198 = vmatpush1.msra.mxu0 %v2904
        %3199 = vmatprep.subr.mxu0 0.0
        %3200 = vmatpush2.msra.mxu0 0.0
        %3201 = vmatprep.subr.mxu0 0.0
        %3202 = vmatpush2.msra.mxu0 0.0
        %3203 = vmatprep.subr.mxu0 0.0
        %3204 = vmatpush2.msra.mxu0 0.0
        %3205 = vmatprep.subr.mxu0 0.0
        %3206 = vmatpush2.msra.mxu0 0.0
        %3207 = vmatprep.subr.mxu0 0.0
        %3208 = vmatpush2.msra.mxu0 0.0
        %3209 = vmatprep.subr.mxu0 0.0
        %3210 = vmatpush2.msra.mxu0 0.0
        %3211 = vmatprep.subr.mxu0 0.0
        %3212 = vmatpush2.msra.mxu0 0.0
        %3213 = vmatprep.subr.mxu0 0.0
        %3214 = vmatpush2.msra.mxu0 0.0
        %3215 = vmatprep.subr.mxu0 0.0
        %3216 = vmatpush2.msra.mxu0 0.0
        %3217 = vmatprep.subr.mxu0 0.0
        %3218 = vmatpush2.msra.mxu0 0.0
        %3219 = vmatprep.subr.mxu0 0.0
        %3220 = vmatpush2.msra.mxu0 0.0
        %3221 = vmatprep.subr.mxu0 0.0
        %3222 = vmatpush2.msra.mxu0 0.0
        %3223 = vmatprep.subr.mxu0 0.0
        %3224 = vmatpush2.msra.mxu0 0.0
        %3225 = vmatprep.subr.mxu0 0.0
        %3226 = vmatpush2.msra.mxu0 0.0
        %3227 = vmatprep.subr.mxu0 0.0
        %3228 = vmatpush2.msra.mxu0 0.0
        %3229 = vmatprep.subr.mxu0 0.0
        %3230 = vmatpush2.msra.mxu0 0.0
        %3231 = vmatprep.mubr.f32.mxu0 0.0
        %3232 = vmatmul.mubr.f32.gmra.mxu0 %v2976
        %v3233 = vpop.f32.mrf.mxu0
        %v3234 = vadd.f32 0.0, %v3233
        %v3235 = vpop.f32.mrf.mxu0
        %3236 = vmatprep.mubr.f32.mxu0 0.0
        %3237 = vmatmul.mubr.f32.gmra.mxu0 %v2979
        %v3238 = vpop.f32.mrf.mxu0
        %v3239 = vadd.f32 0.0, %v3238
        %v3240 = vpop.f32.mrf.mxu0
        %3241 = vmatprep.mubr.f32.mxu0 0.0
        %3242 = vmatmul.mubr.f32.gmra.mxu0 %v2982
        %v3243 = vpop.f32.mrf.mxu0
        %v3244 = vadd.f32 0.0, %v3243
        %v3245 = vpop.f32.mrf.mxu0
        %3246 = vmatprep.mubr.f32.mxu0 0.0
        %3247 = vmatmul.mubr.f32.gmra.mxu0 %v2985
        %v3248 = vpop.f32.mrf.mxu0
        %v3249 = vadd.f32 0.0, %v3248
        %v3250 = vpop.f32.mrf.mxu0
        %3251 = vmatprep.mubr.f32.mxu0 0.0
        %3252 = vmatmul.mubr.f32.gmra.mxu0 %v2988
        %v3253 = vpop.f32.mrf.mxu0
        %v3254 = vadd.f32 0.0, %v3253
        %v3255 = vpop.f32.mrf.mxu0
        %3256 = vmatprep.mubr.f32.mxu0 0.0
        %3257 = vmatmul.mubr.f32.gmra.mxu0 %v2991
        %v3258 = vpop.f32.mrf.mxu0
        %v3259 = vadd.f32 0.0, %v3258
        %v3260 = vpop.f32.mrf.mxu0
        %3261 = vmatprep.mubr.f32.mxu0 0.0
        %3262 = vmatmul.mubr.f32.gmra.mxu0 %v2994
        %v3263 = vpop.f32.mrf.mxu0
        %v3264 = vadd.f32 0.0, %v3263
        %v3265 = vpop.f32.mrf.mxu0
        %3266 = vmatprep.mubr.f32.mxu0 0.0
        %3267 = vmatmul.mubr.f32.gmra.mxu0 %v2997
        %v3268 = vpop.f32.mrf.mxu0
        %v3269 = vadd.f32 0.0, %v3268
        %v3270 = vpop.f32.mrf.mxu0
        %3271 = vmatprep.mubr.f32.mxu0 0.0
        %3272 = vmatmul.mubr.f32.gmra.mxu0 %v3000
        %v3273 = vpop.f32.mrf.mxu0
        %v3274 = vadd.f32 0.0, %v3273
        %v3275 = vpop.f32.mrf.mxu0
        %3276 = vmatprep.mubr.f32.mxu0 0.0
        %3277 = vmatmul.mubr.f32.gmra.mxu0 %v3003
        %v3278 = vpop.f32.mrf.mxu0
        %v3279 = vadd.f32 0.0, %v3278
        %v3280 = vpop.f32.mrf.mxu0
        %3281 = vmatprep.mubr.f32.mxu0 0.0
        %3282 = vmatmul.mubr.f32.gmra.mxu0 %v3006
        %v3283 = vpop.f32.mrf.mxu0
        %v3284 = vadd.f32 0.0, %v3283
        %v3285 = vpop.f32.mrf.mxu0
        %3286 = vmatprep.mubr.f32.mxu0 0.0
        %3287 = vmatmul.mubr.f32.gmra.mxu0 %v3009
        %v3288 = vpop.f32.mrf.mxu0
        %v3289 = vadd.f32 0.0, %v3288
        %v3290 = vpop.f32.mrf.mxu0
        %3291 = vmatprep.mubr.f32.mxu0 0.0
        %3292 = vmatmul.mubr.f32.gmra.mxu0 %v3012
        %v3293 = vpop.f32.mrf.mxu0
        %v3294 = vadd.f32 0.0, %v3293
        %v3295 = vpop.f32.mrf.mxu0
        %3296 = vmatprep.mubr.f32.mxu0 0.0
        %3297 = vmatmul.mubr.f32.gmra.mxu0 %v3015
        %v3298 = vpop.f32.mrf.mxu0
        %v3299 = vadd.f32 0.0, %v3298
        %v3300 = vpop.f32.mrf.mxu0
        %3301 = vmatprep.mubr.f32.mxu0 0.0
        %3302 = vmatmul.mubr.f32.gmra.mxu0 %v3018
        %v3303 = vpop.f32.mrf.mxu0
        %v3304 = vadd.f32 0.0, %v3303
        %v3305 = vpop.f32.mrf.mxu0
        %3306 = vmatprep.mubr.f32.mxu0 0.0
        %3307 = vmatmul.mubr.f32.gmra.mxu0 %v3021
        %v3308 = vpop.f32.mrf.mxu0
        %v3309 = vadd.f32 0.0, %v3308
        %v3310 = vpop.f32.mrf.mxu0
        %3311 = vmatprep.mubr.f32.mxu0 0.0
        %3312 = vmatmul.mubr.f32.gmra.mxu0 %v3024
        %v3313 = vpop.f32.mrf.mxu0
        %v3314 = vadd.f32 0.0, %v3313
        %v3315 = vpop.f32.mrf.mxu0
        %3316 = vmatprep.mubr.f32.mxu0 0.0
        %3317 = vmatmul.mubr.f32.gmra.mxu0 %v3027
        %v3318 = vpop.f32.mrf.mxu0
        %v3319 = vadd.f32 0.0, %v3318
        %v3320 = vpop.f32.mrf.mxu0
        %3321 = vmatprep.mubr.f32.mxu0 0.0
        %3322 = vmatmul.mubr.f32.gmra.mxu0 %v3030
        %v3323 = vpop.f32.mrf.mxu0
        %v3324 = vadd.f32 0.0, %v3323
        %v3325 = vpop.f32.mrf.mxu0
        %3326 = vmatprep.mubr.f32.mxu0 0.0
        %3327 = vmatmul.mubr.f32.gmra.mxu0 %v3033
        %v3328 = vpop.f32.mrf.mxu0
        %v3329 = vadd.f32 0.0, %v3328
        %v3330 = vpop.f32.mrf.mxu0
        %3331 = vmatprep.mubr.f32.mxu0 0.0
        %3332 = vmatmul.mubr.f32.gmra.mxu0 %v3036
        %v3333 = vpop.f32.mrf.mxu0
        %v3334 = vadd.f32 0.0, %v3333
        %v3335 = vpop.f32.mrf.mxu0
        %3336 = vmatprep.mubr.f32.mxu0 0.0
        %3337 = vmatmul.mubr.f32.gmra.mxu0 %v3039
        %v3338 = vpop.f32.mrf.mxu0
        %v3339 = vadd.f32 0.0, %v3338
        %v3340 = vpop.f32.mrf.mxu0
        %3341 = vmatprep.mubr.f32.mxu0 0.0
        %3342 = vmatmul.mubr.f32.gmra.mxu0 %v3042
        %v3343 = vpop.f32.mrf.mxu0
        %v3344 = vadd.f32 0.0, %v3343
        %v3345 = vpop.f32.mrf.mxu0
        %3346 = vmatprep.mubr.f32.mxu0 0.0
        %3347 = vmatmul.mubr.f32.gmra.mxu0 %v3045
        %v3348 = vpop.f32.mrf.mxu0
        %v3349 = vadd.f32 0.0, %v3348
        %v3350 = vpop.f32.mrf.mxu0
        %3351 = vmatprep.mubr.f32.mxu0 0.0
        %3352 = vmatmul.mubr.f32.gmra.mxu0 %v3048
        %v3353 = vpop.f32.mrf.mxu0
        %v3354 = vadd.f32 0.0, %v3353
        %v3355 = vpop.f32.mrf.mxu0
        %3356 = vmatprep.mubr.f32.mxu0 0.0
        %3357 = vmatmul.mubr.f32.gmra.mxu0 %v3051
        %v3358 = vpop.f32.mrf.mxu0
        %v3359 = vadd.f32 0.0, %v3358
        %v3360 = vpop.f32.mrf.mxu0
        %3361 = vmatprep.mubr.f32.mxu0 0.0
        %3362 = vmatmul.mubr.f32.gmra.mxu0 %v3054
        %v3363 = vpop.f32.mrf.mxu0
        %v3364 = vadd.f32 0.0, %v3363
        %v3365 = vpop.f32.mrf.mxu0
        %3366 = vmatprep.mubr.f32.mxu0 0.0
        %3367 = vmatmul.mubr.f32.gmra.mxu0 %v3057
        %v3368 = vpop.f32.mrf.mxu0
        %v3369 = vadd.f32 0.0, %v3368
        %v3370 = vpop.f32.mrf.mxu0
        %3371 = vmatprep.mubr.f32.mxu0 0.0
        %3372 = vmatmul.mubr.f32.gmra.mxu0 %v3060
        %v3373 = vpop.f32.mrf.mxu0
        %v3374 = vadd.f32 0.0, %v3373
        %v3375 = vpop.f32.mrf.mxu0
        %3376 = vmatprep.mubr.f32.mxu0 0.0
        %3377 = vmatmul.mubr.f32.gmra.mxu0 %v3063
        %v3378 = vpop.f32.mrf.mxu0
        %v3379 = vadd.f32 0.0, %v3378
        %v3380 = vpop.f32.mrf.mxu0
        %3381 = vmatprep.mubr.f32.mxu0 0.0
        %3382 = vmatmul.mubr.f32.gmra.mxu0 %v3066
        %v3383 = vpop.f32.mrf.mxu0
        %v3384 = vadd.f32 0.0, %v3383
        %v3385 = vpop.f32.mrf.mxu0
        %3386 = vmatprep.mubr.f32.mxu0 0.0
        %3387 = vmatmul.mubr.f32.gmra.mxu0 %v3069
        %v3388 = vpop.f32.mrf.mxu0
        %v3389 = vadd.f32 0.0, %v3388
        %v3390 = vpop.f32.mrf.mxu0
        %3391 = vmatprep.mubr.f32.mxu0 0.0
        %3392 = vmatmul.mubr.f32.gmra.mxu0 %v3072
        %v3393 = vpop.f32.mrf.mxu0
        %v3394 = vadd.f32 0.0, %v3393
        %v3395 = vpop.f32.mrf.mxu0
        %3396 = vmatprep.mubr.f32.mxu0 0.0
        %3397 = vmatmul.mubr.f32.gmra.mxu0 %v3075
        %v3398 = vpop.f32.mrf.mxu0
        %v3399 = vadd.f32 0.0, %v3398
        %v3400 = vpop.f32.mrf.mxu0
        %3401 = vmatprep.mubr.f32.mxu0 0.0
        %3402 = vmatmul.mubr.f32.gmra.mxu0 %v3078
        %v3403 = vpop.f32.mrf.mxu0
        %v3404 = vadd.f32 0.0, %v3403
        %v3405 = vpop.f32.mrf.mxu0
        %3406 = vmatprep.mubr.f32.mxu0 0.0
        %3407 = vmatmul.mubr.f32.gmra.mxu0 %v3081
        %v3408 = vpop.f32.mrf.mxu0
        %v3409 = vadd.f32 0.0, %v3408
        %v3410 = vpop.f32.mrf.mxu0
        %3411 = vmatprep.mubr.f32.mxu0 0.0
        %3412 = vmatmul.mubr.f32.gmra.mxu0 %v3084
        %v3413 = vpop.f32.mrf.mxu0
        %v3414 = vadd.f32 0.0, %v3413
        %v3415 = vpop.f32.mrf.mxu0
        %3416 = vmatprep.mubr.f32.mxu0 0.0
        %3417 = vmatmul.mubr.f32.gmra.mxu0 %v3087
        %v3418 = vpop.f32.mrf.mxu0
        %v3419 = vadd.f32 0.0, %v3418
        %v3420 = vpop.f32.mrf.mxu0
        %3421 = vmatprep.mubr.f32.mxu0 0.0
        %3422 = vmatmul.mubr.f32.gmra.mxu0 %v3090
        %v3423 = vpop.f32.mrf.mxu0
        %v3424 = vadd.f32 0.0, %v3423
        %v3425 = vpop.f32.mrf.mxu0
        %3426 = vmatprep.mubr.f32.mxu0 0.0
        %3427 = vmatmul.mubr.f32.gmra.mxu0 %v3093
        %v3428 = vpop.f32.mrf.mxu0
        %v3429 = vadd.f32 0.0, %v3428
        %v3430 = vpop.f32.mrf.mxu0
        %3431 = vmatprep.mubr.f32.mxu0 0.0
        %3432 = vmatmul.mubr.f32.gmra.mxu0 %v3096
        %v3433 = vpop.f32.mrf.mxu0
        %v3434 = vadd.f32 0.0, %v3433
        %v3435 = vpop.f32.mrf.mxu0
        %3436 = vmatprep.mubr.f32.mxu0 0.0
        %3437 = vmatmul.mubr.f32.gmra.mxu0 %v3099
        %v3438 = vpop.f32.mrf.mxu0
        %v3439 = vadd.f32 0.0, %v3438
        %v3440 = vpop.f32.mrf.mxu0
        %3441 = vmatprep.mubr.f32.mxu0 0.0
        %3442 = vmatmul.mubr.f32.gmra.mxu0 %v3102
        %v3443 = vpop.f32.mrf.mxu0
        %v3444 = vadd.f32 0.0, %v3443
        %v3445 = vpop.f32.mrf.mxu0
        %3446 = vmatprep.mubr.f32.mxu0 0.0
        %3447 = vmatmul.mubr.f32.gmra.mxu0 %v3105
        %v3448 = vpop.f32.mrf.mxu0
        %v3449 = vadd.f32 0.0, %v3448
        %v3450 = vpop.f32.mrf.mxu0
        %3451 = vmatprep.mubr.f32.mxu0 0.0
        %3452 = vmatmul.mubr.f32.gmra.mxu0 %v3108
        %v3453 = vpop.f32.mrf.mxu0
        %v3454 = vadd.f32 0.0, %v3453
        %v3455 = vpop.f32.mrf.mxu0
        %3456 = vmatprep.mubr.f32.mxu0 0.0
        %3457 = vmatmul.mubr.f32.gmra.mxu0 %v3111
        %v3458 = vpop.f32.mrf.mxu0
        %v3459 = vadd.f32 0.0, %v3458
        %v3460 = vpop.f32.mrf.mxu0
        %3461 = vmatprep.mubr.f32.mxu0 0.0
        %3462 = vmatmul.mubr.f32.gmra.mxu0 %v3114
        %v3463 = vpop.f32.mrf.mxu0
        %v3464 = vadd.f32 0.0, %v3463
        %v3465 = vpop.f32.mrf.mxu0
        %3466 = vmatprep.mubr.f32.mxu0 0.0
        %3467 = vmatmul.mubr.f32.gmra.mxu0 %v3117
        %v3468 = vpop.f32.mrf.mxu0
        %v3469 = vadd.f32 0.0, %v3468
        %v3470 = vpop.f32.mrf.mxu0
        %3471 = vmatprep.mubr.f32.mxu0 0.0
        %3472 = vmatmul.mubr.f32.gmra.mxu0 %v3120
        %v3473 = vpop.f32.mrf.mxu0
        %v3474 = vadd.f32 0.0, %v3473
        %v3475 = vpop.f32.mrf.mxu0
        %3476 = vmatprep.mubr.f32.mxu0 0.0
        %3477 = vmatmul.mubr.f32.gmra.mxu0 %v3123
        %v3478 = vpop.f32.mrf.mxu0
        %v3479 = vadd.f32 0.0, %v3478
        %v3480 = vpop.f32.mrf.mxu0
        %3481 = vmatprep.mubr.f32.mxu0 0.0
        %3482 = vmatmul.mubr.f32.gmra.mxu0 %v3126
        %v3483 = vpop.f32.mrf.mxu0
        %v3484 = vadd.f32 0.0, %v3483
        %v3485 = vpop.f32.mrf.mxu0
        %3486 = vmatprep.mubr.f32.mxu0 0.0
        %3487 = vmatmul.mubr.f32.gmra.mxu0 %v3129
        %v3488 = vpop.f32.mrf.mxu0
        %v3489 = vadd.f32 0.0, %v3488
        %v3490 = vpop.f32.mrf.mxu0
        %3491 = vmatprep.mubr.f32.mxu0 0.0
        %3492 = vmatmul.mubr.f32.gmra.mxu0 %v3132
        %v3493 = vpop.f32.mrf.mxu0
        %v3494 = vadd.f32 0.0, %v3493
        %v3495 = vpop.f32.mrf.mxu0
        %3496 = vmatprep.mubr.f32.mxu0 0.0
        %3497 = vmatmul.mubr.f32.gmra.mxu0 %v3135
        %v3498 = vpop.f32.mrf.mxu0
        %v3499 = vadd.f32 0.0, %v3498
        %v3500 = vpop.f32.mrf.mxu0
        %3501 = vmatprep.mubr.f32.mxu0 0.0
        %3502 = vmatmul.mubr.f32.gmra.mxu0 %v3138
        %v3503 = vpop.f32.mrf.mxu0
        %v3504 = vadd.f32 0.0, %v3503
        %v3505 = vpop.f32.mrf.mxu0
        %3506 = vmatprep.mubr.f32.mxu0 0.0
        %3507 = vmatmul.mubr.f32.gmra.mxu0 %v3141
        %v3508 = vpop.f32.mrf.mxu0
        %v3509 = vadd.f32 0.0, %v3508
        %v3510 = vpop.f32.mrf.mxu0
        %3511 = vmatprep.mubr.f32.mxu0 0.0
        %3512 = vmatmul.mubr.f32.gmra.mxu0 %v3144
        %v3513 = vpop.f32.mrf.mxu0
        %v3514 = vadd.f32 0.0, %v3513
        %v3515 = vpop.f32.mrf.mxu0
        %3516 = vmatprep.mubr.f32.mxu0 0.0
        %3517 = vmatmul.mubr.f32.gmra.mxu0 %v3147
        %v3518 = vpop.f32.mrf.mxu0
        %v3519 = vadd.f32 0.0, %v3518
        %v3520 = vpop.f32.mrf.mxu0
        %3521 = vmatprep.mubr.f32.mxu0 0.0
        %3522 = vmatmul.mubr.f32.gmra.mxu0 %v3150
        %v3523 = vpop.f32.mrf.mxu0
        %v3524 = vadd.f32 0.0, %v3523
        %v3525 = vpop.f32.mrf.mxu0
        %3526 = vmatprep.mubr.f32.mxu0 0.0
        %3527 = vmatmul.mubr.f32.gmra.mxu0 %v3153
        %v3528 = vpop.f32.mrf.mxu0
        %v3529 = vadd.f32 0.0, %v3528
        %v3530 = vpop.f32.mrf.mxu0
        %3531 = vmatprep.mubr.f32.mxu0 0.0
        %3532 = vmatmul.mubr.f32.gmra.mxu0 %v3156
        %v3533 = vpop.f32.mrf.mxu0
        %v3534 = vadd.f32 0.0, %v3533
        %v3535 = vpop.f32.mrf.mxu0
        %3536 = vmatprep.mubr.f32.mxu0 0.0
        %3537 = vmatmul.mubr.f32.gmra.mxu0 %v3159
        %v3538 = vpop.f32.mrf.mxu0
        %v3539 = vadd.f32 0.0, %v3538
        %v3540 = vpop.f32.mrf.mxu0
        %3541 = vmatprep.mubr.f32.mxu0 0.0
        %3542 = vmatmul.mubr.f32.gmra.mxu0 %v3162
        %v3543 = vpop.f32.mrf.mxu0
        %v3544 = vadd.f32 0.0, %v3543
        %v3545 = vpop.f32.mrf.mxu0
        %3546 = vmatprep.mubr.f32.mxu0 0.0
        %3547 = vmatmul.mubr.f32.gmra.mxu0 %v3165
        %v3548 = vpop.f32.mrf.mxu0
        %v3549 = vadd.f32 0.0, %v3548
        %v3550 = vpop.f32.mrf.mxu0
        %3551 = vdwg.mxu0
        %v3552 = vld [vmem:[#allocation4] sm:$0xff]
        %v3553 = vld [vmem:[#allocation4 + $0x8] sm:$0xff]
        %v3554 = vld [vmem:[#allocation4 + $0x10] sm:$0xff]
        %v3555 = vld [vmem:[#allocation4 + $0x18] sm:$0xff]
        %v3556 = vld [vmem:[#allocation4 + $0x20] sm:$0xff]
        %v3557 = vld [vmem:[#allocation4 + $0x28] sm:$0xff]
        %v3558 = vld [vmem:[#allocation4 + $0x30] sm:$0xff]
        %v3559 = vld [vmem:[#allocation4 + $0x38] sm:$0xff]
        %s3560 = scalar_lea.vmem [#allocation4], 64
        %v3561 = vld [vmem:[%s3560] sm:$0xff]
        %v3562 = vld [vmem:[%s3560 + $0x8] sm:$0xff]
        %v3563 = vld [vmem:[%s3560 + $0x10] sm:$0xff]
        %v3564 = vld [vmem:[%s3560 + $0x18] sm:$0xff]
        %v3565 = vld [vmem:[%s3560 + $0x20] sm:$0xff]
        %v3566 = vld [vmem:[%s3560 + $0x28] sm:$0xff]
        %v3567 = vld [vmem:[%s3560 + $0x30] sm:$0xff]
        %v3568 = vld [vmem:[%s3560 + $0x38] sm:$0xff]
        %vm3569 = vcmask 523264
        %v3571 = vsel %vm3569, %v3254, 0
        %v3574 = vsel %vm3569, %v3259, 0
        %v3577 = vsel %vm3569, %v3264, 0
        %v3580 = vsel %vm3569, %v3269, 0
        %3582 = vmatprep.subr.mxu0 0.0
        %3583 = vmatpush1.msra.mxu0 0.0
        %3584 = vmatprep.subr.mxu0 0.0
        %3585 = vmatpush1.msra.mxu0 0.0
        %3586 = vmatprep.subr.mxu0 0.0
        %3587 = vmatpush1.msra.mxu0 0.0
        %3588 = vmatprep.subr.mxu0 0.0
        %3589 = vmatpush1.msra.mxu0 0.0
        %3590 = vmatprep.subr.mxu0 0.0
        %3591 = vmatpush1.msra.mxu0 0.0
        %3592 = vmatprep.subr.mxu0 0.0
        %3593 = vmatpush1.msra.mxu0 0.0
        %3594 = vmatprep.subr.mxu0 0.0
        %3595 = vmatpush1.msra.mxu0 0.0
        %3596 = vmatprep.subr.mxu0 0.0
        %3597 = vmatpush1.msra.mxu0 0.0
        %3598 = vmatprep.subr.mxu0 0.0
        %3599 = vmatpush1.msra.mxu0 %v3568
        %3600 = vmatprep.subr.mxu0 0.0
        %3601 = vmatpush1.msra.mxu0 %v3567
        %3602 = vmatprep.subr.mxu0 0.0
        %3603 = vmatpush1.msra.mxu0 %v3566
        %3604 = vmatprep.subr.mxu0 0.0
        %3605 = vmatpush1.msra.mxu0 %v3565
        %3606 = vmatprep.subr.mxu0 0.0
        %3607 = vmatpush1.msra.mxu0 %v3564
        %3608 = vmatprep.subr.mxu0 0.0
        %3609 = vmatpush1.msra.mxu0 %v3563
        %3610 = vmatprep.subr.mxu0 0.0
        %3611 = vmatpush1.msra.mxu0 %v3562
        %3612 = vmatprep.subr.mxu0 0.0
        %3613 = vmatpush1.msra.mxu0 %v3561
        %3614 = vmatprep.subr.mxu0 0.0
        %3615 = vmatpush2.msra.mxu0 0.0
        %3616 = vmatprep.subr.mxu0 0.0
        %3617 = vmatpush2.msra.mxu0 0.0
        %3618 = vmatprep.subr.mxu0 0.0
        %3619 = vmatpush2.msra.mxu0 0.0
        %3620 = vmatprep.subr.mxu0 0.0
        %3621 = vmatpush2.msra.mxu0 0.0
        %3622 = vmatprep.subr.mxu0 0.0
        %3623 = vmatpush2.msra.mxu0 0.0
        %3624 = vmatprep.subr.mxu0 0.0
        %3625 = vmatpush2.msra.mxu0 0.0
        %3626 = vmatprep.subr.mxu0 0.0
        %3627 = vmatpush2.msra.mxu0 0.0
        %3628 = vmatprep.subr.mxu0 0.0
        %3629 = vmatpush2.msra.mxu0 0.0
        %3630 = vmatprep.subr.mxu0 0.0
        %3631 = vmatpush2.msra.mxu0 0.0
        %3632 = vmatprep.subr.mxu0 0.0
        %3633 = vmatpush2.msra.mxu0 0.0
        %3634 = vmatprep.subr.mxu0 0.0
        %3635 = vmatpush2.msra.mxu0 0.0
        %3636 = vmatprep.subr.mxu0 0.0
        %3637 = vmatpush2.msra.mxu0 0.0
        %3638 = vmatprep.subr.mxu0 0.0
        %3639 = vmatpush2.msra.mxu0 0.0
        %3640 = vmatprep.subr.mxu0 0.0
        %3641 = vmatpush2.msra.mxu0 0.0
        %3642 = vmatprep.subr.mxu0 0.0
        %3643 = vmatpush2.msra.mxu0 0.0
        %3644 = vmatprep.subr.mxu0 0.0
        %3645 = vmatpush2.msra.mxu0 0.0
        %3646 = vmatprep.mubr.f32.mxu0 0.0
        %3647 = vmatmul.mubr.f32.gmra.mxu0 %v3571
        %v3648 = vpop.f32.mrf.mxu0
        %v3649 = vadd.f32 0.0, %v3648
        %v3650 = vpop.f32.mrf.mxu0
        %3651 = vmatprep.mubr.f32.mxu0 0.0
        %3652 = vmatmul.mubr.f32.gmra.mxu0 %v3574
        %v3653 = vpop.f32.mrf.mxu0
        %v3654 = vadd.f32 0.0, %v3653
        %v3655 = vpop.f32.mrf.mxu0
        %3656 = vmatprep.mubr.f32.mxu0 0.0
        %3657 = vmatmul.mubr.f32.gmra.mxu0 %v3577
        %v3658 = vpop.f32.mrf.mxu0
        %v3659 = vadd.f32 0.0, %v3658
        %v3660 = vpop.f32.mrf.mxu0
        %3661 = vmatprep.mubr.f32.mxu0 0.0
        %3662 = vmatmul.mubr.f32.gmra.mxu0 %v3580
        %v3663 = vpop.f32.mrf.mxu0
        %v3664 = vadd.f32 0.0, %v3663
        %v3665 = vpop.f32.mrf.mxu0
        %3666 = vdwg.mxu0
        %v3668 = vsel %vm3569, %v3234, 0
        %v3671 = vsel %vm3569, %v3239, 0
        %v3674 = vsel %vm3569, %v3244, 0
        %v3677 = vsel %vm3569, %v3249, 0
        %3679 = vmatprep.subr.mxu0 0.0
        %3680 = vmatpush1.msra.mxu0 0.0
        %3681 = vmatprep.subr.mxu0 0.0
        %3682 = vmatpush1.msra.mxu0 0.0
        %3683 = vmatprep.subr.mxu0 0.0
        %3684 = vmatpush1.msra.mxu0 0.0
        %3685 = vmatprep.subr.mxu0 0.0
        %3686 = vmatpush1.msra.mxu0 0.0
        %3687 = vmatprep.subr.mxu0 0.0
        %3688 = vmatpush1.msra.mxu0 0.0
        %3689 = vmatprep.subr.mxu0 0.0
        %3690 = vmatpush1.msra.mxu0 0.0
        %3691 = vmatprep.subr.mxu0 0.0
        %3692 = vmatpush1.msra.mxu0 0.0
        %3693 = vmatprep.subr.mxu0 0.0
        %3694 = vmatpush1.msra.mxu0 0.0
        %3695 = vmatprep.subr.mxu0 0.0
        %3696 = vmatpush1.msra.mxu0 %v3559
        %3697 = vmatprep.subr.mxu0 0.0
        %3698 = vmatpush1.msra.mxu0 %v3558
        %3699 = vmatprep.subr.mxu0 0.0
        %3700 = vmatpush1.msra.mxu0 %v3557
        %3701 = vmatprep.subr.mxu0 0.0
        %3702 = vmatpush1.msra.mxu0 %v3556
        %3703 = vmatprep.subr.mxu0 0.0
        %3704 = vmatpush1.msra.mxu0 %v3555
        %3705 = vmatprep.subr.mxu0 0.0
        %3706 = vmatpush1.msra.mxu0 %v3554
        %3707 = vmatprep.subr.mxu0 0.0
        %3708 = vmatpush1.msra.mxu0 %v3553
        %3709 = vmatprep.subr.mxu0 0.0
        %3710 = vmatpush1.msra.mxu0 %v3552
        %3711 = vmatprep.subr.mxu0 0.0
        %3712 = vmatpush2.msra.mxu0 0.0
        %3713 = vmatprep.subr.mxu0 0.0
        %3714 = vmatpush2.msra.mxu0 0.0
        %3715 = vmatprep.subr.mxu0 0.0
        %3716 = vmatpush2.msra.mxu0 0.0
        %3717 = vmatprep.subr.mxu0 0.0
        %3718 = vmatpush2.msra.mxu0 0.0
        %3719 = vmatprep.subr.mxu0 0.0
        %3720 = vmatpush2.msra.mxu0 0.0
        %3721 = vmatprep.subr.mxu0 0.0
        %3722 = vmatpush2.msra.mxu0 0.0
        %3723 = vmatprep.subr.mxu0 0.0
        %3724 = vmatpush2.msra.mxu0 0.0
        %3725 = vmatprep.subr.mxu0 0.0
        %3726 = vmatpush2.msra.mxu0 0.0
        %3727 = vmatprep.subr.mxu0 0.0
        %3728 = vmatpush2.msra.mxu0 0.0
        %3729 = vmatprep.subr.mxu0 0.0
        %3730 = vmatpush2.msra.mxu0 0.0
        %3731 = vmatprep.subr.mxu0 0.0
        %3732 = vmatpush2.msra.mxu0 0.0
        %3733 = vmatprep.subr.mxu0 0.0
        %3734 = vmatpush2.msra.mxu0 0.0
        %3735 = vmatprep.subr.mxu0 0.0
        %3736 = vmatpush2.msra.mxu0 0.0
        %3737 = vmatprep.subr.mxu0 0.0
        %3738 = vmatpush2.msra.mxu0 0.0
        %3739 = vmatprep.subr.mxu0 0.0
        %3740 = vmatpush2.msra.mxu0 0.0
        %3741 = vmatprep.subr.mxu0 0.0
        %3742 = vmatpush2.msra.mxu0 0.0
        %3743 = vmatprep.mubr.f32.mxu0 0.0
        %3744 = vmatmul.mubr.f32.gmra.mxu0 %v3668
        %v3745 = vpop.f32.mrf.mxu0
        %v3746 = vadd.f32 %v3649, %v3745
        %v3747 = vpop.f32.mrf.mxu0
        %3748 = vmatprep.mubr.f32.mxu0 0.0
        %3749 = vmatmul.mubr.f32.gmra.mxu0 %v3671
        %v3750 = vpop.f32.mrf.mxu0
        %v3751 = vadd.f32 %v3654, %v3750
        %v3752 = vpop.f32.mrf.mxu0
        %3753 = vmatprep.mubr.f32.mxu0 0.0
        %3754 = vmatmul.mubr.f32.gmra.mxu0 %v3674
        %v3755 = vpop.f32.mrf.mxu0
        %v3756 = vadd.f32 %v3659, %v3755
        %v3757 = vpop.f32.mrf.mxu0
        %3758 = vmatprep.mubr.f32.mxu0 0.0
        %3759 = vmatmul.mubr.f32.gmra.mxu0 %v3677
        %v3760 = vpop.f32.mrf.mxu0
        %v3761 = vadd.f32 %v3664, %v3760
        %v3762 = vpop.f32.mrf.mxu0
        %3763 = vdwg.mxu0
        %s3764 = scalar_lea.vmem [#allocation4], 128
        %v3765 = vld [vmem:[%s3764] sm:$0xff]
        %v3766 = vld [vmem:[%s3764 + $0x8] sm:$0xff]
        %v3767 = vld [vmem:[%s3764 + $0x10] sm:$0xff]
        %v3768 = vld [vmem:[%s3764 + $0x18] sm:$0xff]
        %v3769 = vld [vmem:[%s3764 + $0x20] sm:$0xff]
        %v3770 = vld [vmem:[%s3764 + $0x28] sm:$0xff]
        %v3771 = vld [vmem:[%s3764 + $0x30] sm:$0xff]
        %v3772 = vld [vmem:[%s3764 + $0x38] sm:$0xff]
        %v3774 = vsel %vm3569, %v3274, 0
        %v3777 = vsel %vm3569, %v3279, 0
        %v3780 = vsel %vm3569, %v3284, 0
        %v3783 = vsel %vm3569, %v3289, 0
        %3785 = vmatprep.subr.mxu0 0.0
        %3786 = vmatpush1.msra.mxu0 0.0
        %3787 = vmatprep.subr.mxu0 0.0
        %3788 = vmatpush1.msra.mxu0 0.0
        %3789 = vmatprep.subr.mxu0 0.0
        %3790 = vmatpush1.msra.mxu0 0.0
        %3791 = vmatprep.subr.mxu0 0.0
        %3792 = vmatpush1.msra.mxu0 0.0
        %3793 = vmatprep.subr.mxu0 0.0
        %3794 = vmatpush1.msra.mxu0 0.0
        %3795 = vmatprep.subr.mxu0 0.0
        %3796 = vmatpush1.msra.mxu0 0.0
        %3797 = vmatprep.subr.mxu0 0.0
        %3798 = vmatpush1.msra.mxu0 0.0
        %3799 = vmatprep.subr.mxu0 0.0
        %3800 = vmatpush1.msra.mxu0 0.0
        %3801 = vmatprep.subr.mxu0 0.0
        %3802 = vmatpush1.msra.mxu0 %v3772
        %3803 = vmatprep.subr.mxu0 0.0
        %3804 = vmatpush1.msra.mxu0 %v3771
        %3805 = vmatprep.subr.mxu0 0.0
        %3806 = vmatpush1.msra.mxu0 %v3770
        %3807 = vmatprep.subr.mxu0 0.0
        %3808 = vmatpush1.msra.mxu0 %v3769
        %3809 = vmatprep.subr.mxu0 0.0
        %3810 = vmatpush1.msra.mxu0 %v3768
        %3811 = vmatprep.subr.mxu0 0.0
        %3812 = vmatpush1.msra.mxu0 %v3767
        %3813 = vmatprep.subr.mxu0 0.0
        %3814 = vmatpush1.msra.mxu0 %v3766
        %3815 = vmatprep.subr.mxu0 0.0
        %3816 = vmatpush1.msra.mxu0 %v3765
        %3817 = vmatprep.subr.mxu0 0.0
        %3818 = vmatpush2.msra.mxu0 0.0
        %3819 = vmatprep.subr.mxu0 0.0
        %3820 = vmatpush2.msra.mxu0 0.0
        %3821 = vmatprep.subr.mxu0 0.0
        %3822 = vmatpush2.msra.mxu0 0.0
        %3823 = vmatprep.subr.mxu0 0.0
        %3824 = vmatpush2.msra.mxu0 0.0
        %3825 = vmatprep.subr.mxu0 0.0
        %3826 = vmatpush2.msra.mxu0 0.0
        %3827 = vmatprep.subr.mxu0 0.0
        %3828 = vmatpush2.msra.mxu0 0.0
        %3829 = vmatprep.subr.mxu0 0.0
        %3830 = vmatpush2.msra.mxu0 0.0
        %3831 = vmatprep.subr.mxu0 0.0
        %3832 = vmatpush2.msra.mxu0 0.0
        %3833 = vmatprep.subr.mxu0 0.0
        %3834 = vmatpush2.msra.mxu0 0.0
        %3835 = vmatprep.subr.mxu0 0.0
        %3836 = vmatpush2.msra.mxu0 0.0
        %3837 = vmatprep.subr.mxu0 0.0
        %3838 = vmatpush2.msra.mxu0 0.0
        %3839 = vmatprep.subr.mxu0 0.0
        %3840 = vmatpush2.msra.mxu0 0.0
        %3841 = vmatprep.subr.mxu0 0.0
        %3842 = vmatpush2.msra.mxu0 0.0
        %3843 = vmatprep.subr.mxu0 0.0
        %3844 = vmatpush2.msra.mxu0 0.0
        %3845 = vmatprep.subr.mxu0 0.0
        %3846 = vmatpush2.msra.mxu0 0.0
        %3847 = vmatprep.subr.mxu0 0.0
        %3848 = vmatpush2.msra.mxu0 0.0
        %3849 = vmatprep.mubr.f32.mxu0 0.0
        %3850 = vmatmul.mubr.f32.gmra.mxu0 %v3774
        %v3851 = vpop.f32.mrf.mxu0
        %v3852 = vadd.f32 0.0, %v3851
        %v3853 = vpop.f32.mrf.mxu0
        %3854 = vmatprep.mubr.f32.mxu0 0.0
        %3855 = vmatmul.mubr.f32.gmra.mxu0 %v3777
        %v3856 = vpop.f32.mrf.mxu0
        %v3857 = vadd.f32 0.0, %v3856
        %v3858 = vpop.f32.mrf.mxu0
        %3859 = vmatprep.mubr.f32.mxu0 0.0
        %3860 = vmatmul.mubr.f32.gmra.mxu0 %v3780
        %v3861 = vpop.f32.mrf.mxu0
        %v3862 = vadd.f32 0.0, %v3861
        %v3863 = vpop.f32.mrf.mxu0
        %3864 = vmatprep.mubr.f32.mxu0 0.0
        %3865 = vmatmul.mubr.f32.gmra.mxu0 %v3783
        %v3866 = vpop.f32.mrf.mxu0
        %v3867 = vadd.f32 0.0, %v3866
        %v3868 = vpop.f32.mrf.mxu0
        %3869 = vdwg.mxu0
        %v3870 = vadd.f32 %v3746, %v3852
        %v3871 = vadd.f32 %v3751, %v3857
        %v3872 = vadd.f32 %v3756, %v3862
        %v3873 = vadd.f32 %v3761, %v3867
        %s3874 = scalar_lea.vmem [#allocation4], 192
        %v3875 = vld [vmem:[%s3874] sm:$0xff]
        %v3876 = vld [vmem:[%s3874 + $0x8] sm:$0xff]
        %v3877 = vld [vmem:[%s3874 + $0x10] sm:$0xff]
        %v3878 = vld [vmem:[%s3874 + $0x18] sm:$0xff]
        %v3879 = vld [vmem:[%s3874 + $0x20] sm:$0xff]
        %v3880 = vld [vmem:[%s3874 + $0x28] sm:$0xff]
        %v3881 = vld [vmem:[%s3874 + $0x30] sm:$0xff]
        %v3882 = vld [vmem:[%s3874 + $0x38] sm:$0xff]
        %v3884 = vsel %vm3569, %v3294, 0
        %v3887 = vsel %vm3569, %v3299, 0
        %v3890 = vsel %vm3569, %v3304, 0
        %v3893 = vsel %vm3569, %v3309, 0
        %3895 = vmatprep.subr.mxu0 0.0
        %3896 = vmatpush1.msra.mxu0 0.0
        %3897 = vmatprep.subr.mxu0 0.0
        %3898 = vmatpush1.msra.mxu0 0.0
        %3899 = vmatprep.subr.mxu0 0.0
        %3900 = vmatpush1.msra.mxu0 0.0
        %3901 = vmatprep.subr.mxu0 0.0
        %3902 = vmatpush1.msra.mxu0 0.0
        %3903 = vmatprep.subr.mxu0 0.0
        %3904 = vmatpush1.msra.mxu0 0.0
        %3905 = vmatprep.subr.mxu0 0.0
        %3906 = vmatpush1.msra.mxu0 0.0
        %3907 = vmatprep.subr.mxu0 0.0
        %3908 = vmatpush1.msra.mxu0 0.0
        %3909 = vmatprep.subr.mxu0 0.0
        %3910 = vmatpush1.msra.mxu0 0.0
        %3911 = vmatprep.subr.mxu0 0.0
        %3912 = vmatpush1.msra.mxu0 %v3882
        %3913 = vmatprep.subr.mxu0 0.0
        %3914 = vmatpush1.msra.mxu0 %v3881
        %3915 = vmatprep.subr.mxu0 0.0
        %3916 = vmatpush1.msra.mxu0 %v3880
        %3917 = vmatprep.subr.mxu0 0.0
        %3918 = vmatpush1.msra.mxu0 %v3879
        %3919 = vmatprep.subr.mxu0 0.0
        %3920 = vmatpush1.msra.mxu0 %v3878
        %3921 = vmatprep.subr.mxu0 0.0
        %3922 = vmatpush1.msra.mxu0 %v3877
        %3923 = vmatprep.subr.mxu0 0.0
        %3924 = vmatpush1.msra.mxu0 %v3876
        %3925 = vmatprep.subr.mxu0 0.0
        %3926 = vmatpush1.msra.mxu0 %v3875
        %3927 = vmatprep.subr.mxu0 0.0
        %3928 = vmatpush2.msra.mxu0 0.0
        %3929 = vmatprep.subr.mxu0 0.0
        %3930 = vmatpush2.msra.mxu0 0.0
        %3931 = vmatprep.subr.mxu0 0.0
        %3932 = vmatpush2.msra.mxu0 0.0
        %3933 = vmatprep.subr.mxu0 0.0
        %3934 = vmatpush2.msra.mxu0 0.0
        %3935 = vmatprep.subr.mxu0 0.0
        %3936 = vmatpush2.msra.mxu0 0.0
        %3937 = vmatprep.subr.mxu0 0.0
        %3938 = vmatpush2.msra.mxu0 0.0
        %3939 = vmatprep.subr.mxu0 0.0
        %3940 = vmatpush2.msra.mxu0 0.0
        %3941 = vmatprep.subr.mxu0 0.0
        %3942 = vmatpush2.msra.mxu0 0.0
        %3943 = vmatprep.subr.mxu0 0.0
        %3944 = vmatpush2.msra.mxu0 0.0
        %3945 = vmatprep.subr.mxu0 0.0
        %3946 = vmatpush2.msra.mxu0 0.0
        %3947 = vmatprep.subr.mxu0 0.0
        %3948 = vmatpush2.msra.mxu0 0.0
        %3949 = vmatprep.subr.mxu0 0.0
        %3950 = vmatpush2.msra.mxu0 0.0
        %3951 = vmatprep.subr.mxu0 0.0
        %3952 = vmatpush2.msra.mxu0 0.0
        %3953 = vmatprep.subr.mxu0 0.0
        %3954 = vmatpush2.msra.mxu0 0.0
        %3955 = vmatprep.subr.mxu0 0.0
        %3956 = vmatpush2.msra.mxu0 0.0
        %3957 = vmatprep.subr.mxu0 0.0
        %3958 = vmatpush2.msra.mxu0 0.0
        %3959 = vmatprep.mubr.f32.mxu0 0.0
        %3960 = vmatmul.mubr.f32.gmra.mxu0 %v3884
        %v3961 = vpop.f32.mrf.mxu0
        %v3962 = vadd.f32 0.0, %v3961
        %v3963 = vpop.f32.mrf.mxu0
        %3964 = vmatprep.mubr.f32.mxu0 0.0
        %3965 = vmatmul.mubr.f32.gmra.mxu0 %v3887
        %v3966 = vpop.f32.mrf.mxu0
        %v3967 = vadd.f32 0.0, %v3966
        %v3968 = vpop.f32.mrf.mxu0
        %3969 = vmatprep.mubr.f32.mxu0 0.0
        %3970 = vmatmul.mubr.f32.gmra.mxu0 %v3890
        %v3971 = vpop.f32.mrf.mxu0
        %v3972 = vadd.f32 0.0, %v3971
        %v3973 = vpop.f32.mrf.mxu0
        %3974 = vmatprep.mubr.f32.mxu0 0.0
        %3975 = vmatmul.mubr.f32.gmra.mxu0 %v3893
        %v3976 = vpop.f32.mrf.mxu0
        %v3977 = vadd.f32 0.0, %v3976
        %v3978 = vpop.f32.mrf.mxu0
        %3979 = vdwg.mxu0
        %v3980 = vadd.f32 %v3870, %v3962
        %v3981 = vadd.f32 %v3871, %v3967
        %v3982 = vadd.f32 %v3872, %v3972
        %v3983 = vadd.f32 %v3873, %v3977
        %s3984 = scalar_lea.vmem [#allocation4], 256
        %v3985 = vld [vmem:[%s3984] sm:$0xff]
        %v3986 = vld [vmem:[%s3984 + $0x8] sm:$0xff]
        %v3987 = vld [vmem:[%s3984 + $0x10] sm:$0xff]
        %v3988 = vld [vmem:[%s3984 + $0x18] sm:$0xff]
        %v3989 = vld [vmem:[%s3984 + $0x20] sm:$0xff]
        %v3990 = vld [vmem:[%s3984 + $0x28] sm:$0xff]
        %v3991 = vld [vmem:[%s3984 + $0x30] sm:$0xff]
        %v3992 = vld [vmem:[%s3984 + $0x38] sm:$0xff]
        %v3994 = vsel %vm3569, %v3314, 0
        %v3997 = vsel %vm3569, %v3319, 0
        %v4000 = vsel %vm3569, %v3324, 0
        %v4003 = vsel %vm3569, %v3329, 0
        %4005 = vmatprep.subr.mxu0 0.0
        %4006 = vmatpush1.msra.mxu0 0.0
        %4007 = vmatprep.subr.mxu0 0.0
        %4008 = vmatpush1.msra.mxu0 0.0
        %4009 = vmatprep.subr.mxu0 0.0
        %4010 = vmatpush1.msra.mxu0 0.0
        %4011 = vmatprep.subr.mxu0 0.0
        %4012 = vmatpush1.msra.mxu0 0.0
        %4013 = vmatprep.subr.mxu0 0.0
        %4014 = vmatpush1.msra.mxu0 0.0
        %4015 = vmatprep.subr.mxu0 0.0
        %4016 = vmatpush1.msra.mxu0 0.0
        %4017 = vmatprep.subr.mxu0 0.0
        %4018 = vmatpush1.msra.mxu0 0.0
        %4019 = vmatprep.subr.mxu0 0.0
        %4020 = vmatpush1.msra.mxu0 0.0
        %4021 = vmatprep.subr.mxu0 0.0
        %4022 = vmatpush1.msra.mxu0 %v3992
        %4023 = vmatprep.subr.mxu0 0.0
        %4024 = vmatpush1.msra.mxu0 %v3991
        %4025 = vmatprep.subr.mxu0 0.0
        %4026 = vmatpush1.msra.mxu0 %v3990
        %4027 = vmatprep.subr.mxu0 0.0
        %4028 = vmatpush1.msra.mxu0 %v3989
        %4029 = vmatprep.subr.mxu0 0.0
        %4030 = vmatpush1.msra.mxu0 %v3988
        %4031 = vmatprep.subr.mxu0 0.0
        %4032 = vmatpush1.msra.mxu0 %v3987
        %4033 = vmatprep.subr.mxu0 0.0
        %4034 = vmatpush1.msra.mxu0 %v3986
        %4035 = vmatprep.subr.mxu0 0.0
        %4036 = vmatpush1.msra.mxu0 %v3985
        %4037 = vmatprep.subr.mxu0 0.0
        %4038 = vmatpush2.msra.mxu0 0.0
        %4039 = vmatprep.subr.mxu0 0.0
        %4040 = vmatpush2.msra.mxu0 0.0
        %4041 = vmatprep.subr.mxu0 0.0
        %4042 = vmatpush2.msra.mxu0 0.0
        %4043 = vmatprep.subr.mxu0 0.0
        %4044 = vmatpush2.msra.mxu0 0.0
        %4045 = vmatprep.subr.mxu0 0.0
        %4046 = vmatpush2.msra.mxu0 0.0
        %4047 = vmatprep.subr.mxu0 0.0
        %4048 = vmatpush2.msra.mxu0 0.0
        %4049 = vmatprep.subr.mxu0 0.0
        %4050 = vmatpush2.msra.mxu0 0.0
        %4051 = vmatprep.subr.mxu0 0.0
        %4052 = vmatpush2.msra.mxu0 0.0
        %4053 = vmatprep.subr.mxu0 0.0
        %4054 = vmatpush2.msra.mxu0 0.0
        %4055 = vmatprep.subr.mxu0 0.0
        %4056 = vmatpush2.msra.mxu0 0.0
        %4057 = vmatprep.subr.mxu0 0.0
        %4058 = vmatpush2.msra.mxu0 0.0
        %4059 = vmatprep.subr.mxu0 0.0
        %4060 = vmatpush2.msra.mxu0 0.0
        %4061 = vmatprep.subr.mxu0 0.0
        %4062 = vmatpush2.msra.mxu0 0.0
        %4063 = vmatprep.subr.mxu0 0.0
        %4064 = vmatpush2.msra.mxu0 0.0
        %4065 = vmatprep.subr.mxu0 0.0
        %4066 = vmatpush2.msra.mxu0 0.0
        %4067 = vmatprep.subr.mxu0 0.0
        %4068 = vmatpush2.msra.mxu0 0.0
        %4069 = vmatprep.mubr.f32.mxu0 0.0
        %4070 = vmatmul.mubr.f32.gmra.mxu0 %v3994
        %v4071 = vpop.f32.mrf.mxu0
        %v4072 = vadd.f32 0.0, %v4071
        %v4073 = vpop.f32.mrf.mxu0
        %4074 = vmatprep.mubr.f32.mxu0 0.0
        %4075 = vmatmul.mubr.f32.gmra.mxu0 %v3997
        %v4076 = vpop.f32.mrf.mxu0
        %v4077 = vadd.f32 0.0, %v4076
        %v4078 = vpop.f32.mrf.mxu0
        %4079 = vmatprep.mubr.f32.mxu0 0.0
        %4080 = vmatmul.mubr.f32.gmra.mxu0 %v4000
        %v4081 = vpop.f32.mrf.mxu0
        %v4082 = vadd.f32 0.0, %v4081
        %v4083 = vpop.f32.mrf.mxu0
        %4084 = vmatprep.mubr.f32.mxu0 0.0
        %4085 = vmatmul.mubr.f32.gmra.mxu0 %v4003
        %v4086 = vpop.f32.mrf.mxu0
        %v4087 = vadd.f32 0.0, %v4086
        %v4088 = vpop.f32.mrf.mxu0
        %4089 = vdwg.mxu0
        %v4090 = vadd.f32 %v3980, %v4072
        %v4091 = vadd.f32 %v3981, %v4077
        %v4092 = vadd.f32 %v3982, %v4082
        %v4093 = vadd.f32 %v3983, %v4087
        %s4094 = scalar_lea.vmem [#allocation4], 320
        %v4095 = vld [vmem:[%s4094] sm:$0xff]
        %v4096 = vld [vmem:[%s4094 + $0x8] sm:$0xff]
        %v4097 = vld [vmem:[%s4094 + $0x10] sm:$0xff]
        %v4098 = vld [vmem:[%s4094 + $0x18] sm:$0xff]
        %v4099 = vld [vmem:[%s4094 + $0x20] sm:$0xff]
        %v4100 = vld [vmem:[%s4094 + $0x28] sm:$0xff]
        %v4101 = vld [vmem:[%s4094 + $0x30] sm:$0xff]
        %v4102 = vld [vmem:[%s4094 + $0x38] sm:$0xff]
        %v4104 = vsel %vm3569, %v3334, 0
        %v4107 = vsel %vm3569, %v3339, 0
        %v4110 = vsel %vm3569, %v3344, 0
        %v4113 = vsel %vm3569, %v3349, 0
        %4115 = vmatprep.subr.mxu0 0.0
        %4116 = vmatpush1.msra.mxu0 0.0
        %4117 = vmatprep.subr.mxu0 0.0
        %4118 = vmatpush1.msra.mxu0 0.0
        %4119 = vmatprep.subr.mxu0 0.0
        %4120 = vmatpush1.msra.mxu0 0.0
        %4121 = vmatprep.subr.mxu0 0.0
        %4122 = vmatpush1.msra.mxu0 0.0
        %4123 = vmatprep.subr.mxu0 0.0
        %4124 = vmatpush1.msra.mxu0 0.0
        %4125 = vmatprep.subr.mxu0 0.0
        %4126 = vmatpush1.msra.mxu0 0.0
        %4127 = vmatprep.subr.mxu0 0.0
        %4128 = vmatpush1.msra.mxu0 0.0
        %4129 = vmatprep.subr.mxu0 0.0
        %4130 = vmatpush1.msra.mxu0 0.0
        %4131 = vmatprep.subr.mxu0 0.0
        %4132 = vmatpush1.msra.mxu0 %v4102
        %4133 = vmatprep.subr.mxu0 0.0
        %4134 = vmatpush1.msra.mxu0 %v4101
        %4135 = vmatprep.subr.mxu0 0.0
        %4136 = vmatpush1.msra.mxu0 %v4100
        %4137 = vmatprep.subr.mxu0 0.0
        %4138 = vmatpush1.msra.mxu0 %v4099
        %4139 = vmatprep.subr.mxu0 0.0
        %4140 = vmatpush1.msra.mxu0 %v4098
        %4141 = vmatprep.subr.mxu0 0.0
        %4142 = vmatpush1.msra.mxu0 %v4097
        %4143 = vmatprep.subr.mxu0 0.0
        %4144 = vmatpush1.msra.mxu0 %v4096
        %4145 = vmatprep.subr.mxu0 0.0
        %4146 = vmatpush1.msra.mxu0 %v4095
        %4147 = vmatprep.subr.mxu0 0.0
        %4148 = vmatpush2.msra.mxu0 0.0
        %4149 = vmatprep.subr.mxu0 0.0
        %4150 = vmatpush2.msra.mxu0 0.0
        %4151 = vmatprep.subr.mxu0 0.0
        %4152 = vmatpush2.msra.mxu0 0.0
        %4153 = vmatprep.subr.mxu0 0.0
        %4154 = vmatpush2.msra.mxu0 0.0
        %4155 = vmatprep.subr.mxu0 0.0
        %4156 = vmatpush2.msra.mxu0 0.0
        %4157 = vmatprep.subr.mxu0 0.0
        %4158 = vmatpush2.msra.mxu0 0.0
        %4159 = vmatprep.subr.mxu0 0.0
        %4160 = vmatpush2.msra.mxu0 0.0
        %4161 = vmatprep.subr.mxu0 0.0
        %4162 = vmatpush2.msra.mxu0 0.0
        %4163 = vmatprep.subr.mxu0 0.0
        %4164 = vmatpush2.msra.mxu0 0.0
        %4165 = vmatprep.subr.mxu0 0.0
        %4166 = vmatpush2.msra.mxu0 0.0
        %4167 = vmatprep.subr.mxu0 0.0
        %4168 = vmatpush2.msra.mxu0 0.0
        %4169 = vmatprep.subr.mxu0 0.0
        %4170 = vmatpush2.msra.mxu0 0.0
        %4171 = vmatprep.subr.mxu0 0.0
        %4172 = vmatpush2.msra.mxu0 0.0
        %4173 = vmatprep.subr.mxu0 0.0
        %4174 = vmatpush2.msra.mxu0 0.0
        %4175 = vmatprep.subr.mxu0 0.0
        %4176 = vmatpush2.msra.mxu0 0.0
        %4177 = vmatprep.subr.mxu0 0.0
        %4178 = vmatpush2.msra.mxu0 0.0
        %4179 = vmatprep.mubr.f32.mxu0 0.0
        %4180 = vmatmul.mubr.f32.gmra.mxu0 %v4104
        %v4181 = vpop.f32.mrf.mxu0
        %v4182 = vadd.f32 0.0, %v4181
        %v4183 = vpop.f32.mrf.mxu0
        %4184 = vmatprep.mubr.f32.mxu0 0.0
        %4185 = vmatmul.mubr.f32.gmra.mxu0 %v4107
        %v4186 = vpop.f32.mrf.mxu0
        %v4187 = vadd.f32 0.0, %v4186
        %v4188 = vpop.f32.mrf.mxu0
        %4189 = vmatprep.mubr.f32.mxu0 0.0
        %4190 = vmatmul.mubr.f32.gmra.mxu0 %v4110
        %v4191 = vpop.f32.mrf.mxu0
        %v4192 = vadd.f32 0.0, %v4191
        %v4193 = vpop.f32.mrf.mxu0
        %4194 = vmatprep.mubr.f32.mxu0 0.0
        %4195 = vmatmul.mubr.f32.gmra.mxu0 %v4113
        %v4196 = vpop.f32.mrf.mxu0
        %v4197 = vadd.f32 0.0, %v4196
        %v4198 = vpop.f32.mrf.mxu0
        %4199 = vdwg.mxu0
        %v4200 = vadd.f32 %v4090, %v4182
        %v4201 = vadd.f32 %v4091, %v4187
        %v4202 = vadd.f32 %v4092, %v4192
        %v4203 = vadd.f32 %v4093, %v4197
        %s4204 = scalar_lea.vmem [#allocation4], 384
        %v4205 = vld [vmem:[%s4204] sm:$0xff]
        %v4206 = vld [vmem:[%s4204 + $0x8] sm:$0xff]
        %v4207 = vld [vmem:[%s4204 + $0x10] sm:$0xff]
        %v4208 = vld [vmem:[%s4204 + $0x18] sm:$0xff]
        %v4209 = vld [vmem:[%s4204 + $0x20] sm:$0xff]
        %v4210 = vld [vmem:[%s4204 + $0x28] sm:$0xff]
        %v4211 = vld [vmem:[%s4204 + $0x30] sm:$0xff]
        %v4212 = vld [vmem:[%s4204 + $0x38] sm:$0xff]
        %v4214 = vsel %vm3569, %v3354, 0
        %v4217 = vsel %vm3569, %v3359, 0
        %v4220 = vsel %vm3569, %v3364, 0
        %v4223 = vsel %vm3569, %v3369, 0
        %4225 = vmatprep.subr.mxu0 0.0
        %4226 = vmatpush1.msra.mxu0 0.0
        %4227 = vmatprep.subr.mxu0 0.0
        %4228 = vmatpush1.msra.mxu0 0.0
        %4229 = vmatprep.subr.mxu0 0.0
        %4230 = vmatpush1.msra.mxu0 0.0
        %4231 = vmatprep.subr.mxu0 0.0
        %4232 = vmatpush1.msra.mxu0 0.0
        %4233 = vmatprep.subr.mxu0 0.0
        %4234 = vmatpush1.msra.mxu0 0.0
        %4235 = vmatprep.subr.mxu0 0.0
        %4236 = vmatpush1.msra.mxu0 0.0
        %4237 = vmatprep.subr.mxu0 0.0
        %4238 = vmatpush1.msra.mxu0 0.0
        %4239 = vmatprep.subr.mxu0 0.0
        %4240 = vmatpush1.msra.mxu0 0.0
        %4241 = vmatprep.subr.mxu0 0.0
        %4242 = vmatpush1.msra.mxu0 %v4212
        %4243 = vmatprep.subr.mxu0 0.0
        %4244 = vmatpush1.msra.mxu0 %v4211
        %4245 = vmatprep.subr.mxu0 0.0
        %4246 = vmatpush1.msra.mxu0 %v4210
        %4247 = vmatprep.subr.mxu0 0.0
        %4248 = vmatpush1.msra.mxu0 %v4209
        %4249 = vmatprep.subr.mxu0 0.0
        %4250 = vmatpush1.msra.mxu0 %v4208
        %4251 = vmatprep.subr.mxu0 0.0
        %4252 = vmatpush1.msra.mxu0 %v4207
        %4253 = vmatprep.subr.mxu0 0.0
        %4254 = vmatpush1.msra.mxu0 %v4206
        %4255 = vmatprep.subr.mxu0 0.0
        %4256 = vmatpush1.msra.mxu0 %v4205
        %4257 = vmatprep.subr.mxu0 0.0
        %4258 = vmatpush2.msra.mxu0 0.0
        %4259 = vmatprep.subr.mxu0 0.0
        %4260 = vmatpush2.msra.mxu0 0.0
        %4261 = vmatprep.subr.mxu0 0.0
        %4262 = vmatpush2.msra.mxu0 0.0
        %4263 = vmatprep.subr.mxu0 0.0
        %4264 = vmatpush2.msra.mxu0 0.0
        %4265 = vmatprep.subr.mxu0 0.0
        %4266 = vmatpush2.msra.mxu0 0.0
        %4267 = vmatprep.subr.mxu0 0.0
        %4268 = vmatpush2.msra.mxu0 0.0
        %4269 = vmatprep.subr.mxu0 0.0
        %4270 = vmatpush2.msra.mxu0 0.0
        %4271 = vmatprep.subr.mxu0 0.0
        %4272 = vmatpush2.msra.mxu0 0.0
        %4273 = vmatprep.subr.mxu0 0.0
        %4274 = vmatpush2.msra.mxu0 0.0
        %4275 = vmatprep.subr.mxu0 0.0
        %4276 = vmatpush2.msra.mxu0 0.0
        %4277 = vmatprep.subr.mxu0 0.0
        %4278 = vmatpush2.msra.mxu0 0.0
        %4279 = vmatprep.subr.mxu0 0.0
        %4280 = vmatpush2.msra.mxu0 0.0
        %4281 = vmatprep.subr.mxu0 0.0
        %4282 = vmatpush2.msra.mxu0 0.0
        %4283 = vmatprep.subr.mxu0 0.0
        %4284 = vmatpush2.msra.mxu0 0.0
        %4285 = vmatprep.subr.mxu0 0.0
        %4286 = vmatpush2.msra.mxu0 0.0
        %4287 = vmatprep.subr.mxu0 0.0
        %4288 = vmatpush2.msra.mxu0 0.0
        %4289 = vmatprep.mubr.f32.mxu0 0.0
        %4290 = vmatmul.mubr.f32.gmra.mxu0 %v4214
        %v4291 = vpop.f32.mrf.mxu0
        %v4292 = vadd.f32 0.0, %v4291
        %v4293 = vpop.f32.mrf.mxu0
        %4294 = vmatprep.mubr.f32.mxu0 0.0
        %4295 = vmatmul.mubr.f32.gmra.mxu0 %v4217
        %v4296 = vpop.f32.mrf.mxu0
        %v4297 = vadd.f32 0.0, %v4296
        %v4298 = vpop.f32.mrf.mxu0
        %4299 = vmatprep.mubr.f32.mxu0 0.0
        %4300 = vmatmul.mubr.f32.gmra.mxu0 %v4220
        %v4301 = vpop.f32.mrf.mxu0
        %v4302 = vadd.f32 0.0, %v4301
        %v4303 = vpop.f32.mrf.mxu0
        %4304 = vmatprep.mubr.f32.mxu0 0.0
        %4305 = vmatmul.mubr.f32.gmra.mxu0 %v4223
        %v4306 = vpop.f32.mrf.mxu0
        %v4307 = vadd.f32 0.0, %v4306
        %v4308 = vpop.f32.mrf.mxu0
        %4309 = vdwg.mxu0
        %v4310 = vadd.f32 %v4200, %v4292
        %v4311 = vadd.f32 %v4201, %v4297
        %v4312 = vadd.f32 %v4202, %v4302
        %v4313 = vadd.f32 %v4203, %v4307
        %s4314 = scalar_lea.vmem [#allocation4], 448
        %v4315 = vld [vmem:[%s4314] sm:$0xff]
        %v4316 = vld [vmem:[%s4314 + $0x8] sm:$0xff]
        %v4317 = vld [vmem:[%s4314 + $0x10] sm:$0xff]
        %v4318 = vld [vmem:[%s4314 + $0x18] sm:$0xff]
        %v4319 = vld [vmem:[%s4314 + $0x20] sm:$0xff]
        %v4320 = vld [vmem:[%s4314 + $0x28] sm:$0xff]
        %v4321 = vld [vmem:[%s4314 + $0x30] sm:$0xff]
        %v4322 = vld [vmem:[%s4314 + $0x38] sm:$0xff]
        %v4324 = vsel %vm3569, %v3374, 0
        %v4327 = vsel %vm3569, %v3379, 0
        %v4330 = vsel %vm3569, %v3384, 0
        %v4333 = vsel %vm3569, %v3389, 0
        %4335 = vmatprep.subr.mxu0 0.0
        %4336 = vmatpush1.msra.mxu0 0.0
        %4337 = vmatprep.subr.mxu0 0.0
        %4338 = vmatpush1.msra.mxu0 0.0
        %4339 = vmatprep.subr.mxu0 0.0
        %4340 = vmatpush1.msra.mxu0 0.0
        %4341 = vmatprep.subr.mxu0 0.0
        %4342 = vmatpush1.msra.mxu0 0.0
        %4343 = vmatprep.subr.mxu0 0.0
        %4344 = vmatpush1.msra.mxu0 0.0
        %4345 = vmatprep.subr.mxu0 0.0
        %4346 = vmatpush1.msra.mxu0 0.0
        %4347 = vmatprep.subr.mxu0 0.0
        %4348 = vmatpush1.msra.mxu0 0.0
        %4349 = vmatprep.subr.mxu0 0.0
        %4350 = vmatpush1.msra.mxu0 0.0
        %4351 = vmatprep.subr.mxu0 0.0
        %4352 = vmatpush1.msra.mxu0 %v4322
        %4353 = vmatprep.subr.mxu0 0.0
        %4354 = vmatpush1.msra.mxu0 %v4321
        %4355 = vmatprep.subr.mxu0 0.0
        %4356 = vmatpush1.msra.mxu0 %v4320
        %4357 = vmatprep.subr.mxu0 0.0
        %4358 = vmatpush1.msra.mxu0 %v4319
        %4359 = vmatprep.subr.mxu0 0.0
        %4360 = vmatpush1.msra.mxu0 %v4318
        %4361 = vmatprep.subr.mxu0 0.0
        %4362 = vmatpush1.msra.mxu0 %v4317
        %4363 = vmatprep.subr.mxu0 0.0
        %4364 = vmatpush1.msra.mxu0 %v4316
        %4365 = vmatprep.subr.mxu0 0.0
        %4366 = vmatpush1.msra.mxu0 %v4315
        %4367 = vmatprep.subr.mxu0 0.0
        %4368 = vmatpush2.msra.mxu0 0.0
        %4369 = vmatprep.subr.mxu0 0.0
        %4370 = vmatpush2.msra.mxu0 0.0
        %4371 = vmatprep.subr.mxu0 0.0
        %4372 = vmatpush2.msra.mxu0 0.0
        %4373 = vmatprep.subr.mxu0 0.0
        %4374 = vmatpush2.msra.mxu0 0.0
        %4375 = vmatprep.subr.mxu0 0.0
        %4376 = vmatpush2.msra.mxu0 0.0
        %4377 = vmatprep.subr.mxu0 0.0
        %4378 = vmatpush2.msra.mxu0 0.0
        %4379 = vmatprep.subr.mxu0 0.0
        %4380 = vmatpush2.msra.mxu0 0.0
        %4381 = vmatprep.subr.mxu0 0.0
        %4382 = vmatpush2.msra.mxu0 0.0
        %4383 = vmatprep.subr.mxu0 0.0
        %4384 = vmatpush2.msra.mxu0 0.0
        %4385 = vmatprep.subr.mxu0 0.0
        %4386 = vmatpush2.msra.mxu0 0.0
        %4387 = vmatprep.subr.mxu0 0.0
        %4388 = vmatpush2.msra.mxu0 0.0
        %4389 = vmatprep.subr.mxu0 0.0
        %4390 = vmatpush2.msra.mxu0 0.0
        %4391 = vmatprep.subr.mxu0 0.0
        %4392 = vmatpush2.msra.mxu0 0.0
        %4393 = vmatprep.subr.mxu0 0.0
        %4394 = vmatpush2.msra.mxu0 0.0
        %4395 = vmatprep.subr.mxu0 0.0
        %4396 = vmatpush2.msra.mxu0 0.0
        %4397 = vmatprep.subr.mxu0 0.0
        %4398 = vmatpush2.msra.mxu0 0.0
        %4399 = vmatprep.mubr.f32.mxu0 0.0
        %4400 = vmatmul.mubr.f32.gmra.mxu0 %v4324
        %v4401 = vpop.f32.mrf.mxu0
        %v4402 = vadd.f32 0.0, %v4401
        %v4403 = vpop.f32.mrf.mxu0
        %4404 = vmatprep.mubr.f32.mxu0 0.0
        %4405 = vmatmul.mubr.f32.gmra.mxu0 %v4327
        %v4406 = vpop.f32.mrf.mxu0
        %v4407 = vadd.f32 0.0, %v4406
        %v4408 = vpop.f32.mrf.mxu0
        %4409 = vmatprep.mubr.f32.mxu0 0.0
        %4410 = vmatmul.mubr.f32.gmra.mxu0 %v4330
        %v4411 = vpop.f32.mrf.mxu0
        %v4412 = vadd.f32 0.0, %v4411
        %v4413 = vpop.f32.mrf.mxu0
        %4414 = vmatprep.mubr.f32.mxu0 0.0
        %4415 = vmatmul.mubr.f32.gmra.mxu0 %v4333
        %v4416 = vpop.f32.mrf.mxu0
        %v4417 = vadd.f32 0.0, %v4416
        %v4418 = vpop.f32.mrf.mxu0
        %4419 = vdwg.mxu0
        %v4420 = vadd.f32 %v4310, %v4402
        %v4421 = vadd.f32 %v4311, %v4407
        %v4422 = vadd.f32 %v4312, %v4412
        %v4423 = vadd.f32 %v4313, %v4417
        %s4424 = scalar_lea.vmem [#allocation4], 512
        %v4425 = vld [vmem:[%s4424] sm:$0xff]
        %v4426 = vld [vmem:[%s4424 + $0x8] sm:$0xff]
        %v4427 = vld [vmem:[%s4424 + $0x10] sm:$0xff]
        %v4428 = vld [vmem:[%s4424 + $0x18] sm:$0xff]
        %v4429 = vld [vmem:[%s4424 + $0x20] sm:$0xff]
        %v4430 = vld [vmem:[%s4424 + $0x28] sm:$0xff]
        %v4431 = vld [vmem:[%s4424 + $0x30] sm:$0xff]
        %v4432 = vld [vmem:[%s4424 + $0x38] sm:$0xff]
        %v4434 = vsel %vm3569, %v3394, 0
        %v4437 = vsel %vm3569, %v3399, 0
        %v4440 = vsel %vm3569, %v3404, 0
        %v4443 = vsel %vm3569, %v3409, 0
        %4445 = vmatprep.subr.mxu0 0.0
        %4446 = vmatpush1.msra.mxu0 0.0
        %4447 = vmatprep.subr.mxu0 0.0
        %4448 = vmatpush1.msra.mxu0 0.0
        %4449 = vmatprep.subr.mxu0 0.0
        %4450 = vmatpush1.msra.mxu0 0.0
        %4451 = vmatprep.subr.mxu0 0.0
        %4452 = vmatpush1.msra.mxu0 0.0
        %4453 = vmatprep.subr.mxu0 0.0
        %4454 = vmatpush1.msra.mxu0 0.0
        %4455 = vmatprep.subr.mxu0 0.0
        %4456 = vmatpush1.msra.mxu0 0.0
        %4457 = vmatprep.subr.mxu0 0.0
        %4458 = vmatpush1.msra.mxu0 0.0
        %4459 = vmatprep.subr.mxu0 0.0
        %4460 = vmatpush1.msra.mxu0 0.0
        %4461 = vmatprep.subr.mxu0 0.0
        %4462 = vmatpush1.msra.mxu0 %v4432
        %4463 = vmatprep.subr.mxu0 0.0
        %4464 = vmatpush1.msra.mxu0 %v4431
        %4465 = vmatprep.subr.mxu0 0.0
        %4466 = vmatpush1.msra.mxu0 %v4430
        %4467 = vmatprep.subr.mxu0 0.0
        %4468 = vmatpush1.msra.mxu0 %v4429
        %4469 = vmatprep.subr.mxu0 0.0
        %4470 = vmatpush1.msra.mxu0 %v4428
        %4471 = vmatprep.subr.mxu0 0.0
        %4472 = vmatpush1.msra.mxu0 %v4427
        %4473 = vmatprep.subr.mxu0 0.0
        %4474 = vmatpush1.msra.mxu0 %v4426
        %4475 = vmatprep.subr.mxu0 0.0
        %4476 = vmatpush1.msra.mxu0 %v4425
        %4477 = vmatprep.subr.mxu0 0.0
        %4478 = vmatpush2.msra.mxu0 0.0
        %4479 = vmatprep.subr.mxu0 0.0
        %4480 = vmatpush2.msra.mxu0 0.0
        %4481 = vmatprep.subr.mxu0 0.0
        %4482 = vmatpush2.msra.mxu0 0.0
        %4483 = vmatprep.subr.mxu0 0.0
        %4484 = vmatpush2.msra.mxu0 0.0
        %4485 = vmatprep.subr.mxu0 0.0
        %4486 = vmatpush2.msra.mxu0 0.0
        %4487 = vmatprep.subr.mxu0 0.0
        %4488 = vmatpush2.msra.mxu0 0.0
        %4489 = vmatprep.subr.mxu0 0.0
        %4490 = vmatpush2.msra.mxu0 0.0
        %4491 = vmatprep.subr.mxu0 0.0
        %4492 = vmatpush2.msra.mxu0 0.0
        %4493 = vmatprep.subr.mxu0 0.0
        %4494 = vmatpush2.msra.mxu0 0.0
        %4495 = vmatprep.subr.mxu0 0.0
        %4496 = vmatpush2.msra.mxu0 0.0
        %4497 = vmatprep.subr.mxu0 0.0
        %4498 = vmatpush2.msra.mxu0 0.0
        %4499 = vmatprep.subr.mxu0 0.0
        %4500 = vmatpush2.msra.mxu0 0.0
        %4501 = vmatprep.subr.mxu0 0.0
        %4502 = vmatpush2.msra.mxu0 0.0
        %4503 = vmatprep.subr.mxu0 0.0
        %4504 = vmatpush2.msra.mxu0 0.0
        %4505 = vmatprep.subr.mxu0 0.0
        %4506 = vmatpush2.msra.mxu0 0.0
        %4507 = vmatprep.subr.mxu0 0.0
        %4508 = vmatpush2.msra.mxu0 0.0
        %4509 = vmatprep.mubr.f32.mxu0 0.0
        %4510 = vmatmul.mubr.f32.gmra.mxu0 %v4434
        %v4511 = vpop.f32.mrf.mxu0
        %v4512 = vadd.f32 0.0, %v4511
        %v4513 = vpop.f32.mrf.mxu0
        %4514 = vmatprep.mubr.f32.mxu0 0.0
        %4515 = vmatmul.mubr.f32.gmra.mxu0 %v4437
        %v4516 = vpop.f32.mrf.mxu0
        %v4517 = vadd.f32 0.0, %v4516
        %v4518 = vpop.f32.mrf.mxu0
        %4519 = vmatprep.mubr.f32.mxu0 0.0
        %4520 = vmatmul.mubr.f32.gmra.mxu0 %v4440
        %v4521 = vpop.f32.mrf.mxu0
        %v4522 = vadd.f32 0.0, %v4521
        %v4523 = vpop.f32.mrf.mxu0
        %4524 = vmatprep.mubr.f32.mxu0 0.0
        %4525 = vmatmul.mubr.f32.gmra.mxu0 %v4443
        %v4526 = vpop.f32.mrf.mxu0
        %v4527 = vadd.f32 0.0, %v4526
        %v4528 = vpop.f32.mrf.mxu0
        %4529 = vdwg.mxu0
        %v4530 = vadd.f32 %v4420, %v4512
        %v4531 = vadd.f32 %v4421, %v4517
        %v4532 = vadd.f32 %v4422, %v4522
        %v4533 = vadd.f32 %v4423, %v4527
        %s4534 = scalar_lea.vmem [#allocation4], 576
        %v4535 = vld [vmem:[%s4534] sm:$0xff]
        %v4536 = vld [vmem:[%s4534 + $0x8] sm:$0xff]
        %v4537 = vld [vmem:[%s4534 + $0x10] sm:$0xff]
        %v4538 = vld [vmem:[%s4534 + $0x18] sm:$0xff]
        %v4539 = vld [vmem:[%s4534 + $0x20] sm:$0xff]
        %v4540 = vld [vmem:[%s4534 + $0x28] sm:$0xff]
        %v4541 = vld [vmem:[%s4534 + $0x30] sm:$0xff]
        %v4542 = vld [vmem:[%s4534 + $0x38] sm:$0xff]
        %v4544 = vsel %vm3569, %v3414, 0
        %v4547 = vsel %vm3569, %v3419, 0
        %v4550 = vsel %vm3569, %v3424, 0
        %v4553 = vsel %vm3569, %v3429, 0
        %4555 = vmatprep.subr.mxu0 0.0
        %4556 = vmatpush1.msra.mxu0 0.0
        %4557 = vmatprep.subr.mxu0 0.0
        %4558 = vmatpush1.msra.mxu0 0.0
        %4559 = vmatprep.subr.mxu0 0.0
        %4560 = vmatpush1.msra.mxu0 0.0
        %4561 = vmatprep.subr.mxu0 0.0
        %4562 = vmatpush1.msra.mxu0 0.0
        %4563 = vmatprep.subr.mxu0 0.0
        %4564 = vmatpush1.msra.mxu0 0.0
        %4565 = vmatprep.subr.mxu0 0.0
        %4566 = vmatpush1.msra.mxu0 0.0
        %4567 = vmatprep.subr.mxu0 0.0
        %4568 = vmatpush1.msra.mxu0 0.0
        %4569 = vmatprep.subr.mxu0 0.0
        %4570 = vmatpush1.msra.mxu0 0.0
        %4571 = vmatprep.subr.mxu0 0.0
        %4572 = vmatpush1.msra.mxu0 %v4542
        %4573 = vmatprep.subr.mxu0 0.0
        %4574 = vmatpush1.msra.mxu0 %v4541
        %4575 = vmatprep.subr.mxu0 0.0
        %4576 = vmatpush1.msra.mxu0 %v4540
        %4577 = vmatprep.subr.mxu0 0.0
        %4578 = vmatpush1.msra.mxu0 %v4539
        %4579 = vmatprep.subr.mxu0 0.0
        %4580 = vmatpush1.msra.mxu0 %v4538
        %4581 = vmatprep.subr.mxu0 0.0
        %4582 = vmatpush1.msra.mxu0 %v4537
        %4583 = vmatprep.subr.mxu0 0.0
        %4584 = vmatpush1.msra.mxu0 %v4536
        %4585 = vmatprep.subr.mxu0 0.0
        %4586 = vmatpush1.msra.mxu0 %v4535
        %4587 = vmatprep.subr.mxu0 0.0
        %4588 = vmatpush2.msra.mxu0 0.0
        %4589 = vmatprep.subr.mxu0 0.0
        %4590 = vmatpush2.msra.mxu0 0.0
        %4591 = vmatprep.subr.mxu0 0.0
        %4592 = vmatpush2.msra.mxu0 0.0
        %4593 = vmatprep.subr.mxu0 0.0
        %4594 = vmatpush2.msra.mxu0 0.0
        %4595 = vmatprep.subr.mxu0 0.0
        %4596 = vmatpush2.msra.mxu0 0.0
        %4597 = vmatprep.subr.mxu0 0.0
        %4598 = vmatpush2.msra.mxu0 0.0
        %4599 = vmatprep.subr.mxu0 0.0
        %4600 = vmatpush2.msra.mxu0 0.0
        %4601 = vmatprep.subr.mxu0 0.0
        %4602 = vmatpush2.msra.mxu0 0.0
        %4603 = vmatprep.subr.mxu0 0.0
        %4604 = vmatpush2.msra.mxu0 0.0
        %4605 = vmatprep.subr.mxu0 0.0
        %4606 = vmatpush2.msra.mxu0 0.0
        %4607 = vmatprep.subr.mxu0 0.0
        %4608 = vmatpush2.msra.mxu0 0.0
        %4609 = vmatprep.subr.mxu0 0.0
        %4610 = vmatpush2.msra.mxu0 0.0
        %4611 = vmatprep.subr.mxu0 0.0
        %4612 = vmatpush2.msra.mxu0 0.0
        %4613 = vmatprep.subr.mxu0 0.0
        %4614 = vmatpush2.msra.mxu0 0.0
        %4615 = vmatprep.subr.mxu0 0.0
        %4616 = vmatpush2.msra.mxu0 0.0
        %4617 = vmatprep.subr.mxu0 0.0
        %4618 = vmatpush2.msra.mxu0 0.0
        %4619 = vmatprep.mubr.f32.mxu0 0.0
        %4620 = vmatmul.mubr.f32.gmra.mxu0 %v4544
        %v4621 = vpop.f32.mrf.mxu0
        %v4622 = vadd.f32 0.0, %v4621
        %v4623 = vpop.f32.mrf.mxu0
        %4624 = vmatprep.mubr.f32.mxu0 0.0
        %4625 = vmatmul.mubr.f32.gmra.mxu0 %v4547
        %v4626 = vpop.f32.mrf.mxu0
        %v4627 = vadd.f32 0.0, %v4626
        %v4628 = vpop.f32.mrf.mxu0
        %4629 = vmatprep.mubr.f32.mxu0 0.0
        %4630 = vmatmul.mubr.f32.gmra.mxu0 %v4550
        %v4631 = vpop.f32.mrf.mxu0
        %v4632 = vadd.f32 0.0, %v4631
        %v4633 = vpop.f32.mrf.mxu0
        %4634 = vmatprep.mubr.f32.mxu0 0.0
        %4635 = vmatmul.mubr.f32.gmra.mxu0 %v4553
        %v4636 = vpop.f32.mrf.mxu0
        %v4637 = vadd.f32 0.0, %v4636
        %v4638 = vpop.f32.mrf.mxu0
        %4639 = vdwg.mxu0
        %v4640 = vadd.f32 %v4530, %v4622
        %v4641 = vadd.f32 %v4531, %v4627
        %v4642 = vadd.f32 %v4532, %v4632
        %v4643 = vadd.f32 %v4533, %v4637
        %s4644 = scalar_lea.vmem [#allocation4], 640
        %v4645 = vld [vmem:[%s4644] sm:$0xff]
        %v4646 = vld [vmem:[%s4644 + $0x8] sm:$0xff]
        %v4647 = vld [vmem:[%s4644 + $0x10] sm:$0xff]
        %v4648 = vld [vmem:[%s4644 + $0x18] sm:$0xff]
        %v4649 = vld [vmem:[%s4644 + $0x20] sm:$0xff]
        %v4650 = vld [vmem:[%s4644 + $0x28] sm:$0xff]
        %v4651 = vld [vmem:[%s4644 + $0x30] sm:$0xff]
        %v4652 = vld [vmem:[%s4644 + $0x38] sm:$0xff]
        %v4654 = vsel %vm3569, %v3434, 0
        %v4657 = vsel %vm3569, %v3439, 0
        %v4660 = vsel %vm3569, %v3444, 0
        %v4663 = vsel %vm3569, %v3449, 0
        %4665 = vmatprep.subr.mxu0 0.0
        %4666 = vmatpush1.msra.mxu0 0.0
        %4667 = vmatprep.subr.mxu0 0.0
        %4668 = vmatpush1.msra.mxu0 0.0
        %4669 = vmatprep.subr.mxu0 0.0
        %4670 = vmatpush1.msra.mxu0 0.0
        %4671 = vmatprep.subr.mxu0 0.0
        %4672 = vmatpush1.msra.mxu0 0.0
        %4673 = vmatprep.subr.mxu0 0.0
        %4674 = vmatpush1.msra.mxu0 0.0
        %4675 = vmatprep.subr.mxu0 0.0
        %4676 = vmatpush1.msra.mxu0 0.0
        %4677 = vmatprep.subr.mxu0 0.0
        %4678 = vmatpush1.msra.mxu0 0.0
        %4679 = vmatprep.subr.mxu0 0.0
        %4680 = vmatpush1.msra.mxu0 0.0
        %4681 = vmatprep.subr.mxu0 0.0
        %4682 = vmatpush1.msra.mxu0 %v4652
        %4683 = vmatprep.subr.mxu0 0.0
        %4684 = vmatpush1.msra.mxu0 %v4651
        %4685 = vmatprep.subr.mxu0 0.0
        %4686 = vmatpush1.msra.mxu0 %v4650
        %4687 = vmatprep.subr.mxu0 0.0
        %4688 = vmatpush1.msra.mxu0 %v4649
        %4689 = vmatprep.subr.mxu0 0.0
        %4690 = vmatpush1.msra.mxu0 %v4648
        %4691 = vmatprep.subr.mxu0 0.0
        %4692 = vmatpush1.msra.mxu0 %v4647
        %4693 = vmatprep.subr.mxu0 0.0
        %4694 = vmatpush1.msra.mxu0 %v4646
        %4695 = vmatprep.subr.mxu0 0.0
        %4696 = vmatpush1.msra.mxu0 %v4645
        %4697 = vmatprep.subr.mxu0 0.0
        %4698 = vmatpush2.msra.mxu0 0.0
        %4699 = vmatprep.subr.mxu0 0.0
        %4700 = vmatpush2.msra.mxu0 0.0
        %4701 = vmatprep.subr.mxu0 0.0
        %4702 = vmatpush2.msra.mxu0 0.0
        %4703 = vmatprep.subr.mxu0 0.0
        %4704 = vmatpush2.msra.mxu0 0.0
        %4705 = vmatprep.subr.mxu0 0.0
        %4706 = vmatpush2.msra.mxu0 0.0
        %4707 = vmatprep.subr.mxu0 0.0
        %4708 = vmatpush2.msra.mxu0 0.0
        %4709 = vmatprep.subr.mxu0 0.0
        %4710 = vmatpush2.msra.mxu0 0.0
        %4711 = vmatprep.subr.mxu0 0.0
        %4712 = vmatpush2.msra.mxu0 0.0
        %4713 = vmatprep.subr.mxu0 0.0
        %4714 = vmatpush2.msra.mxu0 0.0
        %4715 = vmatprep.subr.mxu0 0.0
        %4716 = vmatpush2.msra.mxu0 0.0
        %4717 = vmatprep.subr.mxu0 0.0
        %4718 = vmatpush2.msra.mxu0 0.0
        %4719 = vmatprep.subr.mxu0 0.0
        %4720 = vmatpush2.msra.mxu0 0.0
        %4721 = vmatprep.subr.mxu0 0.0
        %4722 = vmatpush2.msra.mxu0 0.0
        %4723 = vmatprep.subr.mxu0 0.0
        %4724 = vmatpush2.msra.mxu0 0.0
        %4725 = vmatprep.subr.mxu0 0.0
        %4726 = vmatpush2.msra.mxu0 0.0
        %4727 = vmatprep.subr.mxu0 0.0
        %4728 = vmatpush2.msra.mxu0 0.0
        %4729 = vmatprep.mubr.f32.mxu0 0.0
        %4730 = vmatmul.mubr.f32.gmra.mxu0 %v4654
        %v4731 = vpop.f32.mrf.mxu0
        %v4732 = vadd.f32 0.0, %v4731
        %v4733 = vpop.f32.mrf.mxu0
        %4734 = vmatprep.mubr.f32.mxu0 0.0
        %4735 = vmatmul.mubr.f32.gmra.mxu0 %v4657
        %v4736 = vpop.f32.mrf.mxu0
        %v4737 = vadd.f32 0.0, %v4736
        %v4738 = vpop.f32.mrf.mxu0
        %4739 = vmatprep.mubr.f32.mxu0 0.0
        %4740 = vmatmul.mubr.f32.gmra.mxu0 %v4660
        %v4741 = vpop.f32.mrf.mxu0
        %v4742 = vadd.f32 0.0, %v4741
        %v4743 = vpop.f32.mrf.mxu0
        %4744 = vmatprep.mubr.f32.mxu0 0.0
        %4745 = vmatmul.mubr.f32.gmra.mxu0 %v4663
        %v4746 = vpop.f32.mrf.mxu0
        %v4747 = vadd.f32 0.0, %v4746
        %v4748 = vpop.f32.mrf.mxu0
        %4749 = vdwg.mxu0
        %v4750 = vadd.f32 %v4640, %v4732
        %v4751 = vadd.f32 %v4641, %v4737
        %v4752 = vadd.f32 %v4642, %v4742
        %v4753 = vadd.f32 %v4643, %v4747
        %s4754 = scalar_lea.vmem [#allocation4], 704
        %v4755 = vld [vmem:[%s4754] sm:$0xff]
        %v4756 = vld [vmem:[%s4754 + $0x8] sm:$0xff]
        %v4757 = vld [vmem:[%s4754 + $0x10] sm:$0xff]
        %v4758 = vld [vmem:[%s4754 + $0x18] sm:$0xff]
        %v4759 = vld [vmem:[%s4754 + $0x20] sm:$0xff]
        %v4760 = vld [vmem:[%s4754 + $0x28] sm:$0xff]
        %v4761 = vld [vmem:[%s4754 + $0x30] sm:$0xff]
        %v4762 = vld [vmem:[%s4754 + $0x38] sm:$0xff]
        %v4764 = vsel %vm3569, %v3454, 0
        %v4767 = vsel %vm3569, %v3459, 0
        %v4770 = vsel %vm3569, %v3464, 0
        %v4773 = vsel %vm3569, %v3469, 0
        %4775 = vmatprep.subr.mxu0 0.0
        %4776 = vmatpush1.msra.mxu0 0.0
        %4777 = vmatprep.subr.mxu0 0.0
        %4778 = vmatpush1.msra.mxu0 0.0
        %4779 = vmatprep.subr.mxu0 0.0
        %4780 = vmatpush1.msra.mxu0 0.0
        %4781 = vmatprep.subr.mxu0 0.0
        %4782 = vmatpush1.msra.mxu0 0.0
        %4783 = vmatprep.subr.mxu0 0.0
        %4784 = vmatpush1.msra.mxu0 0.0
        %4785 = vmatprep.subr.mxu0 0.0
        %4786 = vmatpush1.msra.mxu0 0.0
        %4787 = vmatprep.subr.mxu0 0.0
        %4788 = vmatpush1.msra.mxu0 0.0
        %4789 = vmatprep.subr.mxu0 0.0
        %4790 = vmatpush1.msra.mxu0 0.0
        %4791 = vmatprep.subr.mxu0 0.0
        %4792 = vmatpush1.msra.mxu0 %v4762
        %4793 = vmatprep.subr.mxu0 0.0
        %4794 = vmatpush1.msra.mxu0 %v4761
        %4795 = vmatprep.subr.mxu0 0.0
        %4796 = vmatpush1.msra.mxu0 %v4760
        %4797 = vmatprep.subr.mxu0 0.0
        %4798 = vmatpush1.msra.mxu0 %v4759
        %4799 = vmatprep.subr.mxu0 0.0
        %4800 = vmatpush1.msra.mxu0 %v4758
        %4801 = vmatprep.subr.mxu0 0.0
        %4802 = vmatpush1.msra.mxu0 %v4757
        %4803 = vmatprep.subr.mxu0 0.0
        %4804 = vmatpush1.msra.mxu0 %v4756
        %4805 = vmatprep.subr.mxu0 0.0
        %4806 = vmatpush1.msra.mxu0 %v4755
        %4807 = vmatprep.subr.mxu0 0.0
        %4808 = vmatpush2.msra.mxu0 0.0
        %4809 = vmatprep.subr.mxu0 0.0
        %4810 = vmatpush2.msra.mxu0 0.0
        %4811 = vmatprep.subr.mxu0 0.0
        %4812 = vmatpush2.msra.mxu0 0.0
        %4813 = vmatprep.subr.mxu0 0.0
        %4814 = vmatpush2.msra.mxu0 0.0
        %4815 = vmatprep.subr.mxu0 0.0
        %4816 = vmatpush2.msra.mxu0 0.0
        %4817 = vmatprep.subr.mxu0 0.0
        %4818 = vmatpush2.msra.mxu0 0.0
        %4819 = vmatprep.subr.mxu0 0.0
        %4820 = vmatpush2.msra.mxu0 0.0
        %4821 = vmatprep.subr.mxu0 0.0
        %4822 = vmatpush2.msra.mxu0 0.0
        %4823 = vmatprep.subr.mxu0 0.0
        %4824 = vmatpush2.msra.mxu0 0.0
        %4825 = vmatprep.subr.mxu0 0.0
        %4826 = vmatpush2.msra.mxu0 0.0
        %4827 = vmatprep.subr.mxu0 0.0
        %4828 = vmatpush2.msra.mxu0 0.0
        %4829 = vmatprep.subr.mxu0 0.0
        %4830 = vmatpush2.msra.mxu0 0.0
        %4831 = vmatprep.subr.mxu0 0.0
        %4832 = vmatpush2.msra.mxu0 0.0
        %4833 = vmatprep.subr.mxu0 0.0
        %4834 = vmatpush2.msra.mxu0 0.0
        %4835 = vmatprep.subr.mxu0 0.0
        %4836 = vmatpush2.msra.mxu0 0.0
        %4837 = vmatprep.subr.mxu0 0.0
        %4838 = vmatpush2.msra.mxu0 0.0
        %4839 = vmatprep.mubr.f32.mxu0 0.0
        %4840 = vmatmul.mubr.f32.gmra.mxu0 %v4764
        %v4841 = vpop.f32.mrf.mxu0
        %v4842 = vadd.f32 0.0, %v4841
        %v4843 = vpop.f32.mrf.mxu0
        %4844 = vmatprep.mubr.f32.mxu0 0.0
        %4845 = vmatmul.mubr.f32.gmra.mxu0 %v4767
        %v4846 = vpop.f32.mrf.mxu0
        %v4847 = vadd.f32 0.0, %v4846
        %v4848 = vpop.f32.mrf.mxu0
        %4849 = vmatprep.mubr.f32.mxu0 0.0
        %4850 = vmatmul.mubr.f32.gmra.mxu0 %v4770
        %v4851 = vpop.f32.mrf.mxu0
        %v4852 = vadd.f32 0.0, %v4851
        %v4853 = vpop.f32.mrf.mxu0
        %4854 = vmatprep.mubr.f32.mxu0 0.0
        %4855 = vmatmul.mubr.f32.gmra.mxu0 %v4773
        %v4856 = vpop.f32.mrf.mxu0
        %v4857 = vadd.f32 0.0, %v4856
        %v4858 = vpop.f32.mrf.mxu0
        %4859 = vdwg.mxu0
        %v4860 = vadd.f32 %v4750, %v4842
        %v4861 = vadd.f32 %v4751, %v4847
        %v4862 = vadd.f32 %v4752, %v4852
        %v4863 = vadd.f32 %v4753, %v4857
        %s4864 = scalar_lea.vmem [#allocation4], 768
        %v4865 = vld [vmem:[%s4864] sm:$0xff]
        %v4866 = vld [vmem:[%s4864 + $0x8] sm:$0xff]
        %v4867 = vld [vmem:[%s4864 + $0x10] sm:$0xff]
        %v4868 = vld [vmem:[%s4864 + $0x18] sm:$0xff]
        %v4869 = vld [vmem:[%s4864 + $0x20] sm:$0xff]
        %v4870 = vld [vmem:[%s4864 + $0x28] sm:$0xff]
        %v4871 = vld [vmem:[%s4864 + $0x30] sm:$0xff]
        %v4872 = vld [vmem:[%s4864 + $0x38] sm:$0xff]
        %v4874 = vsel %vm3569, %v3474, 0
        %v4877 = vsel %vm3569, %v3479, 0
        %v4880 = vsel %vm3569, %v3484, 0
        %v4883 = vsel %vm3569, %v3489, 0
        %4885 = vmatprep.subr.mxu0 0.0
        %4886 = vmatpush1.msra.mxu0 0.0
        %4887 = vmatprep.subr.mxu0 0.0
        %4888 = vmatpush1.msra.mxu0 0.0
        %4889 = vmatprep.subr.mxu0 0.0
        %4890 = vmatpush1.msra.mxu0 0.0
        %4891 = vmatprep.subr.mxu0 0.0
        %4892 = vmatpush1.msra.mxu0 0.0
        %4893 = vmatprep.subr.mxu0 0.0
        %4894 = vmatpush1.msra.mxu0 0.0
        %4895 = vmatprep.subr.mxu0 0.0
        %4896 = vmatpush1.msra.mxu0 0.0
        %4897 = vmatprep.subr.mxu0 0.0
        %4898 = vmatpush1.msra.mxu0 0.0
        %4899 = vmatprep.subr.mxu0 0.0
        %4900 = vmatpush1.msra.mxu0 0.0
        %4901 = vmatprep.subr.mxu0 0.0
        %4902 = vmatpush1.msra.mxu0 %v4872
        %4903 = vmatprep.subr.mxu0 0.0
        %4904 = vmatpush1.msra.mxu0 %v4871
        %4905 = vmatprep.subr.mxu0 0.0
        %4906 = vmatpush1.msra.mxu0 %v4870
        %4907 = vmatprep.subr.mxu0 0.0
        %4908 = vmatpush1.msra.mxu0 %v4869
        %4909 = vmatprep.subr.mxu0 0.0
        %4910 = vmatpush1.msra.mxu0 %v4868
        %4911 = vmatprep.subr.mxu0 0.0
        %4912 = vmatpush1.msra.mxu0 %v4867
        %4913 = vmatprep.subr.mxu0 0.0
        %4914 = vmatpush1.msra.mxu0 %v4866
        %4915 = vmatprep.subr.mxu0 0.0
        %4916 = vmatpush1.msra.mxu0 %v4865
        %4917 = vmatprep.subr.mxu0 0.0
        %4918 = vmatpush2.msra.mxu0 0.0
        %4919 = vmatprep.subr.mxu0 0.0
        %4920 = vmatpush2.msra.mxu0 0.0
        %4921 = vmatprep.subr.mxu0 0.0
        %4922 = vmatpush2.msra.mxu0 0.0
        %4923 = vmatprep.subr.mxu0 0.0
        %4924 = vmatpush2.msra.mxu0 0.0
        %4925 = vmatprep.subr.mxu0 0.0
        %4926 = vmatpush2.msra.mxu0 0.0
        %4927 = vmatprep.subr.mxu0 0.0
        %4928 = vmatpush2.msra.mxu0 0.0
        %4929 = vmatprep.subr.mxu0 0.0
        %4930 = vmatpush2.msra.mxu0 0.0
        %4931 = vmatprep.subr.mxu0 0.0
        %4932 = vmatpush2.msra.mxu0 0.0
        %4933 = vmatprep.subr.mxu0 0.0
        %4934 = vmatpush2.msra.mxu0 0.0
        %4935 = vmatprep.subr.mxu0 0.0
        %4936 = vmatpush2.msra.mxu0 0.0
        %4937 = vmatprep.subr.mxu0 0.0
        %4938 = vmatpush2.msra.mxu0 0.0
        %4939 = vmatprep.subr.mxu0 0.0
        %4940 = vmatpush2.msra.mxu0 0.0
        %4941 = vmatprep.subr.mxu0 0.0
        %4942 = vmatpush2.msra.mxu0 0.0
        %4943 = vmatprep.subr.mxu0 0.0
        %4944 = vmatpush2.msra.mxu0 0.0
        %4945 = vmatprep.subr.mxu0 0.0
        %4946 = vmatpush2.msra.mxu0 0.0
        %4947 = vmatprep.subr.mxu0 0.0
        %4948 = vmatpush2.msra.mxu0 0.0
        %4949 = vmatprep.mubr.f32.mxu0 0.0
        %4950 = vmatmul.mubr.f32.gmra.mxu0 %v4874
        %v4951 = vpop.f32.mrf.mxu0
        %v4952 = vadd.f32 0.0, %v4951
        %v4953 = vpop.f32.mrf.mxu0
        %4954 = vmatprep.mubr.f32.mxu0 0.0
        %4955 = vmatmul.mubr.f32.gmra.mxu0 %v4877
        %v4956 = vpop.f32.mrf.mxu0
        %v4957 = vadd.f32 0.0, %v4956
        %v4958 = vpop.f32.mrf.mxu0
        %4959 = vmatprep.mubr.f32.mxu0 0.0
        %4960 = vmatmul.mubr.f32.gmra.mxu0 %v4880
        %v4961 = vpop.f32.mrf.mxu0
        %v4962 = vadd.f32 0.0, %v4961
        %v4963 = vpop.f32.mrf.mxu0
        %4964 = vmatprep.mubr.f32.mxu0 0.0
        %4965 = vmatmul.mubr.f32.gmra.mxu0 %v4883
        %v4966 = vpop.f32.mrf.mxu0
        %v4967 = vadd.f32 0.0, %v4966
        %v4968 = vpop.f32.mrf.mxu0
        %4969 = vdwg.mxu0
        %v4970 = vadd.f32 %v4860, %v4952
        %v4971 = vadd.f32 %v4861, %v4957
        %v4972 = vadd.f32 %v4862, %v4962
        %v4973 = vadd.f32 %v4863, %v4967
        %s4974 = scalar_lea.vmem [#allocation4], 832
        %v4975 = vld [vmem:[%s4974] sm:$0xff]
        %v4976 = vld [vmem:[%s4974 + $0x8] sm:$0xff]
        %v4977 = vld [vmem:[%s4974 + $0x10] sm:$0xff]
        %v4978 = vld [vmem:[%s4974 + $0x18] sm:$0xff]
        %v4979 = vld [vmem:[%s4974 + $0x20] sm:$0xff]
        %v4980 = vld [vmem:[%s4974 + $0x28] sm:$0xff]
        %v4981 = vld [vmem:[%s4974 + $0x30] sm:$0xff]
        %v4982 = vld [vmem:[%s4974 + $0x38] sm:$0xff]
        %v4984 = vsel %vm3569, %v3494, 0
        %v4987 = vsel %vm3569, %v3499, 0
        %v4990 = vsel %vm3569, %v3504, 0
        %v4993 = vsel %vm3569, %v3509, 0
        %4995 = vmatprep.subr.mxu0 0.0
        %4996 = vmatpush1.msra.mxu0 0.0
        %4997 = vmatprep.subr.mxu0 0.0
        %4998 = vmatpush1.msra.mxu0 0.0
        %4999 = vmatprep.subr.mxu0 0.0
        %5000 = vmatpush1.msra.mxu0 0.0
        %5001 = vmatprep.subr.mxu0 0.0
        %5002 = vmatpush1.msra.mxu0 0.0
        %5003 = vmatprep.subr.mxu0 0.0
        %5004 = vmatpush1.msra.mxu0 0.0
        %5005 = vmatprep.subr.mxu0 0.0
        %5006 = vmatpush1.msra.mxu0 0.0
        %5007 = vmatprep.subr.mxu0 0.0
        %5008 = vmatpush1.msra.mxu0 0.0
        %5009 = vmatprep.subr.mxu0 0.0
        %5010 = vmatpush1.msra.mxu0 0.0
        %5011 = vmatprep.subr.mxu0 0.0
        %5012 = vmatpush1.msra.mxu0 %v4982
        %5013 = vmatprep.subr.mxu0 0.0
        %5014 = vmatpush1.msra.mxu0 %v4981
        %5015 = vmatprep.subr.mxu0 0.0
        %5016 = vmatpush1.msra.mxu0 %v4980
        %5017 = vmatprep.subr.mxu0 0.0
        %5018 = vmatpush1.msra.mxu0 %v4979
        %5019 = vmatprep.subr.mxu0 0.0
        %5020 = vmatpush1.msra.mxu0 %v4978
        %5021 = vmatprep.subr.mxu0 0.0
        %5022 = vmatpush1.msra.mxu0 %v4977
        %5023 = vmatprep.subr.mxu0 0.0
        %5024 = vmatpush1.msra.mxu0 %v4976
        %5025 = vmatprep.subr.mxu0 0.0
        %5026 = vmatpush1.msra.mxu0 %v4975
        %5027 = vmatprep.subr.mxu0 0.0
        %5028 = vmatpush2.msra.mxu0 0.0
        %5029 = vmatprep.subr.mxu0 0.0
        %5030 = vmatpush2.msra.mxu0 0.0
        %5031 = vmatprep.subr.mxu0 0.0
        %5032 = vmatpush2.msra.mxu0 0.0
        %5033 = vmatprep.subr.mxu0 0.0
        %5034 = vmatpush2.msra.mxu0 0.0
        %5035 = vmatprep.subr.mxu0 0.0
        %5036 = vmatpush2.msra.mxu0 0.0
        %5037 = vmatprep.subr.mxu0 0.0
        %5038 = vmatpush2.msra.mxu0 0.0
        %5039 = vmatprep.subr.mxu0 0.0
        %5040 = vmatpush2.msra.mxu0 0.0
        %5041 = vmatprep.subr.mxu0 0.0
        %5042 = vmatpush2.msra.mxu0 0.0
        %5043 = vmatprep.subr.mxu0 0.0
        %5044 = vmatpush2.msra.mxu0 0.0
        %5045 = vmatprep.subr.mxu0 0.0
        %5046 = vmatpush2.msra.mxu0 0.0
        %5047 = vmatprep.subr.mxu0 0.0
        %5048 = vmatpush2.msra.mxu0 0.0
        %5049 = vmatprep.subr.mxu0 0.0
        %5050 = vmatpush2.msra.mxu0 0.0
        %5051 = vmatprep.subr.mxu0 0.0
        %5052 = vmatpush2.msra.mxu0 0.0
        %5053 = vmatprep.subr.mxu0 0.0
        %5054 = vmatpush2.msra.mxu0 0.0
        %5055 = vmatprep.subr.mxu0 0.0
        %5056 = vmatpush2.msra.mxu0 0.0
        %5057 = vmatprep.subr.mxu0 0.0
        %5058 = vmatpush2.msra.mxu0 0.0
        %5059 = vmatprep.mubr.f32.mxu0 0.0
        %5060 = vmatmul.mubr.f32.gmra.mxu0 %v4984
        %v5061 = vpop.f32.mrf.mxu0
        %v5062 = vadd.f32 0.0, %v5061
        %v5063 = vpop.f32.mrf.mxu0
        %5064 = vmatprep.mubr.f32.mxu0 0.0
        %5065 = vmatmul.mubr.f32.gmra.mxu0 %v4987
        %v5066 = vpop.f32.mrf.mxu0
        %v5067 = vadd.f32 0.0, %v5066
        %v5068 = vpop.f32.mrf.mxu0
        %5069 = vmatprep.mubr.f32.mxu0 0.0
        %5070 = vmatmul.mubr.f32.gmra.mxu0 %v4990
        %v5071 = vpop.f32.mrf.mxu0
        %v5072 = vadd.f32 0.0, %v5071
        %v5073 = vpop.f32.mrf.mxu0
        %5074 = vmatprep.mubr.f32.mxu0 0.0
        %5075 = vmatmul.mubr.f32.gmra.mxu0 %v4993
        %v5076 = vpop.f32.mrf.mxu0
        %v5077 = vadd.f32 0.0, %v5076
        %v5078 = vpop.f32.mrf.mxu0
        %5079 = vdwg.mxu0
        %v5080 = vadd.f32 %v4970, %v5062
        %v5081 = vadd.f32 %v4971, %v5067
        %v5082 = vadd.f32 %v4972, %v5072
        %v5083 = vadd.f32 %v4973, %v5077
        %s5084 = scalar_lea.vmem [#allocation4], 896
        %v5085 = vld [vmem:[%s5084] sm:$0xff]
        %v5086 = vld [vmem:[%s5084 + $0x8] sm:$0xff]
        %v5087 = vld [vmem:[%s5084 + $0x10] sm:$0xff]
        %v5088 = vld [vmem:[%s5084 + $0x18] sm:$0xff]
        %v5089 = vld [vmem:[%s5084 + $0x20] sm:$0xff]
        %v5090 = vld [vmem:[%s5084 + $0x28] sm:$0xff]
        %v5091 = vld [vmem:[%s5084 + $0x30] sm:$0xff]
        %v5092 = vld [vmem:[%s5084 + $0x38] sm:$0xff]
        %v5094 = vsel %vm3569, %v3514, 0
        %v5097 = vsel %vm3569, %v3519, 0
        %v5100 = vsel %vm3569, %v3524, 0
        %v5103 = vsel %vm3569, %v3529, 0
        %5105 = vmatprep.subr.mxu0 0.0
        %5106 = vmatpush1.msra.mxu0 0.0
        %5107 = vmatprep.subr.mxu0 0.0
        %5108 = vmatpush1.msra.mxu0 0.0
        %5109 = vmatprep.subr.mxu0 0.0
        %5110 = vmatpush1.msra.mxu0 0.0
        %5111 = vmatprep.subr.mxu0 0.0
        %5112 = vmatpush1.msra.mxu0 0.0
        %5113 = vmatprep.subr.mxu0 0.0
        %5114 = vmatpush1.msra.mxu0 0.0
        %5115 = vmatprep.subr.mxu0 0.0
        %5116 = vmatpush1.msra.mxu0 0.0
        %5117 = vmatprep.subr.mxu0 0.0
        %5118 = vmatpush1.msra.mxu0 0.0
        %5119 = vmatprep.subr.mxu0 0.0
        %5120 = vmatpush1.msra.mxu0 0.0
        %5121 = vmatprep.subr.mxu0 0.0
        %5122 = vmatpush1.msra.mxu0 %v5092
        %5123 = vmatprep.subr.mxu0 0.0
        %5124 = vmatpush1.msra.mxu0 %v5091
        %5125 = vmatprep.subr.mxu0 0.0
        %5126 = vmatpush1.msra.mxu0 %v5090
        %5127 = vmatprep.subr.mxu0 0.0
        %5128 = vmatpush1.msra.mxu0 %v5089
        %5129 = vmatprep.subr.mxu0 0.0
        %5130 = vmatpush1.msra.mxu0 %v5088
        %5131 = vmatprep.subr.mxu0 0.0
        %5132 = vmatpush1.msra.mxu0 %v5087
        %5133 = vmatprep.subr.mxu0 0.0
        %5134 = vmatpush1.msra.mxu0 %v5086
        %5135 = vmatprep.subr.mxu0 0.0
        %5136 = vmatpush1.msra.mxu0 %v5085
        %5137 = vmatprep.subr.mxu0 0.0
        %5138 = vmatpush2.msra.mxu0 0.0
        %5139 = vmatprep.subr.mxu0 0.0
        %5140 = vmatpush2.msra.mxu0 0.0
        %5141 = vmatprep.subr.mxu0 0.0
        %5142 = vmatpush2.msra.mxu0 0.0
        %5143 = vmatprep.subr.mxu0 0.0
        %5144 = vmatpush2.msra.mxu0 0.0
        %5145 = vmatprep.subr.mxu0 0.0
        %5146 = vmatpush2.msra.mxu0 0.0
        %5147 = vmatprep.subr.mxu0 0.0
        %5148 = vmatpush2.msra.mxu0 0.0
        %5149 = vmatprep.subr.mxu0 0.0
        %5150 = vmatpush2.msra.mxu0 0.0
        %5151 = vmatprep.subr.mxu0 0.0
        %5152 = vmatpush2.msra.mxu0 0.0
        %5153 = vmatprep.subr.mxu0 0.0
        %5154 = vmatpush2.msra.mxu0 0.0
        %5155 = vmatprep.subr.mxu0 0.0
        %5156 = vmatpush2.msra.mxu0 0.0
        %5157 = vmatprep.subr.mxu0 0.0
        %5158 = vmatpush2.msra.mxu0 0.0
        %5159 = vmatprep.subr.mxu0 0.0
        %5160 = vmatpush2.msra.mxu0 0.0
        %5161 = vmatprep.subr.mxu0 0.0
        %5162 = vmatpush2.msra.mxu0 0.0
        %5163 = vmatprep.subr.mxu0 0.0
        %5164 = vmatpush2.msra.mxu0 0.0
        %5165 = vmatprep.subr.mxu0 0.0
        %5166 = vmatpush2.msra.mxu0 0.0
        %5167 = vmatprep.subr.mxu0 0.0
        %5168 = vmatpush2.msra.mxu0 0.0
        %5169 = vmatprep.mubr.f32.mxu0 0.0
        %5170 = vmatmul.mubr.f32.gmra.mxu0 %v5094
        %v5171 = vpop.f32.mrf.mxu0
        %v5172 = vadd.f32 0.0, %v5171
        %v5173 = vpop.f32.mrf.mxu0
        %5174 = vmatprep.mubr.f32.mxu0 0.0
        %5175 = vmatmul.mubr.f32.gmra.mxu0 %v5097
        %v5176 = vpop.f32.mrf.mxu0
        %v5177 = vadd.f32 0.0, %v5176
        %v5178 = vpop.f32.mrf.mxu0
        %5179 = vmatprep.mubr.f32.mxu0 0.0
        %5180 = vmatmul.mubr.f32.gmra.mxu0 %v5100
        %v5181 = vpop.f32.mrf.mxu0
        %v5182 = vadd.f32 0.0, %v5181
        %v5183 = vpop.f32.mrf.mxu0
        %5184 = vmatprep.mubr.f32.mxu0 0.0
        %5185 = vmatmul.mubr.f32.gmra.mxu0 %v5103
        %v5186 = vpop.f32.mrf.mxu0
        %v5187 = vadd.f32 0.0, %v5186
        %v5188 = vpop.f32.mrf.mxu0
        %5189 = vdwg.mxu0
        %v5190 = vadd.f32 %v5080, %v5172
        %v5191 = vadd.f32 %v5081, %v5177
        %v5192 = vadd.f32 %v5082, %v5182
        %v5193 = vadd.f32 %v5083, %v5187
        %s5194 = scalar_lea.vmem [#allocation4], 960
        %v5195 = vld [vmem:[%s5194] sm:$0xff]
        %v5196 = vld [vmem:[%s5194 + $0x8] sm:$0xff]
        %v5197 = vld [vmem:[%s5194 + $0x10] sm:$0xff]
        %v5198 = vld [vmem:[%s5194 + $0x18] sm:$0xff]
        %v5199 = vld [vmem:[%s5194 + $0x20] sm:$0xff]
        %v5200 = vld [vmem:[%s5194 + $0x28] sm:$0xff]
        %v5201 = vld [vmem:[%s5194 + $0x30] sm:$0xff]
        %v5202 = vld [vmem:[%s5194 + $0x38] sm:$0xff]
        %v5204 = vsel %vm3569, %v3534, 0
        %v5207 = vsel %vm3569, %v3539, 0
        %v5210 = vsel %vm3569, %v3544, 0
        %v5213 = vsel %vm3569, %v3549, 0
        %5215 = vmatprep.subr.mxu0 0.0
        %5216 = vmatpush1.msra.mxu0 0.0
        %5217 = vmatprep.subr.mxu0 0.0
        %5218 = vmatpush1.msra.mxu0 0.0
        %5219 = vmatprep.subr.mxu0 0.0
        %5220 = vmatpush1.msra.mxu0 0.0
        %5221 = vmatprep.subr.mxu0 0.0
        %5222 = vmatpush1.msra.mxu0 0.0
        %5223 = vmatprep.subr.mxu0 0.0
        %5224 = vmatpush1.msra.mxu0 0.0
        %5225 = vmatprep.subr.mxu0 0.0
        %5226 = vmatpush1.msra.mxu0 0.0
        %5227 = vmatprep.subr.mxu0 0.0
        %5228 = vmatpush1.msra.mxu0 0.0
        %5229 = vmatprep.subr.mxu0 0.0
        %5230 = vmatpush1.msra.mxu0 0.0
        %5231 = vmatprep.subr.mxu0 0.0
        %5232 = vmatpush1.msra.mxu0 %v5202
        %5233 = vmatprep.subr.mxu0 0.0
        %5234 = vmatpush1.msra.mxu0 %v5201
        %5235 = vmatprep.subr.mxu0 0.0
        %5236 = vmatpush1.msra.mxu0 %v5200
        %5237 = vmatprep.subr.mxu0 0.0
        %5238 = vmatpush1.msra.mxu0 %v5199
        %5239 = vmatprep.subr.mxu0 0.0
        %5240 = vmatpush1.msra.mxu0 %v5198
        %5241 = vmatprep.subr.mxu0 0.0
        %5242 = vmatpush1.msra.mxu0 %v5197
        %5243 = vmatprep.subr.mxu0 0.0
        %5244 = vmatpush1.msra.mxu0 %v5196
        %5245 = vmatprep.subr.mxu0 0.0
        %5246 = vmatpush1.msra.mxu0 %v5195
        %5247 = vmatprep.subr.mxu0 0.0
        %5248 = vmatpush2.msra.mxu0 0.0
        %5249 = vmatprep.subr.mxu0 0.0
        %5250 = vmatpush2.msra.mxu0 0.0
        %5251 = vmatprep.subr.mxu0 0.0
        %5252 = vmatpush2.msra.mxu0 0.0
        %5253 = vmatprep.subr.mxu0 0.0
        %5254 = vmatpush2.msra.mxu0 0.0
        %5255 = vmatprep.subr.mxu0 0.0
        %5256 = vmatpush2.msra.mxu0 0.0
        %5257 = vmatprep.subr.mxu0 0.0
        %5258 = vmatpush2.msra.mxu0 0.0
        %5259 = vmatprep.subr.mxu0 0.0
        %5260 = vmatpush2.msra.mxu0 0.0
        %5261 = vmatprep.subr.mxu0 0.0
        %5262 = vmatpush2.msra.mxu0 0.0
        %5263 = vmatprep.subr.mxu0 0.0
        %5264 = vmatpush2.msra.mxu0 0.0
        %5265 = vmatprep.subr.mxu0 0.0
        %5266 = vmatpush2.msra.mxu0 0.0
        %5267 = vmatprep.subr.mxu0 0.0
        %5268 = vmatpush2.msra.mxu0 0.0
        %5269 = vmatprep.subr.mxu0 0.0
        %5270 = vmatpush2.msra.mxu0 0.0
        %5271 = vmatprep.subr.mxu0 0.0
        %5272 = vmatpush2.msra.mxu0 0.0
        %5273 = vmatprep.subr.mxu0 0.0
        %5274 = vmatpush2.msra.mxu0 0.0
        %5275 = vmatprep.subr.mxu0 0.0
        %5276 = vmatpush2.msra.mxu0 0.0
        %5277 = vmatprep.subr.mxu0 0.0
        %5278 = vmatpush2.msra.mxu0 0.0
        %5279 = vmatprep.mubr.f32.mxu0 0.0
        %5280 = vmatmul.mubr.f32.gmra.mxu0 %v5204
        %v5281 = vpop.f32.mrf.mxu0
        %v5282 = vadd.f32 0.0, %v5281
        %v5283 = vpop.f32.mrf.mxu0
        %5284 = vmatprep.mubr.f32.mxu0 0.0
        %5285 = vmatmul.mubr.f32.gmra.mxu0 %v5207
        %v5286 = vpop.f32.mrf.mxu0
        %v5287 = vadd.f32 0.0, %v5286
        %v5288 = vpop.f32.mrf.mxu0
        %5289 = vmatprep.mubr.f32.mxu0 0.0
        %5290 = vmatmul.mubr.f32.gmra.mxu0 %v5210
        %v5291 = vpop.f32.mrf.mxu0
        %v5292 = vadd.f32 0.0, %v5291
        %v5293 = vpop.f32.mrf.mxu0
        %5294 = vmatprep.mubr.f32.mxu0 0.0
        %5295 = vmatmul.mubr.f32.gmra.mxu0 %v5213
        %v5296 = vpop.f32.mrf.mxu0
        %v5297 = vadd.f32 0.0, %v5296
        %v5298 = vpop.f32.mrf.mxu0
        %5299 = vdwg.mxu0
        %v5300 = vadd.f32 %v5190, %v5282
        %v5301 = vadd.f32 %v5191, %v5287
        %v5302 = vadd.f32 %v5192, %v5292
        %v5303 = vadd.f32 %v5193, %v5297
        %5305 = vset.pattern.permute.xlu0 0
        %5306 = vperm.xlu0 %5305, %v2970
        %v5307 = vpop.permute.xlu0 %5306
        %5310 = vset.pattern.permute.xlu0 0
        %5311 = vperm.xlu0 %5310, %v2971
        %v5312 = vpop.permute.xlu0 %5311
        %5315 = vset.pattern.permute.xlu0 0
        %5316 = vperm.xlu0 %5315, %v2972
        %v5317 = vpop.permute.xlu0 %5316
        %5320 = vset.pattern.permute.xlu0 0
        %5321 = vperm.xlu0 %5320, %v2973
        %v5322 = vpop.permute.xlu0 %5321
        %v5324 = vadd.f32 %v5300, %v5307
        %v5325 = vadd.f32 %v5301, %v5312
        %v5326 = vadd.f32 %v5302, %v5317
        %v5327 = vadd.f32 %v5303, %v5322
        %v5328 = vmax.f32 %v5324, 0.0
        %v5329 = vmax.f32 %v5325, 0.0
        %v5330 = vmax.f32 %v5326, 0.0
        %v5331 = vmax.f32 %v5327, 0.0
        %v5332 = vld [vmem:[#allocation6] sm:$0xff]
        %v5333 = vld [vmem:[#allocation6 + $0x8] sm:$0xff]
        %v5334 = vld [vmem:[#allocation6 + $0x10] sm:$0xff]
        %v5335 = vld [vmem:[#allocation6 + $0x18] sm:$0xff]
        %v5336 = vld [vmem:[#allocation6 + $0x20] sm:$0xff]
        %v5337 = vld [vmem:[#allocation6 + $0x28] sm:$0xff]
        %v5338 = vld [vmem:[#allocation6 + $0x30] sm:$0xff]
        %v5339 = vld [vmem:[#allocation6 + $0x38] sm:$0xff]
        %v5340 = vld [vmem:[#allocation6 + $0x40] sm:$0xff]
        %v5341 = vld [vmem:[#allocation6 + $0x48] sm:$0xff]
        %v5342 = vld [vmem:[#allocation6 + $0x50] sm:$0xff]
        %v5343 = vld [vmem:[#allocation6 + $0x58] sm:$0xff]
        %v5344 = vld [vmem:[#allocation6 + $0x60] sm:$0xff]
        %v5345 = vld [vmem:[#allocation6 + $0x68] sm:$0xff]
        %v5346 = vld [vmem:[#allocation6 + $0x70] sm:$0xff]
        %v5347 = vld [vmem:[#allocation6 + $0x78] sm:$0xff]
        %v5348 = vld [vmem:[#allocation6 + $0x80] sm:$0xff]
        %v5349 = vld [vmem:[#allocation6 + $0x88] sm:$0xff]
        %v5350 = vld [vmem:[#allocation6 + $0x90] sm:$0xff]
        %v5351 = vld [vmem:[#allocation6 + $0x98] sm:$0xff]
        %v5352 = vld [vmem:[#allocation6 + $0xa0] sm:$0xff]
        %v5353 = vld [vmem:[#allocation6 + $0xa8] sm:$0xff]
        %v5354 = vld [vmem:[#allocation6 + $0xb0] sm:$0xff]
        %v5355 = vld [vmem:[#allocation6 + $0xb8] sm:$0xff]
        %v5356 = vld [vmem:[#allocation6 + $0xc0] sm:$0xff]
        %v5357 = vld [vmem:[#allocation6 + $0xc8] sm:$0xff]
        %v5358 = vld [vmem:[#allocation6 + $0xd0] sm:$0xff]
        %v5359 = vld [vmem:[#allocation6 + $0xd8] sm:$0xff]
        %v5360 = vld [vmem:[#allocation6 + $0xe0] sm:$0xff]
        %v5361 = vld [vmem:[#allocation6 + $0xe8] sm:$0xff]
        %v5362 = vld [vmem:[#allocation6 + $0xf0] sm:$0xff]
        %v5363 = vld [vmem:[#allocation6 + $0xf8] sm:$0xff]
        %v5364 = vld [vmem:[#allocation6 + $0x100] sm:$0xff]
        %v5365 = vld [vmem:[#allocation6 + $0x108] sm:$0xff]
        %v5366 = vld [vmem:[#allocation6 + $0x110] sm:$0xff]
        %v5367 = vld [vmem:[#allocation6 + $0x118] sm:$0xff]
        %v5368 = vld [vmem:[%s8] sm:$0xff]
        %v5369 = vld [vmem:[%s8 + $0x8] sm:$0xff]
        %v5370 = vld [vmem:[%s8 + $0x10] sm:$0xff]
        %v5371 = vld [vmem:[%s8 + $0x18] sm:$0xff]
        %vm5372 = vcmask 261120
        %v5374 = vsel %vm5372, %v5332, 0
        %v5377 = vsel %vm5372, %v5333, 0
        %v5380 = vsel %vm5372, %v5334, 0
        %v5383 = vsel %vm5372, %v5335, 0
        %v5386 = vsel %vm5372, %v5336, 0
        %v5389 = vsel %vm5372, %v5337, 0
        %v5392 = vsel %vm5372, %v5338, 0
        %v5395 = vsel %vm5372, %v5339, 0
        %v5398 = vsel %vm5372, %v5340, 0
        %v5401 = vsel %vm5372, %v5341, 0
        %v5404 = vsel %vm5372, %v5342, 0
        %v5407 = vsel %vm5372, %v5343, 0
        %v5410 = vsel %vm5372, %v5344, 0
        %v5413 = vsel %vm5372, %v5345, 0
        %v5416 = vsel %vm5372, %v5346, 0
        %v5419 = vsel %vm5372, %v5347, 0
        %v5422 = vsel %vm5372, %v5348, 0
        %v5425 = vsel %vm5372, %v5349, 0
        %v5428 = vsel %vm5372, %v5350, 0
        %v5431 = vsel %vm5372, %v5351, 0
        %v5434 = vsel %vm5372, %v5352, 0
        %v5437 = vsel %vm5372, %v5353, 0
        %v5440 = vsel %vm5372, %v5354, 0
        %v5443 = vsel %vm5372, %v5355, 0
        %v5446 = vsel %vm5372, %v5356, 0
        %v5449 = vsel %vm5372, %v5357, 0
        %v5452 = vsel %vm5372, %v5358, 0
        %v5455 = vsel %vm5372, %v5359, 0
        %v5458 = vsel %vm5372, %v5360, 0
        %v5461 = vsel %vm5372, %v5361, 0
        %v5464 = vsel %vm5372, %v5362, 0
        %v5467 = vsel %vm5372, %v5363, 0
        %v5470 = vsel %vm5372, %v5364, 0
        %v5473 = vsel %vm5372, %v5365, 0
        %v5476 = vsel %vm5372, %v5366, 0
        %v5479 = vsel %vm5372, %v5367, 0
        %5481 = vmatprep.subr.mxu0 0.0
        %5482 = vmatpush1.msra.mxu0 0.0
        %5483 = vmatprep.subr.mxu0 0.0
        %5484 = vmatpush1.msra.mxu0 0.0
        %5485 = vmatprep.subr.mxu0 0.0
        %5486 = vmatpush1.msra.mxu0 0.0
        %5487 = vmatprep.subr.mxu0 0.0
        %5488 = vmatpush1.msra.mxu0 0.0
        %5489 = vmatprep.subr.mxu0 0.0
        %5490 = vmatpush1.msra.mxu0 0.0
        %5491 = vmatprep.subr.mxu0 0.0
        %5492 = vmatpush1.msra.mxu0 0.0
        %5493 = vmatprep.subr.mxu0 0.0
        %5494 = vmatpush1.msra.mxu0 0.0
        %5495 = vmatprep.subr.mxu0 0.0
        %5496 = vmatpush1.msra.mxu0 0.0
        %5497 = vmatprep.subr.mxu0 0.0
        %5498 = vmatpush1.msra.mxu0 0.0
        %5499 = vmatprep.subr.mxu0 0.0
        %5500 = vmatpush1.msra.mxu0 0.0
        %5501 = vmatprep.subr.mxu0 0.0
        %5502 = vmatpush1.msra.mxu0 0.0
        %5503 = vmatprep.subr.mxu0 0.0
        %5504 = vmatpush1.msra.mxu0 0.0
        %5505 = vmatprep.subr.mxu0 0.0
        %5506 = vmatpush1.msra.mxu0 %v5331
        %5507 = vmatprep.subr.mxu0 0.0
        %5508 = vmatpush1.msra.mxu0 %v5330
        %5509 = vmatprep.subr.mxu0 0.0
        %5510 = vmatpush1.msra.mxu0 %v5329
        %5511 = vmatprep.subr.mxu0 0.0
        %5512 = vmatpush1.msra.mxu0 %v5328
        %5513 = vmatprep.subr.mxu0 0.0
        %5514 = vmatpush2.msra.mxu0 0.0
        %5515 = vmatprep.subr.mxu0 0.0
        %5516 = vmatpush2.msra.mxu0 0.0
        %5517 = vmatprep.subr.mxu0 0.0
        %5518 = vmatpush2.msra.mxu0 0.0
        %5519 = vmatprep.subr.mxu0 0.0
        %5520 = vmatpush2.msra.mxu0 0.0
        %5521 = vmatprep.subr.mxu0 0.0
        %5522 = vmatpush2.msra.mxu0 0.0
        %5523 = vmatprep.subr.mxu0 0.0
        %5524 = vmatpush2.msra.mxu0 0.0
        %5525 = vmatprep.subr.mxu0 0.0
        %5526 = vmatpush2.msra.mxu0 0.0
        %5527 = vmatprep.subr.mxu0 0.0
        %5528 = vmatpush2.msra.mxu0 0.0
        %5529 = vmatprep.subr.mxu0 0.0
        %5530 = vmatpush2.msra.mxu0 0.0
        %5531 = vmatprep.subr.mxu0 0.0
        %5532 = vmatpush2.msra.mxu0 0.0
        %5533 = vmatprep.subr.mxu0 0.0
        %5534 = vmatpush2.msra.mxu0 0.0
        %5535 = vmatprep.subr.mxu0 0.0
        %5536 = vmatpush2.msra.mxu0 0.0
        %5537 = vmatprep.subr.mxu0 0.0
        %5538 = vmatpush2.msra.mxu0 0.0
        %5539 = vmatprep.subr.mxu0 0.0
        %5540 = vmatpush2.msra.mxu0 0.0
        %5541 = vmatprep.subr.mxu0 0.0
        %5542 = vmatpush2.msra.mxu0 0.0
        %5543 = vmatprep.subr.mxu0 0.0
        %5544 = vmatpush2.msra.mxu0 0.0
        %5545 = vmatprep.mubr.f32.mxu0 0.0
        %5546 = vmatmul.mubr.f32.gmra.mxu0 %v5374
        %v5547 = vpop.f32.mrf.mxu0
        %v5548 = vadd.f32 0.0, %v5547
        %v5549 = vpop.f32.mrf.mxu0
        %5550 = vmatprep.mubr.f32.mxu0 0.0
        %5551 = vmatmul.mubr.f32.gmra.mxu0 %v5377
        %v5552 = vpop.f32.mrf.mxu0
        %v5553 = vadd.f32 0.0, %v5552
        %v5554 = vpop.f32.mrf.mxu0
        %5555 = vmatprep.mubr.f32.mxu0 0.0
        %5556 = vmatmul.mubr.f32.gmra.mxu0 %v5380
        %v5557 = vpop.f32.mrf.mxu0
        %v5558 = vadd.f32 0.0, %v5557
        %v5559 = vpop.f32.mrf.mxu0
        %5560 = vmatprep.mubr.f32.mxu0 0.0
        %5561 = vmatmul.mubr.f32.gmra.mxu0 %v5383
        %v5562 = vpop.f32.mrf.mxu0
        %v5563 = vadd.f32 0.0, %v5562
        %v5564 = vpop.f32.mrf.mxu0
        %5565 = vmatprep.mubr.f32.mxu0 0.0
        %5566 = vmatmul.mubr.f32.gmra.mxu0 %v5386
        %v5567 = vpop.f32.mrf.mxu0
        %v5568 = vadd.f32 0.0, %v5567
        %v5569 = vpop.f32.mrf.mxu0
        %5570 = vmatprep.mubr.f32.mxu0 0.0
        %5571 = vmatmul.mubr.f32.gmra.mxu0 %v5389
        %v5572 = vpop.f32.mrf.mxu0
        %v5573 = vadd.f32 0.0, %v5572
        %v5574 = vpop.f32.mrf.mxu0
        %5575 = vmatprep.mubr.f32.mxu0 0.0
        %5576 = vmatmul.mubr.f32.gmra.mxu0 %v5392
        %v5577 = vpop.f32.mrf.mxu0
        %v5578 = vadd.f32 0.0, %v5577
        %v5579 = vpop.f32.mrf.mxu0
        %5580 = vmatprep.mubr.f32.mxu0 0.0
        %5581 = vmatmul.mubr.f32.gmra.mxu0 %v5395
        %v5582 = vpop.f32.mrf.mxu0
        %v5583 = vadd.f32 0.0, %v5582
        %v5584 = vpop.f32.mrf.mxu0
        %5585 = vmatprep.mubr.f32.mxu0 0.0
        %5586 = vmatmul.mubr.f32.gmra.mxu0 %v5398
        %v5587 = vpop.f32.mrf.mxu0
        %v5588 = vadd.f32 0.0, %v5587
        %v5589 = vpop.f32.mrf.mxu0
        %5590 = vmatprep.mubr.f32.mxu0 0.0
        %5591 = vmatmul.mubr.f32.gmra.mxu0 %v5401
        %v5592 = vpop.f32.mrf.mxu0
        %v5593 = vadd.f32 0.0, %v5592
        %v5594 = vpop.f32.mrf.mxu0
        %5595 = vmatprep.mubr.f32.mxu0 0.0
        %5596 = vmatmul.mubr.f32.gmra.mxu0 %v5404
        %v5597 = vpop.f32.mrf.mxu0
        %v5598 = vadd.f32 0.0, %v5597
        %v5599 = vpop.f32.mrf.mxu0
        %5600 = vmatprep.mubr.f32.mxu0 0.0
        %5601 = vmatmul.mubr.f32.gmra.mxu0 %v5407
        %v5602 = vpop.f32.mrf.mxu0
        %v5603 = vadd.f32 0.0, %v5602
        %v5604 = vpop.f32.mrf.mxu0
        %5605 = vmatprep.mubr.f32.mxu0 0.0
        %5606 = vmatmul.mubr.f32.gmra.mxu0 %v5410
        %v5607 = vpop.f32.mrf.mxu0
        %v5608 = vadd.f32 0.0, %v5607
        %v5609 = vpop.f32.mrf.mxu0
        %5610 = vmatprep.mubr.f32.mxu0 0.0
        %5611 = vmatmul.mubr.f32.gmra.mxu0 %v5413
        %v5612 = vpop.f32.mrf.mxu0
        %v5613 = vadd.f32 0.0, %v5612
        %v5614 = vpop.f32.mrf.mxu0
        %5615 = vmatprep.mubr.f32.mxu0 0.0
        %5616 = vmatmul.mubr.f32.gmra.mxu0 %v5416
        %v5617 = vpop.f32.mrf.mxu0
        %v5618 = vadd.f32 0.0, %v5617
        %v5619 = vpop.f32.mrf.mxu0
        %5620 = vmatprep.mubr.f32.mxu0 0.0
        %5621 = vmatmul.mubr.f32.gmra.mxu0 %v5419
        %v5622 = vpop.f32.mrf.mxu0
        %v5623 = vadd.f32 0.0, %v5622
        %v5624 = vpop.f32.mrf.mxu0
        %5625 = vmatprep.mubr.f32.mxu0 0.0
        %5626 = vmatmul.mubr.f32.gmra.mxu0 %v5422
        %v5627 = vpop.f32.mrf.mxu0
        %v5628 = vadd.f32 0.0, %v5627
        %v5629 = vpop.f32.mrf.mxu0
        %5630 = vmatprep.mubr.f32.mxu0 0.0
        %5631 = vmatmul.mubr.f32.gmra.mxu0 %v5425
        %v5632 = vpop.f32.mrf.mxu0
        %v5633 = vadd.f32 0.0, %v5632
        %v5634 = vpop.f32.mrf.mxu0
        %5635 = vmatprep.mubr.f32.mxu0 0.0
        %5636 = vmatmul.mubr.f32.gmra.mxu0 %v5428
        %v5637 = vpop.f32.mrf.mxu0
        %v5638 = vadd.f32 0.0, %v5637
        %v5639 = vpop.f32.mrf.mxu0
        %5640 = vmatprep.mubr.f32.mxu0 0.0
        %5641 = vmatmul.mubr.f32.gmra.mxu0 %v5431
        %v5642 = vpop.f32.mrf.mxu0
        %v5643 = vadd.f32 0.0, %v5642
        %v5644 = vpop.f32.mrf.mxu0
        %5645 = vmatprep.mubr.f32.mxu0 0.0
        %5646 = vmatmul.mubr.f32.gmra.mxu0 %v5434
        %v5647 = vpop.f32.mrf.mxu0
        %v5648 = vadd.f32 0.0, %v5647
        %v5649 = vpop.f32.mrf.mxu0
        %5650 = vmatprep.mubr.f32.mxu0 0.0
        %5651 = vmatmul.mubr.f32.gmra.mxu0 %v5437
        %v5652 = vpop.f32.mrf.mxu0
        %v5653 = vadd.f32 0.0, %v5652
        %v5654 = vpop.f32.mrf.mxu0
        %5655 = vmatprep.mubr.f32.mxu0 0.0
        %5656 = vmatmul.mubr.f32.gmra.mxu0 %v5440
        %v5657 = vpop.f32.mrf.mxu0
        %v5658 = vadd.f32 0.0, %v5657
        %v5659 = vpop.f32.mrf.mxu0
        %5660 = vmatprep.mubr.f32.mxu0 0.0
        %5661 = vmatmul.mubr.f32.gmra.mxu0 %v5443
        %v5662 = vpop.f32.mrf.mxu0
        %v5663 = vadd.f32 0.0, %v5662
        %v5664 = vpop.f32.mrf.mxu0
        %5665 = vmatprep.mubr.f32.mxu0 0.0
        %5666 = vmatmul.mubr.f32.gmra.mxu0 %v5446
        %v5667 = vpop.f32.mrf.mxu0
        %v5668 = vadd.f32 0.0, %v5667
        %v5669 = vpop.f32.mrf.mxu0
        %5670 = vmatprep.mubr.f32.mxu0 0.0
        %5671 = vmatmul.mubr.f32.gmra.mxu0 %v5449
        %v5672 = vpop.f32.mrf.mxu0
        %v5673 = vadd.f32 0.0, %v5672
        %v5674 = vpop.f32.mrf.mxu0
        %5675 = vmatprep.mubr.f32.mxu0 0.0
        %5676 = vmatmul.mubr.f32.gmra.mxu0 %v5452
        %v5677 = vpop.f32.mrf.mxu0
        %v5678 = vadd.f32 0.0, %v5677
        %v5679 = vpop.f32.mrf.mxu0
        %5680 = vmatprep.mubr.f32.mxu0 0.0
        %5681 = vmatmul.mubr.f32.gmra.mxu0 %v5455
        %v5682 = vpop.f32.mrf.mxu0
        %v5683 = vadd.f32 0.0, %v5682
        %v5684 = vpop.f32.mrf.mxu0
        %5685 = vmatprep.mubr.f32.mxu0 0.0
        %5686 = vmatmul.mubr.f32.gmra.mxu0 %v5458
        %v5687 = vpop.f32.mrf.mxu0
        %v5688 = vadd.f32 0.0, %v5687
        %v5689 = vpop.f32.mrf.mxu0
        %5690 = vmatprep.mubr.f32.mxu0 0.0
        %5691 = vmatmul.mubr.f32.gmra.mxu0 %v5461
        %v5692 = vpop.f32.mrf.mxu0
        %v5693 = vadd.f32 0.0, %v5692
        %v5694 = vpop.f32.mrf.mxu0
        %5695 = vmatprep.mubr.f32.mxu0 0.0
        %5696 = vmatmul.mubr.f32.gmra.mxu0 %v5464
        %v5697 = vpop.f32.mrf.mxu0
        %v5698 = vadd.f32 0.0, %v5697
        %v5699 = vpop.f32.mrf.mxu0
        %5700 = vmatprep.mubr.f32.mxu0 0.0
        %5701 = vmatmul.mubr.f32.gmra.mxu0 %v5467
        %v5702 = vpop.f32.mrf.mxu0
        %v5703 = vadd.f32 0.0, %v5702
        %v5704 = vpop.f32.mrf.mxu0
        %5705 = vmatprep.mubr.f32.mxu0 0.0
        %5706 = vmatmul.mubr.f32.gmra.mxu0 %v5470
        %v5707 = vpop.f32.mrf.mxu0
        %v5708 = vadd.f32 0.0, %v5707
        %v5709 = vpop.f32.mrf.mxu0
        %5710 = vmatprep.mubr.f32.mxu0 0.0
        %5711 = vmatmul.mubr.f32.gmra.mxu0 %v5473
        %v5712 = vpop.f32.mrf.mxu0
        %v5713 = vadd.f32 0.0, %v5712
        %v5714 = vpop.f32.mrf.mxu0
        %5715 = vmatprep.mubr.f32.mxu0 0.0
        %5716 = vmatmul.mubr.f32.gmra.mxu0 %v5476
        %v5717 = vpop.f32.mrf.mxu0
        %v5718 = vadd.f32 0.0, %v5717
        %v5719 = vpop.f32.mrf.mxu0
        %5720 = vmatprep.mubr.f32.mxu0 0.0
        %5721 = vmatmul.mubr.f32.gmra.mxu0 %v5479
        %v5722 = vpop.f32.mrf.mxu0
        %v5723 = vadd.f32 0.0, %v5722
        %v5724 = vpop.f32.mrf.mxu0
        %5725 = vdwg.mxu0
        %v5726 = vld [vmem:[#allocation7] sm:$0xff]
        %v5727 = vld [vmem:[#allocation7 + $0x8] sm:$0xff]
        %s5728 = scalar_lea.vmem [#allocation7], 16
        %v5729 = vld [vmem:[%s5728] sm:$0xff]
        %v5730 = vld [vmem:[%s5728 + $0x8] sm:$0xff]
        %v5732 = vsel %vm2974, %v5568, 0
        %v5735 = vsel %vm2974, %v5573, 0
        %v5738 = vsel %vm2974, %v5578, 0
        %v5741 = vsel %vm2974, %v5583, 0
        %5743 = vmatprep.subr.mxu0 0.0
        %5744 = vmatpush1.msra.mxu0 0.0
        %5745 = vmatprep.subr.mxu0 0.0
        %5746 = vmatpush1.msra.mxu0 0.0
        %5747 = vmatprep.subr.mxu0 0.0
        %5748 = vmatpush1.msra.mxu0 0.0
        %5749 = vmatprep.subr.mxu0 0.0
        %5750 = vmatpush1.msra.mxu0 0.0
        %5751 = vmatprep.subr.mxu0 0.0
        %5752 = vmatpush1.msra.mxu0 0.0
        %5753 = vmatprep.subr.mxu0 0.0
        %5754 = vmatpush1.msra.mxu0 0.0
        %5755 = vmatprep.subr.mxu0 0.0
        %5756 = vmatpush1.msra.mxu0 0.0
        %5757 = vmatprep.subr.mxu0 0.0
        %5758 = vmatpush1.msra.mxu0 0.0
        %5759 = vmatprep.subr.mxu0 0.0
        %5760 = vmatpush1.msra.mxu0 0.0
        %5761 = vmatprep.subr.mxu0 0.0
        %5762 = vmatpush1.msra.mxu0 0.0
        %5763 = vmatprep.subr.mxu0 0.0
        %5764 = vmatpush1.msra.mxu0 0.0
        %5765 = vmatprep.subr.mxu0 0.0
        %5766 = vmatpush1.msra.mxu0 0.0
        %5767 = vmatprep.subr.mxu0 0.0
        %5768 = vmatpush1.msra.mxu0 0.0
        %5769 = vmatprep.subr.mxu0 0.0
        %5770 = vmatpush1.msra.mxu0 0.0
        %5771 = vmatprep.subr.mxu0 0.0
        %5772 = vmatpush1.msra.mxu0 %v5730
        %5773 = vmatprep.subr.mxu0 0.0
        %5774 = vmatpush1.msra.mxu0 %v5729
        %5775 = vmatprep.subr.mxu0 0.0
        %5776 = vmatpush2.msra.mxu0 0.0
        %5777 = vmatprep.subr.mxu0 0.0
        %5778 = vmatpush2.msra.mxu0 0.0
        %5779 = vmatprep.subr.mxu0 0.0
        %5780 = vmatpush2.msra.mxu0 0.0
        %5781 = vmatprep.subr.mxu0 0.0
        %5782 = vmatpush2.msra.mxu0 0.0
        %5783 = vmatprep.subr.mxu0 0.0
        %5784 = vmatpush2.msra.mxu0 0.0
        %5785 = vmatprep.subr.mxu0 0.0
        %5786 = vmatpush2.msra.mxu0 0.0
        %5787 = vmatprep.subr.mxu0 0.0
        %5788 = vmatpush2.msra.mxu0 0.0
        %5789 = vmatprep.subr.mxu0 0.0
        %5790 = vmatpush2.msra.mxu0 0.0
        %5791 = vmatprep.subr.mxu0 0.0
        %5792 = vmatpush2.msra.mxu0 0.0
        %5793 = vmatprep.subr.mxu0 0.0
        %5794 = vmatpush2.msra.mxu0 0.0
        %5795 = vmatprep.subr.mxu0 0.0
        %5796 = vmatpush2.msra.mxu0 0.0
        %5797 = vmatprep.subr.mxu0 0.0
        %5798 = vmatpush2.msra.mxu0 0.0
        %5799 = vmatprep.subr.mxu0 0.0
        %5800 = vmatpush2.msra.mxu0 0.0
        %5801 = vmatprep.subr.mxu0 0.0
        %5802 = vmatpush2.msra.mxu0 0.0
        %5803 = vmatprep.subr.mxu0 0.0
        %5804 = vmatpush2.msra.mxu0 0.0
        %5805 = vmatprep.subr.mxu0 0.0
        %5806 = vmatpush2.msra.mxu0 0.0
        %5807 = vmatprep.mubr.f32.mxu0 0.0
        %5808 = vmatmul.mubr.f32.gmra.mxu0 %v5732
        %v5809 = vpop.f32.mrf.mxu0
        %v5810 = vadd.f32 0.0, %v5809
        %v5811 = vpop.f32.mrf.mxu0
        %5812 = vmatprep.mubr.f32.mxu0 0.0
        %5813 = vmatmul.mubr.f32.gmra.mxu0 %v5735
        %v5814 = vpop.f32.mrf.mxu0
        %v5815 = vadd.f32 0.0, %v5814
        %v5816 = vpop.f32.mrf.mxu0
        %5817 = vmatprep.mubr.f32.mxu0 0.0
        %5818 = vmatmul.mubr.f32.gmra.mxu0 %v5738
        %v5819 = vpop.f32.mrf.mxu0
        %v5820 = vadd.f32 0.0, %v5819
        %v5821 = vpop.f32.mrf.mxu0
        %5822 = vmatprep.mubr.f32.mxu0 0.0
        %5823 = vmatmul.mubr.f32.gmra.mxu0 %v5741
        %v5824 = vpop.f32.mrf.mxu0
        %v5825 = vadd.f32 0.0, %v5824
        %v5826 = vpop.f32.mrf.mxu0
        %5827 = vdwg.mxu0
        %v5829 = vsel %vm2974, %v5548, 0
        %v5832 = vsel %vm2974, %v5553, 0
        %v5835 = vsel %vm2974, %v5558, 0
        %v5838 = vsel %vm2974, %v5563, 0
        %5840 = vmatprep.subr.mxu0 0.0
        %5841 = vmatpush1.msra.mxu0 0.0
        %5842 = vmatprep.subr.mxu0 0.0
        %5843 = vmatpush1.msra.mxu0 0.0
        %5844 = vmatprep.subr.mxu0 0.0
        %5845 = vmatpush1.msra.mxu0 0.0
        %5846 = vmatprep.subr.mxu0 0.0
        %5847 = vmatpush1.msra.mxu0 0.0
        %5848 = vmatprep.subr.mxu0 0.0
        %5849 = vmatpush1.msra.mxu0 0.0
        %5850 = vmatprep.subr.mxu0 0.0
        %5851 = vmatpush1.msra.mxu0 0.0
        %5852 = vmatprep.subr.mxu0 0.0
        %5853 = vmatpush1.msra.mxu0 0.0
        %5854 = vmatprep.subr.mxu0 0.0
        %5855 = vmatpush1.msra.mxu0 0.0
        %5856 = vmatprep.subr.mxu0 0.0
        %5857 = vmatpush1.msra.mxu0 0.0
        %5858 = vmatprep.subr.mxu0 0.0
        %5859 = vmatpush1.msra.mxu0 0.0
        %5860 = vmatprep.subr.mxu0 0.0
        %5861 = vmatpush1.msra.mxu0 0.0
        %5862 = vmatprep.subr.mxu0 0.0
        %5863 = vmatpush1.msra.mxu0 0.0
        %5864 = vmatprep.subr.mxu0 0.0
        %5865 = vmatpush1.msra.mxu0 0.0
        %5866 = vmatprep.subr.mxu0 0.0
        %5867 = vmatpush1.msra.mxu0 0.0
        %5868 = vmatprep.subr.mxu0 0.0
        %5869 = vmatpush1.msra.mxu0 %v5727
        %5870 = vmatprep.subr.mxu0 0.0
        %5871 = vmatpush1.msra.mxu0 %v5726
        %5872 = vmatprep.subr.mxu0 0.0
        %5873 = vmatpush2.msra.mxu0 0.0
        %5874 = vmatprep.subr.mxu0 0.0
        %5875 = vmatpush2.msra.mxu0 0.0
        %5876 = vmatprep.subr.mxu0 0.0
        %5877 = vmatpush2.msra.mxu0 0.0
        %5878 = vmatprep.subr.mxu0 0.0
        %5879 = vmatpush2.msra.mxu0 0.0
        %5880 = vmatprep.subr.mxu0 0.0
        %5881 = vmatpush2.msra.mxu0 0.0
        %5882 = vmatprep.subr.mxu0 0.0
        %5883 = vmatpush2.msra.mxu0 0.0
        %5884 = vmatprep.subr.mxu0 0.0
        %5885 = vmatpush2.msra.mxu0 0.0
        %5886 = vmatprep.subr.mxu0 0.0
        %5887 = vmatpush2.msra.mxu0 0.0
        %5888 = vmatprep.subr.mxu0 0.0
        %5889 = vmatpush2.msra.mxu0 0.0
        %5890 = vmatprep.subr.mxu0 0.0
        %5891 = vmatpush2.msra.mxu0 0.0
        %5892 = vmatprep.subr.mxu0 0.0
        %5893 = vmatpush2.msra.mxu0 0.0
        %5894 = vmatprep.subr.mxu0 0.0
        %5895 = vmatpush2.msra.mxu0 0.0
        %5896 = vmatprep.subr.mxu0 0.0
        %5897 = vmatpush2.msra.mxu0 0.0
        %5898 = vmatprep.subr.mxu0 0.0
        %5899 = vmatpush2.msra.mxu0 0.0
        %5900 = vmatprep.subr.mxu0 0.0
        %5901 = vmatpush2.msra.mxu0 0.0
        %5902 = vmatprep.subr.mxu0 0.0
        %5903 = vmatpush2.msra.mxu0 0.0
        %5904 = vmatprep.mubr.f32.mxu0 0.0
        %5905 = vmatmul.mubr.f32.gmra.mxu0 %v5829
        %v5906 = vpop.f32.mrf.mxu0
        %v5907 = vadd.f32 %v5810, %v5906
        %v5908 = vpop.f32.mrf.mxu0
        %5909 = vmatprep.mubr.f32.mxu0 0.0
        %5910 = vmatmul.mubr.f32.gmra.mxu0 %v5832
        %v5911 = vpop.f32.mrf.mxu0
        %v5912 = vadd.f32 %v5815, %v5911
        %v5913 = vpop.f32.mrf.mxu0
        %5914 = vmatprep.mubr.f32.mxu0 0.0
        %5915 = vmatmul.mubr.f32.gmra.mxu0 %v5835
        %v5916 = vpop.f32.mrf.mxu0
        %v5917 = vadd.f32 %v5820, %v5916
        %v5918 = vpop.f32.mrf.mxu0
        %5919 = vmatprep.mubr.f32.mxu0 0.0
        %5920 = vmatmul.mubr.f32.gmra.mxu0 %v5838
        %v5921 = vpop.f32.mrf.mxu0
        %v5922 = vadd.f32 %v5825, %v5921
        %v5923 = vpop.f32.mrf.mxu0
        %5924 = vdwg.mxu0
        %s5925 = scalar_lea.vmem [#allocation7], 32
        %v5926 = vld [vmem:[%s5925] sm:$0xff]
        %v5927 = vld [vmem:[%s5925 + $0x8] sm:$0xff]
        %v5929 = vsel %vm2974, %v5588, 0
        %v5932 = vsel %vm2974, %v5593, 0
        %v5935 = vsel %vm2974, %v5598, 0
        %v5938 = vsel %vm2974, %v5603, 0
        %5940 = vmatprep.subr.mxu0 0.0
        %5941 = vmatpush1.msra.mxu0 0.0
        %5942 = vmatprep.subr.mxu0 0.0
        %5943 = vmatpush1.msra.mxu0 0.0
        %5944 = vmatprep.subr.mxu0 0.0
        %5945 = vmatpush1.msra.mxu0 0.0
        %5946 = vmatprep.subr.mxu0 0.0
        %5947 = vmatpush1.msra.mxu0 0.0
        %5948 = vmatprep.subr.mxu0 0.0
        %5949 = vmatpush1.msra.mxu0 0.0
        %5950 = vmatprep.subr.mxu0 0.0
        %5951 = vmatpush1.msra.mxu0 0.0
        %5952 = vmatprep.subr.mxu0 0.0
        %5953 = vmatpush1.msra.mxu0 0.0
        %5954 = vmatprep.subr.mxu0 0.0
        %5955 = vmatpush1.msra.mxu0 0.0
        %5956 = vmatprep.subr.mxu0 0.0
        %5957 = vmatpush1.msra.mxu0 0.0
        %5958 = vmatprep.subr.mxu0 0.0
        %5959 = vmatpush1.msra.mxu0 0.0
        %5960 = vmatprep.subr.mxu0 0.0
        %5961 = vmatpush1.msra.mxu0 0.0
        %5962 = vmatprep.subr.mxu0 0.0
        %5963 = vmatpush1.msra.mxu0 0.0
        %5964 = vmatprep.subr.mxu0 0.0
        %5965 = vmatpush1.msra.mxu0 0.0
        %5966 = vmatprep.subr.mxu0 0.0
        %5967 = vmatpush1.msra.mxu0 0.0
        %5968 = vmatprep.subr.mxu0 0.0
        %5969 = vmatpush1.msra.mxu0 %v5927
        %5970 = vmatprep.subr.mxu0 0.0
        %5971 = vmatpush1.msra.mxu0 %v5926
        %5972 = vmatprep.subr.mxu0 0.0
        %5973 = vmatpush2.msra.mxu0 0.0
        %5974 = vmatprep.subr.mxu0 0.0
        %5975 = vmatpush2.msra.mxu0 0.0
        %5976 = vmatprep.subr.mxu0 0.0
        %5977 = vmatpush2.msra.mxu0 0.0
        %5978 = vmatprep.subr.mxu0 0.0
        %5979 = vmatpush2.msra.mxu0 0.0
        %5980 = vmatprep.subr.mxu0 0.0
        %5981 = vmatpush2.msra.mxu0 0.0
        %5982 = vmatprep.subr.mxu0 0.0
        %5983 = vmatpush2.msra.mxu0 0.0
        %5984 = vmatprep.subr.mxu0 0.0
        %5985 = vmatpush2.msra.mxu0 0.0
        %5986 = vmatprep.subr.mxu0 0.0
        %5987 = vmatpush2.msra.mxu0 0.0
        %5988 = vmatprep.subr.mxu0 0.0
        %5989 = vmatpush2.msra.mxu0 0.0
        %5990 = vmatprep.subr.mxu0 0.0
        %5991 = vmatpush2.msra.mxu0 0.0
        %5992 = vmatprep.subr.mxu0 0.0
        %5993 = vmatpush2.msra.mxu0 0.0
        %5994 = vmatprep.subr.mxu0 0.0
        %5995 = vmatpush2.msra.mxu0 0.0
        %5996 = vmatprep.subr.mxu0 0.0
        %5997 = vmatpush2.msra.mxu0 0.0
        %5998 = vmatprep.subr.mxu0 0.0
        %5999 = vmatpush2.msra.mxu0 0.0
        %6000 = vmatprep.subr.mxu0 0.0
        %6001 = vmatpush2.msra.mxu0 0.0
        %6002 = vmatprep.subr.mxu0 0.0
        %6003 = vmatpush2.msra.mxu0 0.0
        %6004 = vmatprep.mubr.f32.mxu0 0.0
        %6005 = vmatmul.mubr.f32.gmra.mxu0 %v5929
        %v6006 = vpop.f32.mrf.mxu0
        %v6007 = vadd.f32 0.0, %v6006
        %v6008 = vpop.f32.mrf.mxu0
        %6009 = vmatprep.mubr.f32.mxu0 0.0
        %6010 = vmatmul.mubr.f32.gmra.mxu0 %v5932
        %v6011 = vpop.f32.mrf.mxu0
        %v6012 = vadd.f32 0.0, %v6011
        %v6013 = vpop.f32.mrf.mxu0
        %6014 = vmatprep.mubr.f32.mxu0 0.0
        %6015 = vmatmul.mubr.f32.gmra.mxu0 %v5935
        %v6016 = vpop.f32.mrf.mxu0
        %v6017 = vadd.f32 0.0, %v6016
        %v6018 = vpop.f32.mrf.mxu0
        %6019 = vmatprep.mubr.f32.mxu0 0.0
        %6020 = vmatmul.mubr.f32.gmra.mxu0 %v5938
        %v6021 = vpop.f32.mrf.mxu0
        %v6022 = vadd.f32 0.0, %v6021
        %v6023 = vpop.f32.mrf.mxu0
        %6024 = vdwg.mxu0
        %v6025 = vadd.f32 %v5907, %v6007
        %v6026 = vadd.f32 %v5912, %v6012
        %v6027 = vadd.f32 %v5917, %v6017
        %v6028 = vadd.f32 %v5922, %v6022
        %s6029 = scalar_lea.vmem [#allocation7], 48
        %v6030 = vld [vmem:[%s6029] sm:$0xff]
        %v6031 = vld [vmem:[%s6029 + $0x8] sm:$0xff]
        %v6033 = vsel %vm2974, %v5608, 0
        %v6036 = vsel %vm2974, %v5613, 0
        %v6039 = vsel %vm2974, %v5618, 0
        %v6042 = vsel %vm2974, %v5623, 0
        %6044 = vmatprep.subr.mxu0 0.0
        %6045 = vmatpush1.msra.mxu0 0.0
        %6046 = vmatprep.subr.mxu0 0.0
        %6047 = vmatpush1.msra.mxu0 0.0
        %6048 = vmatprep.subr.mxu0 0.0
        %6049 = vmatpush1.msra.mxu0 0.0
        %6050 = vmatprep.subr.mxu0 0.0
        %6051 = vmatpush1.msra.mxu0 0.0
        %6052 = vmatprep.subr.mxu0 0.0
        %6053 = vmatpush1.msra.mxu0 0.0
        %6054 = vmatprep.subr.mxu0 0.0
        %6055 = vmatpush1.msra.mxu0 0.0
        %6056 = vmatprep.subr.mxu0 0.0
        %6057 = vmatpush1.msra.mxu0 0.0
        %6058 = vmatprep.subr.mxu0 0.0
        %6059 = vmatpush1.msra.mxu0 0.0
        %6060 = vmatprep.subr.mxu0 0.0
        %6061 = vmatpush1.msra.mxu0 0.0
        %6062 = vmatprep.subr.mxu0 0.0
        %6063 = vmatpush1.msra.mxu0 0.0
        %6064 = vmatprep.subr.mxu0 0.0
        %6065 = vmatpush1.msra.mxu0 0.0
        %6066 = vmatprep.subr.mxu0 0.0
        %6067 = vmatpush1.msra.mxu0 0.0
        %6068 = vmatprep.subr.mxu0 0.0
        %6069 = vmatpush1.msra.mxu0 0.0
        %6070 = vmatprep.subr.mxu0 0.0
        %6071 = vmatpush1.msra.mxu0 0.0
        %6072 = vmatprep.subr.mxu0 0.0
        %6073 = vmatpush1.msra.mxu0 %v6031
        %6074 = vmatprep.subr.mxu0 0.0
        %6075 = vmatpush1.msra.mxu0 %v6030
        %6076 = vmatprep.subr.mxu0 0.0
        %6077 = vmatpush2.msra.mxu0 0.0
        %6078 = vmatprep.subr.mxu0 0.0
        %6079 = vmatpush2.msra.mxu0 0.0
        %6080 = vmatprep.subr.mxu0 0.0
        %6081 = vmatpush2.msra.mxu0 0.0
        %6082 = vmatprep.subr.mxu0 0.0
        %6083 = vmatpush2.msra.mxu0 0.0
        %6084 = vmatprep.subr.mxu0 0.0
        %6085 = vmatpush2.msra.mxu0 0.0
        %6086 = vmatprep.subr.mxu0 0.0
        %6087 = vmatpush2.msra.mxu0 0.0
        %6088 = vmatprep.subr.mxu0 0.0
        %6089 = vmatpush2.msra.mxu0 0.0
        %6090 = vmatprep.subr.mxu0 0.0
        %6091 = vmatpush2.msra.mxu0 0.0
        %6092 = vmatprep.subr.mxu0 0.0
        %6093 = vmatpush2.msra.mxu0 0.0
        %6094 = vmatprep.subr.mxu0 0.0
        %6095 = vmatpush2.msra.mxu0 0.0
        %6096 = vmatprep.subr.mxu0 0.0
        %6097 = vmatpush2.msra.mxu0 0.0
        %6098 = vmatprep.subr.mxu0 0.0
        %6099 = vmatpush2.msra.mxu0 0.0
        %6100 = vmatprep.subr.mxu0 0.0
        %6101 = vmatpush2.msra.mxu0 0.0
        %6102 = vmatprep.subr.mxu0 0.0
        %6103 = vmatpush2.msra.mxu0 0.0
        %6104 = vmatprep.subr.mxu0 0.0
        %6105 = vmatpush2.msra.mxu0 0.0
        %6106 = vmatprep.subr.mxu0 0.0
        %6107 = vmatpush2.msra.mxu0 0.0
        %6108 = vmatprep.mubr.f32.mxu0 0.0
        %6109 = vmatmul.mubr.f32.gmra.mxu0 %v6033
        %v6110 = vpop.f32.mrf.mxu0
        %v6111 = vadd.f32 0.0, %v6110
        %v6112 = vpop.f32.mrf.mxu0
        %6113 = vmatprep.mubr.f32.mxu0 0.0
        %6114 = vmatmul.mubr.f32.gmra.mxu0 %v6036
        %v6115 = vpop.f32.mrf.mxu0
        %v6116 = vadd.f32 0.0, %v6115
        %v6117 = vpop.f32.mrf.mxu0
        %6118 = vmatprep.mubr.f32.mxu0 0.0
        %6119 = vmatmul.mubr.f32.gmra.mxu0 %v6039
        %v6120 = vpop.f32.mrf.mxu0
        %v6121 = vadd.f32 0.0, %v6120
        %v6122 = vpop.f32.mrf.mxu0
        %6123 = vmatprep.mubr.f32.mxu0 0.0
        %6124 = vmatmul.mubr.f32.gmra.mxu0 %v6042
        %v6125 = vpop.f32.mrf.mxu0
        %v6126 = vadd.f32 0.0, %v6125
        %v6127 = vpop.f32.mrf.mxu0
        %6128 = vdwg.mxu0
        %v6129 = vadd.f32 %v6025, %v6111
        %v6130 = vadd.f32 %v6026, %v6116
        %v6131 = vadd.f32 %v6027, %v6121
        %v6132 = vadd.f32 %v6028, %v6126
        %s6133 = scalar_lea.vmem [#allocation7], 64
        %v6134 = vld [vmem:[%s6133] sm:$0xff]
        %v6135 = vld [vmem:[%s6133 + $0x8] sm:$0xff]
        %v6137 = vsel %vm2974, %v5628, 0
        %v6140 = vsel %vm2974, %v5633, 0
        %v6143 = vsel %vm2974, %v5638, 0
        %v6146 = vsel %vm2974, %v5643, 0
        %6148 = vmatprep.subr.mxu0 0.0
        %6149 = vmatpush1.msra.mxu0 0.0
        %6150 = vmatprep.subr.mxu0 0.0
        %6151 = vmatpush1.msra.mxu0 0.0
        %6152 = vmatprep.subr.mxu0 0.0
        %6153 = vmatpush1.msra.mxu0 0.0
        %6154 = vmatprep.subr.mxu0 0.0
        %6155 = vmatpush1.msra.mxu0 0.0
        %6156 = vmatprep.subr.mxu0 0.0
        %6157 = vmatpush1.msra.mxu0 0.0
        %6158 = vmatprep.subr.mxu0 0.0
        %6159 = vmatpush1.msra.mxu0 0.0
        %6160 = vmatprep.subr.mxu0 0.0
        %6161 = vmatpush1.msra.mxu0 0.0
        %6162 = vmatprep.subr.mxu0 0.0
        %6163 = vmatpush1.msra.mxu0 0.0
        %6164 = vmatprep.subr.mxu0 0.0
        %6165 = vmatpush1.msra.mxu0 0.0
        %6166 = vmatprep.subr.mxu0 0.0
        %6167 = vmatpush1.msra.mxu0 0.0
        %6168 = vmatprep.subr.mxu0 0.0
        %6169 = vmatpush1.msra.mxu0 0.0
        %6170 = vmatprep.subr.mxu0 0.0
        %6171 = vmatpush1.msra.mxu0 0.0
        %6172 = vmatprep.subr.mxu0 0.0
        %6173 = vmatpush1.msra.mxu0 0.0
        %6174 = vmatprep.subr.mxu0 0.0
        %6175 = vmatpush1.msra.mxu0 0.0
        %6176 = vmatprep.subr.mxu0 0.0
        %6177 = vmatpush1.msra.mxu0 %v6135
        %6178 = vmatprep.subr.mxu0 0.0
        %6179 = vmatpush1.msra.mxu0 %v6134
        %6180 = vmatprep.subr.mxu0 0.0
        %6181 = vmatpush2.msra.mxu0 0.0
        %6182 = vmatprep.subr.mxu0 0.0
        %6183 = vmatpush2.msra.mxu0 0.0
        %6184 = vmatprep.subr.mxu0 0.0
        %6185 = vmatpush2.msra.mxu0 0.0
        %6186 = vmatprep.subr.mxu0 0.0
        %6187 = vmatpush2.msra.mxu0 0.0
        %6188 = vmatprep.subr.mxu0 0.0
        %6189 = vmatpush2.msra.mxu0 0.0
        %6190 = vmatprep.subr.mxu0 0.0
        %6191 = vmatpush2.msra.mxu0 0.0
        %6192 = vmatprep.subr.mxu0 0.0
        %6193 = vmatpush2.msra.mxu0 0.0
        %6194 = vmatprep.subr.mxu0 0.0
        %6195 = vmatpush2.msra.mxu0 0.0
        %6196 = vmatprep.subr.mxu0 0.0
        %6197 = vmatpush2.msra.mxu0 0.0
        %6198 = vmatprep.subr.mxu0 0.0
        %6199 = vmatpush2.msra.mxu0 0.0
        %6200 = vmatprep.subr.mxu0 0.0
        %6201 = vmatpush2.msra.mxu0 0.0
        %6202 = vmatprep.subr.mxu0 0.0
        %6203 = vmatpush2.msra.mxu0 0.0
        %6204 = vmatprep.subr.mxu0 0.0
        %6205 = vmatpush2.msra.mxu0 0.0
        %6206 = vmatprep.subr.mxu0 0.0
        %6207 = vmatpush2.msra.mxu0 0.0
        %6208 = vmatprep.subr.mxu0 0.0
        %6209 = vmatpush2.msra.mxu0 0.0
        %6210 = vmatprep.subr.mxu0 0.0
        %6211 = vmatpush2.msra.mxu0 0.0
        %6212 = vmatprep.mubr.f32.mxu0 0.0
        %6213 = vmatmul.mubr.f32.gmra.mxu0 %v6137
        %v6214 = vpop.f32.mrf.mxu0
        %v6215 = vadd.f32 0.0, %v6214
        %v6216 = vpop.f32.mrf.mxu0
        %6217 = vmatprep.mubr.f32.mxu0 0.0
        %6218 = vmatmul.mubr.f32.gmra.mxu0 %v6140
        %v6219 = vpop.f32.mrf.mxu0
        %v6220 = vadd.f32 0.0, %v6219
        %v6221 = vpop.f32.mrf.mxu0
        %6222 = vmatprep.mubr.f32.mxu0 0.0
        %6223 = vmatmul.mubr.f32.gmra.mxu0 %v6143
        %v6224 = vpop.f32.mrf.mxu0
        %v6225 = vadd.f32 0.0, %v6224
        %v6226 = vpop.f32.mrf.mxu0
        %6227 = vmatprep.mubr.f32.mxu0 0.0
        %6228 = vmatmul.mubr.f32.gmra.mxu0 %v6146
        %v6229 = vpop.f32.mrf.mxu0
        %v6230 = vadd.f32 0.0, %v6229
        %v6231 = vpop.f32.mrf.mxu0
        %6232 = vdwg.mxu0
        %v6233 = vadd.f32 %v6129, %v6215
        %v6234 = vadd.f32 %v6130, %v6220
        %v6235 = vadd.f32 %v6131, %v6225
        %v6236 = vadd.f32 %v6132, %v6230
        %s6237 = scalar_lea.vmem [#allocation7], 80
        %v6238 = vld [vmem:[%s6237] sm:$0xff]
        %v6239 = vld [vmem:[%s6237 + $0x8] sm:$0xff]
        %v6241 = vsel %vm2974, %v5648, 0
        %v6244 = vsel %vm2974, %v5653, 0
        %v6247 = vsel %vm2974, %v5658, 0
        %v6250 = vsel %vm2974, %v5663, 0
        %6252 = vmatprep.subr.mxu0 0.0
        %6253 = vmatpush1.msra.mxu0 0.0
        %6254 = vmatprep.subr.mxu0 0.0
        %6255 = vmatpush1.msra.mxu0 0.0
        %6256 = vmatprep.subr.mxu0 0.0
        %6257 = vmatpush1.msra.mxu0 0.0
        %6258 = vmatprep.subr.mxu0 0.0
        %6259 = vmatpush1.msra.mxu0 0.0
        %6260 = vmatprep.subr.mxu0 0.0
        %6261 = vmatpush1.msra.mxu0 0.0
        %6262 = vmatprep.subr.mxu0 0.0
        %6263 = vmatpush1.msra.mxu0 0.0
        %6264 = vmatprep.subr.mxu0 0.0
        %6265 = vmatpush1.msra.mxu0 0.0
        %6266 = vmatprep.subr.mxu0 0.0
        %6267 = vmatpush1.msra.mxu0 0.0
        %6268 = vmatprep.subr.mxu0 0.0
        %6269 = vmatpush1.msra.mxu0 0.0
        %6270 = vmatprep.subr.mxu0 0.0
        %6271 = vmatpush1.msra.mxu0 0.0
        %6272 = vmatprep.subr.mxu0 0.0
        %6273 = vmatpush1.msra.mxu0 0.0
        %6274 = vmatprep.subr.mxu0 0.0
        %6275 = vmatpush1.msra.mxu0 0.0
        %6276 = vmatprep.subr.mxu0 0.0
        %6277 = vmatpush1.msra.mxu0 0.0
        %6278 = vmatprep.subr.mxu0 0.0
        %6279 = vmatpush1.msra.mxu0 0.0
        %6280 = vmatprep.subr.mxu0 0.0
        %6281 = vmatpush1.msra.mxu0 %v6239
        %6282 = vmatprep.subr.mxu0 0.0
        %6283 = vmatpush1.msra.mxu0 %v6238
        %6284 = vmatprep.subr.mxu0 0.0
        %6285 = vmatpush2.msra.mxu0 0.0
        %6286 = vmatprep.subr.mxu0 0.0
        %6287 = vmatpush2.msra.mxu0 0.0
        %6288 = vmatprep.subr.mxu0 0.0
        %6289 = vmatpush2.msra.mxu0 0.0
        %6290 = vmatprep.subr.mxu0 0.0
        %6291 = vmatpush2.msra.mxu0 0.0
        %6292 = vmatprep.subr.mxu0 0.0
        %6293 = vmatpush2.msra.mxu0 0.0
        %6294 = vmatprep.subr.mxu0 0.0
        %6295 = vmatpush2.msra.mxu0 0.0
        %6296 = vmatprep.subr.mxu0 0.0
        %6297 = vmatpush2.msra.mxu0 0.0
        %6298 = vmatprep.subr.mxu0 0.0
        %6299 = vmatpush2.msra.mxu0 0.0
        %6300 = vmatprep.subr.mxu0 0.0
        %6301 = vmatpush2.msra.mxu0 0.0
        %6302 = vmatprep.subr.mxu0 0.0
        %6303 = vmatpush2.msra.mxu0 0.0
        %6304 = vmatprep.subr.mxu0 0.0
        %6305 = vmatpush2.msra.mxu0 0.0
        %6306 = vmatprep.subr.mxu0 0.0
        %6307 = vmatpush2.msra.mxu0 0.0
        %6308 = vmatprep.subr.mxu0 0.0
        %6309 = vmatpush2.msra.mxu0 0.0
        %6310 = vmatprep.subr.mxu0 0.0
        %6311 = vmatpush2.msra.mxu0 0.0
        %6312 = vmatprep.subr.mxu0 0.0
        %6313 = vmatpush2.msra.mxu0 0.0
        %6314 = vmatprep.subr.mxu0 0.0
        %6315 = vmatpush2.msra.mxu0 0.0
        %6316 = vmatprep.mubr.f32.mxu0 0.0
        %6317 = vmatmul.mubr.f32.gmra.mxu0 %v6241
        %v6318 = vpop.f32.mrf.mxu0
        %v6319 = vadd.f32 0.0, %v6318
        %v6320 = vpop.f32.mrf.mxu0
        %6321 = vmatprep.mubr.f32.mxu0 0.0
        %6322 = vmatmul.mubr.f32.gmra.mxu0 %v6244
        %v6323 = vpop.f32.mrf.mxu0
        %v6324 = vadd.f32 0.0, %v6323
        %v6325 = vpop.f32.mrf.mxu0
        %6326 = vmatprep.mubr.f32.mxu0 0.0
        %6327 = vmatmul.mubr.f32.gmra.mxu0 %v6247
        %v6328 = vpop.f32.mrf.mxu0
        %v6329 = vadd.f32 0.0, %v6328
        %v6330 = vpop.f32.mrf.mxu0
        %6331 = vmatprep.mubr.f32.mxu0 0.0
        %6332 = vmatmul.mubr.f32.gmra.mxu0 %v6250
        %v6333 = vpop.f32.mrf.mxu0
        %v6334 = vadd.f32 0.0, %v6333
        %v6335 = vpop.f32.mrf.mxu0
        %6336 = vdwg.mxu0
        %v6337 = vadd.f32 %v6233, %v6319
        %v6338 = vadd.f32 %v6234, %v6324
        %v6339 = vadd.f32 %v6235, %v6329
        %v6340 = vadd.f32 %v6236, %v6334
        %s6341 = scalar_lea.vmem [#allocation7], 96
        %v6342 = vld [vmem:[%s6341] sm:$0xff]
        %v6343 = vld [vmem:[%s6341 + $0x8] sm:$0xff]
        %v6345 = vsel %vm2974, %v5668, 0
        %v6348 = vsel %vm2974, %v5673, 0
        %v6351 = vsel %vm2974, %v5678, 0
        %v6354 = vsel %vm2974, %v5683, 0
        %6356 = vmatprep.subr.mxu0 0.0
        %6357 = vmatpush1.msra.mxu0 0.0
        %6358 = vmatprep.subr.mxu0 0.0
        %6359 = vmatpush1.msra.mxu0 0.0
        %6360 = vmatprep.subr.mxu0 0.0
        %6361 = vmatpush1.msra.mxu0 0.0
        %6362 = vmatprep.subr.mxu0 0.0
        %6363 = vmatpush1.msra.mxu0 0.0
        %6364 = vmatprep.subr.mxu0 0.0
        %6365 = vmatpush1.msra.mxu0 0.0
        %6366 = vmatprep.subr.mxu0 0.0
        %6367 = vmatpush1.msra.mxu0 0.0
        %6368 = vmatprep.subr.mxu0 0.0
        %6369 = vmatpush1.msra.mxu0 0.0
        %6370 = vmatprep.subr.mxu0 0.0
        %6371 = vmatpush1.msra.mxu0 0.0
        %6372 = vmatprep.subr.mxu0 0.0
        %6373 = vmatpush1.msra.mxu0 0.0
        %6374 = vmatprep.subr.mxu0 0.0
        %6375 = vmatpush1.msra.mxu0 0.0
        %6376 = vmatprep.subr.mxu0 0.0
        %6377 = vmatpush1.msra.mxu0 0.0
        %6378 = vmatprep.subr.mxu0 0.0
        %6379 = vmatpush1.msra.mxu0 0.0
        %6380 = vmatprep.subr.mxu0 0.0
        %6381 = vmatpush1.msra.mxu0 0.0
        %6382 = vmatprep.subr.mxu0 0.0
        %6383 = vmatpush1.msra.mxu0 0.0
        %6384 = vmatprep.subr.mxu0 0.0
        %6385 = vmatpush1.msra.mxu0 %v6343
        %6386 = vmatprep.subr.mxu0 0.0
        %6387 = vmatpush1.msra.mxu0 %v6342
        %6388 = vmatprep.subr.mxu0 0.0
        %6389 = vmatpush2.msra.mxu0 0.0
        %6390 = vmatprep.subr.mxu0 0.0
        %6391 = vmatpush2.msra.mxu0 0.0
        %6392 = vmatprep.subr.mxu0 0.0
        %6393 = vmatpush2.msra.mxu0 0.0
        %6394 = vmatprep.subr.mxu0 0.0
        %6395 = vmatpush2.msra.mxu0 0.0
        %6396 = vmatprep.subr.mxu0 0.0
        %6397 = vmatpush2.msra.mxu0 0.0
        %6398 = vmatprep.subr.mxu0 0.0
        %6399 = vmatpush2.msra.mxu0 0.0
        %6400 = vmatprep.subr.mxu0 0.0
        %6401 = vmatpush2.msra.mxu0 0.0
        %6402 = vmatprep.subr.mxu0 0.0
        %6403 = vmatpush2.msra.mxu0 0.0
        %6404 = vmatprep.subr.mxu0 0.0
        %6405 = vmatpush2.msra.mxu0 0.0
        %6406 = vmatprep.subr.mxu0 0.0
        %6407 = vmatpush2.msra.mxu0 0.0
        %6408 = vmatprep.subr.mxu0 0.0
        %6409 = vmatpush2.msra.mxu0 0.0
        %6410 = vmatprep.subr.mxu0 0.0
        %6411 = vmatpush2.msra.mxu0 0.0
        %6412 = vmatprep.subr.mxu0 0.0
        %6413 = vmatpush2.msra.mxu0 0.0
        %6414 = vmatprep.subr.mxu0 0.0
        %6415 = vmatpush2.msra.mxu0 0.0
        %6416 = vmatprep.subr.mxu0 0.0
        %6417 = vmatpush2.msra.mxu0 0.0
        %6418 = vmatprep.subr.mxu0 0.0
        %6419 = vmatpush2.msra.mxu0 0.0
        %6420 = vmatprep.mubr.f32.mxu0 0.0
        %6421 = vmatmul.mubr.f32.gmra.mxu0 %v6345
        %v6422 = vpop.f32.mrf.mxu0
        %v6423 = vadd.f32 0.0, %v6422
        %v6424 = vpop.f32.mrf.mxu0
        %6425 = vmatprep.mubr.f32.mxu0 0.0
        %6426 = vmatmul.mubr.f32.gmra.mxu0 %v6348
        %v6427 = vpop.f32.mrf.mxu0
        %v6428 = vadd.f32 0.0, %v6427
        %v6429 = vpop.f32.mrf.mxu0
        %6430 = vmatprep.mubr.f32.mxu0 0.0
        %6431 = vmatmul.mubr.f32.gmra.mxu0 %v6351
        %v6432 = vpop.f32.mrf.mxu0
        %v6433 = vadd.f32 0.0, %v6432
        %v6434 = vpop.f32.mrf.mxu0
        %6435 = vmatprep.mubr.f32.mxu0 0.0
        %6436 = vmatmul.mubr.f32.gmra.mxu0 %v6354
        %v6437 = vpop.f32.mrf.mxu0
        %v6438 = vadd.f32 0.0, %v6437
        %v6439 = vpop.f32.mrf.mxu0
        %6440 = vdwg.mxu0
        %v6441 = vadd.f32 %v6337, %v6423
        %v6442 = vadd.f32 %v6338, %v6428
        %v6443 = vadd.f32 %v6339, %v6433
        %v6444 = vadd.f32 %v6340, %v6438
        %s6445 = scalar_lea.vmem [#allocation7], 112
        %v6446 = vld [vmem:[%s6445] sm:$0xff]
        %v6447 = vld [vmem:[%s6445 + $0x8] sm:$0xff]
        %v6449 = vsel %vm2974, %v5688, 0
        %v6452 = vsel %vm2974, %v5693, 0
        %v6455 = vsel %vm2974, %v5698, 0
        %v6458 = vsel %vm2974, %v5703, 0
        %6460 = vmatprep.subr.mxu0 0.0
        %6461 = vmatpush1.msra.mxu0 0.0
        %6462 = vmatprep.subr.mxu0 0.0
        %6463 = vmatpush1.msra.mxu0 0.0
        %6464 = vmatprep.subr.mxu0 0.0
        %6465 = vmatpush1.msra.mxu0 0.0
        %6466 = vmatprep.subr.mxu0 0.0
        %6467 = vmatpush1.msra.mxu0 0.0
        %6468 = vmatprep.subr.mxu0 0.0
        %6469 = vmatpush1.msra.mxu0 0.0
        %6470 = vmatprep.subr.mxu0 0.0
        %6471 = vmatpush1.msra.mxu0 0.0
        %6472 = vmatprep.subr.mxu0 0.0
        %6473 = vmatpush1.msra.mxu0 0.0
        %6474 = vmatprep.subr.mxu0 0.0
        %6475 = vmatpush1.msra.mxu0 0.0
        %6476 = vmatprep.subr.mxu0 0.0
        %6477 = vmatpush1.msra.mxu0 0.0
        %6478 = vmatprep.subr.mxu0 0.0
        %6479 = vmatpush1.msra.mxu0 0.0
        %6480 = vmatprep.subr.mxu0 0.0
        %6481 = vmatpush1.msra.mxu0 0.0
        %6482 = vmatprep.subr.mxu0 0.0
        %6483 = vmatpush1.msra.mxu0 0.0
        %6484 = vmatprep.subr.mxu0 0.0
        %6485 = vmatpush1.msra.mxu0 0.0
        %6486 = vmatprep.subr.mxu0 0.0
        %6487 = vmatpush1.msra.mxu0 0.0
        %6488 = vmatprep.subr.mxu0 0.0
        %6489 = vmatpush1.msra.mxu0 %v6447
        %6490 = vmatprep.subr.mxu0 0.0
        %6491 = vmatpush1.msra.mxu0 %v6446
        %6492 = vmatprep.subr.mxu0 0.0
        %6493 = vmatpush2.msra.mxu0 0.0
        %6494 = vmatprep.subr.mxu0 0.0
        %6495 = vmatpush2.msra.mxu0 0.0
        %6496 = vmatprep.subr.mxu0 0.0
        %6497 = vmatpush2.msra.mxu0 0.0
        %6498 = vmatprep.subr.mxu0 0.0
        %6499 = vmatpush2.msra.mxu0 0.0
        %6500 = vmatprep.subr.mxu0 0.0
        %6501 = vmatpush2.msra.mxu0 0.0
        %6502 = vmatprep.subr.mxu0 0.0
        %6503 = vmatpush2.msra.mxu0 0.0
        %6504 = vmatprep.subr.mxu0 0.0
        %6505 = vmatpush2.msra.mxu0 0.0
        %6506 = vmatprep.subr.mxu0 0.0
        %6507 = vmatpush2.msra.mxu0 0.0
        %6508 = vmatprep.subr.mxu0 0.0
        %6509 = vmatpush2.msra.mxu0 0.0
        %6510 = vmatprep.subr.mxu0 0.0
        %6511 = vmatpush2.msra.mxu0 0.0
        %6512 = vmatprep.subr.mxu0 0.0
        %6513 = vmatpush2.msra.mxu0 0.0
        %6514 = vmatprep.subr.mxu0 0.0
        %6515 = vmatpush2.msra.mxu0 0.0
        %6516 = vmatprep.subr.mxu0 0.0
        %6517 = vmatpush2.msra.mxu0 0.0
        %6518 = vmatprep.subr.mxu0 0.0
        %6519 = vmatpush2.msra.mxu0 0.0
        %6520 = vmatprep.subr.mxu0 0.0
        %6521 = vmatpush2.msra.mxu0 0.0
        %6522 = vmatprep.subr.mxu0 0.0
        %6523 = vmatpush2.msra.mxu0 0.0
        %6524 = vmatprep.mubr.f32.mxu0 0.0
        %6525 = vmatmul.mubr.f32.gmra.mxu0 %v6449
        %v6526 = vpop.f32.mrf.mxu0
        %v6527 = vadd.f32 0.0, %v6526
        %v6528 = vpop.f32.mrf.mxu0
        %6529 = vmatprep.mubr.f32.mxu0 0.0
        %6530 = vmatmul.mubr.f32.gmra.mxu0 %v6452
        %v6531 = vpop.f32.mrf.mxu0
        %v6532 = vadd.f32 0.0, %v6531
        %v6533 = vpop.f32.mrf.mxu0
        %6534 = vmatprep.mubr.f32.mxu0 0.0
        %6535 = vmatmul.mubr.f32.gmra.mxu0 %v6455
        %v6536 = vpop.f32.mrf.mxu0
        %v6537 = vadd.f32 0.0, %v6536
        %v6538 = vpop.f32.mrf.mxu0
        %6539 = vmatprep.mubr.f32.mxu0 0.0
        %6540 = vmatmul.mubr.f32.gmra.mxu0 %v6458
        %v6541 = vpop.f32.mrf.mxu0
        %v6542 = vadd.f32 0.0, %v6541
        %v6543 = vpop.f32.mrf.mxu0
        %6544 = vdwg.mxu0
        %v6545 = vadd.f32 %v6441, %v6527
        %v6546 = vadd.f32 %v6442, %v6532
        %v6547 = vadd.f32 %v6443, %v6537
        %v6548 = vadd.f32 %v6444, %v6542
        %s6549 = scalar_lea.vmem [#allocation7], 128
        %v6550 = vld [vmem:[%s6549] sm:$0xff]
        %v6551 = vld [vmem:[%s6549 + $0x8] sm:$0xff]
        %v6553 = vsel %vm2974, %v5708, 0
        %v6556 = vsel %vm2974, %v5713, 0
        %v6559 = vsel %vm2974, %v5718, 0
        %v6562 = vsel %vm2974, %v5723, 0
        %6564 = vmatprep.subr.mxu0 0.0
        %6565 = vmatpush1.msra.mxu0 0.0
        %6566 = vmatprep.subr.mxu0 0.0
        %6567 = vmatpush1.msra.mxu0 0.0
        %6568 = vmatprep.subr.mxu0 0.0
        %6569 = vmatpush1.msra.mxu0 0.0
        %6570 = vmatprep.subr.mxu0 0.0
        %6571 = vmatpush1.msra.mxu0 0.0
        %6572 = vmatprep.subr.mxu0 0.0
        %6573 = vmatpush1.msra.mxu0 0.0
        %6574 = vmatprep.subr.mxu0 0.0
        %6575 = vmatpush1.msra.mxu0 0.0
        %6576 = vmatprep.subr.mxu0 0.0
        %6577 = vmatpush1.msra.mxu0 0.0
        %6578 = vmatprep.subr.mxu0 0.0
        %6579 = vmatpush1.msra.mxu0 0.0
        %6580 = vmatprep.subr.mxu0 0.0
        %6581 = vmatpush1.msra.mxu0 0.0
        %6582 = vmatprep.subr.mxu0 0.0
        %6583 = vmatpush1.msra.mxu0 0.0
        %6584 = vmatprep.subr.mxu0 0.0
        %6585 = vmatpush1.msra.mxu0 0.0
        %6586 = vmatprep.subr.mxu0 0.0
        %6587 = vmatpush1.msra.mxu0 0.0
        %6588 = vmatprep.subr.mxu0 0.0
        %6589 = vmatpush1.msra.mxu0 0.0
        %6590 = vmatprep.subr.mxu0 0.0
        %6591 = vmatpush1.msra.mxu0 0.0
        %6592 = vmatprep.subr.mxu0 0.0
        %6593 = vmatpush1.msra.mxu0 %v6551
        %6594 = vmatprep.subr.mxu0 0.0
        %6595 = vmatpush1.msra.mxu0 %v6550
        %6596 = vmatprep.subr.mxu0 0.0
        %6597 = vmatpush2.msra.mxu0 0.0
        %6598 = vmatprep.subr.mxu0 0.0
        %6599 = vmatpush2.msra.mxu0 0.0
        %6600 = vmatprep.subr.mxu0 0.0
        %6601 = vmatpush2.msra.mxu0 0.0
        %6602 = vmatprep.subr.mxu0 0.0
        %6603 = vmatpush2.msra.mxu0 0.0
        %6604 = vmatprep.subr.mxu0 0.0
        %6605 = vmatpush2.msra.mxu0 0.0
        %6606 = vmatprep.subr.mxu0 0.0
        %6607 = vmatpush2.msra.mxu0 0.0
        %6608 = vmatprep.subr.mxu0 0.0
        %6609 = vmatpush2.msra.mxu0 0.0
        %6610 = vmatprep.subr.mxu0 0.0
        %6611 = vmatpush2.msra.mxu0 0.0
        %6612 = vmatprep.subr.mxu0 0.0
        %6613 = vmatpush2.msra.mxu0 0.0
        %6614 = vmatprep.subr.mxu0 0.0
        %6615 = vmatpush2.msra.mxu0 0.0
        %6616 = vmatprep.subr.mxu0 0.0
        %6617 = vmatpush2.msra.mxu0 0.0
        %6618 = vmatprep.subr.mxu0 0.0
        %6619 = vmatpush2.msra.mxu0 0.0
        %6620 = vmatprep.subr.mxu0 0.0
        %6621 = vmatpush2.msra.mxu0 0.0
        %6622 = vmatprep.subr.mxu0 0.0
        %6623 = vmatpush2.msra.mxu0 0.0
        %6624 = vmatprep.subr.mxu0 0.0
        %6625 = vmatpush2.msra.mxu0 0.0
        %6626 = vmatprep.subr.mxu0 0.0
        %6627 = vmatpush2.msra.mxu0 0.0
        %6628 = vmatprep.mubr.f32.mxu0 0.0
        %6629 = vmatmul.mubr.f32.gmra.mxu0 %v6553
        %v6630 = vpop.f32.mrf.mxu0
        %v6631 = vadd.f32 0.0, %v6630
        %v6632 = vpop.f32.mrf.mxu0
        %6633 = vmatprep.mubr.f32.mxu0 0.0
        %6634 = vmatmul.mubr.f32.gmra.mxu0 %v6556
        %v6635 = vpop.f32.mrf.mxu0
        %v6636 = vadd.f32 0.0, %v6635
        %v6637 = vpop.f32.mrf.mxu0
        %6638 = vmatprep.mubr.f32.mxu0 0.0
        %6639 = vmatmul.mubr.f32.gmra.mxu0 %v6559
        %v6640 = vpop.f32.mrf.mxu0
        %v6641 = vadd.f32 0.0, %v6640
        %v6642 = vpop.f32.mrf.mxu0
        %6643 = vmatprep.mubr.f32.mxu0 0.0
        %6644 = vmatmul.mubr.f32.gmra.mxu0 %v6562
        %v6645 = vpop.f32.mrf.mxu0
        %v6646 = vadd.f32 0.0, %v6645
        %v6647 = vpop.f32.mrf.mxu0
        %6648 = vdwg.mxu0
        %v6649 = vadd.f32 %v6545, %v6631
        %v6650 = vadd.f32 %v6546, %v6636
        %v6651 = vadd.f32 %v6547, %v6641
        %v6652 = vadd.f32 %v6548, %v6646
        %6654 = vset.pattern.permute.xlu0 0
        %6655 = vperm.xlu0 %6654, %v5368
        %v6656 = vpop.permute.xlu0 %6655
        %6659 = vset.pattern.permute.xlu0 0
        %6660 = vperm.xlu0 %6659, %v5369
        %v6661 = vpop.permute.xlu0 %6660
        %6664 = vset.pattern.permute.xlu0 0
        %6665 = vperm.xlu0 %6664, %v5370
        %v6666 = vpop.permute.xlu0 %6665
        %6669 = vset.pattern.permute.xlu0 0
        %6670 = vperm.xlu0 %6669, %v5371
        %v6671 = vpop.permute.xlu0 %6670
        %v6673 = vadd.f32 %v6649, %v6656
        %v6674 = vadd.f32 %v6650, %v6661
        %v6675 = vadd.f32 %v6651, %v6666
        %v6676 = vadd.f32 %v6652, %v6671
        %v6677 = vld [vmem:[#allocation9] sm:$0xff]
        %v6678 = vld [vmem:[#allocation9 + $0x8] sm:$0xff]
        %v6679 = vld [vmem:[#allocation9 + $0x10] sm:$0xff]
        %v6680 = vld [vmem:[#allocation9 + $0x18] sm:$0xff]
        %v6681 = vld [vmem:[#allocation9 + $0x20] sm:$0xff]
        %v6682 = vld [vmem:[#allocation9 + $0x28] sm:$0xff]
        %v6683 = vld [vmem:[#allocation9 + $0x30] sm:$0xff]
        %v6684 = vld [vmem:[#allocation9 + $0x38] sm:$0xff]
        %v6685 = vld [vmem:[#allocation9 + $0x40] sm:$0xff]
        %v6686 = vld [vmem:[%s11] sm:$0xff]
        %v6687 = vmax.f32 %v6673, 0.0
        %v6688 = vmax.f32 %v6674, 0.0
        %v6689 = vmax.f32 %v6675, 0.0
        %v6690 = vmax.f32 %v6676, 0.0
        %v6692 = vsel %vm5372, %v6677, 0
        %v6695 = vsel %vm5372, %v6678, 0
        %v6698 = vsel %vm5372, %v6679, 0
        %v6701 = vsel %vm5372, %v6680, 0
        %v6704 = vsel %vm5372, %v6681, 0
        %v6707 = vsel %vm5372, %v6682, 0
        %v6710 = vsel %vm5372, %v6683, 0
        %v6713 = vsel %vm5372, %v6684, 0
        %v6716 = vsel %vm5372, %v6685, 0
        %6718 = vmatprep.subr.mxu0 0.0
        %6719 = vmatpush1.msra.mxu0 0.0
        %6720 = vmatprep.subr.mxu0 0.0
        %6721 = vmatpush1.msra.mxu0 0.0
        %6722 = vmatprep.subr.mxu0 0.0
        %6723 = vmatpush1.msra.mxu0 0.0
        %6724 = vmatprep.subr.mxu0 0.0
        %6725 = vmatpush1.msra.mxu0 0.0
        %6726 = vmatprep.subr.mxu0 0.0
        %6727 = vmatpush1.msra.mxu0 0.0
        %6728 = vmatprep.subr.mxu0 0.0
        %6729 = vmatpush1.msra.mxu0 0.0
        %6730 = vmatprep.subr.mxu0 0.0
        %6731 = vmatpush1.msra.mxu0 0.0
        %6732 = vmatprep.subr.mxu0 0.0
        %6733 = vmatpush1.msra.mxu0 0.0
        %6734 = vmatprep.subr.mxu0 0.0
        %6735 = vmatpush1.msra.mxu0 0.0
        %6736 = vmatprep.subr.mxu0 0.0
        %6737 = vmatpush1.msra.mxu0 0.0
        %6738 = vmatprep.subr.mxu0 0.0
        %6739 = vmatpush1.msra.mxu0 0.0
        %6740 = vmatprep.subr.mxu0 0.0
        %6741 = vmatpush1.msra.mxu0 0.0
        %6742 = vmatprep.subr.mxu0 0.0
        %6743 = vmatpush1.msra.mxu0 %v6690
        %6744 = vmatprep.subr.mxu0 0.0
        %6745 = vmatpush1.msra.mxu0 %v6689
        %6746 = vmatprep.subr.mxu0 0.0
        %6747 = vmatpush1.msra.mxu0 %v6688
        %6748 = vmatprep.subr.mxu0 0.0
        %6749 = vmatpush1.msra.mxu0 %v6687
        %6750 = vmatprep.subr.mxu0 0.0
        %6751 = vmatpush2.msra.mxu0 0.0
        %6752 = vmatprep.subr.mxu0 0.0
        %6753 = vmatpush2.msra.mxu0 0.0
        %6754 = vmatprep.subr.mxu0 0.0
        %6755 = vmatpush2.msra.mxu0 0.0
        %6756 = vmatprep.subr.mxu0 0.0
        %6757 = vmatpush2.msra.mxu0 0.0
        %6758 = vmatprep.subr.mxu0 0.0
        %6759 = vmatpush2.msra.mxu0 0.0
        %6760 = vmatprep.subr.mxu0 0.0
        %6761 = vmatpush2.msra.mxu0 0.0
        %6762 = vmatprep.subr.mxu0 0.0
        %6763 = vmatpush2.msra.mxu0 0.0
        %6764 = vmatprep.subr.mxu0 0.0
        %6765 = vmatpush2.msra.mxu0 0.0
        %6766 = vmatprep.subr.mxu0 0.0
        %6767 = vmatpush2.msra.mxu0 0.0
        %6768 = vmatprep.subr.mxu0 0.0
        %6769 = vmatpush2.msra.mxu0 0.0
        %6770 = vmatprep.subr.mxu0 0.0
        %6771 = vmatpush2.msra.mxu0 0.0
        %6772 = vmatprep.subr.mxu0 0.0
        %6773 = vmatpush2.msra.mxu0 0.0
        %6774 = vmatprep.subr.mxu0 0.0
        %6775 = vmatpush2.msra.mxu0 0.0
        %6776 = vmatprep.subr.mxu0 0.0
        %6777 = vmatpush2.msra.mxu0 0.0
        %6778 = vmatprep.subr.mxu0 0.0
        %6779 = vmatpush2.msra.mxu0 0.0
        %6780 = vmatprep.subr.mxu0 0.0
        %6781 = vmatpush2.msra.mxu0 0.0
        %6782 = vmatprep.mubr.f32.mxu0 0.0
        %6783 = vmatmul.mubr.f32.gmra.mxu0 %v6692
        %v6784 = vpop.f32.mrf.mxu0
        %v6785 = vadd.f32 0.0, %v6784
        %v6786 = vpop.f32.mrf.mxu0
        %6787 = vmatprep.mubr.f32.mxu0 0.0
        %6788 = vmatmul.mubr.f32.gmra.mxu0 %v6695
        %v6789 = vpop.f32.mrf.mxu0
        %v6790 = vadd.f32 0.0, %v6789
        %v6791 = vpop.f32.mrf.mxu0
        %6792 = vmatprep.mubr.f32.mxu0 0.0
        %6793 = vmatmul.mubr.f32.gmra.mxu0 %v6698
        %v6794 = vpop.f32.mrf.mxu0
        %v6795 = vadd.f32 0.0, %v6794
        %v6796 = vpop.f32.mrf.mxu0
        %6797 = vmatprep.mubr.f32.mxu0 0.0
        %6798 = vmatmul.mubr.f32.gmra.mxu0 %v6701
        %v6799 = vpop.f32.mrf.mxu0
        %v6800 = vadd.f32 0.0, %v6799
        %v6801 = vpop.f32.mrf.mxu0
        %6802 = vmatprep.mubr.f32.mxu0 0.0
        %6803 = vmatmul.mubr.f32.gmra.mxu0 %v6704
        %v6804 = vpop.f32.mrf.mxu0
        %v6805 = vadd.f32 0.0, %v6804
        %v6806 = vpop.f32.mrf.mxu0
        %6807 = vmatprep.mubr.f32.mxu0 0.0
        %6808 = vmatmul.mubr.f32.gmra.mxu0 %v6707
        %v6809 = vpop.f32.mrf.mxu0
        %v6810 = vadd.f32 0.0, %v6809
        %v6811 = vpop.f32.mrf.mxu0
        %6812 = vmatprep.mubr.f32.mxu0 0.0
        %6813 = vmatmul.mubr.f32.gmra.mxu0 %v6710
        %v6814 = vpop.f32.mrf.mxu0
        %v6815 = vadd.f32 0.0, %v6814
        %v6816 = vpop.f32.mrf.mxu0
        %6817 = vmatprep.mubr.f32.mxu0 0.0
        %6818 = vmatmul.mubr.f32.gmra.mxu0 %v6713
        %v6819 = vpop.f32.mrf.mxu0
        %v6820 = vadd.f32 0.0, %v6819
        %v6821 = vpop.f32.mrf.mxu0
        %6822 = vmatprep.mubr.f32.mxu0 0.0
        %6823 = vmatmul.mubr.f32.gmra.mxu0 %v6716
        %v6824 = vpop.f32.mrf.mxu0
        %v6825 = vadd.f32 0.0, %v6824
        %v6826 = vpop.f32.mrf.mxu0
        %6827 = vdwg.mxu0
        %v6828 = vld [vmem:[#allocation10] sm:$0xff]
        %v6829 = vld [vmem:[#allocation10 + $0x8] sm:$0xff]
        %s6830 = scalar_lea.vmem [#allocation10], 16
        %v6831 = vld [vmem:[%s6830] sm:$0xff]
        %v6832 = vld [vmem:[%s6830 + $0x8] sm:$0xff]
        %v6834 = vsel %vm2974, %v6790, 0
        %6836 = vmatprep.subr.mxu0 0.0
        %6837 = vmatpush1.msra.mxu0 0.0
        %6838 = vmatprep.subr.mxu0 0.0
        %6839 = vmatpush1.msra.mxu0 0.0
        %6840 = vmatprep.subr.mxu0 0.0
        %6841 = vmatpush1.msra.mxu0 0.0
        %6842 = vmatprep.subr.mxu0 0.0
        %6843 = vmatpush1.msra.mxu0 0.0
        %6844 = vmatprep.subr.mxu0 0.0
        %6845 = vmatpush1.msra.mxu0 0.0
        %6846 = vmatprep.subr.mxu0 0.0
        %6847 = vmatpush1.msra.mxu0 0.0
        %6848 = vmatprep.subr.mxu0 0.0
        %6849 = vmatpush1.msra.mxu0 0.0
        %6850 = vmatprep.subr.mxu0 0.0
        %6851 = vmatpush1.msra.mxu0 0.0
        %6852 = vmatprep.subr.mxu0 0.0
        %6853 = vmatpush1.msra.mxu0 0.0
        %6854 = vmatprep.subr.mxu0 0.0
        %6855 = vmatpush1.msra.mxu0 0.0
        %6856 = vmatprep.subr.mxu0 0.0
        %6857 = vmatpush1.msra.mxu0 0.0
        %6858 = vmatprep.subr.mxu0 0.0
        %6859 = vmatpush1.msra.mxu0 0.0
        %6860 = vmatprep.subr.mxu0 0.0
        %6861 = vmatpush1.msra.mxu0 0.0
        %6862 = vmatprep.subr.mxu0 0.0
        %6863 = vmatpush1.msra.mxu0 0.0
        %6864 = vmatprep.subr.mxu0 0.0
        %6865 = vmatpush1.msra.mxu0 %v6832
        %6866 = vmatprep.subr.mxu0 0.0
        %6867 = vmatpush1.msra.mxu0 %v6831
        %6868 = vmatprep.subr.mxu0 0.0
        %6869 = vmatpush2.msra.mxu0 0.0
        %6870 = vmatprep.subr.mxu0 0.0
        %6871 = vmatpush2.msra.mxu0 0.0
        %6872 = vmatprep.subr.mxu0 0.0
        %6873 = vmatpush2.msra.mxu0 0.0
        %6874 = vmatprep.subr.mxu0 0.0
        %6875 = vmatpush2.msra.mxu0 0.0
        %6876 = vmatprep.subr.mxu0 0.0
        %6877 = vmatpush2.msra.mxu0 0.0
        %6878 = vmatprep.subr.mxu0 0.0
        %6879 = vmatpush2.msra.mxu0 0.0
        %6880 = vmatprep.subr.mxu0 0.0
        %6881 = vmatpush2.msra.mxu0 0.0
        %6882 = vmatprep.subr.mxu0 0.0
        %6883 = vmatpush2.msra.mxu0 0.0
        %6884 = vmatprep.subr.mxu0 0.0
        %6885 = vmatpush2.msra.mxu0 0.0
        %6886 = vmatprep.subr.mxu0 0.0
        %6887 = vmatpush2.msra.mxu0 0.0
        %6888 = vmatprep.subr.mxu0 0.0
        %6889 = vmatpush2.msra.mxu0 0.0
        %6890 = vmatprep.subr.mxu0 0.0
        %6891 = vmatpush2.msra.mxu0 0.0
        %6892 = vmatprep.subr.mxu0 0.0
        %6893 = vmatpush2.msra.mxu0 0.0
        %6894 = vmatprep.subr.mxu0 0.0
        %6895 = vmatpush2.msra.mxu0 0.0
        %6896 = vmatprep.subr.mxu0 0.0
        %6897 = vmatpush2.msra.mxu0 0.0
        %6898 = vmatprep.subr.mxu0 0.0
        %6899 = vmatpush2.msra.mxu0 0.0
        %6900 = vmatprep.mubr.f32.mxu0 0.0
        %6901 = vmatmul.mubr.f32.gmra.mxu0 %v6834
        %v6902 = vpop.f32.mrf.mxu0
        %v6903 = vadd.f32 0.0, %v6902
        %v6904 = vpop.f32.mrf.mxu0
        %6905 = vdwg.mxu0
        %v6907 = vsel %vm2974, %v6785, 0
        %6909 = vmatprep.subr.mxu0 0.0
        %6910 = vmatpush1.msra.mxu0 0.0
        %6911 = vmatprep.subr.mxu0 0.0
        %6912 = vmatpush1.msra.mxu0 0.0
        %6913 = vmatprep.subr.mxu0 0.0
        %6914 = vmatpush1.msra.mxu0 0.0
        %6915 = vmatprep.subr.mxu0 0.0
        %6916 = vmatpush1.msra.mxu0 0.0
        %6917 = vmatprep.subr.mxu0 0.0
        %6918 = vmatpush1.msra.mxu0 0.0
        %6919 = vmatprep.subr.mxu0 0.0
        %6920 = vmatpush1.msra.mxu0 0.0
        %6921 = vmatprep.subr.mxu0 0.0
        %6922 = vmatpush1.msra.mxu0 0.0
        %6923 = vmatprep.subr.mxu0 0.0
        %6924 = vmatpush1.msra.mxu0 0.0
        %6925 = vmatprep.subr.mxu0 0.0
        %6926 = vmatpush1.msra.mxu0 0.0
        %6927 = vmatprep.subr.mxu0 0.0
        %6928 = vmatpush1.msra.mxu0 0.0
        %6929 = vmatprep.subr.mxu0 0.0
        %6930 = vmatpush1.msra.mxu0 0.0
        %6931 = vmatprep.subr.mxu0 0.0
        %6932 = vmatpush1.msra.mxu0 0.0
        %6933 = vmatprep.subr.mxu0 0.0
        %6934 = vmatpush1.msra.mxu0 0.0
        %6935 = vmatprep.subr.mxu0 0.0
        %6936 = vmatpush1.msra.mxu0 0.0
        %6937 = vmatprep.subr.mxu0 0.0
        %6938 = vmatpush1.msra.mxu0 %v6829
        %6939 = vmatprep.subr.mxu0 0.0
        %6940 = vmatpush1.msra.mxu0 %v6828
        %6941 = vmatprep.subr.mxu0 0.0
        %6942 = vmatpush2.msra.mxu0 0.0
        %6943 = vmatprep.subr.mxu0 0.0
        %6944 = vmatpush2.msra.mxu0 0.0
        %6945 = vmatprep.subr.mxu0 0.0
        %6946 = vmatpush2.msra.mxu0 0.0
        %6947 = vmatprep.subr.mxu0 0.0
        %6948 = vmatpush2.msra.mxu0 0.0
        %6949 = vmatprep.subr.mxu0 0.0
        %6950 = vmatpush2.msra.mxu0 0.0
        %6951 = vmatprep.subr.mxu0 0.0
        %6952 = vmatpush2.msra.mxu0 0.0
        %6953 = vmatprep.subr.mxu0 0.0
        %6954 = vmatpush2.msra.mxu0 0.0
        %6955 = vmatprep.subr.mxu0 0.0
        %6956 = vmatpush2.msra.mxu0 0.0
        %6957 = vmatprep.subr.mxu0 0.0
        %6958 = vmatpush2.msra.mxu0 0.0
        %6959 = vmatprep.subr.mxu0 0.0
        %6960 = vmatpush2.msra.mxu0 0.0
        %6961 = vmatprep.subr.mxu0 0.0
        %6962 = vmatpush2.msra.mxu0 0.0
        %6963 = vmatprep.subr.mxu0 0.0
        %6964 = vmatpush2.msra.mxu0 0.0
        %6965 = vmatprep.subr.mxu0 0.0
        %6966 = vmatpush2.msra.mxu0 0.0
        %6967 = vmatprep.subr.mxu0 0.0
        %6968 = vmatpush2.msra.mxu0 0.0
        %6969 = vmatprep.subr.mxu0 0.0
        %6970 = vmatpush2.msra.mxu0 0.0
        %6971 = vmatprep.subr.mxu0 0.0
        %6972 = vmatpush2.msra.mxu0 0.0
        %6973 = vmatprep.mubr.f32.mxu0 0.0
        %6974 = vmatmul.mubr.f32.gmra.mxu0 %v6907
        %v6975 = vpop.f32.mrf.mxu0
        %v6976 = vadd.f32 %v6903, %v6975
        %v6977 = vpop.f32.mrf.mxu0
        %6978 = vdwg.mxu0
        %s6979 = scalar_lea.vmem [#allocation10], 32
        %v6980 = vld [vmem:[%s6979] sm:$0xff]
        %v6981 = vld [vmem:[%s6979 + $0x8] sm:$0xff]
        %v6983 = vsel %vm2974, %v6795, 0
        %6985 = vmatprep.subr.mxu0 0.0
        %6986 = vmatpush1.msra.mxu0 0.0
        %6987 = vmatprep.subr.mxu0 0.0
        %6988 = vmatpush1.msra.mxu0 0.0
        %6989 = vmatprep.subr.mxu0 0.0
        %6990 = vmatpush1.msra.mxu0 0.0
        %6991 = vmatprep.subr.mxu0 0.0
        %6992 = vmatpush1.msra.mxu0 0.0
        %6993 = vmatprep.subr.mxu0 0.0
        %6994 = vmatpush1.msra.mxu0 0.0
        %6995 = vmatprep.subr.mxu0 0.0
        %6996 = vmatpush1.msra.mxu0 0.0
        %6997 = vmatprep.subr.mxu0 0.0
        %6998 = vmatpush1.msra.mxu0 0.0
        %6999 = vmatprep.subr.mxu0 0.0
        %7000 = vmatpush1.msra.mxu0 0.0
        %7001 = vmatprep.subr.mxu0 0.0
        %7002 = vmatpush1.msra.mxu0 0.0
        %7003 = vmatprep.subr.mxu0 0.0
        %7004 = vmatpush1.msra.mxu0 0.0
        %7005 = vmatprep.subr.mxu0 0.0
        %7006 = vmatpush1.msra.mxu0 0.0
        %7007 = vmatprep.subr.mxu0 0.0
        %7008 = vmatpush1.msra.mxu0 0.0
        %7009 = vmatprep.subr.mxu0 0.0
        %7010 = vmatpush1.msra.mxu0 0.0
        %7011 = vmatprep.subr.mxu0 0.0
        %7012 = vmatpush1.msra.mxu0 0.0
        %7013 = vmatprep.subr.mxu0 0.0
        %7014 = vmatpush1.msra.mxu0 %v6981
        %7015 = vmatprep.subr.mxu0 0.0
        %7016 = vmatpush1.msra.mxu0 %v6980
        %7017 = vmatprep.subr.mxu0 0.0
        %7018 = vmatpush2.msra.mxu0 0.0
        %7019 = vmatprep.subr.mxu0 0.0
        %7020 = vmatpush2.msra.mxu0 0.0
        %7021 = vmatprep.subr.mxu0 0.0
        %7022 = vmatpush2.msra.mxu0 0.0
        %7023 = vmatprep.subr.mxu0 0.0
        %7024 = vmatpush2.msra.mxu0 0.0
        %7025 = vmatprep.subr.mxu0 0.0
        %7026 = vmatpush2.msra.mxu0 0.0
        %7027 = vmatprep.subr.mxu0 0.0
        %7028 = vmatpush2.msra.mxu0 0.0
        %7029 = vmatprep.subr.mxu0 0.0
        %7030 = vmatpush2.msra.mxu0 0.0
        %7031 = vmatprep.subr.mxu0 0.0
        %7032 = vmatpush2.msra.mxu0 0.0
        %7033 = vmatprep.subr.mxu0 0.0
        %7034 = vmatpush2.msra.mxu0 0.0
        %7035 = vmatprep.subr.mxu0 0.0
        %7036 = vmatpush2.msra.mxu0 0.0
        %7037 = vmatprep.subr.mxu0 0.0
        %7038 = vmatpush2.msra.mxu0 0.0
        %7039 = vmatprep.subr.mxu0 0.0
        %7040 = vmatpush2.msra.mxu0 0.0
        %7041 = vmatprep.subr.mxu0 0.0
        %7042 = vmatpush2.msra.mxu0 0.0
        %7043 = vmatprep.subr.mxu0 0.0
        %7044 = vmatpush2.msra.mxu0 0.0
        %7045 = vmatprep.subr.mxu0 0.0
        %7046 = vmatpush2.msra.mxu0 0.0
        %7047 = vmatprep.subr.mxu0 0.0
        %7048 = vmatpush2.msra.mxu0 0.0
        %7049 = vmatprep.mubr.f32.mxu0 0.0
        %7050 = vmatmul.mubr.f32.gmra.mxu0 %v6983
        %v7051 = vpop.f32.mrf.mxu0
        %v7052 = vadd.f32 0.0, %v7051
        %v7053 = vpop.f32.mrf.mxu0
        %7054 = vdwg.mxu0
        %v7055 = vadd.f32 %v6976, %v7052
        %s7056 = scalar_lea.vmem [#allocation10], 48
        %v7057 = vld [vmem:[%s7056] sm:$0xff]
        %v7058 = vld [vmem:[%s7056 + $0x8] sm:$0xff]
        %v7060 = vsel %vm2974, %v6800, 0
        %7062 = vmatprep.subr.mxu0 0.0
        %7063 = vmatpush1.msra.mxu0 0.0
        %7064 = vmatprep.subr.mxu0 0.0
        %7065 = vmatpush1.msra.mxu0 0.0
        %7066 = vmatprep.subr.mxu0 0.0
        %7067 = vmatpush1.msra.mxu0 0.0
        %7068 = vmatprep.subr.mxu0 0.0
        %7069 = vmatpush1.msra.mxu0 0.0
        %7070 = vmatprep.subr.mxu0 0.0
        %7071 = vmatpush1.msra.mxu0 0.0
        %7072 = vmatprep.subr.mxu0 0.0
        %7073 = vmatpush1.msra.mxu0 0.0
        %7074 = vmatprep.subr.mxu0 0.0
        %7075 = vmatpush1.msra.mxu0 0.0
        %7076 = vmatprep.subr.mxu0 0.0
        %7077 = vmatpush1.msra.mxu0 0.0
        %7078 = vmatprep.subr.mxu0 0.0
        %7079 = vmatpush1.msra.mxu0 0.0
        %7080 = vmatprep.subr.mxu0 0.0
        %7081 = vmatpush1.msra.mxu0 0.0
        %7082 = vmatprep.subr.mxu0 0.0
        %7083 = vmatpush1.msra.mxu0 0.0
        %7084 = vmatprep.subr.mxu0 0.0
        %7085 = vmatpush1.msra.mxu0 0.0
        %7086 = vmatprep.subr.mxu0 0.0
        %7087 = vmatpush1.msra.mxu0 0.0
        %7088 = vmatprep.subr.mxu0 0.0
        %7089 = vmatpush1.msra.mxu0 0.0
        %7090 = vmatprep.subr.mxu0 0.0
        %7091 = vmatpush1.msra.mxu0 %v7058
        %7092 = vmatprep.subr.mxu0 0.0
        %7093 = vmatpush1.msra.mxu0 %v7057
        %7094 = vmatprep.subr.mxu0 0.0
        %7095 = vmatpush2.msra.mxu0 0.0
        %7096 = vmatprep.subr.mxu0 0.0
        %7097 = vmatpush2.msra.mxu0 0.0
        %7098 = vmatprep.subr.mxu0 0.0
        %7099 = vmatpush2.msra.mxu0 0.0
        %7100 = vmatprep.subr.mxu0 0.0
        %7101 = vmatpush2.msra.mxu0 0.0
        %7102 = vmatprep.subr.mxu0 0.0
        %7103 = vmatpush2.msra.mxu0 0.0
        %7104 = vmatprep.subr.mxu0 0.0
        %7105 = vmatpush2.msra.mxu0 0.0
        %7106 = vmatprep.subr.mxu0 0.0
        %7107 = vmatpush2.msra.mxu0 0.0
        %7108 = vmatprep.subr.mxu0 0.0
        %7109 = vmatpush2.msra.mxu0 0.0
        %7110 = vmatprep.subr.mxu0 0.0
        %7111 = vmatpush2.msra.mxu0 0.0
        %7112 = vmatprep.subr.mxu0 0.0
        %7113 = vmatpush2.msra.mxu0 0.0
        %7114 = vmatprep.subr.mxu0 0.0
        %7115 = vmatpush2.msra.mxu0 0.0
        %7116 = vmatprep.subr.mxu0 0.0
        %7117 = vmatpush2.msra.mxu0 0.0
        %7118 = vmatprep.subr.mxu0 0.0
        %7119 = vmatpush2.msra.mxu0 0.0
        %7120 = vmatprep.subr.mxu0 0.0
        %7121 = vmatpush2.msra.mxu0 0.0
        %7122 = vmatprep.subr.mxu0 0.0
        %7123 = vmatpush2.msra.mxu0 0.0
        %7124 = vmatprep.subr.mxu0 0.0
        %7125 = vmatpush2.msra.mxu0 0.0
        %7126 = vmatprep.mubr.f32.mxu0 0.0
        %7127 = vmatmul.mubr.f32.gmra.mxu0 %v7060
        %v7128 = vpop.f32.mrf.mxu0
        %v7129 = vadd.f32 0.0, %v7128
        %v7130 = vpop.f32.mrf.mxu0
        %7131 = vdwg.mxu0
        %v7132 = vadd.f32 %v7055, %v7129
        %s7133 = scalar_lea.vmem [#allocation10], 64
        %v7134 = vld [vmem:[%s7133] sm:$0xff]
        %v7135 = vld [vmem:[%s7133 + $0x8] sm:$0xff]
        %v7137 = vsel %vm2974, %v6805, 0
        %7139 = vmatprep.subr.mxu0 0.0
        %7140 = vmatpush1.msra.mxu0 0.0
        %7141 = vmatprep.subr.mxu0 0.0
        %7142 = vmatpush1.msra.mxu0 0.0
        %7143 = vmatprep.subr.mxu0 0.0
        %7144 = vmatpush1.msra.mxu0 0.0
        %7145 = vmatprep.subr.mxu0 0.0
        %7146 = vmatpush1.msra.mxu0 0.0
        %7147 = vmatprep.subr.mxu0 0.0
        %7148 = vmatpush1.msra.mxu0 0.0
        %7149 = vmatprep.subr.mxu0 0.0
        %7150 = vmatpush1.msra.mxu0 0.0
        %7151 = vmatprep.subr.mxu0 0.0
        %7152 = vmatpush1.msra.mxu0 0.0
        %7153 = vmatprep.subr.mxu0 0.0
        %7154 = vmatpush1.msra.mxu0 0.0
        %7155 = vmatprep.subr.mxu0 0.0
        %7156 = vmatpush1.msra.mxu0 0.0
        %7157 = vmatprep.subr.mxu0 0.0
        %7158 = vmatpush1.msra.mxu0 0.0
        %7159 = vmatprep.subr.mxu0 0.0
        %7160 = vmatpush1.msra.mxu0 0.0
        %7161 = vmatprep.subr.mxu0 0.0
        %7162 = vmatpush1.msra.mxu0 0.0
        %7163 = vmatprep.subr.mxu0 0.0
        %7164 = vmatpush1.msra.mxu0 0.0
        %7165 = vmatprep.subr.mxu0 0.0
        %7166 = vmatpush1.msra.mxu0 0.0
        %7167 = vmatprep.subr.mxu0 0.0
        %7168 = vmatpush1.msra.mxu0 %v7135
        %7169 = vmatprep.subr.mxu0 0.0
        %7170 = vmatpush1.msra.mxu0 %v7134
        %7171 = vmatprep.subr.mxu0 0.0
        %7172 = vmatpush2.msra.mxu0 0.0
        %7173 = vmatprep.subr.mxu0 0.0
        %7174 = vmatpush2.msra.mxu0 0.0
        %7175 = vmatprep.subr.mxu0 0.0
        %7176 = vmatpush2.msra.mxu0 0.0
        %7177 = vmatprep.subr.mxu0 0.0
        %7178 = vmatpush2.msra.mxu0 0.0
        %7179 = vmatprep.subr.mxu0 0.0
        %7180 = vmatpush2.msra.mxu0 0.0
        %7181 = vmatprep.subr.mxu0 0.0
        %7182 = vmatpush2.msra.mxu0 0.0
        %7183 = vmatprep.subr.mxu0 0.0
        %7184 = vmatpush2.msra.mxu0 0.0
        %7185 = vmatprep.subr.mxu0 0.0
        %7186 = vmatpush2.msra.mxu0 0.0
        %7187 = vmatprep.subr.mxu0 0.0
        %7188 = vmatpush2.msra.mxu0 0.0
        %7189 = vmatprep.subr.mxu0 0.0
        %7190 = vmatpush2.msra.mxu0 0.0
        %7191 = vmatprep.subr.mxu0 0.0
        %7192 = vmatpush2.msra.mxu0 0.0
        %7193 = vmatprep.subr.mxu0 0.0
        %7194 = vmatpush2.msra.mxu0 0.0
        %7195 = vmatprep.subr.mxu0 0.0
        %7196 = vmatpush2.msra.mxu0 0.0
        %7197 = vmatprep.subr.mxu0 0.0
        %7198 = vmatpush2.msra.mxu0 0.0
        %7199 = vmatprep.subr.mxu0 0.0
        %7200 = vmatpush2.msra.mxu0 0.0
        %7201 = vmatprep.subr.mxu0 0.0
        %7202 = vmatpush2.msra.mxu0 0.0
        %7203 = vmatprep.mubr.f32.mxu0 0.0
        %7204 = vmatmul.mubr.f32.gmra.mxu0 %v7137
        %v7205 = vpop.f32.mrf.mxu0
        %v7206 = vadd.f32 0.0, %v7205
        %v7207 = vpop.f32.mrf.mxu0
        %7208 = vdwg.mxu0
        %v7209 = vadd.f32 %v7132, %v7206
        %s7210 = scalar_lea.vmem [#allocation10], 80
        %v7211 = vld [vmem:[%s7210] sm:$0xff]
        %v7212 = vld [vmem:[%s7210 + $0x8] sm:$0xff]
        %v7214 = vsel %vm2974, %v6810, 0
        %7216 = vmatprep.subr.mxu0 0.0
        %7217 = vmatpush1.msra.mxu0 0.0
        %7218 = vmatprep.subr.mxu0 0.0
        %7219 = vmatpush1.msra.mxu0 0.0
        %7220 = vmatprep.subr.mxu0 0.0
        %7221 = vmatpush1.msra.mxu0 0.0
        %7222 = vmatprep.subr.mxu0 0.0
        %7223 = vmatpush1.msra.mxu0 0.0
        %7224 = vmatprep.subr.mxu0 0.0
        %7225 = vmatpush1.msra.mxu0 0.0
        %7226 = vmatprep.subr.mxu0 0.0
        %7227 = vmatpush1.msra.mxu0 0.0
        %7228 = vmatprep.subr.mxu0 0.0
        %7229 = vmatpush1.msra.mxu0 0.0
        %7230 = vmatprep.subr.mxu0 0.0
        %7231 = vmatpush1.msra.mxu0 0.0
        %7232 = vmatprep.subr.mxu0 0.0
        %7233 = vmatpush1.msra.mxu0 0.0
        %7234 = vmatprep.subr.mxu0 0.0
        %7235 = vmatpush1.msra.mxu0 0.0
        %7236 = vmatprep.subr.mxu0 0.0
        %7237 = vmatpush1.msra.mxu0 0.0
        %7238 = vmatprep.subr.mxu0 0.0
        %7239 = vmatpush1.msra.mxu0 0.0
        %7240 = vmatprep.subr.mxu0 0.0
        %7241 = vmatpush1.msra.mxu0 0.0
        %7242 = vmatprep.subr.mxu0 0.0
        %7243 = vmatpush1.msra.mxu0 0.0
        %7244 = vmatprep.subr.mxu0 0.0
        %7245 = vmatpush1.msra.mxu0 %v7212
        %7246 = vmatprep.subr.mxu0 0.0
        %7247 = vmatpush1.msra.mxu0 %v7211
        %7248 = vmatprep.subr.mxu0 0.0
        %7249 = vmatpush2.msra.mxu0 0.0
        %7250 = vmatprep.subr.mxu0 0.0
        %7251 = vmatpush2.msra.mxu0 0.0
        %7252 = vmatprep.subr.mxu0 0.0
        %7253 = vmatpush2.msra.mxu0 0.0
        %7254 = vmatprep.subr.mxu0 0.0
        %7255 = vmatpush2.msra.mxu0 0.0
        %7256 = vmatprep.subr.mxu0 0.0
        %7257 = vmatpush2.msra.mxu0 0.0
        %7258 = vmatprep.subr.mxu0 0.0
        %7259 = vmatpush2.msra.mxu0 0.0
        %7260 = vmatprep.subr.mxu0 0.0
        %7261 = vmatpush2.msra.mxu0 0.0
        %7262 = vmatprep.subr.mxu0 0.0
        %7263 = vmatpush2.msra.mxu0 0.0
        %7264 = vmatprep.subr.mxu0 0.0
        %7265 = vmatpush2.msra.mxu0 0.0
        %7266 = vmatprep.subr.mxu0 0.0
        %7267 = vmatpush2.msra.mxu0 0.0
        %7268 = vmatprep.subr.mxu0 0.0
        %7269 = vmatpush2.msra.mxu0 0.0
        %7270 = vmatprep.subr.mxu0 0.0
        %7271 = vmatpush2.msra.mxu0 0.0
        %7272 = vmatprep.subr.mxu0 0.0
        %7273 = vmatpush2.msra.mxu0 0.0
        %7274 = vmatprep.subr.mxu0 0.0
        %7275 = vmatpush2.msra.mxu0 0.0
        %7276 = vmatprep.subr.mxu0 0.0
        %7277 = vmatpush2.msra.mxu0 0.0
        %7278 = vmatprep.subr.mxu0 0.0
        %7279 = vmatpush2.msra.mxu0 0.0
        %7280 = vmatprep.mubr.f32.mxu0 0.0
        %7281 = vmatmul.mubr.f32.gmra.mxu0 %v7214
        %v7282 = vpop.f32.mrf.mxu0
        %v7283 = vadd.f32 0.0, %v7282
        %v7284 = vpop.f32.mrf.mxu0
        %7285 = vdwg.mxu0
        %v7286 = vadd.f32 %v7209, %v7283
        %s7287 = scalar_lea.vmem [#allocation10], 96
        %v7288 = vld [vmem:[%s7287] sm:$0xff]
        %v7289 = vld [vmem:[%s7287 + $0x8] sm:$0xff]
        %v7291 = vsel %vm2974, %v6815, 0
        %7293 = vmatprep.subr.mxu0 0.0
        %7294 = vmatpush1.msra.mxu0 0.0
        %7295 = vmatprep.subr.mxu0 0.0
        %7296 = vmatpush1.msra.mxu0 0.0
        %7297 = vmatprep.subr.mxu0 0.0
        %7298 = vmatpush1.msra.mxu0 0.0
        %7299 = vmatprep.subr.mxu0 0.0
        %7300 = vmatpush1.msra.mxu0 0.0
        %7301 = vmatprep.subr.mxu0 0.0
        %7302 = vmatpush1.msra.mxu0 0.0
        %7303 = vmatprep.subr.mxu0 0.0
        %7304 = vmatpush1.msra.mxu0 0.0
        %7305 = vmatprep.subr.mxu0 0.0
        %7306 = vmatpush1.msra.mxu0 0.0
        %7307 = vmatprep.subr.mxu0 0.0
        %7308 = vmatpush1.msra.mxu0 0.0
        %7309 = vmatprep.subr.mxu0 0.0
        %7310 = vmatpush1.msra.mxu0 0.0
        %7311 = vmatprep.subr.mxu0 0.0
        %7312 = vmatpush1.msra.mxu0 0.0
        %7313 = vmatprep.subr.mxu0 0.0
        %7314 = vmatpush1.msra.mxu0 0.0
        %7315 = vmatprep.subr.mxu0 0.0
        %7316 = vmatpush1.msra.mxu0 0.0
        %7317 = vmatprep.subr.mxu0 0.0
        %7318 = vmatpush1.msra.mxu0 0.0
        %7319 = vmatprep.subr.mxu0 0.0
        %7320 = vmatpush1.msra.mxu0 0.0
        %7321 = vmatprep.subr.mxu0 0.0
        %7322 = vmatpush1.msra.mxu0 %v7289
        %7323 = vmatprep.subr.mxu0 0.0
        %7324 = vmatpush1.msra.mxu0 %v7288
        %7325 = vmatprep.subr.mxu0 0.0
        %7326 = vmatpush2.msra.mxu0 0.0
        %7327 = vmatprep.subr.mxu0 0.0
        %7328 = vmatpush2.msra.mxu0 0.0
        %7329 = vmatprep.subr.mxu0 0.0
        %7330 = vmatpush2.msra.mxu0 0.0
        %7331 = vmatprep.subr.mxu0 0.0
        %7332 = vmatpush2.msra.mxu0 0.0
        %7333 = vmatprep.subr.mxu0 0.0
        %7334 = vmatpush2.msra.mxu0 0.0
        %7335 = vmatprep.subr.mxu0 0.0
        %7336 = vmatpush2.msra.mxu0 0.0
        %7337 = vmatprep.subr.mxu0 0.0
        %7338 = vmatpush2.msra.mxu0 0.0
        %7339 = vmatprep.subr.mxu0 0.0
        %7340 = vmatpush2.msra.mxu0 0.0
        %7341 = vmatprep.subr.mxu0 0.0
        %7342 = vmatpush2.msra.mxu0 0.0
        %7343 = vmatprep.subr.mxu0 0.0
        %7344 = vmatpush2.msra.mxu0 0.0
        %7345 = vmatprep.subr.mxu0 0.0
        %7346 = vmatpush2.msra.mxu0 0.0
        %7347 = vmatprep.subr.mxu0 0.0
        %7348 = vmatpush2.msra.mxu0 0.0
        %7349 = vmatprep.subr.mxu0 0.0
        %7350 = vmatpush2.msra.mxu0 0.0
        %7351 = vmatprep.subr.mxu0 0.0
        %7352 = vmatpush2.msra.mxu0 0.0
        %7353 = vmatprep.subr.mxu0 0.0
        %7354 = vmatpush2.msra.mxu0 0.0
        %7355 = vmatprep.subr.mxu0 0.0
        %7356 = vmatpush2.msra.mxu0 0.0
        %7357 = vmatprep.mubr.f32.mxu0 0.0
        %7358 = vmatmul.mubr.f32.gmra.mxu0 %v7291
        %v7359 = vpop.f32.mrf.mxu0
        %v7360 = vadd.f32 0.0, %v7359
        %v7361 = vpop.f32.mrf.mxu0
        %7362 = vdwg.mxu0
        %v7363 = vadd.f32 %v7286, %v7360
        %s7364 = scalar_lea.vmem [#allocation10], 112
        %v7365 = vld [vmem:[%s7364] sm:$0xff]
        %v7366 = vld [vmem:[%s7364 + $0x8] sm:$0xff]
        %v7368 = vsel %vm2974, %v6820, 0
        %7370 = vmatprep.subr.mxu0 0.0
        %7371 = vmatpush1.msra.mxu0 0.0
        %7372 = vmatprep.subr.mxu0 0.0
        %7373 = vmatpush1.msra.mxu0 0.0
        %7374 = vmatprep.subr.mxu0 0.0
        %7375 = vmatpush1.msra.mxu0 0.0
        %7376 = vmatprep.subr.mxu0 0.0
        %7377 = vmatpush1.msra.mxu0 0.0
        %7378 = vmatprep.subr.mxu0 0.0
        %7379 = vmatpush1.msra.mxu0 0.0
        %7380 = vmatprep.subr.mxu0 0.0
        %7381 = vmatpush1.msra.mxu0 0.0
        %7382 = vmatprep.subr.mxu0 0.0
        %7383 = vmatpush1.msra.mxu0 0.0
        %7384 = vmatprep.subr.mxu0 0.0
        %7385 = vmatpush1.msra.mxu0 0.0
        %7386 = vmatprep.subr.mxu0 0.0
        %7387 = vmatpush1.msra.mxu0 0.0
        %7388 = vmatprep.subr.mxu0 0.0
        %7389 = vmatpush1.msra.mxu0 0.0
        %7390 = vmatprep.subr.mxu0 0.0
        %7391 = vmatpush1.msra.mxu0 0.0
        %7392 = vmatprep.subr.mxu0 0.0
        %7393 = vmatpush1.msra.mxu0 0.0
        %7394 = vmatprep.subr.mxu0 0.0
        %7395 = vmatpush1.msra.mxu0 0.0
        %7396 = vmatprep.subr.mxu0 0.0
        %7397 = vmatpush1.msra.mxu0 0.0
        %7398 = vmatprep.subr.mxu0 0.0
        %7399 = vmatpush1.msra.mxu0 %v7366
        %7400 = vmatprep.subr.mxu0 0.0
        %7401 = vmatpush1.msra.mxu0 %v7365
        %7402 = vmatprep.subr.mxu0 0.0
        %7403 = vmatpush2.msra.mxu0 0.0
        %7404 = vmatprep.subr.mxu0 0.0
        %7405 = vmatpush2.msra.mxu0 0.0
        %7406 = vmatprep.subr.mxu0 0.0
        %7407 = vmatpush2.msra.mxu0 0.0
        %7408 = vmatprep.subr.mxu0 0.0
        %7409 = vmatpush2.msra.mxu0 0.0
        %7410 = vmatprep.subr.mxu0 0.0
        %7411 = vmatpush2.msra.mxu0 0.0
        %7412 = vmatprep.subr.mxu0 0.0
        %7413 = vmatpush2.msra.mxu0 0.0
        %7414 = vmatprep.subr.mxu0 0.0
        %7415 = vmatpush2.msra.mxu0 0.0
        %7416 = vmatprep.subr.mxu0 0.0
        %7417 = vmatpush2.msra.mxu0 0.0
        %7418 = vmatprep.subr.mxu0 0.0
        %7419 = vmatpush2.msra.mxu0 0.0
        %7420 = vmatprep.subr.mxu0 0.0
        %7421 = vmatpush2.msra.mxu0 0.0
        %7422 = vmatprep.subr.mxu0 0.0
        %7423 = vmatpush2.msra.mxu0 0.0
        %7424 = vmatprep.subr.mxu0 0.0
        %7425 = vmatpush2.msra.mxu0 0.0
        %7426 = vmatprep.subr.mxu0 0.0
        %7427 = vmatpush2.msra.mxu0 0.0
        %7428 = vmatprep.subr.mxu0 0.0
        %7429 = vmatpush2.msra.mxu0 0.0
        %7430 = vmatprep.subr.mxu0 0.0
        %7431 = vmatpush2.msra.mxu0 0.0
        %7432 = vmatprep.subr.mxu0 0.0
        %7433 = vmatpush2.msra.mxu0 0.0
        %7434 = vmatprep.mubr.f32.mxu0 0.0
        %7435 = vmatmul.mubr.f32.gmra.mxu0 %v7368
        %v7436 = vpop.f32.mrf.mxu0
        %v7437 = vadd.f32 0.0, %v7436
        %v7438 = vpop.f32.mrf.mxu0
        %7439 = vdwg.mxu0
        %v7440 = vadd.f32 %v7363, %v7437
        %s7441 = scalar_lea.vmem [#allocation10], 128
        %v7442 = vld [vmem:[%s7441] sm:$0xff]
        %v7443 = vld [vmem:[%s7441 + $0x8] sm:$0xff]
        %v7445 = vsel %vm2974, %v6825, 0
        %7447 = vmatprep.subr.mxu0 0.0
        %7448 = vmatpush1.msra.mxu0 0.0
        %7449 = vmatprep.subr.mxu0 0.0
        %7450 = vmatpush1.msra.mxu0 0.0
        %7451 = vmatprep.subr.mxu0 0.0
        %7452 = vmatpush1.msra.mxu0 0.0
        %7453 = vmatprep.subr.mxu0 0.0
        %7454 = vmatpush1.msra.mxu0 0.0
        %7455 = vmatprep.subr.mxu0 0.0
        %7456 = vmatpush1.msra.mxu0 0.0
        %7457 = vmatprep.subr.mxu0 0.0
        %7458 = vmatpush1.msra.mxu0 0.0
        %7459 = vmatprep.subr.mxu0 0.0
        %7460 = vmatpush1.msra.mxu0 0.0
        %7461 = vmatprep.subr.mxu0 0.0
        %7462 = vmatpush1.msra.mxu0 0.0
        %7463 = vmatprep.subr.mxu0 0.0
        %7464 = vmatpush1.msra.mxu0 0.0
        %7465 = vmatprep.subr.mxu0 0.0
        %7466 = vmatpush1.msra.mxu0 0.0
        %7467 = vmatprep.subr.mxu0 0.0
        %7468 = vmatpush1.msra.mxu0 0.0
        %7469 = vmatprep.subr.mxu0 0.0
        %7470 = vmatpush1.msra.mxu0 0.0
        %7471 = vmatprep.subr.mxu0 0.0
        %7472 = vmatpush1.msra.mxu0 0.0
        %7473 = vmatprep.subr.mxu0 0.0
        %7474 = vmatpush1.msra.mxu0 0.0
        %7475 = vmatprep.subr.mxu0 0.0
        %7476 = vmatpush1.msra.mxu0 %v7443
        %7477 = vmatprep.subr.mxu0 0.0
        %7478 = vmatpush1.msra.mxu0 %v7442
        %7479 = vmatprep.subr.mxu0 0.0
        %7480 = vmatpush2.msra.mxu0 0.0
        %7481 = vmatprep.subr.mxu0 0.0
        %7482 = vmatpush2.msra.mxu0 0.0
        %7483 = vmatprep.subr.mxu0 0.0
        %7484 = vmatpush2.msra.mxu0 0.0
        %7485 = vmatprep.subr.mxu0 0.0
        %7486 = vmatpush2.msra.mxu0 0.0
        %7487 = vmatprep.subr.mxu0 0.0
        %7488 = vmatpush2.msra.mxu0 0.0
        %7489 = vmatprep.subr.mxu0 0.0
        %7490 = vmatpush2.msra.mxu0 0.0
        %7491 = vmatprep.subr.mxu0 0.0
        %7492 = vmatpush2.msra.mxu0 0.0
        %7493 = vmatprep.subr.mxu0 0.0
        %7494 = vmatpush2.msra.mxu0 0.0
        %7495 = vmatprep.subr.mxu0 0.0
        %7496 = vmatpush2.msra.mxu0 0.0
        %7497 = vmatprep.subr.mxu0 0.0
        %7498 = vmatpush2.msra.mxu0 0.0
        %7499 = vmatprep.subr.mxu0 0.0
        %7500 = vmatpush2.msra.mxu0 0.0
        %7501 = vmatprep.subr.mxu0 0.0
        %7502 = vmatpush2.msra.mxu0 0.0
        %7503 = vmatprep.subr.mxu0 0.0
        %7504 = vmatpush2.msra.mxu0 0.0
        %7505 = vmatprep.subr.mxu0 0.0
        %7506 = vmatpush2.msra.mxu0 0.0
        %7507 = vmatprep.subr.mxu0 0.0
        %7508 = vmatpush2.msra.mxu0 0.0
        %7509 = vmatprep.subr.mxu0 0.0
        %7510 = vmatpush2.msra.mxu0 0.0
        %7511 = vmatprep.mubr.f32.mxu0 0.0
        %7512 = vmatmul.mubr.f32.gmra.mxu0 %v7445
        %v7513 = vpop.f32.mrf.mxu0
        %v7514 = vadd.f32 0.0, %v7513
        %v7515 = vpop.f32.mrf.mxu0
        %7516 = vdwg.mxu0
        %v7517 = vadd.f32 %v7440, %v7514
        %7519 = vset.pattern.permute.xlu0 0
        %7520 = vperm.xlu0 %7519, %v6686
        %v7521 = vpop.permute.xlu0 %7520
        %v7523 = vadd.f32 %v7517, %v7521
        %v7524 = vmax.f32 %v7523, 0.0
        %v7525 = vld [vmem:[%s13] sm:$0xff]
        %v7526 = vld [vmem:[%s13 + $0x8] sm:$0xff]
        %v7527 = vld [vmem:[%s13 + $0x10] sm:$0xff]
        %v7528 = vld [vmem:[%s13 + $0x18] sm:$0xff]
        %v7529 = vld [vmem:[%s14] sm:$0xff]
        %v7530 = vld [vmem:[%s14 + $0x8] sm:$0xff]
        %v7531 = vld [vmem:[%s14 + $0x10] sm:$0xff]
        %v7532 = vld [vmem:[%s14 + $0x18] sm:$0xff]
        %7534 = vset.pattern.permute.xlu0 0
        %7535 = vperm.xlu0 %7534, %v7529
        %v7536 = vpop.permute.xlu0 %7535
        %7539 = vset.pattern.permute.xlu0 0
        %7540 = vperm.xlu0 %7539, %v7530
        %v7541 = vpop.permute.xlu0 %7540
        %7544 = vset.pattern.permute.xlu0 0
        %7545 = vperm.xlu0 %7544, %v7531
        %v7546 = vpop.permute.xlu0 %7545
        %7549 = vset.pattern.permute.xlu0 0
        %7550 = vperm.xlu0 %7549, %v7532
        %v7551 = vpop.permute.xlu0 %7550
        %v7554 = vsel %vm783, %v7525, 0
        %v7557 = vsel %vm783, %v7526, 0
        %v7560 = vsel %vm783, %v7527, 0
        %v7563 = vsel %vm783, %v7528, 0
        %7565 = vmatprep.subr.mxu0 0.0
        %7566 = vmatpush1.msra.mxu0 0.0
        %7567 = vmatprep.subr.mxu0 0.0
        %7568 = vmatpush1.msra.mxu0 0.0
        %7569 = vmatprep.subr.mxu0 0.0
        %7570 = vmatpush1.msra.mxu0 0.0
        %7571 = vmatprep.subr.mxu0 0.0
        %7572 = vmatpush1.msra.mxu0 0.0
        %7573 = vmatprep.subr.mxu0 0.0
        %7574 = vmatpush1.msra.mxu0 0.0
        %7575 = vmatprep.subr.mxu0 0.0
        %7576 = vmatpush1.msra.mxu0 0.0
        %7577 = vmatprep.subr.mxu0 0.0
        %7578 = vmatpush1.msra.mxu0 0.0
        %7579 = vmatprep.subr.mxu0 0.0
        %7580 = vmatpush1.msra.mxu0 0.0
        %7581 = vmatprep.subr.mxu0 0.0
        %7582 = vmatpush1.msra.mxu0 0.0
        %7583 = vmatprep.subr.mxu0 0.0
        %7584 = vmatpush1.msra.mxu0 0.0
        %7585 = vmatprep.subr.mxu0 0.0
        %7586 = vmatpush1.msra.mxu0 0.0
        %7587 = vmatprep.subr.mxu0 0.0
        %7588 = vmatpush1.msra.mxu0 0.0
        %7589 = vmatprep.subr.mxu0 0.0
        %7590 = vmatpush1.msra.mxu0 0.0
        %7591 = vmatprep.subr.mxu0 0.0
        %7592 = vmatpush1.msra.mxu0 0.0
        %7593 = vmatprep.subr.mxu0 0.0
        %7594 = vmatpush1.msra.mxu0 0.0
        %7595 = vmatprep.subr.mxu0 0.0
        %7596 = vmatpush1.msra.mxu0 %v7524
        %7597 = vmatprep.subr.mxu0 0.0
        %7598 = vmatpush2.msra.mxu0 0.0
        %7599 = vmatprep.subr.mxu0 0.0
        %7600 = vmatpush2.msra.mxu0 0.0
        %7601 = vmatprep.subr.mxu0 0.0
        %7602 = vmatpush2.msra.mxu0 0.0
        %7603 = vmatprep.subr.mxu0 0.0
        %7604 = vmatpush2.msra.mxu0 0.0
        %7605 = vmatprep.subr.mxu0 0.0
        %7606 = vmatpush2.msra.mxu0 0.0
        %7607 = vmatprep.subr.mxu0 0.0
        %7608 = vmatpush2.msra.mxu0 0.0
        %7609 = vmatprep.subr.mxu0 0.0
        %7610 = vmatpush2.msra.mxu0 0.0
        %7611 = vmatprep.subr.mxu0 0.0
        %7612 = vmatpush2.msra.mxu0 0.0
        %7613 = vmatprep.subr.mxu0 0.0
        %7614 = vmatpush2.msra.mxu0 0.0
        %7615 = vmatprep.subr.mxu0 0.0
        %7616 = vmatpush2.msra.mxu0 0.0
        %7617 = vmatprep.subr.mxu0 0.0
        %7618 = vmatpush2.msra.mxu0 0.0
        %7619 = vmatprep.subr.mxu0 0.0
        %7620 = vmatpush2.msra.mxu0 0.0
        %7621 = vmatprep.subr.mxu0 0.0
        %7622 = vmatpush2.msra.mxu0 0.0
        %7623 = vmatprep.subr.mxu0 0.0
        %7624 = vmatpush2.msra.mxu0 0.0
        %7625 = vmatprep.subr.mxu0 0.0
        %7626 = vmatpush2.msra.mxu0 0.0
        %7627 = vmatprep.subr.mxu0 0.0
        %7628 = vmatpush2.msra.mxu0 0.0
        %7629 = vmatprep.mubr.f32.mxu0 0.0
        %7630 = vmatmul.mubr.f32.gmra.mxu0 %v7554
        %v7631 = vpop.f32.mrf.mxu0
        %v7632 = vadd.f32 %v7536, %v7631
        %v7633 = vpop.f32.mrf.mxu0
        %7634 = vmatprep.mubr.f32.mxu0 0.0
        %7635 = vmatmul.mubr.f32.gmra.mxu0 %v7557
        %v7636 = vpop.f32.mrf.mxu0
        %v7637 = vadd.f32 %v7541, %v7636
        %v7638 = vpop.f32.mrf.mxu0
        %7639 = vmatprep.mubr.f32.mxu0 0.0
        %7640 = vmatmul.mubr.f32.gmra.mxu0 %v7560
        %v7641 = vpop.f32.mrf.mxu0
        %v7642 = vadd.f32 %v7546, %v7641
        %v7643 = vpop.f32.mrf.mxu0
        %7644 = vmatprep.mubr.f32.mxu0 0.0
        %7645 = vmatmul.mubr.f32.gmra.mxu0 %v7563
        %v7646 = vpop.f32.mrf.mxu0
        %v7647 = vadd.f32 %v7551, %v7646
        %v7648 = vpop.f32.mrf.mxu0
        %7649 = vdwg.mxu0
        %v7650 = vadd.f32 %v7632, %v6673
        %v7651 = vadd.f32 %v7637, %v6674
        %v7652 = vadd.f32 %v7642, %v6675
        %v7653 = vadd.f32 %v7647, %v6676
        %v7654 = vld [vmem:[#allocation12] sm:$0xff]
        %v7655 = vld [vmem:[#allocation12 + $0x8] sm:$0xff]
        %v7656 = vld [vmem:[#allocation12 + $0x10] sm:$0xff]
        %v7657 = vld [vmem:[#allocation12 + $0x18] sm:$0xff]
        %v7658 = vld [vmem:[#allocation12 + $0x20] sm:$0xff]
        %v7659 = vld [vmem:[#allocation12 + $0x28] sm:$0xff]
        %v7660 = vld [vmem:[#allocation12 + $0x30] sm:$0xff]
        %v7661 = vld [vmem:[#allocation12 + $0x38] sm:$0xff]
        %v7662 = vld [vmem:[#allocation12 + $0x40] sm:$0xff]
        %v7663 = vld [vmem:[%s16] sm:$0xff]
        %v7664 = vmax.f32 %v7650, 0.0
        %v7665 = vmax.f32 %v7651, 0.0
        %v7666 = vmax.f32 %v7652, 0.0
        %v7667 = vmax.f32 %v7653, 0.0
        %v7669 = vsel %vm5372, %v7654, 0
        %v7672 = vsel %vm5372, %v7655, 0
        %v7675 = vsel %vm5372, %v7656, 0
        %v7678 = vsel %vm5372, %v7657, 0
        %v7681 = vsel %vm5372, %v7658, 0
        %v7684 = vsel %vm5372, %v7659, 0
        %v7687 = vsel %vm5372, %v7660, 0
        %v7690 = vsel %vm5372, %v7661, 0
        %v7693 = vsel %vm5372, %v7662, 0
        %7695 = vmatprep.subr.mxu0 0.0
        %7696 = vmatpush1.msra.mxu0 0.0
        %7697 = vmatprep.subr.mxu0 0.0
        %7698 = vmatpush1.msra.mxu0 0.0
        %7699 = vmatprep.subr.mxu0 0.0
        %7700 = vmatpush1.msra.mxu0 0.0
        %7701 = vmatprep.subr.mxu0 0.0
        %7702 = vmatpush1.msra.mxu0 0.0
        %7703 = vmatprep.subr.mxu0 0.0
        %7704 = vmatpush1.msra.mxu0 0.0
        %7705 = vmatprep.subr.mxu0 0.0
        %7706 = vmatpush1.msra.mxu0 0.0
        %7707 = vmatprep.subr.mxu0 0.0
        %7708 = vmatpush1.msra.mxu0 0.0
        %7709 = vmatprep.subr.mxu0 0.0
        %7710 = vmatpush1.msra.mxu0 0.0
        %7711 = vmatprep.subr.mxu0 0.0
        %7712 = vmatpush1.msra.mxu0 0.0
        %7713 = vmatprep.subr.mxu0 0.0
        %7714 = vmatpush1.msra.mxu0 0.0
        %7715 = vmatprep.subr.mxu0 0.0
        %7716 = vmatpush1.msra.mxu0 0.0
        %7717 = vmatprep.subr.mxu0 0.0
        %7718 = vmatpush1.msra.mxu0 0.0
        %7719 = vmatprep.subr.mxu0 0.0
        %7720 = vmatpush1.msra.mxu0 %v7667
        %7721 = vmatprep.subr.mxu0 0.0
        %7722 = vmatpush1.msra.mxu0 %v7666
        %7723 = vmatprep.subr.mxu0 0.0
        %7724 = vmatpush1.msra.mxu0 %v7665
        %7725 = vmatprep.subr.mxu0 0.0
        %7726 = vmatpush1.msra.mxu0 %v7664
        %7727 = vmatprep.subr.mxu0 0.0
        %7728 = vmatpush2.msra.mxu0 0.0
        %7729 = vmatprep.subr.mxu0 0.0
        %7730 = vmatpush2.msra.mxu0 0.0
        %7731 = vmatprep.subr.mxu0 0.0
        %7732 = vmatpush2.msra.mxu0 0.0
        %7733 = vmatprep.subr.mxu0 0.0
        %7734 = vmatpush2.msra.mxu0 0.0
        %7735 = vmatprep.subr.mxu0 0.0
        %7736 = vmatpush2.msra.mxu0 0.0
        %7737 = vmatprep.subr.mxu0 0.0
        %7738 = vmatpush2.msra.mxu0 0.0
        %7739 = vmatprep.subr.mxu0 0.0
        %7740 = vmatpush2.msra.mxu0 0.0
        %7741 = vmatprep.subr.mxu0 0.0
        %7742 = vmatpush2.msra.mxu0 0.0
        %7743 = vmatprep.subr.mxu0 0.0
        %7744 = vmatpush2.msra.mxu0 0.0
        %7745 = vmatprep.subr.mxu0 0.0
        %7746 = vmatpush2.msra.mxu0 0.0
        %7747 = vmatprep.subr.mxu0 0.0
        %7748 = vmatpush2.msra.mxu0 0.0
        %7749 = vmatprep.subr.mxu0 0.0
        %7750 = vmatpush2.msra.mxu0 0.0
        %7751 = vmatprep.subr.mxu0 0.0
        %7752 = vmatpush2.msra.mxu0 0.0
        %7753 = vmatprep.subr.mxu0 0.0
        %7754 = vmatpush2.msra.mxu0 0.0
        %7755 = vmatprep.subr.mxu0 0.0
        %7756 = vmatpush2.msra.mxu0 0.0
        %7757 = vmatprep.subr.mxu0 0.0
        %7758 = vmatpush2.msra.mxu0 0.0
        %7759 = vmatprep.mubr.f32.mxu0 0.0
        %7760 = vmatmul.mubr.f32.gmra.mxu0 %v7669
        %v7761 = vpop.f32.mrf.mxu0
        %v7762 = vadd.f32 0.0, %v7761
        %v7763 = vpop.f32.mrf.mxu0
        %7764 = vmatprep.mubr.f32.mxu0 0.0
        %7765 = vmatmul.mubr.f32.gmra.mxu0 %v7672
        %v7766 = vpop.f32.mrf.mxu0
        %v7767 = vadd.f32 0.0, %v7766
        %v7768 = vpop.f32.mrf.mxu0
        %7769 = vmatprep.mubr.f32.mxu0 0.0
        %7770 = vmatmul.mubr.f32.gmra.mxu0 %v7675
        %v7771 = vpop.f32.mrf.mxu0
        %v7772 = vadd.f32 0.0, %v7771
        %v7773 = vpop.f32.mrf.mxu0
        %7774 = vmatprep.mubr.f32.mxu0 0.0
        %7775 = vmatmul.mubr.f32.gmra.mxu0 %v7678
        %v7776 = vpop.f32.mrf.mxu0
        %v7777 = vadd.f32 0.0, %v7776
        %v7778 = vpop.f32.mrf.mxu0
        %7779 = vmatprep.mubr.f32.mxu0 0.0
        %7780 = vmatmul.mubr.f32.gmra.mxu0 %v7681
        %v7781 = vpop.f32.mrf.mxu0
        %v7782 = vadd.f32 0.0, %v7781
        %v7783 = vpop.f32.mrf.mxu0
        %7784 = vmatprep.mubr.f32.mxu0 0.0
        %7785 = vmatmul.mubr.f32.gmra.mxu0 %v7684
        %v7786 = vpop.f32.mrf.mxu0
        %v7787 = vadd.f32 0.0, %v7786
        %v7788 = vpop.f32.mrf.mxu0
        %7789 = vmatprep.mubr.f32.mxu0 0.0
        %7790 = vmatmul.mubr.f32.gmra.mxu0 %v7687
        %v7791 = vpop.f32.mrf.mxu0
        %v7792 = vadd.f32 0.0, %v7791
        %v7793 = vpop.f32.mrf.mxu0
        %7794 = vmatprep.mubr.f32.mxu0 0.0
        %7795 = vmatmul.mubr.f32.gmra.mxu0 %v7690
        %v7796 = vpop.f32.mrf.mxu0
        %v7797 = vadd.f32 0.0, %v7796
        %v7798 = vpop.f32.mrf.mxu0
        %7799 = vmatprep.mubr.f32.mxu0 0.0
        %7800 = vmatmul.mubr.f32.gmra.mxu0 %v7693
        %v7801 = vpop.f32.mrf.mxu0
        %v7802 = vadd.f32 0.0, %v7801
        %v7803 = vpop.f32.mrf.mxu0
        %7804 = vdwg.mxu0
        %v7805 = vld [vmem:[#allocation13] sm:$0xff]
        %v7806 = vld [vmem:[#allocation13 + $0x8] sm:$0xff]
        %s7807 = scalar_lea.vmem [#allocation13], 16
        %v7808 = vld [vmem:[%s7807] sm:$0xff]
        %v7809 = vld [vmem:[%s7807 + $0x8] sm:$0xff]
        %v7811 = vsel %vm2974, %v7767, 0
        %7813 = vmatprep.subr.mxu0 0.0
        %7814 = vmatpush1.msra.mxu0 0.0
        %7815 = vmatprep.subr.mxu0 0.0
        %7816 = vmatpush1.msra.mxu0 0.0
        %7817 = vmatprep.subr.mxu0 0.0
        %7818 = vmatpush1.msra.mxu0 0.0
        %7819 = vmatprep.subr.mxu0 0.0
        %7820 = vmatpush1.msra.mxu0 0.0
        %7821 = vmatprep.subr.mxu0 0.0
        %7822 = vmatpush1.msra.mxu0 0.0
        %7823 = vmatprep.subr.mxu0 0.0
        %7824 = vmatpush1.msra.mxu0 0.0
        %7825 = vmatprep.subr.mxu0 0.0
        %7826 = vmatpush1.msra.mxu0 0.0
        %7827 = vmatprep.subr.mxu0 0.0
        %7828 = vmatpush1.msra.mxu0 0.0
        %7829 = vmatprep.subr.mxu0 0.0
        %7830 = vmatpush1.msra.mxu0 0.0
        %7831 = vmatprep.subr.mxu0 0.0
        %7832 = vmatpush1.msra.mxu0 0.0
        %7833 = vmatprep.subr.mxu0 0.0
        %7834 = vmatpush1.msra.mxu0 0.0
        %7835 = vmatprep.subr.mxu0 0.0
        %7836 = vmatpush1.msra.mxu0 0.0
        %7837 = vmatprep.subr.mxu0 0.0
        %7838 = vmatpush1.msra.mxu0 0.0
        %7839 = vmatprep.subr.mxu0 0.0
        %7840 = vmatpush1.msra.mxu0 0.0
        %7841 = vmatprep.subr.mxu0 0.0
        %7842 = vmatpush1.msra.mxu0 %v7809
        %7843 = vmatprep.subr.mxu0 0.0
        %7844 = vmatpush1.msra.mxu0 %v7808
        %7845 = vmatprep.subr.mxu0 0.0
        %7846 = vmatpush2.msra.mxu0 0.0
        %7847 = vmatprep.subr.mxu0 0.0
        %7848 = vmatpush2.msra.mxu0 0.0
        %7849 = vmatprep.subr.mxu0 0.0
        %7850 = vmatpush2.msra.mxu0 0.0
        %7851 = vmatprep.subr.mxu0 0.0
        %7852 = vmatpush2.msra.mxu0 0.0
        %7853 = vmatprep.subr.mxu0 0.0
        %7854 = vmatpush2.msra.mxu0 0.0
        %7855 = vmatprep.subr.mxu0 0.0
        %7856 = vmatpush2.msra.mxu0 0.0
        %7857 = vmatprep.subr.mxu0 0.0
        %7858 = vmatpush2.msra.mxu0 0.0
        %7859 = vmatprep.subr.mxu0 0.0
        %7860 = vmatpush2.msra.mxu0 0.0
        %7861 = vmatprep.subr.mxu0 0.0
        %7862 = vmatpush2.msra.mxu0 0.0
        %7863 = vmatprep.subr.mxu0 0.0
        %7864 = vmatpush2.msra.mxu0 0.0
        %7865 = vmatprep.subr.mxu0 0.0
        %7866 = vmatpush2.msra.mxu0 0.0
        %7867 = vmatprep.subr.mxu0 0.0
        %7868 = vmatpush2.msra.mxu0 0.0
        %7869 = vmatprep.subr.mxu0 0.0
        %7870 = vmatpush2.msra.mxu0 0.0
        %7871 = vmatprep.subr.mxu0 0.0
        %7872 = vmatpush2.msra.mxu0 0.0
        %7873 = vmatprep.subr.mxu0 0.0
        %7874 = vmatpush2.msra.mxu0 0.0
        %7875 = vmatprep.subr.mxu0 0.0
        %7876 = vmatpush2.msra.mxu0 0.0
        %7877 = vmatprep.mubr.f32.mxu0 0.0
        %7878 = vmatmul.mubr.f32.gmra.mxu0 %v7811
        %v7879 = vpop.f32.mrf.mxu0
        %v7880 = vadd.f32 0.0, %v7879
        %v7881 = vpop.f32.mrf.mxu0
        %7882 = vdwg.mxu0
        %v7884 = vsel %vm2974, %v7762, 0
        %7886 = vmatprep.subr.mxu0 0.0
        %7887 = vmatpush1.msra.mxu0 0.0
        %7888 = vmatprep.subr.mxu0 0.0
        %7889 = vmatpush1.msra.mxu0 0.0
        %7890 = vmatprep.subr.mxu0 0.0
        %7891 = vmatpush1.msra.mxu0 0.0
        %7892 = vmatprep.subr.mxu0 0.0
        %7893 = vmatpush1.msra.mxu0 0.0
        %7894 = vmatprep.subr.mxu0 0.0
        %7895 = vmatpush1.msra.mxu0 0.0
        %7896 = vmatprep.subr.mxu0 0.0
        %7897 = vmatpush1.msra.mxu0 0.0
        %7898 = vmatprep.subr.mxu0 0.0
        %7899 = vmatpush1.msra.mxu0 0.0
        %7900 = vmatprep.subr.mxu0 0.0
        %7901 = vmatpush1.msra.mxu0 0.0
        %7902 = vmatprep.subr.mxu0 0.0
        %7903 = vmatpush1.msra.mxu0 0.0
        %7904 = vmatprep.subr.mxu0 0.0
        %7905 = vmatpush1.msra.mxu0 0.0
        %7906 = vmatprep.subr.mxu0 0.0
        %7907 = vmatpush1.msra.mxu0 0.0
        %7908 = vmatprep.subr.mxu0 0.0
        %7909 = vmatpush1.msra.mxu0 0.0
        %7910 = vmatprep.subr.mxu0 0.0
        %7911 = vmatpush1.msra.mxu0 0.0
        %7912 = vmatprep.subr.mxu0 0.0
        %7913 = vmatpush1.msra.mxu0 0.0
        %7914 = vmatprep.subr.mxu0 0.0
        %7915 = vmatpush1.msra.mxu0 %v7806
        %7916 = vmatprep.subr.mxu0 0.0
        %7917 = vmatpush1.msra.mxu0 %v7805
        %7918 = vmatprep.subr.mxu0 0.0
        %7919 = vmatpush2.msra.mxu0 0.0
        %7920 = vmatprep.subr.mxu0 0.0
        %7921 = vmatpush2.msra.mxu0 0.0
        %7922 = vmatprep.subr.mxu0 0.0
        %7923 = vmatpush2.msra.mxu0 0.0
        %7924 = vmatprep.subr.mxu0 0.0
        %7925 = vmatpush2.msra.mxu0 0.0
        %7926 = vmatprep.subr.mxu0 0.0
        %7927 = vmatpush2.msra.mxu0 0.0
        %7928 = vmatprep.subr.mxu0 0.0
        %7929 = vmatpush2.msra.mxu0 0.0
        %7930 = vmatprep.subr.mxu0 0.0
        %7931 = vmatpush2.msra.mxu0 0.0
        %7932 = vmatprep.subr.mxu0 0.0
        %7933 = vmatpush2.msra.mxu0 0.0
        %7934 = vmatprep.subr.mxu0 0.0
        %7935 = vmatpush2.msra.mxu0 0.0
        %7936 = vmatprep.subr.mxu0 0.0
        %7937 = vmatpush2.msra.mxu0 0.0
        %7938 = vmatprep.subr.mxu0 0.0
        %7939 = vmatpush2.msra.mxu0 0.0
        %7940 = vmatprep.subr.mxu0 0.0
        %7941 = vmatpush2.msra.mxu0 0.0
        %7942 = vmatprep.subr.mxu0 0.0
        %7943 = vmatpush2.msra.mxu0 0.0
        %7944 = vmatprep.subr.mxu0 0.0
        %7945 = vmatpush2.msra.mxu0 0.0
        %7946 = vmatprep.subr.mxu0 0.0
        %7947 = vmatpush2.msra.mxu0 0.0
        %7948 = vmatprep.subr.mxu0 0.0
        %7949 = vmatpush2.msra.mxu0 0.0
        %7950 = vmatprep.mubr.f32.mxu0 0.0
        %7951 = vmatmul.mubr.f32.gmra.mxu0 %v7884
        %v7952 = vpop.f32.mrf.mxu0
        %v7953 = vadd.f32 %v7880, %v7952
        %v7954 = vpop.f32.mrf.mxu0
        %7955 = vdwg.mxu0
        %s7956 = scalar_lea.vmem [#allocation13], 32
        %v7957 = vld [vmem:[%s7956] sm:$0xff]
        %v7958 = vld [vmem:[%s7956 + $0x8] sm:$0xff]
        %v7960 = vsel %vm2974, %v7772, 0
        %7962 = vmatprep.subr.mxu0 0.0
        %7963 = vmatpush1.msra.mxu0 0.0
        %7964 = vmatprep.subr.mxu0 0.0
        %7965 = vmatpush1.msra.mxu0 0.0
        %7966 = vmatprep.subr.mxu0 0.0
        %7967 = vmatpush1.msra.mxu0 0.0
        %7968 = vmatprep.subr.mxu0 0.0
        %7969 = vmatpush1.msra.mxu0 0.0
        %7970 = vmatprep.subr.mxu0 0.0
        %7971 = vmatpush1.msra.mxu0 0.0
        %7972 = vmatprep.subr.mxu0 0.0
        %7973 = vmatpush1.msra.mxu0 0.0
        %7974 = vmatprep.subr.mxu0 0.0
        %7975 = vmatpush1.msra.mxu0 0.0
        %7976 = vmatprep.subr.mxu0 0.0
        %7977 = vmatpush1.msra.mxu0 0.0
        %7978 = vmatprep.subr.mxu0 0.0
        %7979 = vmatpush1.msra.mxu0 0.0
        %7980 = vmatprep.subr.mxu0 0.0
        %7981 = vmatpush1.msra.mxu0 0.0
        %7982 = vmatprep.subr.mxu0 0.0
        %7983 = vmatpush1.msra.mxu0 0.0
        %7984 = vmatprep.subr.mxu0 0.0
        %7985 = vmatpush1.msra.mxu0 0.0
        %7986 = vmatprep.subr.mxu0 0.0
        %7987 = vmatpush1.msra.mxu0 0.0
        %7988 = vmatprep.subr.mxu0 0.0
        %7989 = vmatpush1.msra.mxu0 0.0
        %7990 = vmatprep.subr.mxu0 0.0
        %7991 = vmatpush1.msra.mxu0 %v7958
        %7992 = vmatprep.subr.mxu0 0.0
        %7993 = vmatpush1.msra.mxu0 %v7957
        %7994 = vmatprep.subr.mxu0 0.0
        %7995 = vmatpush2.msra.mxu0 0.0
        %7996 = vmatprep.subr.mxu0 0.0
        %7997 = vmatpush2.msra.mxu0 0.0
        %7998 = vmatprep.subr.mxu0 0.0
        %7999 = vmatpush2.msra.mxu0 0.0
        %8000 = vmatprep.subr.mxu0 0.0
        %8001 = vmatpush2.msra.mxu0 0.0
        %8002 = vmatprep.subr.mxu0 0.0
        %8003 = vmatpush2.msra.mxu0 0.0
        %8004 = vmatprep.subr.mxu0 0.0
        %8005 = vmatpush2.msra.mxu0 0.0
        %8006 = vmatprep.subr.mxu0 0.0
        %8007 = vmatpush2.msra.mxu0 0.0
        %8008 = vmatprep.subr.mxu0 0.0
        %8009 = vmatpush2.msra.mxu0 0.0
        %8010 = vmatprep.subr.mxu0 0.0
        %8011 = vmatpush2.msra.mxu0 0.0
        %8012 = vmatprep.subr.mxu0 0.0
        %8013 = vmatpush2.msra.mxu0 0.0
        %8014 = vmatprep.subr.mxu0 0.0
        %8015 = vmatpush2.msra.mxu0 0.0
        %8016 = vmatprep.subr.mxu0 0.0
        %8017 = vmatpush2.msra.mxu0 0.0
        %8018 = vmatprep.subr.mxu0 0.0
        %8019 = vmatpush2.msra.mxu0 0.0
        %8020 = vmatprep.subr.mxu0 0.0
        %8021 = vmatpush2.msra.mxu0 0.0
        %8022 = vmatprep.subr.mxu0 0.0
        %8023 = vmatpush2.msra.mxu0 0.0
        %8024 = vmatprep.subr.mxu0 0.0
        %8025 = vmatpush2.msra.mxu0 0.0
        %8026 = vmatprep.mubr.f32.mxu0 0.0
        %8027 = vmatmul.mubr.f32.gmra.mxu0 %v7960
        %v8028 = vpop.f32.mrf.mxu0
        %v8029 = vadd.f32 0.0, %v8028
        %v8030 = vpop.f32.mrf.mxu0
        %8031 = vdwg.mxu0
        %v8032 = vadd.f32 %v7953, %v8029
        %s8033 = scalar_lea.vmem [#allocation13], 48
        %v8034 = vld [vmem:[%s8033] sm:$0xff]
        %v8035 = vld [vmem:[%s8033 + $0x8] sm:$0xff]
        %v8037 = vsel %vm2974, %v7777, 0
        %8039 = vmatprep.subr.mxu0 0.0
        %8040 = vmatpush1.msra.mxu0 0.0
        %8041 = vmatprep.subr.mxu0 0.0
        %8042 = vmatpush1.msra.mxu0 0.0
        %8043 = vmatprep.subr.mxu0 0.0
        %8044 = vmatpush1.msra.mxu0 0.0
        %8045 = vmatprep.subr.mxu0 0.0
        %8046 = vmatpush1.msra.mxu0 0.0
        %8047 = vmatprep.subr.mxu0 0.0
        %8048 = vmatpush1.msra.mxu0 0.0
        %8049 = vmatprep.subr.mxu0 0.0
        %8050 = vmatpush1.msra.mxu0 0.0
        %8051 = vmatprep.subr.mxu0 0.0
        %8052 = vmatpush1.msra.mxu0 0.0
        %8053 = vmatprep.subr.mxu0 0.0
        %8054 = vmatpush1.msra.mxu0 0.0
        %8055 = vmatprep.subr.mxu0 0.0
        %8056 = vmatpush1.msra.mxu0 0.0
        %8057 = vmatprep.subr.mxu0 0.0
        %8058 = vmatpush1.msra.mxu0 0.0
        %8059 = vmatprep.subr.mxu0 0.0
        %8060 = vmatpush1.msra.mxu0 0.0
        %8061 = vmatprep.subr.mxu0 0.0
        %8062 = vmatpush1.msra.mxu0 0.0
        %8063 = vmatprep.subr.mxu0 0.0
        %8064 = vmatpush1.msra.mxu0 0.0
        %8065 = vmatprep.subr.mxu0 0.0
        %8066 = vmatpush1.msra.mxu0 0.0
        %8067 = vmatprep.subr.mxu0 0.0
        %8068 = vmatpush1.msra.mxu0 %v8035
        %8069 = vmatprep.subr.mxu0 0.0
        %8070 = vmatpush1.msra.mxu0 %v8034
        %8071 = vmatprep.subr.mxu0 0.0
        %8072 = vmatpush2.msra.mxu0 0.0
        %8073 = vmatprep.subr.mxu0 0.0
        %8074 = vmatpush2.msra.mxu0 0.0
        %8075 = vmatprep.subr.mxu0 0.0
        %8076 = vmatpush2.msra.mxu0 0.0
        %8077 = vmatprep.subr.mxu0 0.0
        %8078 = vmatpush2.msra.mxu0 0.0
        %8079 = vmatprep.subr.mxu0 0.0
        %8080 = vmatpush2.msra.mxu0 0.0
        %8081 = vmatprep.subr.mxu0 0.0
        %8082 = vmatpush2.msra.mxu0 0.0
        %8083 = vmatprep.subr.mxu0 0.0
        %8084 = vmatpush2.msra.mxu0 0.0
        %8085 = vmatprep.subr.mxu0 0.0
        %8086 = vmatpush2.msra.mxu0 0.0
        %8087 = vmatprep.subr.mxu0 0.0
        %8088 = vmatpush2.msra.mxu0 0.0
        %8089 = vmatprep.subr.mxu0 0.0
        %8090 = vmatpush2.msra.mxu0 0.0
        %8091 = vmatprep.subr.mxu0 0.0
        %8092 = vmatpush2.msra.mxu0 0.0
        %8093 = vmatprep.subr.mxu0 0.0
        %8094 = vmatpush2.msra.mxu0 0.0
        %8095 = vmatprep.subr.mxu0 0.0
        %8096 = vmatpush2.msra.mxu0 0.0
        %8097 = vmatprep.subr.mxu0 0.0
        %8098 = vmatpush2.msra.mxu0 0.0
        %8099 = vmatprep.subr.mxu0 0.0
        %8100 = vmatpush2.msra.mxu0 0.0
        %8101 = vmatprep.subr.mxu0 0.0
        %8102 = vmatpush2.msra.mxu0 0.0
        %8103 = vmatprep.mubr.f32.mxu0 0.0
        %8104 = vmatmul.mubr.f32.gmra.mxu0 %v8037
        %v8105 = vpop.f32.mrf.mxu0
        %v8106 = vadd.f32 0.0, %v8105
        %v8107 = vpop.f32.mrf.mxu0
        %8108 = vdwg.mxu0
        %v8109 = vadd.f32 %v8032, %v8106
        %s8110 = scalar_lea.vmem [#allocation13], 64
        %v8111 = vld [vmem:[%s8110] sm:$0xff]
        %v8112 = vld [vmem:[%s8110 + $0x8] sm:$0xff]
        %v8114 = vsel %vm2974, %v7782, 0
        %8116 = vmatprep.subr.mxu0 0.0
        %8117 = vmatpush1.msra.mxu0 0.0
        %8118 = vmatprep.subr.mxu0 0.0
        %8119 = vmatpush1.msra.mxu0 0.0
        %8120 = vmatprep.subr.mxu0 0.0
        %8121 = vmatpush1.msra.mxu0 0.0
        %8122 = vmatprep.subr.mxu0 0.0
        %8123 = vmatpush1.msra.mxu0 0.0
        %8124 = vmatprep.subr.mxu0 0.0
        %8125 = vmatpush1.msra.mxu0 0.0
        %8126 = vmatprep.subr.mxu0 0.0
        %8127 = vmatpush1.msra.mxu0 0.0
        %8128 = vmatprep.subr.mxu0 0.0
        %8129 = vmatpush1.msra.mxu0 0.0
        %8130 = vmatprep.subr.mxu0 0.0
        %8131 = vmatpush1.msra.mxu0 0.0
        %8132 = vmatprep.subr.mxu0 0.0
        %8133 = vmatpush1.msra.mxu0 0.0
        %8134 = vmatprep.subr.mxu0 0.0
        %8135 = vmatpush1.msra.mxu0 0.0
        %8136 = vmatprep.subr.mxu0 0.0
        %8137 = vmatpush1.msra.mxu0 0.0
        %8138 = vmatprep.subr.mxu0 0.0
        %8139 = vmatpush1.msra.mxu0 0.0
        %8140 = vmatprep.subr.mxu0 0.0
        %8141 = vmatpush1.msra.mxu0 0.0
        %8142 = vmatprep.subr.mxu0 0.0
        %8143 = vmatpush1.msra.mxu0 0.0
        %8144 = vmatprep.subr.mxu0 0.0
        %8145 = vmatpush1.msra.mxu0 %v8112
        %8146 = vmatprep.subr.mxu0 0.0
        %8147 = vmatpush1.msra.mxu0 %v8111
        %8148 = vmatprep.subr.mxu0 0.0
        %8149 = vmatpush2.msra.mxu0 0.0
        %8150 = vmatprep.subr.mxu0 0.0
        %8151 = vmatpush2.msra.mxu0 0.0
        %8152 = vmatprep.subr.mxu0 0.0
        %8153 = vmatpush2.msra.mxu0 0.0
        %8154 = vmatprep.subr.mxu0 0.0
        %8155 = vmatpush2.msra.mxu0 0.0
        %8156 = vmatprep.subr.mxu0 0.0
        %8157 = vmatpush2.msra.mxu0 0.0
        %8158 = vmatprep.subr.mxu0 0.0
        %8159 = vmatpush2.msra.mxu0 0.0
        %8160 = vmatprep.subr.mxu0 0.0
        %8161 = vmatpush2.msra.mxu0 0.0
        %8162 = vmatprep.subr.mxu0 0.0
        %8163 = vmatpush2.msra.mxu0 0.0
        %8164 = vmatprep.subr.mxu0 0.0
        %8165 = vmatpush2.msra.mxu0 0.0
        %8166 = vmatprep.subr.mxu0 0.0
        %8167 = vmatpush2.msra.mxu0 0.0
        %8168 = vmatprep.subr.mxu0 0.0
        %8169 = vmatpush2.msra.mxu0 0.0
        %8170 = vmatprep.subr.mxu0 0.0
        %8171 = vmatpush2.msra.mxu0 0.0
        %8172 = vmatprep.subr.mxu0 0.0
        %8173 = vmatpush2.msra.mxu0 0.0
        %8174 = vmatprep.subr.mxu0 0.0
        %8175 = vmatpush2.msra.mxu0 0.0
        %8176 = vmatprep.subr.mxu0 0.0
        %8177 = vmatpush2.msra.mxu0 0.0
        %8178 = vmatprep.subr.mxu0 0.0
        %8179 = vmatpush2.msra.mxu0 0.0
        %8180 = vmatprep.mubr.f32.mxu0 0.0
        %8181 = vmatmul.mubr.f32.gmra.mxu0 %v8114
        %v8182 = vpop.f32.mrf.mxu0
        %v8183 = vadd.f32 0.0, %v8182
        %v8184 = vpop.f32.mrf.mxu0
        %8185 = vdwg.mxu0
        %v8186 = vadd.f32 %v8109, %v8183
        %s8187 = scalar_lea.vmem [#allocation13], 80
        %v8188 = vld [vmem:[%s8187] sm:$0xff]
        %v8189 = vld [vmem:[%s8187 + $0x8] sm:$0xff]
        %v8191 = vsel %vm2974, %v7787, 0
        %8193 = vmatprep.subr.mxu0 0.0
        %8194 = vmatpush1.msra.mxu0 0.0
        %8195 = vmatprep.subr.mxu0 0.0
        %8196 = vmatpush1.msra.mxu0 0.0
        %8197 = vmatprep.subr.mxu0 0.0
        %8198 = vmatpush1.msra.mxu0 0.0
        %8199 = vmatprep.subr.mxu0 0.0
        %8200 = vmatpush1.msra.mxu0 0.0
        %8201 = vmatprep.subr.mxu0 0.0
        %8202 = vmatpush1.msra.mxu0 0.0
        %8203 = vmatprep.subr.mxu0 0.0
        %8204 = vmatpush1.msra.mxu0 0.0
        %8205 = vmatprep.subr.mxu0 0.0
        %8206 = vmatpush1.msra.mxu0 0.0
        %8207 = vmatprep.subr.mxu0 0.0
        %8208 = vmatpush1.msra.mxu0 0.0
        %8209 = vmatprep.subr.mxu0 0.0
        %8210 = vmatpush1.msra.mxu0 0.0
        %8211 = vmatprep.subr.mxu0 0.0
        %8212 = vmatpush1.msra.mxu0 0.0
        %8213 = vmatprep.subr.mxu0 0.0
        %8214 = vmatpush1.msra.mxu0 0.0
        %8215 = vmatprep.subr.mxu0 0.0
        %8216 = vmatpush1.msra.mxu0 0.0
        %8217 = vmatprep.subr.mxu0 0.0
        %8218 = vmatpush1.msra.mxu0 0.0
        %8219 = vmatprep.subr.mxu0 0.0
        %8220 = vmatpush1.msra.mxu0 0.0
        %8221 = vmatprep.subr.mxu0 0.0
        %8222 = vmatpush1.msra.mxu0 %v8189
        %8223 = vmatprep.subr.mxu0 0.0
        %8224 = vmatpush1.msra.mxu0 %v8188
        %8225 = vmatprep.subr.mxu0 0.0
        %8226 = vmatpush2.msra.mxu0 0.0
        %8227 = vmatprep.subr.mxu0 0.0
        %8228 = vmatpush2.msra.mxu0 0.0
        %8229 = vmatprep.subr.mxu0 0.0
        %8230 = vmatpush2.msra.mxu0 0.0
        %8231 = vmatprep.subr.mxu0 0.0
        %8232 = vmatpush2.msra.mxu0 0.0
        %8233 = vmatprep.subr.mxu0 0.0
        %8234 = vmatpush2.msra.mxu0 0.0
        %8235 = vmatprep.subr.mxu0 0.0
        %8236 = vmatpush2.msra.mxu0 0.0
        %8237 = vmatprep.subr.mxu0 0.0
        %8238 = vmatpush2.msra.mxu0 0.0
        %8239 = vmatprep.subr.mxu0 0.0
        %8240 = vmatpush2.msra.mxu0 0.0
        %8241 = vmatprep.subr.mxu0 0.0
        %8242 = vmatpush2.msra.mxu0 0.0
        %8243 = vmatprep.subr.mxu0 0.0
        %8244 = vmatpush2.msra.mxu0 0.0
        %8245 = vmatprep.subr.mxu0 0.0
        %8246 = vmatpush2.msra.mxu0 0.0
        %8247 = vmatprep.subr.mxu0 0.0
        %8248 = vmatpush2.msra.mxu0 0.0
        %8249 = vmatprep.subr.mxu0 0.0
        %8250 = vmatpush2.msra.mxu0 0.0
        %8251 = vmatprep.subr.mxu0 0.0
        %8252 = vmatpush2.msra.mxu0 0.0
        %8253 = vmatprep.subr.mxu0 0.0
        %8254 = vmatpush2.msra.mxu0 0.0
        %8255 = vmatprep.subr.mxu0 0.0
        %8256 = vmatpush2.msra.mxu0 0.0
        %8257 = vmatprep.mubr.f32.mxu0 0.0
        %8258 = vmatmul.mubr.f32.gmra.mxu0 %v8191
        %v8259 = vpop.f32.mrf.mxu0
        %v8260 = vadd.f32 0.0, %v8259
        %v8261 = vpop.f32.mrf.mxu0
        %8262 = vdwg.mxu0
        %v8263 = vadd.f32 %v8186, %v8260
        %s8264 = scalar_lea.vmem [#allocation13], 96
        %v8265 = vld [vmem:[%s8264] sm:$0xff]
        %v8266 = vld [vmem:[%s8264 + $0x8] sm:$0xff]
        %v8268 = vsel %vm2974, %v7792, 0
        %8270 = vmatprep.subr.mxu0 0.0
        %8271 = vmatpush1.msra.mxu0 0.0
        %8272 = vmatprep.subr.mxu0 0.0
        %8273 = vmatpush1.msra.mxu0 0.0
        %8274 = vmatprep.subr.mxu0 0.0
        %8275 = vmatpush1.msra.mxu0 0.0
        %8276 = vmatprep.subr.mxu0 0.0
        %8277 = vmatpush1.msra.mxu0 0.0
        %8278 = vmatprep.subr.mxu0 0.0
        %8279 = vmatpush1.msra.mxu0 0.0
        %8280 = vmatprep.subr.mxu0 0.0
        %8281 = vmatpush1.msra.mxu0 0.0
        %8282 = vmatprep.subr.mxu0 0.0
        %8283 = vmatpush1.msra.mxu0 0.0
        %8284 = vmatprep.subr.mxu0 0.0
        %8285 = vmatpush1.msra.mxu0 0.0
        %8286 = vmatprep.subr.mxu0 0.0
        %8287 = vmatpush1.msra.mxu0 0.0
        %8288 = vmatprep.subr.mxu0 0.0
        %8289 = vmatpush1.msra.mxu0 0.0
        %8290 = vmatprep.subr.mxu0 0.0
        %8291 = vmatpush1.msra.mxu0 0.0
        %8292 = vmatprep.subr.mxu0 0.0
        %8293 = vmatpush1.msra.mxu0 0.0
        %8294 = vmatprep.subr.mxu0 0.0
        %8295 = vmatpush1.msra.mxu0 0.0
        %8296 = vmatprep.subr.mxu0 0.0
        %8297 = vmatpush1.msra.mxu0 0.0
        %8298 = vmatprep.subr.mxu0 0.0
        %8299 = vmatpush1.msra.mxu0 %v8266
        %8300 = vmatprep.subr.mxu0 0.0
        %8301 = vmatpush1.msra.mxu0 %v8265
        %8302 = vmatprep.subr.mxu0 0.0
        %8303 = vmatpush2.msra.mxu0 0.0
        %8304 = vmatprep.subr.mxu0 0.0
        %8305 = vmatpush2.msra.mxu0 0.0
        %8306 = vmatprep.subr.mxu0 0.0
        %8307 = vmatpush2.msra.mxu0 0.0
        %8308 = vmatprep.subr.mxu0 0.0
        %8309 = vmatpush2.msra.mxu0 0.0
        %8310 = vmatprep.subr.mxu0 0.0
        %8311 = vmatpush2.msra.mxu0 0.0
        %8312 = vmatprep.subr.mxu0 0.0
        %8313 = vmatpush2.msra.mxu0 0.0
        %8314 = vmatprep.subr.mxu0 0.0
        %8315 = vmatpush2.msra.mxu0 0.0
        %8316 = vmatprep.subr.mxu0 0.0
        %8317 = vmatpush2.msra.mxu0 0.0
        %8318 = vmatprep.subr.mxu0 0.0
        %8319 = vmatpush2.msra.mxu0 0.0
        %8320 = vmatprep.subr.mxu0 0.0
        %8321 = vmatpush2.msra.mxu0 0.0
        %8322 = vmatprep.subr.mxu0 0.0
        %8323 = vmatpush2.msra.mxu0 0.0
        %8324 = vmatprep.subr.mxu0 0.0
        %8325 = vmatpush2.msra.mxu0 0.0
        %8326 = vmatprep.subr.mxu0 0.0
        %8327 = vmatpush2.msra.mxu0 0.0
        %8328 = vmatprep.subr.mxu0 0.0
        %8329 = vmatpush2.msra.mxu0 0.0
        %8330 = vmatprep.subr.mxu0 0.0
        %8331 = vmatpush2.msra.mxu0 0.0
        %8332 = vmatprep.subr.mxu0 0.0
        %8333 = vmatpush2.msra.mxu0 0.0
        %8334 = vmatprep.mubr.f32.mxu0 0.0
        %8335 = vmatmul.mubr.f32.gmra.mxu0 %v8268
        %v8336 = vpop.f32.mrf.mxu0
        %v8337 = vadd.f32 0.0, %v8336
        %v8338 = vpop.f32.mrf.mxu0
        %8339 = vdwg.mxu0
        %v8340 = vadd.f32 %v8263, %v8337
        %s8341 = scalar_lea.vmem [#allocation13], 112
        %v8342 = vld [vmem:[%s8341] sm:$0xff]
        %v8343 = vld [vmem:[%s8341 + $0x8] sm:$0xff]
        %v8345 = vsel %vm2974, %v7797, 0
        %8347 = vmatprep.subr.mxu0 0.0
        %8348 = vmatpush1.msra.mxu0 0.0
        %8349 = vmatprep.subr.mxu0 0.0
        %8350 = vmatpush1.msra.mxu0 0.0
        %8351 = vmatprep.subr.mxu0 0.0
        %8352 = vmatpush1.msra.mxu0 0.0
        %8353 = vmatprep.subr.mxu0 0.0
        %8354 = vmatpush1.msra.mxu0 0.0
        %8355 = vmatprep.subr.mxu0 0.0
        %8356 = vmatpush1.msra.mxu0 0.0
        %8357 = vmatprep.subr.mxu0 0.0
        %8358 = vmatpush1.msra.mxu0 0.0
        %8359 = vmatprep.subr.mxu0 0.0
        %8360 = vmatpush1.msra.mxu0 0.0
        %8361 = vmatprep.subr.mxu0 0.0
        %8362 = vmatpush1.msra.mxu0 0.0
        %8363 = vmatprep.subr.mxu0 0.0
        %8364 = vmatpush1.msra.mxu0 0.0
        %8365 = vmatprep.subr.mxu0 0.0
        %8366 = vmatpush1.msra.mxu0 0.0
        %8367 = vmatprep.subr.mxu0 0.0
        %8368 = vmatpush1.msra.mxu0 0.0
        %8369 = vmatprep.subr.mxu0 0.0
        %8370 = vmatpush1.msra.mxu0 0.0
        %8371 = vmatprep.subr.mxu0 0.0
        %8372 = vmatpush1.msra.mxu0 0.0
        %8373 = vmatprep.subr.mxu0 0.0
        %8374 = vmatpush1.msra.mxu0 0.0
        %8375 = vmatprep.subr.mxu0 0.0
        %8376 = vmatpush1.msra.mxu0 %v8343
        %8377 = vmatprep.subr.mxu0 0.0
        %8378 = vmatpush1.msra.mxu0 %v8342
        %8379 = vmatprep.subr.mxu0 0.0
        %8380 = vmatpush2.msra.mxu0 0.0
        %8381 = vmatprep.subr.mxu0 0.0
        %8382 = vmatpush2.msra.mxu0 0.0
        %8383 = vmatprep.subr.mxu0 0.0
        %8384 = vmatpush2.msra.mxu0 0.0
        %8385 = vmatprep.subr.mxu0 0.0
        %8386 = vmatpush2.msra.mxu0 0.0
        %8387 = vmatprep.subr.mxu0 0.0
        %8388 = vmatpush2.msra.mxu0 0.0
        %8389 = vmatprep.subr.mxu0 0.0
        %8390 = vmatpush2.msra.mxu0 0.0
        %8391 = vmatprep.subr.mxu0 0.0
        %8392 = vmatpush2.msra.mxu0 0.0
        %8393 = vmatprep.subr.mxu0 0.0
        %8394 = vmatpush2.msra.mxu0 0.0
        %8395 = vmatprep.subr.mxu0 0.0
        %8396 = vmatpush2.msra.mxu0 0.0
        %8397 = vmatprep.subr.mxu0 0.0
        %8398 = vmatpush2.msra.mxu0 0.0
        %8399 = vmatprep.subr.mxu0 0.0
        %8400 = vmatpush2.msra.mxu0 0.0
        %8401 = vmatprep.subr.mxu0 0.0
        %8402 = vmatpush2.msra.mxu0 0.0
        %8403 = vmatprep.subr.mxu0 0.0
        %8404 = vmatpush2.msra.mxu0 0.0
        %8405 = vmatprep.subr.mxu0 0.0
        %8406 = vmatpush2.msra.mxu0 0.0
        %8407 = vmatprep.subr.mxu0 0.0
        %8408 = vmatpush2.msra.mxu0 0.0
        %8409 = vmatprep.subr.mxu0 0.0
        %8410 = vmatpush2.msra.mxu0 0.0
        %8411 = vmatprep.mubr.f32.mxu0 0.0
        %8412 = vmatmul.mubr.f32.gmra.mxu0 %v8345
        %v8413 = vpop.f32.mrf.mxu0
        %v8414 = vadd.f32 0.0, %v8413
        %v8415 = vpop.f32.mrf.mxu0
        %8416 = vdwg.mxu0
        %v8417 = vadd.f32 %v8340, %v8414
        %s8418 = scalar_lea.vmem [#allocation13], 128
        %v8419 = vld [vmem:[%s8418] sm:$0xff]
        %v8420 = vld [vmem:[%s8418 + $0x8] sm:$0xff]
        %v8422 = vsel %vm2974, %v7802, 0
        %8424 = vmatprep.subr.mxu0 0.0
        %8425 = vmatpush1.msra.mxu0 0.0
        %8426 = vmatprep.subr.mxu0 0.0
        %8427 = vmatpush1.msra.mxu0 0.0
        %8428 = vmatprep.subr.mxu0 0.0
        %8429 = vmatpush1.msra.mxu0 0.0
        %8430 = vmatprep.subr.mxu0 0.0
        %8431 = vmatpush1.msra.mxu0 0.0
        %8432 = vmatprep.subr.mxu0 0.0
        %8433 = vmatpush1.msra.mxu0 0.0
        %8434 = vmatprep.subr.mxu0 0.0
        %8435 = vmatpush1.msra.mxu0 0.0
        %8436 = vmatprep.subr.mxu0 0.0
        %8437 = vmatpush1.msra.mxu0 0.0
        %8438 = vmatprep.subr.mxu0 0.0
        %8439 = vmatpush1.msra.mxu0 0.0
        %8440 = vmatprep.subr.mxu0 0.0
        %8441 = vmatpush1.msra.mxu0 0.0
        %8442 = vmatprep.subr.mxu0 0.0
        %8443 = vmatpush1.msra.mxu0 0.0
        %8444 = vmatprep.subr.mxu0 0.0
        %8445 = vmatpush1.msra.mxu0 0.0
        %8446 = vmatprep.subr.mxu0 0.0
        %8447 = vmatpush1.msra.mxu0 0.0
        %8448 = vmatprep.subr.mxu0 0.0
        %8449 = vmatpush1.msra.mxu0 0.0
        %8450 = vmatprep.subr.mxu0 0.0
        %8451 = vmatpush1.msra.mxu0 0.0
        %8452 = vmatprep.subr.mxu0 0.0
        %8453 = vmatpush1.msra.mxu0 %v8420
        %8454 = vmatprep.subr.mxu0 0.0
        %8455 = vmatpush1.msra.mxu0 %v8419
        %8456 = vmatprep.subr.mxu0 0.0
        %8457 = vmatpush2.msra.mxu0 0.0
        %8458 = vmatprep.subr.mxu0 0.0
        %8459 = vmatpush2.msra.mxu0 0.0
        %8460 = vmatprep.subr.mxu0 0.0
        %8461 = vmatpush2.msra.mxu0 0.0
        %8462 = vmatprep.subr.mxu0 0.0
        %8463 = vmatpush2.msra.mxu0 0.0
        %8464 = vmatprep.subr.mxu0 0.0
        %8465 = vmatpush2.msra.mxu0 0.0
        %8466 = vmatprep.subr.mxu0 0.0
        %8467 = vmatpush2.msra.mxu0 0.0
        %8468 = vmatprep.subr.mxu0 0.0
        %8469 = vmatpush2.msra.mxu0 0.0
        %8470 = vmatprep.subr.mxu0 0.0
        %8471 = vmatpush2.msra.mxu0 0.0
        %8472 = vmatprep.subr.mxu0 0.0
        %8473 = vmatpush2.msra.mxu0 0.0
        %8474 = vmatprep.subr.mxu0 0.0
        %8475 = vmatpush2.msra.mxu0 0.0
        %8476 = vmatprep.subr.mxu0 0.0
        %8477 = vmatpush2.msra.mxu0 0.0
        %8478 = vmatprep.subr.mxu0 0.0
        %8479 = vmatpush2.msra.mxu0 0.0
        %8480 = vmatprep.subr.mxu0 0.0
        %8481 = vmatpush2.msra.mxu0 0.0
        %8482 = vmatprep.subr.mxu0 0.0
        %8483 = vmatpush2.msra.mxu0 0.0
        %8484 = vmatprep.subr.mxu0 0.0
        %8485 = vmatpush2.msra.mxu0 0.0
        %8486 = vmatprep.subr.mxu0 0.0
        %8487 = vmatpush2.msra.mxu0 0.0
        %8488 = vmatprep.mubr.f32.mxu0 0.0
        %8489 = vmatmul.mubr.f32.gmra.mxu0 %v8422
        %v8490 = vpop.f32.mrf.mxu0
        %v8491 = vadd.f32 0.0, %v8490
        %v8492 = vpop.f32.mrf.mxu0
        %8493 = vdwg.mxu0
        %v8494 = vadd.f32 %v8417, %v8491
        %8496 = vset.pattern.permute.xlu0 0
        %8497 = vperm.xlu0 %8496, %v7663
        %v8498 = vpop.permute.xlu0 %8497
        %v8500 = vadd.f32 %v8494, %v8498
        %v8501 = vmax.f32 %v8500, 0.0
        %v8502 = vld [vmem:[%s18] sm:$0xff]
        %v8503 = vld [vmem:[%s18 + $0x8] sm:$0xff]
        %v8504 = vld [vmem:[%s18 + $0x10] sm:$0xff]
        %v8505 = vld [vmem:[%s18 + $0x18] sm:$0xff]
        %v8506 = vld [vmem:[%s19] sm:$0xff]
        %v8507 = vld [vmem:[%s19 + $0x8] sm:$0xff]
        %v8508 = vld [vmem:[%s19 + $0x10] sm:$0xff]
        %v8509 = vld [vmem:[%s19 + $0x18] sm:$0xff]
        %8511 = vset.pattern.permute.xlu0 0
        %8512 = vperm.xlu0 %8511, %v8506
        %v8513 = vpop.permute.xlu0 %8512
        %8516 = vset.pattern.permute.xlu0 0
        %8517 = vperm.xlu0 %8516, %v8507
        %v8518 = vpop.permute.xlu0 %8517
        %8521 = vset.pattern.permute.xlu0 0
        %8522 = vperm.xlu0 %8521, %v8508
        %v8523 = vpop.permute.xlu0 %8522
        %8526 = vset.pattern.permute.xlu0 0
        %8527 = vperm.xlu0 %8526, %v8509
        %v8528 = vpop.permute.xlu0 %8527
        %v8531 = vsel %vm783, %v8502, 0
        %v8534 = vsel %vm783, %v8503, 0
        %v8537 = vsel %vm783, %v8504, 0
        %v8540 = vsel %vm783, %v8505, 0
        %8542 = vmatprep.subr.mxu0 0.0
        %8543 = vmatpush1.msra.mxu0 0.0
        %8544 = vmatprep.subr.mxu0 0.0
        %8545 = vmatpush1.msra.mxu0 0.0
        %8546 = vmatprep.subr.mxu0 0.0
        %8547 = vmatpush1.msra.mxu0 0.0
        %8548 = vmatprep.subr.mxu0 0.0
        %8549 = vmatpush1.msra.mxu0 0.0
        %8550 = vmatprep.subr.mxu0 0.0
        %8551 = vmatpush1.msra.mxu0 0.0
        %8552 = vmatprep.subr.mxu0 0.0
        %8553 = vmatpush1.msra.mxu0 0.0
        %8554 = vmatprep.subr.mxu0 0.0
        %8555 = vmatpush1.msra.mxu0 0.0
        %8556 = vmatprep.subr.mxu0 0.0
        %8557 = vmatpush1.msra.mxu0 0.0
        %8558 = vmatprep.subr.mxu0 0.0
        %8559 = vmatpush1.msra.mxu0 0.0
        %8560 = vmatprep.subr.mxu0 0.0
        %8561 = vmatpush1.msra.mxu0 0.0
        %8562 = vmatprep.subr.mxu0 0.0
        %8563 = vmatpush1.msra.mxu0 0.0
        %8564 = vmatprep.subr.mxu0 0.0
        %8565 = vmatpush1.msra.mxu0 0.0
        %8566 = vmatprep.subr.mxu0 0.0
        %8567 = vmatpush1.msra.mxu0 0.0
        %8568 = vmatprep.subr.mxu0 0.0
        %8569 = vmatpush1.msra.mxu0 0.0
        %8570 = vmatprep.subr.mxu0 0.0
        %8571 = vmatpush1.msra.mxu0 0.0
        %8572 = vmatprep.subr.mxu0 0.0
        %8573 = vmatpush1.msra.mxu0 %v8501
        %8574 = vmatprep.subr.mxu0 0.0
        %8575 = vmatpush2.msra.mxu0 0.0
        %8576 = vmatprep.subr.mxu0 0.0
        %8577 = vmatpush2.msra.mxu0 0.0
        %8578 = vmatprep.subr.mxu0 0.0
        %8579 = vmatpush2.msra.mxu0 0.0
        %8580 = vmatprep.subr.mxu0 0.0
        %8581 = vmatpush2.msra.mxu0 0.0
        %8582 = vmatprep.subr.mxu0 0.0
        %8583 = vmatpush2.msra.mxu0 0.0
        %8584 = vmatprep.subr.mxu0 0.0
        %8585 = vmatpush2.msra.mxu0 0.0
        %8586 = vmatprep.subr.mxu0 0.0
        %8587 = vmatpush2.msra.mxu0 0.0
        %8588 = vmatprep.subr.mxu0 0.0
        %8589 = vmatpush2.msra.mxu0 0.0
        %8590 = vmatprep.subr.mxu0 0.0
        %8591 = vmatpush2.msra.mxu0 0.0
        %8592 = vmatprep.subr.mxu0 0.0
        %8593 = vmatpush2.msra.mxu0 0.0
        %8594 = vmatprep.subr.mxu0 0.0
        %8595 = vmatpush2.msra.mxu0 0.0
        %8596 = vmatprep.subr.mxu0 0.0
        %8597 = vmatpush2.msra.mxu0 0.0
        %8598 = vmatprep.subr.mxu0 0.0
        %8599 = vmatpush2.msra.mxu0 0.0
        %8600 = vmatprep.subr.mxu0 0.0
        %8601 = vmatpush2.msra.mxu0 0.0
        %8602 = vmatprep.subr.mxu0 0.0
        %8603 = vmatpush2.msra.mxu0 0.0
        %8604 = vmatprep.subr.mxu0 0.0
        %8605 = vmatpush2.msra.mxu0 0.0
        %8606 = vmatprep.mubr.f32.mxu0 0.0
        %8607 = vmatmul.mubr.f32.gmra.mxu0 %v8531
        %v8608 = vpop.f32.mrf.mxu0
        %v8609 = vadd.f32 %v8513, %v8608
        %v8610 = vpop.f32.mrf.mxu0
        %8611 = vmatprep.mubr.f32.mxu0 0.0
        %8612 = vmatmul.mubr.f32.gmra.mxu0 %v8534
        %v8613 = vpop.f32.mrf.mxu0
        %v8614 = vadd.f32 %v8518, %v8613
        %v8615 = vpop.f32.mrf.mxu0
        %8616 = vmatprep.mubr.f32.mxu0 0.0
        %8617 = vmatmul.mubr.f32.gmra.mxu0 %v8537
        %v8618 = vpop.f32.mrf.mxu0
        %v8619 = vadd.f32 %v8523, %v8618
        %v8620 = vpop.f32.mrf.mxu0
        %8621 = vmatprep.mubr.f32.mxu0 0.0
        %8622 = vmatmul.mubr.f32.gmra.mxu0 %v8540
        %v8623 = vpop.f32.mrf.mxu0
        %v8624 = vadd.f32 %v8528, %v8623
        %v8625 = vpop.f32.mrf.mxu0
        %8626 = vdwg.mxu0
        %v8627 = vadd.f32 %v8609, %v7650
        %v8628 = vadd.f32 %v8614, %v7651
        %v8629 = vadd.f32 %v8619, %v7652
        %v8630 = vadd.f32 %v8624, %v7653
        %v8631 = vmax.f32 %v8627, 0.0
        %v8632 = vmax.f32 %v8628, 0.0
        %v8633 = vmax.f32 %v8629, 0.0
        %v8634 = vmax.f32 %v8630, 0.0
        %8635 = vst.msk [vmem:[%s746] sm:$0xff] %vm2974, %v8631
        %8636 = vst.msk [vmem:[%s746 + $0x8] sm:$0xff] %vm2974, %v8632
        %8637 = vst.msk [vmem:[%s746 + $0x10] sm:$0xff] %vm2974, %v8633
        %8638 = vst.msk [vmem:[%s746 + $0x18] sm:$0xff] %vm2974, %v8634
        %p8639 = scmp.lt.s32.totalorder %s36, 1
        %s8640 = scalar_select %p8639, %s36, 1
        %s8641 = smul.addr %s8640, 4
        %s8642 = smul.addr %s8641, 8
        %s8643 = scalar_lea.vmem %s20, %s8642
        // Predicated region
        $region133: #{image_encoder_forward.1} parent=99 // pred_check
          %p8644 = pneg %p479
        $region134: #{image_encoder_forward.1} parent=99 // pred_check_branch
          %8646 = sbr.rel (%p8644) target = $region136
        $region135: #{image_encoder_forward.1} parent=99 // pred_region
          _
        $region136: #{image_encoder_forward.1} parent=99 // pred_fallthru
          _
      $region100: #{image_encoder_forward.1} parent=5 // pred_fallthru
        _
      %p8647 = scmp.le.s32.totalorder 2, %s31
      // Predicated region
      $region137: #{image_encoder_forward.1} parent=5 // pred_check
        %p8648 = pneg %p8647
      $region138: #{image_encoder_forward.1} parent=5 // pred_check_branch
        %8650 = sbr.rel (%p8648) target = $region140
      $region139: #{image_encoder_forward.1} parent=5 // pred_region
        %s8651 = ssub.s32 %s31, 2
        // Predicated region
        $region141: #{image_encoder_forward.1} parent=139 // pred_check
          %p8652 = pneg %p485
        $region142: #{image_encoder_forward.1} parent=139 // pred_check_branch
          %8654 = sbr.rel (%p8652) target = $region144
        $region143: #{image_encoder_forward.1} parent=139 // pred_region
          %p8655 = scmp.lt.s32.totalorder %s37, 1
          %s8656 = scalar_select %p8655, %s37, 1
          %s8657 = smul.addr %s8656, 4
          %s8658 = smul.addr %s8657, 8
          %s8659 = scalar_lea.vmem %s20, %s8658
        $region144: #{image_encoder_forward.1} parent=139 // pred_fallthru
          _
      $region140: #{image_encoder_forward.1} parent=5 // pred_fallthru
        _
    $region6: #{image_encoder_forward.1} parent=1 // loop_footer
      %s35 = sadd.s32 1, %s31
    $region7: #{image_encoder_forward.1} parent=1 // loop_footer_branch
      %30 = sbr.rel target = $region3
    $region8: #{image_encoder_forward.1} parent=1 // loop_exit
      _
    %8660 = vsyncpa [#allocation3], 1
    %s8661 = scalar_lea.sflag [#allocation3], 1
    %8662 = vsyncpa %s8661, 1
    %8663 = vsyncpa [#allocation5], 1
    %8664 = vsyncpa [#allocation8], 1
    %8665 = vsyncpa [#allocation11], 1
    %8666 = vsyncpa [#allocation14], 1

</llo_original>
